<compile_context>
chip_gen: v7x
topology: tpu7x:2x2x1
jax: 0.10.0
libtpu: 0.0.40
codegen_flags: <defaults>
</compile_context>

<pallas_src>
import functools
import math

import jax
import jax.numpy as jnp
from jax import lax
from jax.experimental import pallas as pl
from jax.experimental.pallas import tpu as pltpu


MAX_K = 7                 # largest conv kernel size among the 4 branches (1,3,5,7)
PAD = (MAX_K - 1) // 2    # global time padding that covers every branch
B_ALIGN = 8               # pad batch so row starts (l*Bp + b) are sublane aligned (f32)
# TODO(synk): use B_ALIGN=16 to also align bf16 packed sublanes when batch is large.


def _vmem_limit_bytes():
    # ~3/4 of physical VMEM, capped at 100 MiB (=> ~96 MiB on v5e/v6e, ~48 MiB on v7x).
    try:
        cap = int(pltpu.get_tpu_info().vmem_capacity_bytes)
    except Exception:
        cap = 128 * 1024 * 1024
    if cap <= 0:
        cap = 128 * 1024 * 1024
    return int(min(cap * 3 // 4, 100 * 1024 * 1024))


# ----------------------------------------------------------------------------
# Kernel 1: all 4 multi-scale branches of 3 x (Conv1d 'same', no bias + folded BN
# + ReLU) in one program, im2col-fused matmuls, lane-concatenated (L*Bp, 4H) output.
#   xpad_ref : ((L+2*PAD)*Bp, Cin) bf16  time-major rows, zero padded (time & batch)
#   w1_ref   : (MAX_K*Cin, 4H) bf16      layer-1 weights of ALL branches (zero rows
#                                        for taps outside each branch's support)
#   s1,b1    : (1, 4H) f32               folded BN scale/bias of layer 1
#   w2,w3    : (4, MAX_K*H, H) bf16      per-branch layer-2/3 weights
#   s2,b2,s3,b3 : (4, 1, H) f32
#   o_ref    : (L*Bp, 4H) bf16           lane-concatenated branch outputs
# ----------------------------------------------------------------------------
def conv_block_kernel(xpad_ref, w1_ref, s1_ref, b1_ref,
                      w2_ref, s2_ref, b2_ref, w3_ref, s3_ref, b3_ref,
                      o_ref, pad_scr, col1_scr, col_scr, y1_scr,
                      *, L, Bp, H, Cin):
    LB = L * Bp
    LPB = (L + 2 * PAD) * Bp

    # ---- layer 1: one im2col + one matmul for all 4 branches -----------------
    for k in range(MAX_K):                                     # static, aligned copies
        col1_scr[:, k * Cin:(k + 1) * Cin] = xpad_ref[pl.ds(k * Bp, LB), :]
    y1 = jnp.dot(col1_scr[...], w1_ref[...], preferred_element_type=jnp.float32)
    y1 = jnp.maximum(y1 * s1_ref[...] + b1_ref[...], 0.0)
    y1_scr[...] = y1.astype(y1_scr.dtype)                      # (LB, 4H) bf16

    # zero ONLY the time-halo rows of the inter-layer padded buffer (once)
    pad_scr[0:PAD * Bp, :] = jnp.zeros((PAD * Bp, H), pad_scr.dtype)
    pad_scr[PAD * Bp + LB:LPB, :] = jnp.zeros((PAD * Bp, H), pad_scr.dtype)

    # ---- layers 2 & 3, per branch (uniform MAX_K-tap cost => balanced) -------
    # TODO(synk): for v7x, split the branch loop across the two TensorCores
    # (core_map / a 'parallel' grid axis) and add an L-tile-with-halo grid axis
    # so the slabs need not be fully VMEM resident for long sequences.
    for br in range(4):
        pad_scr[PAD * Bp:PAD * Bp + LB, :] = y1_scr[:, br * H:(br + 1) * H]
        for layer_idx in range(2):
            for k in range(MAX_K):
                col_scr[:, k * H:(k + 1) * H] = pad_scr[pl.ds(k * Bp, LB), :]
            w_ref = w2_ref if layer_idx == 0 else w3_ref
            s_ref = s2_ref if layer_idx == 0 else s3_ref
            b_ref = b2_ref if layer_idx == 0 else b3_ref
            y = jnp.dot(col_scr[...], w_ref[br], preferred_element_type=jnp.float32)
            y = jnp.maximum(y * s_ref[br] + b_ref[br], 0.0)
            if layer_idx == 0:
                pad_scr[PAD * Bp:PAD * Bp + LB, :] = y.astype(pad_scr.dtype)
            else:
                o_ref[:, br * H:(br + 1) * H] = y.astype(o_ref.dtype)


def conv_block(xpad, cv, *, L, Bp, H, Cin, vmem_limit):
    LB = L * Bp
    LPB = (L + 2 * PAD) * Bp
    kernel = functools.partial(conv_block_kernel, L=L, Bp=Bp, H=H, Cin=Cin)
    vmem = pl.BlockSpec(memory_space=pltpu.MemorySpace.VMEM)
    return pl.pallas_call(
        kernel,
        out_shape=jax.ShapeDtypeStruct((LB, 4 * H), jnp.bfloat16),
        in_specs=[vmem] * 10,
        out_specs=vmem,
        scratch_shapes=[pltpu.VMEM((LPB, H), jnp.bfloat16),          # padded inter-layer act
                        pltpu.VMEM((LB, MAX_K * Cin), jnp.bfloat16),  # layer-1 im2col
                        pltpu.VMEM((LB, MAX_K * H), jnp.bfloat16),    # layer-2/3 im2col
                        pltpu.VMEM((LB, 4 * H), jnp.bfloat16)],       # layer-1 output
        compiler_params=pltpu.CompilerParams(vmem_limit_bytes=vmem_limit),
    )(xpad, cv["w1"], cv["s1"], cv["b1"], cv["w2"], cv["s2"], cv["b2"],
      cv["w3"], cv["s3"], cv["b3"])


# ----------------------------------------------------------------------------
# Kernel 2: fused bidirectional GRU layer (PyTorch gate order [r, z, n]), with an
# optional fused ReLU + final-Linear epilogue (used for the last layer only).
#   x_ref     : (L*Bp, Win) bf16      single lane-concatenated input piece
#   wih_f/b   : (Win, 3H) bf16        per-direction input-projection weights
#   gxb_f/b   : (1, 3H) f32           b_ih (+ b_hh folded for r/z gates)
#   whh_ref   : (2H, 6H) bf16         block-diagonal [Whh_f -> cols 0:3H ; Whh_b -> 3H:6H]
#   bhhn_ref  : (1, 6H) f32           recurrent n-gate bias only (scaled by r in the cell)
#   fcw/fcb   : (2H, O) bf16 / (1, O) f32   (only when with_fc)
# Output: (L*Bp, 2H) bf16 [fwd|bwd], or (L*Bp, O) f32 when with_fc.
# ----------------------------------------------------------------------------
def bigru_kernel(*args, with_fc, L, Bp, H):
    if with_fc:
        (x_ref, wihf_ref, wihb_ref, gxbf_ref, gxbb_ref, whh_ref, bhhn_ref,
         fcw_ref, fcb_ref, y_ref, o_ref, gxf_scr, gxb_scr, h_scr) = args
    else:
        (x_ref, wihf_ref, wihb_ref, gxbf_ref, gxbb_ref, whh_ref, bhhn_ref,
         o_ref, gxf_scr, gxb_scr, h_scr) = args
    H2 = 2 * H
    H3 = 3 * H

    # ---- hoisted input projection: one big matmul per direction --------------
    # TODO(synk): for long sequences, time-chunk gx / the output ('arbitrary' grid
    # axis with h carried in scratch) and store gx in bf16 for v7x's 64 MiB VMEM.
    x = x_ref[...]
    gxf_scr[...] = (jnp.dot(x, wihf_ref[...], preferred_element_type=jnp.float32)
                    + gxbf_ref[...])
    gxb_scr[...] = (jnp.dot(x, wihb_ref[...], preferred_element_type=jnp.float32)
                    + gxbb_ref[...])

    # ---- fused fwd+bwd recurrence: one (Bp,2H)x(2H,6H) matmul per time step ---
    # TODO(synk): on v7x split the two directions across the TensorCores instead.
    # TODO(synk): pin whh in the MXU across the loop (matmul_push_rhs/acc_lhs/pop).
    h_scr[...] = jnp.zeros_like(h_scr)
    whh = whh_ref[...]
    bhhn = bhhn_ref[...]

    def step(t, carry):
        rf = pl.multiple_of(t * Bp, Bp)               # forward reads time t
        rb = pl.multiple_of((L - 1 - t) * Bp, Bp)     # backward reads time L-1-t
        g_f = gxf_scr[pl.ds(rf, Bp), :]               # full-width row reads
        g_b = gxb_scr[pl.ds(rb, Bp), :]
        h = h_scr[...]                                # (Bp, 2H) = [h_f | h_b]
        # TODO(synk): h is rounded to bf16 each step; switch to f32 weights/state if
        # bit accuracy vs the f32 PyTorch GRU is required for very long sequences.
        gh = jnp.dot(h.astype(jnp.bfloat16), whh,
                     preferred_element_type=jnp.float32) + bhhn
        r_f = jax.nn.sigmoid(g_f[:, 0:H] + gh[:, 0:H])
        z_f = jax.nn.sigmoid(g_f[:, H:H2] + gh[:, H:H2])
        n_f = jnp.tanh(g_f[:, H2:H3] + r_f * gh[:, H2:H3])
        r_b = jax.nn.sigmoid(g_b[:, 0:H] + gh[:, H3:H3 + H])
        z_b = jax.nn.sigmoid(g_b[:, H:H2] + gh[:, H3 + H:H3 + H2])
        n_b = jnp.tanh(g_b[:, H2:H3] + r_b * gh[:, H3 + H2:H3 + H3])
        hf_new = (1.0 - z_f) * n_f + z_f * h[:, 0:H]
        hb_new = (1.0 - z_b) * n_b + z_b * h[:, H:H2]
        h_scr[:, 0:H] = hf_new                        # no per-step concatenate
        h_scr[:, H:H2] = hb_new
        o_ref[pl.ds(rf, Bp), pl.ds(0, H)] = hf_new.astype(o_ref.dtype)
        o_ref[pl.ds(rb, Bp), pl.ds(H, H)] = hb_new.astype(o_ref.dtype)
        return carry

    lax.fori_loop(0, L, step, 0)

    # ---- fused ReLU + final Linear epilogue (last layer only) -----------------
    if with_fc:
        y = jnp.maximum(o_ref[...], 0).astype(jnp.bfloat16)    # (LB, 2H)
        y_ref[...] = (jnp.dot(y, fcw_ref[...], preferred_element_type=jnp.float32)
                      + fcb_ref[...])


def bigru_layer(x, layer, *, L, Bp, H, vmem_limit, fc_w=None, fc_b=None):
    LB = L * Bp
    with_fc = fc_w is not None
    kernel = functools.partial(bigru_kernel, with_fc=with_fc, L=L, Bp=Bp, H=H)
    vmem = pl.BlockSpec(memory_space=pltpu.MemorySpace.VMEM)
    inputs = [x, layer["wih_f"], layer["wih_b"], layer["gxb_f"], layer["gxb_b"],
              layer["whh"], layer["bhhn"]]
    scratch = [pltpu.VMEM((LB, 3 * H), jnp.float32),   # gx fwd (hoisted projection)
               pltpu.VMEM((LB, 3 * H), jnp.float32),   # gx bwd
               pltpu.VMEM((Bp, 2 * H), jnp.float32)]   # h state [fwd | bwd]
    if with_fc:
        inputs += [fc_w, fc_b]
        out_shape = jax.ShapeDtypeStruct((LB, fc_w.shape[1]), jnp.float32)
        # GRU output stays in VMEM (scratch), never round-trips to HBM.
        scratch = [pltpu.VMEM((LB, 2 * H), jnp.bfloat16)] + scratch
    else:
        out_shape = jax.ShapeDtypeStruct((LB, 2 * H), jnp.bfloat16)
    return pl.pallas_call(
        kernel,
        out_shape=out_shape,
        in_specs=[vmem] * len(inputs),
        out_specs=vmem,
        scratch_shapes=scratch,
        compiler_params=pltpu.CompilerParams(vmem_limit_bytes=vmem_limit),
    )(*inputs)


# ----------------------------------------------------------------------------
# Deterministic synthetic parameters (fused layouts)
# ----------------------------------------------------------------------------
class KeyGen:
    def __init__(self, key):
        self._key = key

    def __call__(self):
        self._key, sub = jax.random.split(self._key)
        return sub


def make_conv_params(kg, cin, H):
    kernel_sizes = (1, 3, 5, 7)
    eps = 1e-5

    def bn_fold():
        gamma = 1.0 + 0.1 * jax.random.normal(kg(), (H,), jnp.float32)
        beta = 0.1 * jax.random.normal(kg(), (H,), jnp.float32)
        mean = 0.1 * jax.random.normal(kg(), (H,), jnp.float32)
        var = jnp.abs(jax.random.normal(kg(), (H,), jnp.float32)) + 0.5
        sc = gamma / jnp.sqrt(var + eps)
        return sc, beta - mean * sc

    w1 = jnp.zeros((MAX_K * cin, 4 * H), jnp.float32)
    s1 = jnp.zeros((1, 4 * H), jnp.float32)
    b1 = jnp.zeros((1, 4 * H), jnp.float32)
    w2 = jnp.zeros((4, MAX_K * H, H), jnp.float32)
    w3 = jnp.zeros((4, MAX_K * H, H), jnp.float32)
    s2 = jnp.zeros((4, 1, H), jnp.float32)
    b2 = jnp.zeros((4, 1, H), jnp.float32)
    s3 = jnp.zeros((4, 1, H), jnp.float32)
    b3 = jnp.zeros((4, 1, H), jnp.float32)

    for br, K in enumerate(kernel_sizes):
        k0 = PAD - br                       # first live tap inside the MAX_K window
        # layer 1 (all branches fused into one (MAX_K*cin, 4H) weight)
        wl = jax.random.normal(kg(), (K, cin, H), jnp.float32) / math.sqrt(cin * K)
        w1 = w1.at[k0 * cin:(k0 + K) * cin, br * H:(br + 1) * H].set(
            wl.reshape(K * cin, H))
        sc, bi = bn_fold()
        s1 = s1.at[0, br * H:(br + 1) * H].set(sc)
        b1 = b1.at[0, br * H:(br + 1) * H].set(bi)
        # layer 2
        wl = jax.random.normal(kg(), (K, H, H), jnp.float32) / math.sqrt(H * K)
        w2 = w2.at[br, k0 * H:(k0 + K) * H, :].set(wl.reshape(K * H, H))
        sc, bi = bn_fold()
        s2 = s2.at[br, 0].set(sc)
        b2 = b2.at[br, 0].set(bi)
        # layer 3
        wl = jax.random.normal(kg(), (K, H, H), jnp.float32) / math.sqrt(H * K)
        w3 = w3.at[br, k0 * H:(k0 + K) * H, :].set(wl.reshape(K * H, H))
        sc, bi = bn_fold()
        s3 = s3.at[br, 0].set(sc)
        b3 = b3.at[br, 0].set(bi)

    return {"w1": w1.astype(jnp.bfloat16), "s1": s1, "b1": b1,
            "w2": w2.astype(jnp.bfloat16), "s2": s2, "b2": b2,
            "w3": w3.astype(jnp.bfloat16), "s3": s3, "b3": b3}


def make_bigru_layer(kg, in_width, H):
    s = 1.0 / math.sqrt(H)
    u = lambda shape: jax.random.uniform(kg(), shape, jnp.float32, -s, s)
    wih_f = u((in_width, 3 * H))
    wih_b = u((in_width, 3 * H))
    whh_f = u((H, 3 * H))
    whh_b = u((H, 3 * H))
    bih_f, bhh_f = u((3 * H,)), u((3 * H,))
    bih_b, bhh_b = u((3 * H,)), u((3 * H,))
    # Gate order [r | z | n]; fold b_ih fully (+ b_hh for r/z) into the hoisted
    # projection bias; keep b_hn separate (it is scaled by r inside the cell).
    mask_rz = jnp.concatenate([jnp.ones(2 * H, jnp.float32), jnp.zeros(H, jnp.float32)])
    gxb_f = (bih_f + bhh_f * mask_rz).reshape(1, 3 * H)
    gxb_b = (bih_b + bhh_b * mask_rz).reshape(1, 3 * H)
    bhhn = jnp.concatenate([bhh_f * (1.0 - mask_rz),
                            bhh_b * (1.0 - mask_rz)]).reshape(1, 6 * H)
    whh = jnp.zeros((2 * H, 6 * H), jnp.float32)
    whh = whh.at[0:H, 0:3 * H].set(whh_f)
    whh = whh.at[H:2 * H, 3 * H:6 * H].set(whh_b)
    return {"wih_f": wih_f.astype(jnp.bfloat16), "wih_b": wih_b.astype(jnp.bfloat16),
            "gxb_f": gxb_f, "gxb_b": gxb_b,
            "whh": whh.astype(jnp.bfloat16), "bhhn": bhhn}


def init_grunet(key, input_size, hidden, output_size, num_layers):
    kg = KeyGen(key)
    conv = make_conv_params(kg, input_size, hidden)
    rnn1 = [make_bigru_layer(kg, 4 * hidden if l == 0 else 2 * hidden, hidden)
            for l in range(num_layers)]
    rnn2 = [make_bigru_layer(kg, 2 * hidden, hidden) for _ in range(num_layers)]
    s = 1.0 / math.sqrt(hidden * 2)
    fc_w = jax.random.uniform(kg(), (hidden * 2, output_size), jnp.float32, -s, s)
    fc_b = jax.random.uniform(kg(), (1, output_size), jnp.float32, -s, s)
    return {"conv": conv, "rnn1": rnn1, "rnn2": rnn2,
            "fc_w": fc_w.astype(jnp.bfloat16), "fc_b": fc_b, "hidden": hidden}


# ----------------------------------------------------------------------------
# Full forward pass (mirrors GRUNet.forward with bidirectional GRUs, inference)
# ----------------------------------------------------------------------------
def grunet_forward(x_ncl, params):
    B, Cin, L = x_ncl.shape
    H = params["hidden"]
    O = params["fc_w"].shape[1]
    Bp = -(-B // B_ALIGN) * B_ALIGN
    vmem_limit = _vmem_limit_bytes()

    # NCL -> time-major rows (l*Bp + b, Cin); pad batch to the sublane multiple and
    # pad time once by PAD on both sides (covers every branch's 'same' padding).
    x_lbc = jnp.transpose(x_ncl, (2, 0, 1))                      # (L, B, Cin)
    x_lbc = jnp.pad(x_lbc, ((PAD, PAD), (0, Bp - B), (0, 0)))    # (L+2PAD, Bp, Cin)
    xpad = x_lbc.reshape((L + 2 * PAD) * Bp, Cin).astype(jnp.bfloat16)

    feats = conv_block(xpad, params["conv"], L=L, Bp=Bp, H=H, Cin=Cin,
                       vmem_limit=vmem_limit)                    # (L*Bp, 4H) bf16

    layers = params["rnn1"] + params["rnn2"]
    h = feats
    for li, layer in enumerate(layers):
        # TODO(synk): inter-layer GRU dropout is train-mode only; no-op in inference.
        if li == len(layers) - 1:
            h = bigru_layer(h, layer, L=L, Bp=Bp, H=H, vmem_limit=vmem_limit,
                            fc_w=params["fc_w"], fc_b=params["fc_b"])  # (L*Bp, O) f32
        else:
            h = bigru_layer(h, layer, L=L, Bp=Bp, H=H, vmem_limit=vmem_limit)

    y = h.reshape(L, Bp, O)[:, :B, :]                            # drop batch padding
    return jnp.transpose(y, (1, 0, 2))                           # (B, L, O)


if __name__ == "__main__":
    B, C_IN, L = 2, 8, 16
    HIDDEN, OUT = 32, 4
    NUM_LAYERS = 1   # bidirectional=True is implied by rnn2/last_fc input widths (2*H)

    root = jax.random.PRNGKey(0)
    k_param, k_x = jax.random.split(root)
    params = init_grunet(k_param, C_IN, HIDDEN, OUT, NUM_LAYERS)

    x = jax.random.normal(k_x, (B, C_IN, L), jnp.float32)   # NCL, like nn.Conv1d input
    y = grunet_forward(x, params)
    y = jax.block_until_ready(y)
    assert y.shape == (B, L, OUT), y.shape
    assert bool(jnp.all(jnp.isfinite(y)))
    print("KERNEL_OK")
</pallas_src>

<mosaic_0001>
module attributes {stable_mosaic.version = 11 : i64} {
  func.func @conv_block_kernel(%arg0: memref<176x8xbf16, #tpu.memory_space<vmem>>, %arg1: memref<56x128xbf16, #tpu.memory_space<vmem>>, %arg2: memref<1x128xf32, #tpu.memory_space<vmem>>, %arg3: memref<1x128xf32, #tpu.memory_space<vmem>>, %arg4: memref<4x224x32xbf16, #tpu.memory_space<vmem>>, %arg5: memref<4x1x32xf32, #tpu.memory_space<vmem>>, %arg6: memref<4x1x32xf32, #tpu.memory_space<vmem>>, %arg7: memref<4x224x32xbf16, #tpu.memory_space<vmem>>, %arg8: memref<4x1x32xf32, #tpu.memory_space<vmem>>, %arg9: memref<4x1x32xf32, #tpu.memory_space<vmem>>, %arg10: memref<128x128xbf16, #tpu.memory_space<vmem>>, %arg11: memref<176x32xbf16, #tpu.memory_space<vmem>>, %arg12: memref<128x56xbf16, #tpu.memory_space<vmem>>, %arg13: memref<128x224xbf16, #tpu.memory_space<vmem>>, %arg14: memref<128x128xbf16, #tpu.memory_space<vmem>>) attributes {dimension_semantics = [], scalar_prefetch = 0 : i64, scratch_operands = 4 : i64, tpu.core_type = #tpu.core_type<tc>} {
    %c0 = arith.constant 0 : index
    %c0_0 = arith.constant 0 : index
    %0 = vector.load %arg0[%c0, %c0_0] : memref<176x8xbf16, #tpu.memory_space<vmem>>, vector<128x8xbf16>
    %c0_1 = arith.constant 0 : index
    %c0_2 = arith.constant 0 : index
    %1 = vector.load %arg12[%c0_1, %c0_2] : memref<128x56xbf16, #tpu.memory_space<vmem>>, vector<128x8xbf16>
    tpu.vector_store %arg12[%c0_1, %c0_2], %0 {strides = array<i32>} : memref<128x56xbf16, #tpu.memory_space<vmem>>, vector<128x8xbf16>,
    %c8 = arith.constant 8 : index
    %c0_3 = arith.constant 0 : index
    %2 = vector.load %arg0[%c8, %c0_3] : memref<176x8xbf16, #tpu.memory_space<vmem>>, vector<128x8xbf16>
    %c0_4 = arith.constant 0 : index
    %c8_5 = arith.constant 8 : index
    %3 = vector.load %arg12[%c0_4, %c8_5] : memref<128x56xbf16, #tpu.memory_space<vmem>>, vector<128x8xbf16>
    tpu.vector_store %arg12[%c0_4, %c8_5], %2 {strides = array<i32>} : memref<128x56xbf16, #tpu.memory_space<vmem>>, vector<128x8xbf16>,
    %c16 = arith.constant 16 : index
    %c0_6 = arith.constant 0 : index
    %4 = vector.load %arg0[%c16, %c0_6] : memref<176x8xbf16, #tpu.memory_space<vmem>>, vector<128x8xbf16>
    %c0_7 = arith.constant 0 : index
    %c16_8 = arith.constant 16 : index
    %5 = vector.load %arg12[%c0_7, %c16_8] : memref<128x56xbf16, #tpu.memory_space<vmem>>, vector<128x8xbf16>
    tpu.vector_store %arg12[%c0_7, %c16_8], %4 {strides = array<i32>} : memref<128x56xbf16, #tpu.memory_space<vmem>>, vector<128x8xbf16>,
    %c24 = arith.constant 24 : index
    %c0_9 = arith.constant 0 : index
    %6 = vector.load %arg0[%c24, %c0_9] : memref<176x8xbf16, #tpu.memory_space<vmem>>, vector<128x8xbf16>
    %c0_10 = arith.constant 0 : index
    %c24_11 = arith.constant 24 : index
    %7 = vector.load %arg12[%c0_10, %c24_11] : memref<128x56xbf16, #tpu.memory_space<vmem>>, vector<128x8xbf16>
    tpu.vector_store %arg12[%c0_10, %c24_11], %6 {strides = array<i32>} : memref<128x56xbf16, #tpu.memory_space<vmem>>, vector<128x8xbf16>,
    %c32 = arith.constant 32 : index
    %c0_12 = arith.constant 0 : index
    %8 = vector.load %arg0[%c32, %c0_12] : memref<176x8xbf16, #tpu.memory_space<vmem>>, vector<128x8xbf16>
    %c0_13 = arith.constant 0 : index
    %c32_14 = arith.constant 32 : index
    %9 = vector.load %arg12[%c0_13, %c32_14] : memref<128x56xbf16, #tpu.memory_space<vmem>>, vector<128x8xbf16>
    tpu.vector_store %arg12[%c0_13, %c32_14], %8 {strides = array<i32>} : memref<128x56xbf16, #tpu.memory_space<vmem>>, vector<128x8xbf16>,
    %c40 = arith.constant 40 : index
    %c0_15 = arith.constant 0 : index
    %10 = vector.load %arg0[%c40, %c0_15] : memref<176x8xbf16, #tpu.memory_space<vmem>>, vector<128x8xbf16>
    %c0_16 = arith.constant 0 : index
    %c40_17 = arith.constant 40 : index
    %11 = vector.load %arg12[%c0_16, %c40_17] : memref<128x56xbf16, #tpu.memory_space<vmem>>, vector<128x8xbf16>
    tpu.vector_store %arg12[%c0_16, %c40_17], %10 {strides = array<i32>} : memref<128x56xbf16, #tpu.memory_space<vmem>>, vector<128x8xbf16>,
    %c48 = arith.constant 48 : index
    %c0_18 = arith.constant 0 : index
    %12 = vector.load %arg0[%c48, %c0_18] : memref<176x8xbf16, #tpu.memory_space<vmem>>, vector<128x8xbf16>
    %c0_19 = arith.constant 0 : index
    %c48_20 = arith.constant 48 : index
    %13 = vector.load %arg12[%c0_19, %c48_20] : memref<128x56xbf16, #tpu.memory_space<vmem>>, vector<128x8xbf16>
    tpu.vector_store %arg12[%c0_19, %c48_20], %12 {strides = array<i32>} : memref<128x56xbf16, #tpu.memory_space<vmem>>, vector<128x8xbf16>,
    %c0_21 = arith.constant 0 : index
    %c0_22 = arith.constant 0 : index
    %14 = vector.load %arg12[%c0_21, %c0_22] : memref<128x56xbf16, #tpu.memory_space<vmem>>, vector<128x56xbf16>
    %c0_23 = arith.constant 0 : index
    %c0_24 = arith.constant 0 : index
    %15 = vector.load %arg1[%c0_23, %c0_24] : memref<56x128xbf16, #tpu.memory_space<vmem>>, vector<56x128xbf16>
    %cst = arith.constant dense<0.000000e+00> : vector<128x128xf32>
    %16 = tpu.matmul %14, %15, %cst {dimension_numbers = #tpu.dot_dimension_numbers<[1], [0], [0], [1], [0, 0, 1, 1], [], []>} : vector<128x56xbf16>, vector<56x128xbf16>, vector<128x128xf32> -> vector<128x128xf32>
    %c0_25 = arith.constant 0 : index
    %c0_26 = arith.constant 0 : index
    %17 = vector.load %arg2[%c0_25, %c0_26] : memref<1x128xf32, #tpu.memory_space<vmem>>, vector<1x128xf32>
    %18 = vector.broadcast %17 : vector<1x128xf32> to vector<128x128xf32>
    %19 = arith.mulf %16, %18 : vector<128x128xf32>
    %c0_27 = arith.constant 0 : index
    %c0_28 = arith.constant 0 : index
    %20 = vector.load %arg3[%c0_27, %c0_28] : memref<1x128xf32, #tpu.memory_space<vmem>>, vector<1x128xf32>
    %21 = vector.broadcast %20 : vector<1x128xf32> to vector<128x128xf32>
    %22 = arith.addf %19, %21 : vector<128x128xf32>
    %cst_29 = arith.constant 0.000000e+00 : f32
    %23 = vector.broadcast %cst_29 : f32 to vector<128x128xf32>
    %24 = arith.maximumf %22, %23 : vector<128x128xf32>
    %25 = arith.truncf %24 : vector<128x128xf32> to vector<128x128xbf16>
    %c0_30 = arith.constant 0 : index
    %c0_31 = arith.constant 0 : index
    %26 = vector.load %arg14[%c0_30, %c0_31] : memref<128x128xbf16, #tpu.memory_space<vmem>>, vector<128x128xbf16>
    tpu.vector_store %arg14[%c0_30, %c0_31], %25 {strides = array<i32>} : memref<128x128xbf16, #tpu.memory_space<vmem>>, vector<128x128xbf16>,
    %cst_32 = arith.constant 0.000000e+00 : bf16
    %27 = vector.broadcast %cst_32 : bf16 to vector<24x32xbf16>
    %c0_33 = arith.constant 0 : index
    %c0_34 = arith.constant 0 : index
    %28 = vector.load %arg11[%c0_33, %c0_34] : memref<176x32xbf16, #tpu.memory_space<vmem>>, vector<24x32xbf16>
    tpu.vector_store %arg11[%c0_33, %c0_34], %27 {strides = array<i32>} : memref<176x32xbf16, #tpu.memory_space<vmem>>, vector<24x32xbf16>,
    %cst_35 = arith.constant 0.000000e+00 : bf16
    %29 = vector.broadcast %cst_35 : bf16 to vector<24x32xbf16>
    %c152 = arith.constant 152 : index
    %c0_36 = arith.constant 0 : index
    %30 = vector.load %arg11[%c152, %c0_36] : memref<176x32xbf16, #tpu.memory_space<vmem>>, vector<24x32xbf16>
    tpu.vector_store %arg11[%c152, %c0_36], %29 {strides = array<i32>} : memref<176x32xbf16, #tpu.memory_space<vmem>>, vector<24x32xbf16>,
    %c0_37 = arith.constant 0 : index
    %c0_38 = arith.constant 0 : index
    %31 = vector.load %arg14[%c0_37, %c0_38] : memref<128x128xbf16, #tpu.memory_space<vmem>>, vector<128x32xbf16>
    %c24_39 = arith.constant 24 : index
    %c0_40 = arith.constant 0 : index
    %32 = vector.load %arg11[%c24_39, %c0_40] : memref<176x32xbf16, #tpu.memory_space<vmem>>, vector<128x32xbf16>
    tpu.vector_store %arg11[%c24_39, %c0_40], %31 {strides = array<i32>} : memref<176x32xbf16, #tpu.memory_space<vmem>>, vector<128x32xbf16>,
    %c0_41 = arith.constant 0 : index
    %c0_42 = arith.constant 0 : index
    %33 = vector.load %arg11[%c0_41, %c0_42] : memref<176x32xbf16, #tpu.memory_space<vmem>>, vector<128x32xbf16>
    %c0_43 = arith.constant 0 : index
    %c0_44 = arith.constant 0 : index
    %34 = vector.load %arg13[%c0_43, %c0_44] : memref<128x224xbf16, #tpu.memory_space<vmem>>, vector<128x32xbf16>
    tpu.vector_store %arg13[%c0_43, %c0_44], %33 {strides = array<i32>} : memref<128x224xbf16, #tpu.memory_space<vmem>>, vector<128x32xbf16>,
    %c8_45 = arith.constant 8 : index
    %c0_46 = arith.constant 0 : index
    %35 = vector.load %arg11[%c8_45, %c0_46] : memref<176x32xbf16, #tpu.memory_space<vmem>>, vector<128x32xbf16>
    %c0_47 = arith.constant 0 : index
    %c32_48 = arith.constant 32 : index
    %36 = vector.load %arg13[%c0_47, %c32_48] : memref<128x224xbf16, #tpu.memory_space<vmem>>, vector<128x32xbf16>
    tpu.vector_store %arg13[%c0_47, %c32_48], %35 {strides = array<i32>} : memref<128x224xbf16, #tpu.memory_space<vmem>>, vector<128x32xbf16>,
    %c16_49 = arith.constant 16 : index
    %c0_50 = arith.constant 0 : index
    %37 = vector.load %arg11[%c16_49, %c0_50] : memref<176x32xbf16, #tpu.memory_space<vmem>>, vector<128x32xbf16>
    %c0_51 = arith.constant 0 : index
    %c64 = arith.constant 64 : index
    %38 = vector.load %arg13[%c0_51, %c64] : memref<128x224xbf16, #tpu.memory_space<vmem>>, vector<128x32xbf16>
    tpu.vector_store %arg13[%c0_51, %c64], %37 {strides = array<i32>} : memref<128x224xbf16, #tpu.memory_space<vmem>>, vector<128x32xbf16>,
    %c24_52 = arith.constant 24 : index
    %c0_53 = arith.constant 0 : index
    %39 = vector.load %arg11[%c24_52, %c0_53] : memref<176x32xbf16, #tpu.memory_space<vmem>>, vector<128x32xbf16>
    %c0_54 = arith.constant 0 : index
    %c96 = arith.constant 96 : index
    %40 = vector.load %arg13[%c0_54, %c96] : memref<128x224xbf16, #tpu.memory_space<vmem>>, vector<128x32xbf16>
    tpu.vector_store %arg13[%c0_54, %c96], %39 {strides = array<i32>} : memref<128x224xbf16, #tpu.memory_space<vmem>>, vector<128x32xbf16>,
    %c32_55 = arith.constant 32 : index
    %c0_56 = arith.constant 0 : index
    %41 = vector.load %arg11[%c32_55, %c0_56] : memref<176x32xbf16, #tpu.memory_space<vmem>>, vector<128x32xbf16>
    %c0_57 = arith.constant 0 : index
    %c128 = arith.constant 128 : index
    %42 = vector.load %arg13[%c0_57, %c128] : memref<128x224xbf16, #tpu.memory_space<vmem>>, vector<128x32xbf16>
    tpu.vector_store %arg13[%c0_57, %c128], %41 {strides = array<i32>} : memref<128x224xbf16, #tpu.memory_space<vmem>>, vector<128x32xbf16>,
    %c40_58 = arith.constant 40 : index
    %c0_59 = arith.constant 0 : index
    %43 = vector.load %arg11[%c40_58, %c0_59] : memref<176x32xbf16, #tpu.memory_space<vmem>>, vector<128x32xbf16>
    %c0_60 = arith.constant 0 : index
    %c160 = arith.constant 160 : index
    %44 = vector.load %arg13[%c0_60, %c160] : memref<128x224xbf16, #tpu.memory_space<vmem>>, vector<128x32xbf16>
    tpu.vector_store %arg13[%c0_60, %c160], %43 {strides = array<i32>} : memref<128x224xbf16, #tpu.memory_space<vmem>>, vector<128x32xbf16>,
    %c48_61 = arith.constant 48 : index
    %c0_62 = arith.constant 0 : index
    %45 = vector.load %arg11[%c48_61, %c0_62] : memref<176x32xbf16, #tpu.memory_space<vmem>>, vector<128x32xbf16>
    %c0_63 = arith.constant 0 : index
    %c192 = arith.constant 192 : index
    %46 = vector.load %arg13[%c0_63, %c192] : memref<128x224xbf16, #tpu.memory_space<vmem>>, vector<128x32xbf16>
    tpu.vector_store %arg13[%c0_63, %c192], %45 {strides = array<i32>} : memref<128x224xbf16, #tpu.memory_space<vmem>>, vector<128x32xbf16>,
    %c0_64 = arith.constant 0 : index
    %c0_65 = arith.constant 0 : index
    %47 = vector.load %arg13[%c0_64, %c0_65] : memref<128x224xbf16, #tpu.memory_space<vmem>>, vector<128x224xbf16>
    %c0_66 = arith.constant 0 : index
    %c0_67 = arith.constant 0 : index
    %c0_68 = arith.constant 0 : index
    %48 = vector.load %arg4[%c0_66, %c0_67, %c0_68] : memref<4x224x32xbf16, #tpu.memory_space<vmem>>, vector<1x224x32xbf16>
    %49 = vector.shape_cast %48 : vector<1x224x32xbf16> to vector<224x32xbf16>
    %cst_69 = arith.constant dense<0.000000e+00> : vector<128x32xf32>
    %50 = tpu.matmul %47, %49, %cst_69 {dimension_numbers = #tpu.dot_dimension_numbers<[1], [0], [0], [1], [0, 0, 1, 1], [], []>} : vector<128x224xbf16>, vector<224x32xbf16>, vector<128x32xf32> -> vector<128x32xf32>
    %c0_70 = arith.constant 0 : index
    %c0_71 = arith.constant 0 : index
    %c0_72 = arith.constant 0 : index
    %51 = vector.load %arg5[%c0_70, %c0_71, %c0_72] : memref<4x1x32xf32, #tpu.memory_space<vmem>>, vector<1x1x32xf32>
    %52 = vector.shape_cast %51 : vector<1x1x32xf32> to vector<1x32xf32>
    %53 = vector.broadcast %52 : vector<1x32xf32> to vector<128x32xf32>
    %54 = arith.mulf %50, %53 : vector<128x32xf32>
    %c0_73 = arith.constant 0 : index
    %c0_74 = arith.constant 0 : index
    %c0_75 = arith.constant 0 : index
    %55 = vector.load %arg6[%c0_73, %c0_74, %c0_75] : memref<4x1x32xf32, #tpu.memory_space<vmem>>, vector<1x1x32xf32>
    %56 = vector.shape_cast %55 : vector<1x1x32xf32> to vector<1x32xf32>
    %57 = vector.broadcast %56 : vector<1x32xf32> to vector<128x32xf32>
    %58 = arith.addf %54, %57 : vector<128x32xf32>
    %cst_76 = arith.constant 0.000000e+00 : f32
    %59 = vector.broadcast %cst_76 : f32 to vector<128x32xf32>
    %60 = arith.maximumf %58, %59 : vector<128x32xf32>
    %61 = arith.truncf %60 : vector<128x32xf32> to vector<128x32xbf16>
    %c24_77 = arith.constant 24 : index
    %c0_78 = arith.constant 0 : index
    %62 = vector.load %arg11[%c24_77, %c0_78] : memref<176x32xbf16, #tpu.memory_space<vmem>>, vector<128x32xbf16>
    tpu.vector_store %arg11[%c24_77, %c0_78], %61 {strides = array<i32>} : memref<176x32xbf16, #tpu.memory_space<vmem>>, vector<128x32xbf16>,
    %c0_79 = arith.constant 0 : index
    %c0_80 = arith.constant 0 : index
    %63 = vector.load %arg11[%c0_79, %c0_80] : memref<176x32xbf16, #tpu.memory_space<vmem>>, vector<128x32xbf16>
    %c0_81 = arith.constant 0 : index
    %c0_82 = arith.constant 0 : index
    %64 = vector.load %arg13[%c0_81, %c0_82] : memref<128x224xbf16, #tpu.memory_space<vmem>>, vector<128x32xbf16>
    tpu.vector_store %arg13[%c0_81, %c0_82], %63 {strides = array<i32>} : memref<128x224xbf16, #tpu.memory_space<vmem>>, vector<128x32xbf16>,
    %c8_83 = arith.constant 8 : index
    %c0_84 = arith.constant 0 : index
    %65 = vector.load %arg11[%c8_83, %c0_84] : memref<176x32xbf16, #tpu.memory_space<vmem>>, vector<128x32xbf16>
    %c0_85 = arith.constant 0 : index
    %c32_86 = arith.constant 32 : index
    %66 = vector.load %arg13[%c0_85, %c32_86] : memref<128x224xbf16, #tpu.memory_space<vmem>>, vector<128x32xbf16>
    tpu.vector_store %arg13[%c0_85, %c32_86], %65 {strides = array<i32>} : memref<128x224xbf16, #tpu.memory_space<vmem>>, vector<128x32xbf16>,
    %c16_87 = arith.constant 16 : index
    %c0_88 = arith.constant 0 : index
    %67 = vector.load %arg11[%c16_87, %c0_88] : memref<176x32xbf16, #tpu.memory_space<vmem>>, vector<128x32xbf16>
    %c0_89 = arith.constant 0 : index
    %c64_90 = arith.constant 64 : index
    %68 = vector.load %arg13[%c0_89, %c64_90] : memref<128x224xbf16, #tpu.memory_space<vmem>>, vector<128x32xbf16>
    tpu.vector_store %arg13[%c0_89, %c64_90], %67 {strides = array<i32>} : memref<128x224xbf16, #tpu.memory_space<vmem>>, vector<128x32xbf16>,
    %c24_91 = arith.constant 24 : index
    %c0_92 = arith.constant 0 : index
    %69 = vector.load %arg11[%c24_91, %c0_92] : memref<176x32xbf16, #tpu.memory_space<vmem>>, vector<128x32xbf16>
    %c0_93 = arith.constant 0 : index
    %c96_94 = arith.constant 96 : index
    %70 = vector.load %arg13[%c0_93, %c96_94] : memref<128x224xbf16, #tpu.memory_space<vmem>>, vector<128x32xbf16>
    tpu.vector_store %arg13[%c0_93, %c96_94], %69 {strides = array<i32>} : memref<128x224xbf16, #tpu.memory_space<vmem>>, vector<128x32xbf16>,
    %c32_95 = arith.constant 32 : index
    %c0_96 = arith.constant 0 : index
    %71 = vector.load %arg11[%c32_95, %c0_96] : memref<176x32xbf16, #tpu.memory_space<vmem>>, vector<128x32xbf16>
    %c0_97 = arith.constant 0 : index
    %c128_98 = arith.constant 128 : index
    %72 = vector.load %arg13[%c0_97, %c128_98] : memref<128x224xbf16, #tpu.memory_space<vmem>>, vector<128x32xbf16>
    tpu.vector_store %arg13[%c0_97, %c128_98], %71 {strides = array<i32>} : memref<128x224xbf16, #tpu.memory_space<vmem>>, vector<128x32xbf16>,
    %c40_99 = arith.constant 40 : index
    %c0_100 = arith.constant 0 : index
    %73 = vector.load %arg11[%c40_99, %c0_100] : memref<176x32xbf16, #tpu.memory_space<vmem>>, vector<128x32xbf16>
    %c0_101 = arith.constant 0 : index
    %c160_102 = arith.constant 160 : index
    %74 = vector.load %arg13[%c0_101, %c160_102] : memref<128x224xbf16, #tpu.memory_space<vmem>>, vector<128x32xbf16>
    tpu.vector_store %arg13[%c0_101, %c160_102], %73 {strides = array<i32>} : memref<128x224xbf16, #tpu.memory_space<vmem>>, vector<128x32xbf16>,
    %c48_103 = arith.constant 48 : index
    %c0_104 = arith.constant 0 : index
    %75 = vector.load %arg11[%c48_103, %c0_104] : memref<176x32xbf16, #tpu.memory_space<vmem>>, vector<128x32xbf16>
    %c0_105 = arith.constant 0 : index
    %c192_106 = arith.constant 192 : index
    %76 = vector.load %arg13[%c0_105, %c192_106] : memref<128x224xbf16, #tpu.memory_space<vmem>>, vector<128x32xbf16>
    tpu.vector_store %arg13[%c0_105, %c192_106], %75 {strides = array<i32>} : memref<128x224xbf16, #tpu.memory_space<vmem>>, vector<128x32xbf16>,
    %c0_107 = arith.constant 0 : index
    %c0_108 = arith.constant 0 : index
    %77 = vector.load %arg13[%c0_107, %c0_108] : memref<128x224xbf16, #tpu.memory_space<vmem>>, vector<128x224xbf16>
    %c0_109 = arith.constant 0 : index
    %c0_110 = arith.constant 0 : index
    %c0_111 = arith.constant 0 : index
    %78 = vector.load %arg7[%c0_109, %c0_110, %c0_111] : memref<4x224x32xbf16, #tpu.memory_space<vmem>>, vector<1x224x32xbf16>
    %79 = vector.shape_cast %78 : vector<1x224x32xbf16> to vector<224x32xbf16>
    %cst_112 = arith.constant dense<0.000000e+00> : vector<128x32xf32>
    %80 = tpu.matmul %77, %79, %cst_112 {dimension_numbers = #tpu.dot_dimension_numbers<[1], [0], [0], [1], [0, 0, 1, 1], [], []>} : vector<128x224xbf16>, vector<224x32xbf16>, vector<128x32xf32> -> vector<128x32xf32>
    %c0_113 = arith.constant 0 : index
    %c0_114 = arith.constant 0 : index
    %c0_115 = arith.constant 0 : index
    %81 = vector.load %arg8[%c0_113, %c0_114, %c0_115] : memref<4x1x32xf32, #tpu.memory_space<vmem>>, vector<1x1x32xf32>
    %82 = vector.shape_cast %81 : vector<1x1x32xf32> to vector<1x32xf32>
    %83 = vector.broadcast %82 : vector<1x32xf32> to vector<128x32xf32>
    %84 = arith.mulf %80, %83 : vector<128x32xf32>
    %c0_116 = arith.constant 0 : index
    %c0_117 = arith.constant 0 : index
    %c0_118 = arith.constant 0 : index
    %85 = vector.load %arg9[%c0_116, %c0_117, %c0_118] : memref<4x1x32xf32, #tpu.memory_space<vmem>>, vector<1x1x32xf32>
    %86 = vector.shape_cast %85 : vector<1x1x32xf32> to vector<1x32xf32>
    %87 = vector.broadcast %86 : vector<1x32xf32> to vector<128x32xf32>
    %88 = arith.addf %84, %87 : vector<128x32xf32>
    %cst_119 = arith.constant 0.000000e+00 : f32
    %89 = vector.broadcast %cst_119 : f32 to vector<128x32xf32>
    %90 = arith.maximumf %88, %89 : vector<128x32xf32>
    %91 = arith.truncf %90 : vector<128x32xf32> to vector<128x32xbf16>
    %c0_120 = arith.constant 0 : index
    %c0_121 = arith.constant 0 : index
    %92 = vector.load %arg10[%c0_120, %c0_121] : memref<128x128xbf16, #tpu.memory_space<vmem>>, vector<128x32xbf16>
    tpu.vector_store %arg10[%c0_120, %c0_121], %91 {strides = array<i32>} : memref<128x128xbf16, #tpu.memory_space<vmem>>, vector<128x32xbf16>,
    %c0_122 = arith.constant 0 : index
    %c32_123 = arith.constant 32 : index
    %93 = vector.load %arg14[%c0_122, %c32_123] : memref<128x128xbf16, #tpu.memory_space<vmem>>, vector<128x32xbf16>
    %c24_124 = arith.constant 24 : index
    %c0_125 = arith.constant 0 : index
    %94 = vector.load %arg11[%c24_124, %c0_125] : memref<176x32xbf16, #tpu.memory_space<vmem>>, vector<128x32xbf16>
    tpu.vector_store %arg11[%c24_124, %c0_125], %93 {strides = array<i32>} : memref<176x32xbf16, #tpu.memory_space<vmem>>, vector<128x32xbf16>,
    %c0_126 = arith.constant 0 : index
    %c0_127 = arith.constant 0 : index
    %95 = vector.load %arg11[%c0_126, %c0_127] : memref<176x32xbf16, #tpu.memory_space<vmem>>, vector<128x32xbf16>
    %c0_128 = arith.constant 0 : index
    %c0_129 = arith.constant 0 : index
    %96 = vector.load %arg13[%c0_128, %c0_129] : memref<128x224xbf16, #tpu.memory_space<vmem>>, vector<128x32xbf16>
    tpu.vector_store %arg13[%c0_128, %c0_129], %95 {strides = array<i32>} : memref<128x224xbf16, #tpu.memory_space<vmem>>, vector<128x32xbf16>,
    %c8_130 = arith.constant 8 : index
    %c0_131 = arith.constant 0 : index
    %97 = vector.load %arg11[%c8_130, %c0_131] : memref<176x32xbf16, #tpu.memory_space<vmem>>, vector<128x32xbf16>
    %c0_132 = arith.constant 0 : index
    %c32_133 = arith.constant 32 : index
    %98 = vector.load %arg13[%c0_132, %c32_133] : memref<128x224xbf16, #tpu.memory_space<vmem>>, vector<128x32xbf16>
    tpu.vector_store %arg13[%c0_132, %c32_133], %97 {strides = array<i32>} : memref<128x224xbf16, #tpu.memory_space<vmem>>, vector<128x32xbf16>,
    %c16_134 = arith.constant 16 : index
    %c0_135 = arith.constant 0 : index
    %99 = vector.load %arg11[%c16_134, %c0_135] : memref<176x32xbf16, #tpu.memory_space<vmem>>, vector<128x32xbf16>
    %c0_136 = arith.constant 0 : index
    %c64_137 = arith.constant 64 : index
    %100 = vector.load %arg13[%c0_136, %c64_137] : memref<128x224xbf16, #tpu.memory_space<vmem>>, vector<128x32xbf16>
    tpu.vector_store %arg13[%c0_136, %c64_137], %99 {strides = array<i32>} : memref<128x224xbf16, #tpu.memory_space<vmem>>, vector<128x32xbf16>,
    %c24_138 = arith.constant 24 : index
    %c0_139 = arith.constant 0 : index
    %101 = vector.load %arg11[%c24_138, %c0_139] : memref<176x32xbf16, #tpu.memory_space<vmem>>, vector<128x32xbf16>
    %c0_140 = arith.constant 0 : index
    %c96_141 = arith.constant 96 : index
    %102 = vector.load %arg13[%c0_140, %c96_141] : memref<128x224xbf16, #tpu.memory_space<vmem>>, vector<128x32xbf16>
    tpu.vector_store %arg13[%c0_140, %c96_141], %101 {strides = array<i32>} : memref<128x224xbf16, #tpu.memory_space<vmem>>, vector<128x32xbf16>,
    %c32_142 = arith.constant 32 : index
    %c0_143 = arith.constant 0 : index
    %103 = vector.load %arg11[%c32_142, %c0_143] : memref<176x32xbf16, #tpu.memory_space<vmem>>, vector<128x32xbf16>
    %c0_144 = arith.constant 0 : index
    %c128_145 = arith.constant 128 : index
    %104 = vector.load %arg13[%c0_144, %c128_145] : memref<128x224xbf16, #tpu.memory_space<vmem>>, vector<128x32xbf16>
    tpu.vector_store %arg13[%c0_144, %c128_145], %103 {strides = array<i32>} : memref<128x224xbf16, #tpu.memory_space<vmem>>, vector<128x32xbf16>,
    %c40_146 = arith.constant 40 : index
    %c0_147 = arith.constant 0 : index
    %105 = vector.load %arg11[%c40_146, %c0_147] : memref<176x32xbf16, #tpu.memory_space<vmem>>, vector<128x32xbf16>
    %c0_148 = arith.constant 0 : index
    %c160_149 = arith.constant 160 : index
    %106 = vector.load %arg13[%c0_148, %c160_149] : memref<128x224xbf16, #tpu.memory_space<vmem>>, vector<128x32xbf16>
    tpu.vector_store %arg13[%c0_148, %c160_149], %105 {strides = array<i32>} : memref<128x224xbf16, #tpu.memory_space<vmem>>, vector<128x32xbf16>,
    %c48_150 = arith.constant 48 : index
    %c0_151 = arith.constant 0 : index
    %107 = vector.load %arg11[%c48_150, %c0_151] : memref<176x32xbf16, #tpu.memory_space<vmem>>, vector<128x32xbf16>
    %c0_152 = arith.constant 0 : index
    %c192_153 = arith.constant 192 : index
    %108 = vector.load %arg13[%c0_152, %c192_153] : memref<128x224xbf16, #tpu.memory_space<vmem>>, vector<128x32xbf16>
    tpu.vector_store %arg13[%c0_152, %c192_153], %107 {strides = array<i32>} : memref<128x224xbf16, #tpu.memory_space<vmem>>, vector<128x32xbf16>,
    %c0_154 = arith.constant 0 : index
    %c0_155 = arith.constant 0 : index
    %109 = vector.load %arg13[%c0_154, %c0_155] : memref<128x224xbf16, #tpu.memory_space<vmem>>, vector<128x224xbf16>
    %c1 = arith.constant 1 : index
    %c0_156 = arith.constant 0 : index
    %c0_157 = arith.constant 0 : index
    %110 = vector.load %arg4[%c1, %c0_156, %c0_157] : memref<4x224x32xbf16, #tpu.memory_space<vmem>>, vector<1x224x32xbf16>
    %111 = vector.shape_cast %110 : vector<1x224x32xbf16> to vector<224x32xbf16>
    %cst_158 = arith.constant dense<0.000000e+00> : vector<128x32xf32>
    %112 = tpu.matmul %109, %111, %cst_158 {dimension_numbers = #tpu.dot_dimension_numbers<[1], [0], [0], [1], [0, 0, 1, 1], [], []>} : vector<128x224xbf16>, vector<224x32xbf16>, vector<128x32xf32> -> vector<128x32xf32>
    %c1_159 = arith.constant 1 : index
    %c0_160 = arith.constant 0 : index
    %c0_161 = arith.constant 0 : index
    %113 = vector.load %arg5[%c1_159, %c0_160, %c0_161] : memref<4x1x32xf32, #tpu.memory_space<vmem>>, vector<1x1x32xf32>
    %114 = vector.shape_cast %113 : vector<1x1x32xf32> to vector<1x32xf32>
    %115 = vector.broadcast %114 : vector<1x32xf32> to vector<128x32xf32>
    %116 = arith.mulf %112, %115 : vector<128x32xf32>
    %c1_162 = arith.constant 1 : index
    %c0_163 = arith.constant 0 : index
    %c0_164 = arith.constant 0 : index
    %117 = vector.load %arg6[%c1_162, %c0_163, %c0_164] : memref<4x1x32xf32, #tpu.memory_space<vmem>>, vector<1x1x32xf32>
    %118 = vector.shape_cast %117 : vector<1x1x32xf32> to vector<1x32xf32>
    %119 = vector.broadcast %118 : vector<1x32xf32> to vector<128x32xf32>
    %120 = arith.addf %116, %119 : vector<128x32xf32>
    %cst_165 = arith.constant 0.000000e+00 : f32
    %121 = vector.broadcast %cst_165 : f32 to vector<128x32xf32>
    %122 = arith.maximumf %120, %121 : vector<128x32xf32>
    %123 = arith.truncf %122 : vector<128x32xf32> to vector<128x32xbf16>
    %c24_166 = arith.constant 24 : index
    %c0_167 = arith.constant 0 : index
    %124 = vector.load %arg11[%c24_166, %c0_167] : memref<176x32xbf16, #tpu.memory_space<vmem>>, vector<128x32xbf16>
    tpu.vector_store %arg11[%c24_166, %c0_167], %123 {strides = array<i32>} : memref<176x32xbf16, #tpu.memory_space<vmem>>, vector<128x32xbf16>,
    %c0_168 = arith.constant 0 : index
    %c0_169 = arith.constant 0 : index
    %125 = vector.load %arg11[%c0_168, %c0_169] : memref<176x32xbf16, #tpu.memory_space<vmem>>, vector<128x32xbf16>
    %c0_170 = arith.constant 0 : index
    %c0_171 = arith.constant 0 : index
    %126 = vector.load %arg13[%c0_170, %c0_171] : memref<128x224xbf16, #tpu.memory_space<vmem>>, vector<128x32xbf16>
    tpu.vector_store %arg13[%c0_170, %c0_171], %125 {strides = array<i32>} : memref<128x224xbf16, #tpu.memory_space<vmem>>, vector<128x32xbf16>,
    %c8_172 = arith.constant 8 : index
    %c0_173 = arith.constant 0 : index
    %127 = vector.load %arg11[%c8_172, %c0_173] : memref<176x32xbf16, #tpu.memory_space<vmem>>, vector<128x32xbf16>
    %c0_174 = arith.constant 0 : index
    %c32_175 = arith.constant 32 : index
    %128 = vector.load %arg13[%c0_174, %c32_175] : memref<128x224xbf16, #tpu.memory_space<vmem>>, vector<128x32xbf16>
    tpu.vector_store %arg13[%c0_174, %c32_175], %127 {strides = array<i32>} : memref<128x224xbf16, #tpu.memory_space<vmem>>, vector<128x32xbf16>,
    %c16_176 = arith.constant 16 : index
    %c0_177 = arith.constant 0 : index
    %129 = vector.load %arg11[%c16_176, %c0_177] : memref<176x32xbf16, #tpu.memory_space<vmem>>, vector<128x32xbf16>
    %c0_178 = arith.constant 0 : index
    %c64_179 = arith.constant 64 : index
    %130 = vector.load %arg13[%c0_178, %c64_179] : memref<128x224xbf16, #tpu.memory_space<vmem>>, vector<128x32xbf16>
    tpu.vector_store %arg13[%c0_178, %c64_179], %129 {strides = array<i32>} : memref<128x224xbf16, #tpu.memory_space<vmem>>, vector<128x32xbf16>,
    %c24_180 = arith.constant 24 : index
    %c0_181 = arith.constant 0 : index
    %131 = vector.load %arg11[%c24_180, %c0_181] : memref<176x32xbf16, #tpu.memory_space<vmem>>, vector<128x32xbf16>
    %c0_182 = arith.constant 0 : index
    %c96_183 = arith.constant 96 : index
    %132 = vector.load %arg13[%c0_182, %c96_183] : memref<128x224xbf16, #tpu.memory_space<vmem>>, vector<128x32xbf16>
    tpu.vector_store %arg13[%c0_182, %c96_183], %131 {strides = array<i32>} : memref<128x224xbf16, #tpu.memory_space<vmem>>, vector<128x32xbf16>,
    %c32_184 = arith.constant 32 : index
    %c0_185 = arith.constant 0 : index
    %133 = vector.load %arg11[%c32_184, %c0_185] : memref<176x32xbf16, #tpu.memory_space<vmem>>, vector<128x32xbf16>
    %c0_186 = arith.constant 0 : index
    %c128_187 = arith.constant 128 : index
    %134 = vector.load %arg13[%c0_186, %c128_187] : memref<128x224xbf16, #tpu.memory_space<vmem>>, vector<128x32xbf16>
    tpu.vector_store %arg13[%c0_186, %c128_187], %133 {strides = array<i32>} : memref<128x224xbf16, #tpu.memory_space<vmem>>, vector<128x32xbf16>,
    %c40_188 = arith.constant 40 : index
    %c0_189 = arith.constant 0 : index
    %135 = vector.load %arg11[%c40_188, %c0_189] : memref<176x32xbf16, #tpu.memory_space<vmem>>, vector<128x32xbf16>
    %c0_190 = arith.constant 0 : index
    %c160_191 = arith.constant 160 : index
    %136 = vector.load %arg13[%c0_190, %c160_191] : memref<128x224xbf16, #tpu.memory_space<vmem>>, vector<128x32xbf16>
    tpu.vector_store %arg13[%c0_190, %c160_191], %135 {strides = array<i32>} : memref<128x224xbf16, #tpu.memory_space<vmem>>, vector<128x32xbf16>,
    %c48_192 = arith.constant 48 : index
    %c0_193 = arith.constant 0 : index
    %137 = vector.load %arg11[%c48_192, %c0_193] : memref<176x32xbf16, #tpu.memory_space<vmem>>, vector<128x32xbf16>
    %c0_194 = arith.constant 0 : index
    %c192_195 = arith.constant 192 : index
    %138 = vector.load %arg13[%c0_194, %c192_195] : memref<128x224xbf16, #tpu.memory_space<vmem>>, vector<128x32xbf16>
    tpu.vector_store %arg13[%c0_194, %c192_195], %137 {strides = array<i32>} : memref<128x224xbf16, #tpu.memory_space<vmem>>, vector<128x32xbf16>,
    %c0_196 = arith.constant 0 : index
    %c0_197 = arith.constant 0 : index
    %139 = vector.load %arg13[%c0_196, %c0_197] : memref<128x224xbf16, #tpu.memory_space<vmem>>, vector<128x224xbf16>
    %c1_198 = arith.constant 1 : index
    %c0_199 = arith.constant 0 : index
    %c0_200 = arith.constant 0 : index
    %140 = vector.load %arg7[%c1_198, %c0_199, %c0_200] : memref<4x224x32xbf16, #tpu.memory_space<vmem>>, vector<1x224x32xbf16>
    %141 = vector.shape_cast %140 : vector<1x224x32xbf16> to vector<224x32xbf16>
    %cst_201 = arith.constant dense<0.000000e+00> : vector<128x32xf32>
    %142 = tpu.matmul %139, %141, %cst_201 {dimension_numbers = #tpu.dot_dimension_numbers<[1], [0], [0], [1], [0, 0, 1, 1], [], []>} : vector<128x224xbf16>, vector<224x32xbf16>, vector<128x32xf32> -> vector<128x32xf32>
    %c1_202 = arith.constant 1 : index
    %c0_203 = arith.constant 0 : index
    %c0_204 = arith.constant 0 : index
    %143 = vector.load %arg8[%c1_202, %c0_203, %c0_204] : memref<4x1x32xf32, #tpu.memory_space<vmem>>, vector<1x1x32xf32>
    %144 = vector.shape_cast %143 : vector<1x1x32xf32> to vector<1x32xf32>
    %145 = vector.broadcast %144 : vector<1x32xf32> to vector<128x32xf32>
    %146 = arith.mulf %142, %145 : vector<128x32xf32>
    %c1_205 = arith.constant 1 : index
    %c0_206 = arith.constant 0 : index
    %c0_207 = arith.constant 0 : index
    %147 = vector.load %arg9[%c1_205, %c0_206, %c0_207] : memref<4x1x32xf32, #tpu.memory_space<vmem>>, vector<1x1x32xf32>
    %148 = vector.shape_cast %147 : vector<1x1x32xf32> to vector<1x32xf32>
    %149 = vector.broadcast %148 : vector<1x32xf32> to vector<128x32xf32>
    %150 = arith.addf %146, %149 : vector<128x32xf32>
    %cst_208 = arith.constant 0.000000e+00 : f32
    %151 = vector.broadcast %cst_208 : f32 to vector<128x32xf32>
    %152 = arith.maximumf %150, %151 : vector<128x32xf32>
    %153 = arith.truncf %152 : vector<128x32xf32> to vector<128x32xbf16>
    %c0_209 = arith.constant 0 : index
    %c32_210 = arith.constant 32 : index
    %154 = vector.load %arg10[%c0_209, %c32_210] : memref<128x128xbf16, #tpu.memory_space<vmem>>, vector<128x32xbf16>
    tpu.vector_store %arg10[%c0_209, %c32_210], %153 {strides = array<i32>} : memref<128x128xbf16, #tpu.memory_space<vmem>>, vector<128x32xbf16>,
    %c0_211 = arith.constant 0 : index
    %c64_212 = arith.constant 64 : index
    %155 = vector.load %arg14[%c0_211, %c64_212] : memref<128x128xbf16, #tpu.memory_space<vmem>>, vector<128x32xbf16>
    %c24_213 = arith.constant 24 : index
    %c0_214 = arith.constant 0 : index
    %156 = vector.load %arg11[%c24_213, %c0_214] : memref<176x32xbf16, #tpu.memory_space<vmem>>, vector<128x32xbf16>
    tpu.vector_store %arg11[%c24_213, %c0_214], %155 {strides = array<i32>} : memref<176x32xbf16, #tpu.memory_space<vmem>>, vector<128x32xbf16>,
    %c0_215 = arith.constant 0 : index
    %c0_216 = arith.constant 0 : index
    %157 = vector.load %arg11[%c0_215, %c0_216] : memref<176x32xbf16, #tpu.memory_space<vmem>>, vector<128x32xbf16>
    %c0_217 = arith.constant 0 : index
    %c0_218 = arith.constant 0 : index
    %158 = vector.load %arg13[%c0_217, %c0_218] : memref<128x224xbf16, #tpu.memory_space<vmem>>, vector<128x32xbf16>
    tpu.vector_store %arg13[%c0_217, %c0_218], %157 {strides = array<i32>} : memref<128x224xbf16, #tpu.memory_space<vmem>>, vector<128x32xbf16>,
    %c8_219 = arith.constant 8 : index
    %c0_220 = arith.constant 0 : index
    %159 = vector.load %arg11[%c8_219, %c0_220] : memref<176x32xbf16, #tpu.memory_space<vmem>>, vector<128x32xbf16>
    %c0_221 = arith.constant 0 : index
    %c32_222 = arith.constant 32 : index
    %160 = vector.load %arg13[%c0_221, %c32_222] : memref<128x224xbf16, #tpu.memory_space<vmem>>, vector<128x32xbf16>
    tpu.vector_store %arg13[%c0_221, %c32_222], %159 {strides = array<i32>} : memref<128x224xbf16, #tpu.memory_space<vmem>>, vector<128x32xbf16>,
    %c16_223 = arith.constant 16 : index
    %c0_224 = arith.constant 0 : index
    %161 = vector.load %arg11[%c16_223, %c0_224] : memref<176x32xbf16, #tpu.memory_space<vmem>>, vector<128x32xbf16>
    %c0_225 = arith.constant 0 : index
    %c64_226 = arith.constant 64 : index
    %162 = vector.load %arg13[%c0_225, %c64_226] : memref<128x224xbf16, #tpu.memory_space<vmem>>, vector<128x32xbf16>
    tpu.vector_store %arg13[%c0_225, %c64_226], %161 {strides = array<i32>} : memref<128x224xbf16, #tpu.memory_space<vmem>>, vector<128x32xbf16>,
    %c24_227 = arith.constant 24 : index
    %c0_228 = arith.constant 0 : index
    %163 = vector.load %arg11[%c24_227, %c0_228] : memref<176x32xbf16, #tpu.memory_space<vmem>>, vector<128x32xbf16>
    %c0_229 = arith.constant 0 : index
    %c96_230 = arith.constant 96 : index
    %164 = vector.load %arg13[%c0_229, %c96_230] : memref<128x224xbf16, #tpu.memory_space<vmem>>, vector<128x32xbf16>
    tpu.vector_store %arg13[%c0_229, %c96_230], %163 {strides = array<i32>} : memref<128x224xbf16, #tpu.memory_space<vmem>>, vector<128x32xbf16>,
    %c32_231 = arith.constant 32 : index
    %c0_232 = arith.constant 0 : index
    %165 = vector.load %arg11[%c32_231, %c0_232] : memref<176x32xbf16, #tpu.memory_space<vmem>>, vector<128x32xbf16>
    %c0_233 = arith.constant 0 : index
    %c128_234 = arith.constant 128 : index
    %166 = vector.load %arg13[%c0_233, %c128_234] : memref<128x224xbf16, #tpu.memory_space<vmem>>, vector<128x32xbf16>
    tpu.vector_store %arg13[%c0_233, %c128_234], %165 {strides = array<i32>} : memref<128x224xbf16, #tpu.memory_space<vmem>>, vector<128x32xbf16>,
    %c40_235 = arith.constant 40 : index
    %c0_236 = arith.constant 0 : index
    %167 = vector.load %arg11[%c40_235, %c0_236] : memref<176x32xbf16, #tpu.memory_space<vmem>>, vector<128x32xbf16>
    %c0_237 = arith.constant 0 : index
    %c160_238 = arith.constant 160 : index
    %168 = vector.load %arg13[%c0_237, %c160_238] : memref<128x224xbf16, #tpu.memory_space<vmem>>, vector<128x32xbf16>
    tpu.vector_store %arg13[%c0_237, %c160_238], %167 {strides = array<i32>} : memref<128x224xbf16, #tpu.memory_space<vmem>>, vector<128x32xbf16>,
    %c48_239 = arith.constant 48 : index
    %c0_240 = arith.constant 0 : index
    %169 = vector.load %arg11[%c48_239, %c0_240] : memref<176x32xbf16, #tpu.memory_space<vmem>>, vector<128x32xbf16>
    %c0_241 = arith.constant 0 : index
    %c192_242 = arith.constant 192 : index
    %170 = vector.load %arg13[%c0_241, %c192_242] : memref<128x224xbf16, #tpu.memory_space<vmem>>, vector<128x32xbf16>
    tpu.vector_store %arg13[%c0_241, %c192_242], %169 {strides = array<i32>} : memref<128x224xbf16, #tpu.memory_space<vmem>>, vector<128x32xbf16>,
    %c0_243 = arith.constant 0 : index
    %c0_244 = arith.constant 0 : index
    %171 = vector.load %arg13[%c0_243, %c0_244] : memref<128x224xbf16, #tpu.memory_space<vmem>>, vector<128x224xbf16>
    %c2 = arith.constant 2 : index
    %c0_245 = arith.constant 0 : index
    %c0_246 = arith.constant 0 : index
    %172 = vector.load %arg4[%c2, %c0_245, %c0_246] : memref<4x224x32xbf16, #tpu.memory_space<vmem>>, vector<1x224x32xbf16>
    %173 = vector.shape_cast %172 : vector<1x224x32xbf16> to vector<224x32xbf16>
    %cst_247 = arith.constant dense<0.000000e+00> : vector<128x32xf32>
    %174 = tpu.matmul %171, %173, %cst_247 {dimension_numbers = #tpu.dot_dimension_numbers<[1], [0], [0], [1], [0, 0, 1, 1], [], []>} : vector<128x224xbf16>, vector<224x32xbf16>, vector<128x32xf32> -> vector<128x32xf32>
    %c2_248 = arith.constant 2 : index
    %c0_249 = arith.constant 0 : index
    %c0_250 = arith.constant 0 : index
    %175 = vector.load %arg5[%c2_248, %c0_249, %c0_250] : memref<4x1x32xf32, #tpu.memory_space<vmem>>, vector<1x1x32xf32>
    %176 = vector.shape_cast %175 : vector<1x1x32xf32> to vector<1x32xf32>
    %177 = vector.broadcast %176 : vector<1x32xf32> to vector<128x32xf32>
    %178 = arith.mulf %174, %177 : vector<128x32xf32>
    %c2_251 = arith.constant 2 : index
    %c0_252 = arith.constant 0 : index
    %c0_253 = arith.constant 0 : index
    %179 = vector.load %arg6[%c2_251, %c0_252, %c0_253] : memref<4x1x32xf32, #tpu.memory_space<vmem>>, vector<1x1x32xf32>
    %180 = vector.shape_cast %179 : vector<1x1x32xf32> to vector<1x32xf32>
    %181 = vector.broadcast %180 : vector<1x32xf32> to vector<128x32xf32>
    %182 = arith.addf %178, %181 : vector<128x32xf32>
    %cst_254 = arith.constant 0.000000e+00 : f32
    %183 = vector.broadcast %cst_254 : f32 to vector<128x32xf32>
    %184 = arith.maximumf %182, %183 : vector<128x32xf32>
    %185 = arith.truncf %184 : vector<128x32xf32> to vector<128x32xbf16>
    %c24_255 = arith.constant 24 : index
    %c0_256 = arith.constant 0 : index
    %186 = vector.load %arg11[%c24_255, %c0_256] : memref<176x32xbf16, #tpu.memory_space<vmem>>, vector<128x32xbf16>
    tpu.vector_store %arg11[%c24_255, %c0_256], %185 {strides = array<i32>} : memref<176x32xbf16, #tpu.memory_space<vmem>>, vector<128x32xbf16>,
    %c0_257 = arith.constant 0 : index
    %c0_258 = arith.constant 0 : index
    %187 = vector.load %arg11[%c0_257, %c0_258] : memref<176x32xbf16, #tpu.memory_space<vmem>>, vector<128x32xbf16>
    %c0_259 = arith.constant 0 : index
    %c0_260 = arith.constant 0 : index
    %188 = vector.load %arg13[%c0_259, %c0_260] : memref<128x224xbf16, #tpu.memory_space<vmem>>, vector<128x32xbf16>
    tpu.vector_store %arg13[%c0_259, %c0_260], %187 {strides = array<i32>} : memref<128x224xbf16, #tpu.memory_space<vmem>>, vector<128x32xbf16>,
    %c8_261 = arith.constant 8 : index
    %c0_262 = arith.constant 0 : index
    %189 = vector.load %arg11[%c8_261, %c0_262] : memref<176x32xbf16, #tpu.memory_space<vmem>>, vector<128x32xbf16>
    %c0_263 = arith.constant 0 : index
    %c32_264 = arith.constant 32 : index
    %190 = vector.load %arg13[%c0_263, %c32_264] : memref<128x224xbf16, #tpu.memory_space<vmem>>, vector<128x32xbf16>
    tpu.vector_store %arg13[%c0_263, %c32_264], %189 {strides = array<i32>} : memref<128x224xbf16, #tpu.memory_space<vmem>>, vector<128x32xbf16>,
    %c16_265 = arith.constant 16 : index
    %c0_266 = arith.constant 0 : index
    %191 = vector.load %arg11[%c16_265, %c0_266] : memref<176x32xbf16, #tpu.memory_space<vmem>>, vector<128x32xbf16>
    %c0_267 = arith.constant 0 : index
    %c64_268 = arith.constant 64 : index
    %192 = vector.load %arg13[%c0_267, %c64_268] : memref<128x224xbf16, #tpu.memory_space<vmem>>, vector<128x32xbf16>
    tpu.vector_store %arg13[%c0_267, %c64_268], %191 {strides = array<i32>} : memref<128x224xbf16, #tpu.memory_space<vmem>>, vector<128x32xbf16>,
    %c24_269 = arith.constant 24 : index
    %c0_270 = arith.constant 0 : index
    %193 = vector.load %arg11[%c24_269, %c0_270] : memref<176x32xbf16, #tpu.memory_space<vmem>>, vector<128x32xbf16>
    %c0_271 = arith.constant 0 : index
    %c96_272 = arith.constant 96 : index
    %194 = vector.load %arg13[%c0_271, %c96_272] : memref<128x224xbf16, #tpu.memory_space<vmem>>, vector<128x32xbf16>
    tpu.vector_store %arg13[%c0_271, %c96_272], %193 {strides = array<i32>} : memref<128x224xbf16, #tpu.memory_space<vmem>>, vector<128x32xbf16>,
    %c32_273 = arith.constant 32 : index
    %c0_274 = arith.constant 0 : index
    %195 = vector.load %arg11[%c32_273, %c0_274] : memref<176x32xbf16, #tpu.memory_space<vmem>>, vector<128x32xbf16>
    %c0_275 = arith.constant 0 : index
    %c128_276 = arith.constant 128 : index
    %196 = vector.load %arg13[%c0_275, %c128_276] : memref<128x224xbf16, #tpu.memory_space<vmem>>, vector<128x32xbf16>
    tpu.vector_store %arg13[%c0_275, %c128_276], %195 {strides = array<i32>} : memref<128x224xbf16, #tpu.memory_space<vmem>>, vector<128x32xbf16>,
    %c40_277 = arith.constant 40 : index
    %c0_278 = arith.constant 0 : index
    %197 = vector.load %arg11[%c40_277, %c0_278] : memref<176x32xbf16, #tpu.memory_space<vmem>>, vector<128x32xbf16>
    %c0_279 = arith.constant 0 : index
    %c160_280 = arith.constant 160 : index
    %198 = vector.load %arg13[%c0_279, %c160_280] : memref<128x224xbf16, #tpu.memory_space<vmem>>, vector<128x32xbf16>
    tpu.vector_store %arg13[%c0_279, %c160_280], %197 {strides = array<i32>} : memref<128x224xbf16, #tpu.memory_space<vmem>>, vector<128x32xbf16>,
    %c48_281 = arith.constant 48 : index
    %c0_282 = arith.constant 0 : index
    %199 = vector.load %arg11[%c48_281, %c0_282] : memref<176x32xbf16, #tpu.memory_space<vmem>>, vector<128x32xbf16>
    %c0_283 = arith.constant 0 : index
    %c192_284 = arith.constant 192 : index
    %200 = vector.load %arg13[%c0_283, %c192_284] : memref<128x224xbf16, #tpu.memory_space<vmem>>, vector<128x32xbf16>
    tpu.vector_store %arg13[%c0_283, %c192_284], %199 {strides = array<i32>} : memref<128x224xbf16, #tpu.memory_space<vmem>>, vector<128x32xbf16>,
    %c0_285 = arith.constant 0 : index
    %c0_286 = arith.constant 0 : index
    %201 = vector.load %arg13[%c0_285, %c0_286] : memref<128x224xbf16, #tpu.memory_space<vmem>>, vector<128x224xbf16>
    %c2_287 = arith.constant 2 : index
    %c0_288 = arith.constant 0 : index
    %c0_289 = arith.constant 0 : index
    %202 = vector.load %arg7[%c2_287, %c0_288, %c0_289] : memref<4x224x32xbf16, #tpu.memory_space<vmem>>, vector<1x224x32xbf16>
    %203 = vector.shape_cast %202 : vector<1x224x32xbf16> to vector<224x32xbf16>
    %cst_290 = arith.constant dense<0.000000e+00> : vector<128x32xf32>
    %204 = tpu.matmul %201, %203, %cst_290 {dimension_numbers = #tpu.dot_dimension_numbers<[1], [0], [0], [1], [0, 0, 1, 1], [], []>} : vector<128x224xbf16>, vector<224x32xbf16>, vector<128x32xf32> -> vector<128x32xf32>
    %c2_291 = arith.constant 2 : index
    %c0_292 = arith.constant 0 : index
    %c0_293 = arith.constant 0 : index
    %205 = vector.load %arg8[%c2_291, %c0_292, %c0_293] : memref<4x1x32xf32, #tpu.memory_space<vmem>>, vector<1x1x32xf32>
    %206 = vector.shape_cast %205 : vector<1x1x32xf32> to vector<1x32xf32>
    %207 = vector.broadcast %206 : vector<1x32xf32> to vector<128x32xf32>
    %208 = arith.mulf %204, %207 : vector<128x32xf32>
    %c2_294 = arith.constant 2 : index
    %c0_295 = arith.constant 0 : index
    %c0_296 = arith.constant 0 : index
    %209 = vector.load %arg9[%c2_294, %c0_295, %c0_296] : memref<4x1x32xf32, #tpu.memory_space<vmem>>, vector<1x1x32xf32>
    %210 = vector.shape_cast %209 : vector<1x1x32xf32> to vector<1x32xf32>
    %211 = vector.broadcast %210 : vector<1x32xf32> to vector<128x32xf32>
    %212 = arith.addf %208, %211 : vector<128x32xf32>
    %cst_297 = arith.constant 0.000000e+00 : f32
    %213 = vector.broadcast %cst_297 : f32 to vector<128x32xf32>
    %214 = arith.maximumf %212, %213 : vector<128x32xf32>
    %215 = arith.truncf %214 : vector<128x32xf32> to vector<128x32xbf16>
    %c0_298 = arith.constant 0 : index
    %c64_299 = arith.constant 64 : index
    %216 = vector.load %arg10[%c0_298, %c64_299] : memref<128x128xbf16, #tpu.memory_space<vmem>>, vector<128x32xbf16>
    tpu.vector_store %arg10[%c0_298, %c64_299], %215 {strides = array<i32>} : memref<128x128xbf16, #tpu.memory_space<vmem>>, vector<128x32xbf16>,
    %c0_300 = arith.constant 0 : index
    %c96_301 = arith.constant 96 : index
    %217 = vector.load %arg14[%c0_300, %c96_301] : memref<128x128xbf16, #tpu.memory_space<vmem>>, vector<128x32xbf16>
    %c24_302 = arith.constant 24 : index
    %c0_303 = arith.constant 0 : index
    %218 = vector.load %arg11[%c24_302, %c0_303] : memref<176x32xbf16, #tpu.memory_space<vmem>>, vector<128x32xbf16>
    tpu.vector_store %arg11[%c24_302, %c0_303], %217 {strides = array<i32>} : memref<176x32xbf16, #tpu.memory_space<vmem>>, vector<128x32xbf16>,
    %c0_304 = arith.constant 0 : index
    %c0_305 = arith.constant 0 : index
    %219 = vector.load %arg11[%c0_304, %c0_305] : memref<176x32xbf16, #tpu.memory_space<vmem>>, vector<128x32xbf16>
    %c0_306 = arith.constant 0 : index
    %c0_307 = arith.constant 0 : index
    %220 = vector.load %arg13[%c0_306, %c0_307] : memref<128x224xbf16, #tpu.memory_space<vmem>>, vector<128x32xbf16>
    tpu.vector_store %arg13[%c0_306, %c0_307], %219 {strides = array<i32>} : memref<128x224xbf16, #tpu.memory_space<vmem>>, vector<128x32xbf16>,
    %c8_308 = arith.constant 8 : index
    %c0_309 = arith.constant 0 : index
    %221 = vector.load %arg11[%c8_308, %c0_309] : memref<176x32xbf16, #tpu.memory_space<vmem>>, vector<128x32xbf16>
    %c0_310 = arith.constant 0 : index
    %c32_311 = arith.constant 32 : index
    %222 = vector.load %arg13[%c0_310, %c32_311] : memref<128x224xbf16, #tpu.memory_space<vmem>>, vector<128x32xbf16>
    tpu.vector_store %arg13[%c0_310, %c32_311], %221 {strides = array<i32>} : memref<128x224xbf16, #tpu.memory_space<vmem>>, vector<128x32xbf16>,
    %c16_312 = arith.constant 16 : index
    %c0_313 = arith.constant 0 : index
    %223 = vector.load %arg11[%c16_312, %c0_313] : memref<176x32xbf16, #tpu.memory_space<vmem>>, vector<128x32xbf16>
    %c0_314 = arith.constant 0 : index
    %c64_315 = arith.constant 64 : index
    %224 = vector.load %arg13[%c0_314, %c64_315] : memref<128x224xbf16, #tpu.memory_space<vmem>>, vector<128x32xbf16>
    tpu.vector_store %arg13[%c0_314, %c64_315], %223 {strides = array<i32>} : memref<128x224xbf16, #tpu.memory_space<vmem>>, vector<128x32xbf16>,
    %c24_316 = arith.constant 24 : index
    %c0_317 = arith.constant 0 : index
    %225 = vector.load %arg11[%c24_316, %c0_317] : memref<176x32xbf16, #tpu.memory_space<vmem>>, vector<128x32xbf16>
    %c0_318 = arith.constant 0 : index
    %c96_319 = arith.constant 96 : index
    %226 = vector.load %arg13[%c0_318, %c96_319] : memref<128x224xbf16, #tpu.memory_space<vmem>>, vector<128x32xbf16>
    tpu.vector_store %arg13[%c0_318, %c96_319], %225 {strides = array<i32>} : memref<128x224xbf16, #tpu.memory_space<vmem>>, vector<128x32xbf16>,
    %c32_320 = arith.constant 32 : index
    %c0_321 = arith.constant 0 : index
    %227 = vector.load %arg11[%c32_320, %c0_321] : memref<176x32xbf16, #tpu.memory_space<vmem>>, vector<128x32xbf16>
    %c0_322 = arith.constant 0 : index
    %c128_323 = arith.constant 128 : index
    %228 = vector.load %arg13[%c0_322, %c128_323] : memref<128x224xbf16, #tpu.memory_space<vmem>>, vector<128x32xbf16>
    tpu.vector_store %arg13[%c0_322, %c128_323], %227 {strides = array<i32>} : memref<128x224xbf16, #tpu.memory_space<vmem>>, vector<128x32xbf16>,
    %c40_324 = arith.constant 40 : index
    %c0_325 = arith.constant 0 : index
    %229 = vector.load %arg11[%c40_324, %c0_325] : memref<176x32xbf16, #tpu.memory_space<vmem>>, vector<128x32xbf16>
    %c0_326 = arith.constant 0 : index
    %c160_327 = arith.constant 160 : index
    %230 = vector.load %arg13[%c0_326, %c160_327] : memref<128x224xbf16, #tpu.memory_space<vmem>>, vector<128x32xbf16>
    tpu.vector_store %arg13[%c0_326, %c160_327], %229 {strides = array<i32>} : memref<128x224xbf16, #tpu.memory_space<vmem>>, vector<128x32xbf16>,
    %c48_328 = arith.constant 48 : index
    %c0_329 = arith.constant 0 : index
    %231 = vector.load %arg11[%c48_328, %c0_329] : memref<176x32xbf16, #tpu.memory_space<vmem>>, vector<128x32xbf16>
    %c0_330 = arith.constant 0 : index
    %c192_331 = arith.constant 192 : index
    %232 = vector.load %arg13[%c0_330, %c192_331] : memref<128x224xbf16, #tpu.memory_space<vmem>>, vector<128x32xbf16>
    tpu.vector_store %arg13[%c0_330, %c192_331], %231 {strides = array<i32>} : memref<128x224xbf16, #tpu.memory_space<vmem>>, vector<128x32xbf16>,
    %c0_332 = arith.constant 0 : index
    %c0_333 = arith.constant 0 : index
    %233 = vector.load %arg13[%c0_332, %c0_333] : memref<128x224xbf16, #tpu.memory_space<vmem>>, vector<128x224xbf16>
    %c3 = arith.constant 3 : index
    %c0_334 = arith.constant 0 : index
    %c0_335 = arith.constant 0 : index
    %234 = vector.load %arg4[%c3, %c0_334, %c0_335] : memref<4x224x32xbf16, #tpu.memory_space<vmem>>, vector<1x224x32xbf16>
    %235 = vector.shape_cast %234 : vector<1x224x32xbf16> to vector<224x32xbf16>
    %cst_336 = arith.constant dense<0.000000e+00> : vector<128x32xf32>
    %236 = tpu.matmul %233, %235, %cst_336 {dimension_numbers = #tpu.dot_dimension_numbers<[1], [0], [0], [1], [0, 0, 1, 1], [], []>} : vector<128x224xbf16>, vector<224x32xbf16>, vector<128x32xf32> -> vector<128x32xf32>
    %c3_337 = arith.constant 3 : index
    %c0_338 = arith.constant 0 : index
    %c0_339 = arith.constant 0 : index
    %237 = vector.load %arg5[%c3_337, %c0_338, %c0_339] : memref<4x1x32xf32, #tpu.memory_space<vmem>>, vector<1x1x32xf32>
    %238 = vector.shape_cast %237 : vector<1x1x32xf32> to vector<1x32xf32>
    %239 = vector.broadcast %238 : vector<1x32xf32> to vector<128x32xf32>
    %240 = arith.mulf %236, %239 : vector<128x32xf32>
    %c3_340 = arith.constant 3 : index
    %c0_341 = arith.constant 0 : index
    %c0_342 = arith.constant 0 : index
    %241 = vector.load %arg6[%c3_340, %c0_341, %c0_342] : memref<4x1x32xf32, #tpu.memory_space<vmem>>, vector<1x1x32xf32>
    %242 = vector.shape_cast %241 : vector<1x1x32xf32> to vector<1x32xf32>
    %243 = vector.broadcast %242 : vector<1x32xf32> to vector<128x32xf32>
    %244 = arith.addf %240, %243 : vector<128x32xf32>
    %cst_343 = arith.constant 0.000000e+00 : f32
    %245 = vector.broadcast %cst_343 : f32 to vector<128x32xf32>
    %246 = arith.maximumf %244, %245 : vector<128x32xf32>
    %247 = arith.truncf %246 : vector<128x32xf32> to vector<128x32xbf16>
    %c24_344 = arith.constant 24 : index
    %c0_345 = arith.constant 0 : index
    %248 = vector.load %arg11[%c24_344, %c0_345] : memref<176x32xbf16, #tpu.memory_space<vmem>>, vector<128x32xbf16>
    tpu.vector_store %arg11[%c24_344, %c0_345], %247 {strides = array<i32>} : memref<176x32xbf16, #tpu.memory_space<vmem>>, vector<128x32xbf16>,
    %c0_346 = arith.constant 0 : index
    %c0_347 = arith.constant 0 : index
    %249 = vector.load %arg11[%c0_346, %c0_347] : memref<176x32xbf16, #tpu.memory_space<vmem>>, vector<128x32xbf16>
    %c0_348 = arith.constant 0 : index
    %c0_349 = arith.constant 0 : index
    %250 = vector.load %arg13[%c0_348, %c0_349] : memref<128x224xbf16, #tpu.memory_space<vmem>>, vector<128x32xbf16>
    tpu.vector_store %arg13[%c0_348, %c0_349], %249 {strides = array<i32>} : memref<128x224xbf16, #tpu.memory_space<vmem>>, vector<128x32xbf16>,
    %c8_350 = arith.constant 8 : index
    %c0_351 = arith.constant 0 : index
    %251 = vector.load %arg11[%c8_350, %c0_351] : memref<176x32xbf16, #tpu.memory_space<vmem>>, vector<128x32xbf16>
    %c0_352 = arith.constant 0 : index
    %c32_353 = arith.constant 32 : index
    %252 = vector.load %arg13[%c0_352, %c32_353] : memref<128x224xbf16, #tpu.memory_space<vmem>>, vector<128x32xbf16>
    tpu.vector_store %arg13[%c0_352, %c32_353], %251 {strides = array<i32>} : memref<128x224xbf16, #tpu.memory_space<vmem>>, vector<128x32xbf16>,
    %c16_354 = arith.constant 16 : index
    %c0_355 = arith.constant 0 : index
    %253 = vector.load %arg11[%c16_354, %c0_355] : memref<176x32xbf16, #tpu.memory_space<vmem>>, vector<128x32xbf16>
    %c0_356 = arith.constant 0 : index
    %c64_357 = arith.constant 64 : index
    %254 = vector.load %arg13[%c0_356, %c64_357] : memref<128x224xbf16, #tpu.memory_space<vmem>>, vector<128x32xbf16>
    tpu.vector_store %arg13[%c0_356, %c64_357], %253 {strides = array<i32>} : memref<128x224xbf16, #tpu.memory_space<vmem>>, vector<128x32xbf16>,
    %c24_358 = arith.constant 24 : index
    %c0_359 = arith.constant 0 : index
    %255 = vector.load %arg11[%c24_358, %c0_359] : memref<176x32xbf16, #tpu.memory_space<vmem>>, vector<128x32xbf16>
    %c0_360 = arith.constant 0 : index
    %c96_361 = arith.constant 96 : index
    %256 = vector.load %arg13[%c0_360, %c96_361] : memref<128x224xbf16, #tpu.memory_space<vmem>>, vector<128x32xbf16>
    tpu.vector_store %arg13[%c0_360, %c96_361], %255 {strides = array<i32>} : memref<128x224xbf16, #tpu.memory_space<vmem>>, vector<128x32xbf16>,
    %c32_362 = arith.constant 32 : index
    %c0_363 = arith.constant 0 : index
    %257 = vector.load %arg11[%c32_362, %c0_363] : memref<176x32xbf16, #tpu.memory_space<vmem>>, vector<128x32xbf16>
    %c0_364 = arith.constant 0 : index
    %c128_365 = arith.constant 128 : index
    %258 = vector.load %arg13[%c0_364, %c128_365] : memref<128x224xbf16, #tpu.memory_space<vmem>>, vector<128x32xbf16>
    tpu.vector_store %arg13[%c0_364, %c128_365], %257 {strides = array<i32>} : memref<128x224xbf16, #tpu.memory_space<vmem>>, vector<128x32xbf16>,
    %c40_366 = arith.constant 40 : index
    %c0_367 = arith.constant 0 : index
    %259 = vector.load %arg11[%c40_366, %c0_367] : memref<176x32xbf16, #tpu.memory_space<vmem>>, vector<128x32xbf16>
    %c0_368 = arith.constant 0 : index
    %c160_369 = arith.constant 160 : index
    %260 = vector.load %arg13[%c0_368, %c160_369] : memref<128x224xbf16, #tpu.memory_space<vmem>>, vector<128x32xbf16>
    tpu.vector_store %arg13[%c0_368, %c160_369], %259 {strides = array<i32>} : memref<128x224xbf16, #tpu.memory_space<vmem>>, vector<128x32xbf16>,
    %c48_370 = arith.constant 48 : index
    %c0_371 = arith.constant 0 : index
    %261 = vector.load %arg11[%c48_370, %c0_371] : memref<176x32xbf16, #tpu.memory_space<vmem>>, vector<128x32xbf16>
    %c0_372 = arith.constant 0 : index
    %c192_373 = arith.constant 192 : index
    %262 = vector.load %arg13[%c0_372, %c192_373] : memref<128x224xbf16, #tpu.memory_space<vmem>>, vector<128x32xbf16>
    tpu.vector_store %arg13[%c0_372, %c192_373], %261 {strides = array<i32>} : memref<128x224xbf16, #tpu.memory_space<vmem>>, vector<128x32xbf16>,
    %c0_374 = arith.constant 0 : index
    %c0_375 = arith.constant 0 : index
    %263 = vector.load %arg13[%c0_374, %c0_375] : memref<128x224xbf16, #tpu.memory_space<vmem>>, vector<128x224xbf16>
    %c3_376 = arith.constant 3 : index
    %c0_377 = arith.constant 0 : index
    %c0_378 = arith.constant 0 : index
    %264 = vector.load %arg7[%c3_376, %c0_377, %c0_378] : memref<4x224x32xbf16, #tpu.memory_space<vmem>>, vector<1x224x32xbf16>
    %265 = vector.shape_cast %264 : vector<1x224x32xbf16> to vector<224x32xbf16>
    %cst_379 = arith.constant dense<0.000000e+00> : vector<128x32xf32>
    %266 = tpu.matmul %263, %265, %cst_379 {dimension_numbers = #tpu.dot_dimension_numbers<[1], [0], [0], [1], [0, 0, 1, 1], [], []>} : vector<128x224xbf16>, vector<224x32xbf16>, vector<128x32xf32> -> vector<128x32xf32>
    %c3_380 = arith.constant 3 : index
    %c0_381 = arith.constant 0 : index
    %c0_382 = arith.constant 0 : index
    %267 = vector.load %arg8[%c3_380, %c0_381, %c0_382] : memref<4x1x32xf32, #tpu.memory_space<vmem>>, vector<1x1x32xf32>
    %268 = vector.shape_cast %267 : vector<1x1x32xf32> to vector<1x32xf32>
    %269 = vector.broadcast %268 : vector<1x32xf32> to vector<128x32xf32>
    %270 = arith.mulf %266, %269 : vector<128x32xf32>
    %c3_383 = arith.constant 3 : index
    %c0_384 = arith.constant 0 : index
    %c0_385 = arith.constant 0 : index
    %271 = vector.load %arg9[%c3_383, %c0_384, %c0_385] : memref<4x1x32xf32, #tpu.memory_space<vmem>>, vector<1x1x32xf32>
    %272 = vector.shape_cast %271 : vector<1x1x32xf32> to vector<1x32xf32>
    %273 = vector.broadcast %272 : vector<1x32xf32> to vector<128x32xf32>
    %274 = arith.addf %270, %273 : vector<128x32xf32>
    %cst_386 = arith.constant 0.000000e+00 : f32
    %275 = vector.broadcast %cst_386 : f32 to vector<128x32xf32>
    %276 = arith.maximumf %274, %275 : vector<128x32xf32>
    %277 = arith.truncf %276 : vector<128x32xf32> to vector<128x32xbf16>
    %c0_387 = arith.constant 0 : index
    %c96_388 = arith.constant 96 : index
    %278 = vector.load %arg10[%c0_387, %c96_388] : memref<128x128xbf16, #tpu.memory_space<vmem>>, vector<128x32xbf16>
    tpu.vector_store %arg10[%c0_387, %c96_388], %277 {strides = array<i32>} : memref<128x128xbf16, #tpu.memory_space<vmem>>, vector<128x32xbf16>,
    return
  }
}

</mosaic_0001>

<llo_original>
// kernel: tpu_custom_call.1
$region0: #{tpu_custom_call.1}
  #allocation0 [shape = 'u32[]', space=smem, size = 0x4, offset = 0x4, fixed_abs, tag = 'smem constant byte address 0x4 - core index']
  #allocation1 [shape = 'u32[144,128]{1,0:T(1,128)}', space=vmem, size = 0x12000, scoped, tag = 'internal scratch']
  #allocation2 [shape = 'bf16[176,32]{1,0:T(16,128)(2,1)}', space=vmem, size = 0xb000, scoped, tag = 'scratch operand']
  #allocation3 [shape = 'bf16[128,56]{1,0:T(16,128)(2,1)}', space=vmem, size = 0x8000, scoped, tag = 'scratch operand']
  #allocation4 [shape = 'bf16[128,224]{1,0:T(16,128)(2,1)}', space=vmem, size = 0x10000, scoped, tag = 'scratch operand']
  #allocation5 [shape = 'bf16[128,128]{1,0:T(16,128)(2,1)}', space=vmem, size = 0x8000, scoped, tag = 'scratch operand']
  %s0 = inlined_call_operand.hbm [shape: bf16[176,8], index: 0, kind: input, shape index: {}]
  %s1 = inlined_call_operand.hbm [shape: bf16[56,128], index: 1, kind: input, shape index: {}]
  %s2 = inlined_call_operand.hbm [shape: f32[1,128], index: 2, kind: input, shape index: {}]
  %s3 = inlined_call_operand.hbm [shape: f32[1,128], index: 3, kind: input, shape index: {}]
  %s4 = inlined_call_operand.hbm [shape: bf16[4,224,32], index: 4, kind: input, shape index: {}]
  %s5 = inlined_call_operand.hbm [shape: f32[4,1,32], index: 5, kind: input, shape index: {}]
  %s6 = inlined_call_operand.hbm [shape: f32[4,1,32], index: 6, kind: input, shape index: {}]
  %s7 = inlined_call_operand.hbm [shape: bf16[4,224,32], index: 7, kind: input, shape index: {}]
  %s8 = inlined_call_operand.hbm [shape: f32[4,1,32], index: 8, kind: input, shape index: {}]
  %s9 = inlined_call_operand.hbm [shape: f32[4,1,32], index: 9, kind: input, shape index: {}]
  %s10 = inlined_call_operand.hbm [shape: bf16[128,128], index: 10, kind: output, shape index: {}]
  %s11 = sld [smem:[#allocation0]]
  $region90: #{tpu_custom_call.1} parent=0
    _
  %s13 = ssub.s32 1, %s11
  %s14 = scalar_select 0, %s13, %s11
  $region1: #{tpu_custom_call.1} parent=0
    #allocation6 [shape = 'u8[45056]{0}', space=vmem, size = 0xb000, scoped, tag = 'input window, operand 0, single buffered']
    #allocation7 [shape = 's32[1]{0}', space=sflag, size = 0x4, scoped, tag = 'scoped memory for tpu_custom_call.1']
    #allocation8 [shape = 's32[1]{0}', space=sflag, size = 0x4, scoped, tag = 'scoped memory for tpu_custom_call.1']
    #allocation9 [shape = 'u8[14336]{0}', space=vmem, size = 0x3800, scoped, tag = 'input window, operand 1, single buffered']
    #allocation10 [shape = 's32[1]{0}', space=sflag, size = 0x4, scoped, tag = 'scoped memory for tpu_custom_call.1']
    #allocation11 [shape = 'u8[512]{0}', space=vmem, size = 0x400, scoped, tag = 'input window, operand 2, single buffered']
    #allocation12 [shape = 'u8[512]{0}', space=vmem, size = 0x400, scoped, tag = 'input window, operand 3, single buffered']
    #allocation13 [shape = 's32[1]{0}', space=sflag, size = 0x4, scoped, tag = 'scoped memory for tpu_custom_call.1']
    #allocation14 [shape = 'u8[229376]{0}', space=vmem, size = 0x38000, scoped, tag = 'input window, operand 4, single buffered']
    #allocation15 [shape = 'u8[2048]{0}', space=vmem, size = 0x800, scoped, tag = 'input window, operand 5, single buffered']
    #allocation16 [shape = 's32[1]{0}', space=sflag, size = 0x4, scoped, tag = 'scoped memory for tpu_custom_call.1']
    #allocation17 [shape = 'u8[2048]{0}', space=vmem, size = 0x800, scoped, tag = 'input window, operand 6, single buffered']
    #allocation18 [shape = 'u8[229376]{0}', space=vmem, size = 0x38000, scoped, tag = 'input window, operand 7, single buffered']
    #allocation19 [shape = 's32[1]{0}', space=sflag, size = 0x4, scoped, tag = 'scoped memory for tpu_custom_call.1']
    #allocation20 [shape = 'u8[2048]{0}', space=vmem, size = 0x800, scoped, tag = 'input window, operand 8, single buffered']
    #allocation21 [shape = 'u8[2048]{0}', space=vmem, size = 0x800, scoped, tag = 'input window, operand 9, single buffered']
    #allocation22 [shape = 's32[1]{0}', space=sflag, size = 0x4, scoped, tag = 'scoped memory for tpu_custom_call.1']
    #allocation23 [shape = 'u8[32768]{0}', space=vmem, size = 0x8000, scoped, tag = 'output window, operand 0, single buffered']
    %15 = vsyncpa [#allocation7], 0
    %16 = vsyncpa [#allocation10], 0
    %17 = vsyncpa [#allocation13], 0
    %18 = vsyncpa [#allocation16], 0
    %19 = vsyncpa [#allocation19], 0
    %20 = vsyncpa [#allocation22], 0
    %21 = vsyncpa [#allocation8], 0
    // Predicated region
    $region2: #{tpu_custom_call.1} parent=1 // pred_check
      _
    $region3: #{tpu_custom_call.1} parent=1 // pred_check_branch
      %23 = sbr.rel (0) target = $region5
    $region4: #{tpu_custom_call.1} parent=1 // pred_region
      %s25 = ssub.s32 1408, 1408
      %26 = vsyncadd [#allocation7], %s25
      %s27 = sshll.u32 [#allocation6], 4
      %s28 = int_to_ptr.vmem [resolvable:$true] %s27
      %33 = dma.hbm_to_vmem [thread:$0]  %s0, 1408, %s28, [#allocation7], 64, 64, 4
    $region5: #{tpu_custom_call.1} parent=1 // pred_fallthru
      _
    // Predicated region
    $region6: #{tpu_custom_call.1} parent=1 // pred_check
      _
    $region7: #{tpu_custom_call.1} parent=1 // pred_check_branch
      %35 = sbr.rel (0) target = $region9
    $region8: #{tpu_custom_call.1} parent=1 // pred_region
      %s37 = ssub.s32 448, 448
      %38 = vsyncadd [#allocation10], %s37
      %s39 = sshll.u32 [#allocation9], 4
      %s40 = int_to_ptr.vmem [resolvable:$true] %s39
      %45 = dma.hbm_to_vmem [thread:$0]  %s1, 448, %s40, [#allocation10], 64, 64, 4
    $region9: #{tpu_custom_call.1} parent=1 // pred_fallthru
      _
    // Predicated region
    $region10: #{tpu_custom_call.1} parent=1 // pred_check
      _
    $region11: #{tpu_custom_call.1} parent=1 // pred_check_branch
      %47 = sbr.rel (0) target = $region13
    $region12: #{tpu_custom_call.1} parent=1 // pred_region
      %s49 = ssub.s32 16, 16
      %50 = vsyncadd [#allocation10], %s49
      %s52 = sshll.u32 [#allocation11], 4
      %s53 = int_to_ptr.vmem [resolvable:$true] %s52
      %55 = dma.hbm_to_vmem [thread:$0]  %s2, 16, %s53, [#allocation10]
    $region13: #{tpu_custom_call.1} parent=1 // pred_fallthru
      _
    // Predicated region
    $region14: #{tpu_custom_call.1} parent=1 // pred_check
      _
    $region15: #{tpu_custom_call.1} parent=1 // pred_check_branch
      %57 = sbr.rel (0) target = $region17
    $region16: #{tpu_custom_call.1} parent=1 // pred_region
      %s59 = ssub.s32 16, 16
      %60 = vsyncadd [#allocation13], %s59
      %s62 = sshll.u32 [#allocation12], 4
      %s63 = int_to_ptr.vmem [resolvable:$true] %s62
      %65 = dma.hbm_to_vmem [thread:$0]  %s3, 16, %s63, [#allocation13]
    $region17: #{tpu_custom_call.1} parent=1 // pred_fallthru
      _
    // Predicated region
    $region18: #{tpu_custom_call.1} parent=1 // pred_check
      _
    $region19: #{tpu_custom_call.1} parent=1 // pred_check_branch
      %67 = sbr.rel (0) target = $region21
    $region20: #{tpu_custom_call.1} parent=1 // pred_region
      %s69 = ssub.s32 7168, 7168
      %70 = vsyncadd [#allocation13], %s69
      %s71 = sshll.u32 [#allocation14], 4
      %s72 = int_to_ptr.vmem [resolvable:$true] %s71
      %77 = dma.hbm_to_vmem [thread:$0]  %s4, 7168, %s72, [#allocation13], 64, 64, 4
    $region21: #{tpu_custom_call.1} parent=1 // pred_fallthru
      _
    // Predicated region
    $region22: #{tpu_custom_call.1} parent=1 // pred_check
      _
    $region23: #{tpu_custom_call.1} parent=1 // pred_check_branch
      %79 = sbr.rel (0) target = $region25
    $region24: #{tpu_custom_call.1} parent=1 // pred_region
      %s81 = ssub.s32 64, 64
      %82 = vsyncadd [#allocation16], %s81
      %s83 = sshll.u32 [#allocation15], 4
      %s84 = int_to_ptr.vmem [resolvable:$true] %s83
      %89 = dma.hbm_to_vmem [thread:$0]  %s5, 64, %s84, [#allocation16], 16, 16, 1
    $region25: #{tpu_custom_call.1} parent=1 // pred_fallthru
      _
    // Predicated region
    $region26: #{tpu_custom_call.1} parent=1 // pred_check
      _
    $region27: #{tpu_custom_call.1} parent=1 // pred_check_branch
      %91 = sbr.rel (0) target = $region29
    $region28: #{tpu_custom_call.1} parent=1 // pred_region
      %s93 = ssub.s32 64, 64
      %94 = vsyncadd [#allocation16], %s93
      %s95 = sshll.u32 [#allocation17], 4
      %s96 = int_to_ptr.vmem [resolvable:$true] %s95
      %101 = dma.hbm_to_vmem [thread:$0]  %s6, 64, %s96, [#allocation16], 16, 16, 1
    $region29: #{tpu_custom_call.1} parent=1 // pred_fallthru
      _
    // Predicated region
    $region30: #{tpu_custom_call.1} parent=1 // pred_check
      _
    $region31: #{tpu_custom_call.1} parent=1 // pred_check_branch
      %103 = sbr.rel (0) target = $region33
    $region32: #{tpu_custom_call.1} parent=1 // pred_region
      %s105 = ssub.s32 7168, 7168
      %106 = vsyncadd [#allocation19], %s105
      %s107 = sshll.u32 [#allocation18], 4
      %s108 = int_to_ptr.vmem [resolvable:$true] %s107
      %113 = dma.hbm_to_vmem [thread:$0]  %s7, 7168, %s108, [#allocation19], 64, 64, 4
    $region33: #{tpu_custom_call.1} parent=1 // pred_fallthru
      _
    // Predicated region
    $region34: #{tpu_custom_call.1} parent=1 // pred_check
      _
    $region35: #{tpu_custom_call.1} parent=1 // pred_check_branch
      %115 = sbr.rel (0) target = $region37
    $region36: #{tpu_custom_call.1} parent=1 // pred_region
      %s117 = ssub.s32 64, 64
      %118 = vsyncadd [#allocation19], %s117
      %s119 = sshll.u32 [#allocation20], 4
      %s120 = int_to_ptr.vmem [resolvable:$true] %s119
      %125 = dma.hbm_to_vmem [thread:$0]  %s8, 64, %s120, [#allocation19], 16, 16, 1
    $region37: #{tpu_custom_call.1} parent=1 // pred_fallthru
      _
    // Predicated region
    $region38: #{tpu_custom_call.1} parent=1 // pred_check
      _
    $region39: #{tpu_custom_call.1} parent=1 // pred_check_branch
      %127 = sbr.rel (0) target = $region41
    $region40: #{tpu_custom_call.1} parent=1 // pred_region
      %s129 = ssub.s32 64, 64
      %130 = vsyncadd [#allocation22], %s129
      %s131 = sshll.u32 [#allocation21], 4
      %s132 = int_to_ptr.vmem [resolvable:$true] %s131
      %137 = dma.hbm_to_vmem [thread:$0]  %s9, 64, %s132, [#allocation22], 16, 16, 1
    $region41: #{tpu_custom_call.1} parent=1 // pred_fallthru
      _
    // Predicated region
    $region42: #{tpu_custom_call.1} parent=1 // pred_check
      _
    $region43: #{tpu_custom_call.1} parent=1 // pred_check_branch
      %139 = sbr.rel (0) target = $region45
    $region44: #{tpu_custom_call.1} parent=1 // pred_region
      %140 = dma.done [#allocation7], 1408
    $region45: #{tpu_custom_call.1} parent=1 // pred_fallthru
      _
    // Predicated region
    $region46: #{tpu_custom_call.1} parent=1 // pred_check
      _
    $region47: #{tpu_custom_call.1} parent=1 // pred_check_branch
      %142 = sbr.rel (0) target = $region49
    $region48: #{tpu_custom_call.1} parent=1 // pred_region
      %143 = dma.done [#allocation10], 448
    $region49: #{tpu_custom_call.1} parent=1 // pred_fallthru
      _
    // Predicated region
    $region50: #{tpu_custom_call.1} parent=1 // pred_check
      _
    $region51: #{tpu_custom_call.1} parent=1 // pred_check_branch
      %145 = sbr.rel (0) target = $region53
    $region52: #{tpu_custom_call.1} parent=1 // pred_region
      %146 = dma.done [#allocation10], 16
    $region53: #{tpu_custom_call.1} parent=1 // pred_fallthru
      _
    // Predicated region
    $region54: #{tpu_custom_call.1} parent=1 // pred_check
      _
    $region55: #{tpu_custom_call.1} parent=1 // pred_check_branch
      %148 = sbr.rel (0) target = $region57
    $region56: #{tpu_custom_call.1} parent=1 // pred_region
      %149 = dma.done [#allocation13], 16
    $region57: #{tpu_custom_call.1} parent=1 // pred_fallthru
      _
    // Predicated region
    $region58: #{tpu_custom_call.1} parent=1 // pred_check
      _
    $region59: #{tpu_custom_call.1} parent=1 // pred_check_branch
      %151 = sbr.rel (0) target = $region61
    $region60: #{tpu_custom_call.1} parent=1 // pred_region
      %152 = dma.done [#allocation13], 7168
    $region61: #{tpu_custom_call.1} parent=1 // pred_fallthru
      _
    // Predicated region
    $region62: #{tpu_custom_call.1} parent=1 // pred_check
      _
    $region63: #{tpu_custom_call.1} parent=1 // pred_check_branch
      %154 = sbr.rel (0) target = $region65
    $region64: #{tpu_custom_call.1} parent=1 // pred_region
      %155 = dma.done [#allocation16], 64
    $region65: #{tpu_custom_call.1} parent=1 // pred_fallthru
      _
    // Predicated region
    $region66: #{tpu_custom_call.1} parent=1 // pred_check
      _
    $region67: #{tpu_custom_call.1} parent=1 // pred_check_branch
      %157 = sbr.rel (0) target = $region69
    $region68: #{tpu_custom_call.1} parent=1 // pred_region
      %158 = dma.done [#allocation16], 64
    $region69: #{tpu_custom_call.1} parent=1 // pred_fallthru
      _
    // Predicated region
    $region70: #{tpu_custom_call.1} parent=1 // pred_check
      _
    $region71: #{tpu_custom_call.1} parent=1 // pred_check_branch
      %160 = sbr.rel (0) target = $region73
    $region72: #{tpu_custom_call.1} parent=1 // pred_region
      %161 = dma.done [#allocation19], 7168
    $region73: #{tpu_custom_call.1} parent=1 // pred_fallthru
      _
    // Predicated region
    $region74: #{tpu_custom_call.1} parent=1 // pred_check
      _
    $region75: #{tpu_custom_call.1} parent=1 // pred_check_branch
      %163 = sbr.rel (0) target = $region77
    $region76: #{tpu_custom_call.1} parent=1 // pred_region
      %164 = dma.done [#allocation19], 64
    $region77: #{tpu_custom_call.1} parent=1 // pred_fallthru
      _
    // Predicated region
    $region78: #{tpu_custom_call.1} parent=1 // pred_check
      _
    $region79: #{tpu_custom_call.1} parent=1 // pred_check_branch
      %166 = sbr.rel (0) target = $region81
    $region80: #{tpu_custom_call.1} parent=1 // pred_region
      %167 = dma.done [#allocation22], 64
    $region81: #{tpu_custom_call.1} parent=1 // pred_fallthru
      _
    %v169 = vld [vmem:[#allocation6] sm:$0xf]
    %v170 = vld [vmem:[#allocation6 + $0x4] sm:$0xf]
    %v171 = vld [vmem:[#allocation6 + $0x8] sm:$0xf]
    %v172 = vld [vmem:[#allocation6 + $0xc] sm:$0xf]
    %v173 = vld [vmem:[#allocation6 + $0x10] sm:$0xf]
    %v174 = vld [vmem:[#allocation6 + $0x14] sm:$0xf]
    %v175 = vld [vmem:[#allocation6 + $0x18] sm:$0xf]
    %v176 = vld [vmem:[#allocation6 + $0x1c] sm:$0xf]
    %v177 = vld [vmem:[#allocation6 + $0x20] sm:$0xf]
    %v178 = vld [vmem:[#allocation6 + $0x24] sm:$0xf]
    %v179 = vld [vmem:[#allocation6 + $0x28] sm:$0xf]
    %v180 = vld [vmem:[#allocation6 + $0x2c] sm:$0xf]
    %v181 = vld [vmem:[#allocation6 + $0x30] sm:$0xf]
    %v182 = vld [vmem:[#allocation6 + $0x34] sm:$0xf]
    %v183 = vld [vmem:[#allocation6 + $0x38] sm:$0xf]
    %v184 = vld [vmem:[#allocation6 + $0x3c] sm:$0xf]
    %v201 = vunpack.c.l.b16 %v169
    %v202 = vunpack.c.l.b16 %v170
    %v203 = vunpack.c.l.b16 %v171
    %v204 = vunpack.c.l.b16 %v172
    %v205 = vunpack.c.l.b16 %v173
    %v206 = vunpack.c.l.b16 %v174
    %v207 = vunpack.c.l.b16 %v175
    %v208 = vunpack.c.l.b16 %v176
    %v209 = vunpack.c.l.b16 %v177
    %v210 = vunpack.c.l.b16 %v178
    %v211 = vunpack.c.l.b16 %v179
    %v212 = vunpack.c.l.b16 %v180
    %v213 = vunpack.c.l.b16 %v181
    %v214 = vunpack.c.l.b16 %v182
    %v215 = vunpack.c.l.b16 %v183
    %v216 = vunpack.c.l.b16 %v184
    %v217 = vpack.c.b16 %v202, %v201
    %v218 = vpack.c.b16 %v204, %v203
    %v219 = vpack.c.b16 %v206, %v205
    %v220 = vpack.c.b16 %v208, %v207
    %v221 = vpack.c.b16 %v210, %v209
    %v222 = vpack.c.b16 %v212, %v211
    %v223 = vpack.c.b16 %v214, %v213
    %v224 = vpack.c.b16 %v216, %v215
    %vm233 = vcmask 64512
    %234 = vst.msk [vmem:[#allocation3] sm:$0xff] %vm233, %v217
    %235 = vst.msk [vmem:[#allocation3 + $0x8] sm:$0xff] %vm233, %v218
    %236 = vst.msk [vmem:[#allocation3 + $0x10] sm:$0xff] %vm233, %v219
    %237 = vst.msk [vmem:[#allocation3 + $0x18] sm:$0xff] %vm233, %v220
    %238 = vst.msk [vmem:[#allocation3 + $0x20] sm:$0xff] %vm233, %v221
    %239 = vst.msk [vmem:[#allocation3 + $0x28] sm:$0xff] %vm233, %v222
    %240 = vst.msk [vmem:[#allocation3 + $0x30] sm:$0xff] %vm233, %v223
    %241 = vst.msk [vmem:[#allocation3 + $0x38] sm:$0xff] %vm233, %v224
    %v242 = vld [vmem:[#allocation6 + $0x4] sm:$0xf]
    %v243 = vld [vmem:[#allocation6 + $0x8] sm:$0xf]
    %v244 = vld [vmem:[#allocation6 + $0xc] sm:$0xf]
    %v245 = vld [vmem:[#allocation6 + $0x10] sm:$0xf]
    %v246 = vld [vmem:[#allocation6 + $0x14] sm:$0xf]
    %v247 = vld [vmem:[#allocation6 + $0x18] sm:$0xf]
    %v248 = vld [vmem:[#allocation6 + $0x1c] sm:$0xf]
    %v249 = vld [vmem:[#allocation6 + $0x20] sm:$0xf]
    %v250 = vld [vmem:[#allocation6 + $0x24] sm:$0xf]
    %v251 = vld [vmem:[#allocation6 + $0x28] sm:$0xf]
    %v252 = vld [vmem:[#allocation6 + $0x2c] sm:$0xf]
    %v253 = vld [vmem:[#allocation6 + $0x30] sm:$0xf]
    %v254 = vld [vmem:[#allocation6 + $0x34] sm:$0xf]
    %v255 = vld [vmem:[#allocation6 + $0x38] sm:$0xf]
    %v256 = vld [vmem:[#allocation6 + $0x3c] sm:$0xf]
    %v257 = vld [vmem:[#allocation6 + $0x40] sm:$0xf]
    %v274 = vunpack.c.l.b16 %v242
    %v275 = vunpack.c.l.b16 %v243
    %v276 = vunpack.c.l.b16 %v244
    %v277 = vunpack.c.l.b16 %v245
    %v278 = vunpack.c.l.b16 %v246
    %v279 = vunpack.c.l.b16 %v247
    %v280 = vunpack.c.l.b16 %v248
    %v281 = vunpack.c.l.b16 %v249
    %v282 = vunpack.c.l.b16 %v250
    %v283 = vunpack.c.l.b16 %v251
    %v284 = vunpack.c.l.b16 %v252
    %v285 = vunpack.c.l.b16 %v253
    %v286 = vunpack.c.l.b16 %v254
    %v287 = vunpack.c.l.b16 %v255
    %v288 = vunpack.c.l.b16 %v256
    %v289 = vunpack.c.l.b16 %v257
    %v290 = vpack.c.b16 %v275, %v274
    %v291 = vpack.c.b16 %v277, %v276
    %v292 = vpack.c.b16 %v279, %v278
    %v293 = vpack.c.b16 %v281, %v280
    %v294 = vpack.c.b16 %v283, %v282
    %v295 = vpack.c.b16 %v285, %v284
    %v296 = vpack.c.b16 %v287, %v286
    %v297 = vpack.c.b16 %v289, %v288
    %298 = vrot.lane.b32.xlu0 %v290, 8
    %v299 = vpop.permute.xlu0 %298
    %300 = vrot.lane.b32.xlu0 %v291, 8
    %v301 = vpop.permute.xlu0 %300
    %302 = vrot.lane.b32.xlu0 %v292, 8
    %v303 = vpop.permute.xlu0 %302
    %304 = vrot.lane.b32.xlu0 %v293, 8
    %v305 = vpop.permute.xlu0 %304
    %306 = vrot.lane.b32.xlu0 %v294, 8
    %v307 = vpop.permute.xlu0 %306
    %308 = vrot.lane.b32.xlu0 %v295, 8
    %v309 = vpop.permute.xlu0 %308
    %310 = vrot.lane.b32.xlu0 %v296, 8
    %v311 = vpop.permute.xlu0 %310
    %312 = vrot.lane.b32.xlu0 %v297, 8
    %v313 = vpop.permute.xlu0 %312
    %vm322 = vcmask 130112
    %323 = vst.msk [vmem:[#allocation3] sm:$0xff] %vm322, %v299
    %324 = vst.msk [vmem:[#allocation3 + $0x8] sm:$0xff] %vm322, %v301
    %325 = vst.msk [vmem:[#allocation3 + $0x10] sm:$0xff] %vm322, %v303
    %326 = vst.msk [vmem:[#allocation3 + $0x18] sm:$0xff] %vm322, %v305
    %327 = vst.msk [vmem:[#allocation3 + $0x20] sm:$0xff] %vm322, %v307
    %328 = vst.msk [vmem:[#allocation3 + $0x28] sm:$0xff] %vm322, %v309
    %329 = vst.msk [vmem:[#allocation3 + $0x30] sm:$0xff] %vm322, %v311
    %330 = vst.msk [vmem:[#allocation3 + $0x38] sm:$0xff] %vm322, %v313
    %v331 = vld [vmem:[#allocation6 + $0x8] sm:$0xf]
    %v332 = vld [vmem:[#allocation6 + $0xc] sm:$0xf]
    %v333 = vld [vmem:[#allocation6 + $0x10] sm:$0xf]
    %v334 = vld [vmem:[#allocation6 + $0x14] sm:$0xf]
    %v335 = vld [vmem:[#allocation6 + $0x18] sm:$0xf]
    %v336 = vld [vmem:[#allocation6 + $0x1c] sm:$0xf]
    %v337 = vld [vmem:[#allocation6 + $0x20] sm:$0xf]
    %v338 = vld [vmem:[#allocation6 + $0x24] sm:$0xf]
    %v339 = vld [vmem:[#allocation6 + $0x28] sm:$0xf]
    %v340 = vld [vmem:[#allocation6 + $0x2c] sm:$0xf]
    %v341 = vld [vmem:[#allocation6 + $0x30] sm:$0xf]
    %v342 = vld [vmem:[#allocation6 + $0x34] sm:$0xf]
    %v343 = vld [vmem:[#allocation6 + $0x38] sm:$0xf]
    %v344 = vld [vmem:[#allocation6 + $0x3c] sm:$0xf]
    %v345 = vld [vmem:[#allocation6 + $0x40] sm:$0xf]
    %v346 = vld [vmem:[#allocation6 + $0x44] sm:$0xf]
    %v363 = vunpack.c.l.b16 %v331
    %v364 = vunpack.c.l.b16 %v332
    %v365 = vunpack.c.l.b16 %v333
    %v366 = vunpack.c.l.b16 %v334
    %v367 = vunpack.c.l.b16 %v335
    %v368 = vunpack.c.l.b16 %v336
    %v369 = vunpack.c.l.b16 %v337
    %v370 = vunpack.c.l.b16 %v338
    %v371 = vunpack.c.l.b16 %v339
    %v372 = vunpack.c.l.b16 %v340
    %v373 = vunpack.c.l.b16 %v341
    %v374 = vunpack.c.l.b16 %v342
    %v375 = vunpack.c.l.b16 %v343
    %v376 = vunpack.c.l.b16 %v344
    %v377 = vunpack.c.l.b16 %v345
    %v378 = vunpack.c.l.b16 %v346
    %v379 = vpack.c.b16 %v364, %v363
    %v380 = vpack.c.b16 %v366, %v365
    %v381 = vpack.c.b16 %v368, %v367
    %v382 = vpack.c.b16 %v370, %v369
    %v383 = vpack.c.b16 %v372, %v371
    %v384 = vpack.c.b16 %v374, %v373
    %v385 = vpack.c.b16 %v376, %v375
    %v386 = vpack.c.b16 %v378, %v377
    %387 = vrot.lane.b32.xlu0 %v379, 16
    %v388 = vpop.permute.xlu0 %387
    %389 = vrot.lane.b32.xlu0 %v380, 16
    %v390 = vpop.permute.xlu0 %389
    %391 = vrot.lane.b32.xlu0 %v381, 16
    %v392 = vpop.permute.xlu0 %391
    %393 = vrot.lane.b32.xlu0 %v382, 16
    %v394 = vpop.permute.xlu0 %393
    %395 = vrot.lane.b32.xlu0 %v383, 16
    %v396 = vpop.permute.xlu0 %395
    %397 = vrot.lane.b32.xlu0 %v384, 16
    %v398 = vpop.permute.xlu0 %397
    %399 = vrot.lane.b32.xlu0 %v385, 16
    %v400 = vpop.permute.xlu0 %399
    %401 = vrot.lane.b32.xlu0 %v386, 16
    %v402 = vpop.permute.xlu0 %401
    %vm411 = vcmask 195712
    %412 = vst.msk [vmem:[#allocation3] sm:$0xff] %vm411, %v388
    %413 = vst.msk [vmem:[#allocation3 + $0x8] sm:$0xff] %vm411, %v390
    %414 = vst.msk [vmem:[#allocation3 + $0x10] sm:$0xff] %vm411, %v392
    %415 = vst.msk [vmem:[#allocation3 + $0x18] sm:$0xff] %vm411, %v394
    %416 = vst.msk [vmem:[#allocation3 + $0x20] sm:$0xff] %vm411, %v396
    %417 = vst.msk [vmem:[#allocation3 + $0x28] sm:$0xff] %vm411, %v398
    %418 = vst.msk [vmem:[#allocation3 + $0x30] sm:$0xff] %vm411, %v400
    %419 = vst.msk [vmem:[#allocation3 + $0x38] sm:$0xff] %vm411, %v402
    %v420 = vld [vmem:[#allocation6 + $0xc] sm:$0xf]
    %v421 = vld [vmem:[#allocation6 + $0x10] sm:$0xf]
    %v422 = vld [vmem:[#allocation6 + $0x14] sm:$0xf]
    %v423 = vld [vmem:[#allocation6 + $0x18] sm:$0xf]
    %v424 = vld [vmem:[#allocation6 + $0x1c] sm:$0xf]
    %v425 = vld [vmem:[#allocation6 + $0x20] sm:$0xf]
    %v426 = vld [vmem:[#allocation6 + $0x24] sm:$0xf]
    %v427 = vld [vmem:[#allocation6 + $0x28] sm:$0xf]
    %v428 = vld [vmem:[#allocation6 + $0x2c] sm:$0xf]
    %v429 = vld [vmem:[#allocation6 + $0x30] sm:$0xf]
    %v430 = vld [vmem:[#allocation6 + $0x34] sm:$0xf]
    %v431 = vld [vmem:[#allocation6 + $0x38] sm:$0xf]
    %v432 = vld [vmem:[#allocation6 + $0x3c] sm:$0xf]
    %v433 = vld [vmem:[#allocation6 + $0x40] sm:$0xf]
    %v434 = vld [vmem:[#allocation6 + $0x44] sm:$0xf]
    %v435 = vld [vmem:[#allocation6 + $0x48] sm:$0xf]
    %v452 = vunpack.c.l.b16 %v420
    %v453 = vunpack.c.l.b16 %v421
    %v454 = vunpack.c.l.b16 %v422
    %v455 = vunpack.c.l.b16 %v423
    %v456 = vunpack.c.l.b16 %v424
    %v457 = vunpack.c.l.b16 %v425
    %v458 = vunpack.c.l.b16 %v426
    %v459 = vunpack.c.l.b16 %v427
    %v460 = vunpack.c.l.b16 %v428
    %v461 = vunpack.c.l.b16 %v429
    %v462 = vunpack.c.l.b16 %v430
    %v463 = vunpack.c.l.b16 %v431
    %v464 = vunpack.c.l.b16 %v432
    %v465 = vunpack.c.l.b16 %v433
    %v466 = vunpack.c.l.b16 %v434
    %v467 = vunpack.c.l.b16 %v435
    %v468 = vpack.c.b16 %v453, %v452
    %v469 = vpack.c.b16 %v455, %v454
    %v470 = vpack.c.b16 %v457, %v456
    %v471 = vpack.c.b16 %v459, %v458
    %v472 = vpack.c.b16 %v461, %v460
    %v473 = vpack.c.b16 %v463, %v462
    %v474 = vpack.c.b16 %v465, %v464
    %v475 = vpack.c.b16 %v467, %v466
    %476 = vrot.lane.b32.xlu0 %v468, 24
    %v477 = vpop.permute.xlu0 %476
    %478 = vrot.lane.b32.xlu0 %v469, 24
    %v479 = vpop.permute.xlu0 %478
    %480 = vrot.lane.b32.xlu0 %v470, 24
    %v481 = vpop.permute.xlu0 %480
    %482 = vrot.lane.b32.xlu0 %v471, 24
    %v483 = vpop.permute.xlu0 %482
    %484 = vrot.lane.b32.xlu0 %v472, 24
    %v485 = vpop.permute.xlu0 %484
    %486 = vrot.lane.b32.xlu0 %v473, 24
    %v487 = vpop.permute.xlu0 %486
    %488 = vrot.lane.b32.xlu0 %v474, 24
    %v489 = vpop.permute.xlu0 %488
    %490 = vrot.lane.b32.xlu0 %v475, 24
    %v491 = vpop.permute.xlu0 %490
    %vm500 = vcmask 261312
    %501 = vst.msk [vmem:[#allocation3] sm:$0xff] %vm500, %v477
    %502 = vst.msk [vmem:[#allocation3 + $0x8] sm:$0xff] %vm500, %v479
    %503 = vst.msk [vmem:[#allocation3 + $0x10] sm:$0xff] %vm500, %v481
    %504 = vst.msk [vmem:[#allocation3 + $0x18] sm:$0xff] %vm500, %v483
    %505 = vst.msk [vmem:[#allocation3 + $0x20] sm:$0xff] %vm500, %v485
    %506 = vst.msk [vmem:[#allocation3 + $0x28] sm:$0xff] %vm500, %v487
    %507 = vst.msk [vmem:[#allocation3 + $0x30] sm:$0xff] %vm500, %v489
    %508 = vst.msk [vmem:[#allocation3 + $0x38] sm:$0xff] %vm500, %v491
    %v509 = vld [vmem:[#allocation6 + $0x10] sm:$0xf]
    %v510 = vld [vmem:[#allocation6 + $0x14] sm:$0xf]
    %v511 = vld [vmem:[#allocation6 + $0x18] sm:$0xf]
    %v512 = vld [vmem:[#allocation6 + $0x1c] sm:$0xf]
    %v513 = vld [vmem:[#allocation6 + $0x20] sm:$0xf]
    %v514 = vld [vmem:[#allocation6 + $0x24] sm:$0xf]
    %v515 = vld [vmem:[#allocation6 + $0x28] sm:$0xf]
    %v516 = vld [vmem:[#allocation6 + $0x2c] sm:$0xf]
    %v517 = vld [vmem:[#allocation6 + $0x30] sm:$0xf]
    %v518 = vld [vmem:[#allocation6 + $0x34] sm:$0xf]
    %v519 = vld [vmem:[#allocation6 + $0x38] sm:$0xf]
    %v520 = vld [vmem:[#allocation6 + $0x3c] sm:$0xf]
    %v521 = vld [vmem:[#allocation6 + $0x40] sm:$0xf]
    %v522 = vld [vmem:[#allocation6 + $0x44] sm:$0xf]
    %v523 = vld [vmem:[#allocation6 + $0x48] sm:$0xf]
    %v524 = vld [vmem:[#allocation6 + $0x4c] sm:$0xf]
    %v541 = vunpack.c.l.b16 %v509
    %v542 = vunpack.c.l.b16 %v510
    %v543 = vunpack.c.l.b16 %v511
    %v544 = vunpack.c.l.b16 %v512
    %v545 = vunpack.c.l.b16 %v513
    %v546 = vunpack.c.l.b16 %v514
    %v547 = vunpack.c.l.b16 %v515
    %v548 = vunpack.c.l.b16 %v516
    %v549 = vunpack.c.l.b16 %v517
    %v550 = vunpack.c.l.b16 %v518
    %v551 = vunpack.c.l.b16 %v519
    %v552 = vunpack.c.l.b16 %v520
    %v553 = vunpack.c.l.b16 %v521
    %v554 = vunpack.c.l.b16 %v522
    %v555 = vunpack.c.l.b16 %v523
    %v556 = vunpack.c.l.b16 %v524
    %v557 = vpack.c.b16 %v542, %v541
    %v558 = vpack.c.b16 %v544, %v543
    %v559 = vpack.c.b16 %v546, %v545
    %v560 = vpack.c.b16 %v548, %v547
    %v561 = vpack.c.b16 %v550, %v549
    %v562 = vpack.c.b16 %v552, %v551
    %v563 = vpack.c.b16 %v554, %v553
    %v564 = vpack.c.b16 %v556, %v555
    %565 = vrot.lane.b32.xlu0 %v557, 32
    %v566 = vpop.permute.xlu0 %565
    %567 = vrot.lane.b32.xlu0 %v558, 32
    %v568 = vpop.permute.xlu0 %567
    %569 = vrot.lane.b32.xlu0 %v559, 32
    %v570 = vpop.permute.xlu0 %569
    %571 = vrot.lane.b32.xlu0 %v560, 32
    %v572 = vpop.permute.xlu0 %571
    %573 = vrot.lane.b32.xlu0 %v561, 32
    %v574 = vpop.permute.xlu0 %573
    %575 = vrot.lane.b32.xlu0 %v562, 32
    %v576 = vpop.permute.xlu0 %575
    %577 = vrot.lane.b32.xlu0 %v563, 32
    %v578 = vpop.permute.xlu0 %577
    %579 = vrot.lane.b32.xlu0 %v564, 32
    %v580 = vpop.permute.xlu0 %579
    %vm589 = vcmask 326912
    %590 = vst.msk [vmem:[#allocation3] sm:$0xff] %vm589, %v566
    %591 = vst.msk [vmem:[#allocation3 + $0x8] sm:$0xff] %vm589, %v568
    %592 = vst.msk [vmem:[#allocation3 + $0x10] sm:$0xff] %vm589, %v570
    %593 = vst.msk [vmem:[#allocation3 + $0x18] sm:$0xff] %vm589, %v572
    %594 = vst.msk [vmem:[#allocation3 + $0x20] sm:$0xff] %vm589, %v574
    %595 = vst.msk [vmem:[#allocation3 + $0x28] sm:$0xff] %vm589, %v576
    %596 = vst.msk [vmem:[#allocation3 + $0x30] sm:$0xff] %vm589, %v578
    %597 = vst.msk [vmem:[#allocation3 + $0x38] sm:$0xff] %vm589, %v580
    %v598 = vld [vmem:[#allocation6 + $0x14] sm:$0xf]
    %v599 = vld [vmem:[#allocation6 + $0x18] sm:$0xf]
    %v600 = vld [vmem:[#allocation6 + $0x1c] sm:$0xf]
    %v601 = vld [vmem:[#allocation6 + $0x20] sm:$0xf]
    %v602 = vld [vmem:[#allocation6 + $0x24] sm:$0xf]
    %v603 = vld [vmem:[#allocation6 + $0x28] sm:$0xf]
    %v604 = vld [vmem:[#allocation6 + $0x2c] sm:$0xf]
    %v605 = vld [vmem:[#allocation6 + $0x30] sm:$0xf]
    %v606 = vld [vmem:[#allocation6 + $0x34] sm:$0xf]
    %v607 = vld [vmem:[#allocation6 + $0x38] sm:$0xf]
    %v608 = vld [vmem:[#allocation6 + $0x3c] sm:$0xf]
    %v609 = vld [vmem:[#allocation6 + $0x40] sm:$0xf]
    %v610 = vld [vmem:[#allocation6 + $0x44] sm:$0xf]
    %v611 = vld [vmem:[#allocation6 + $0x48] sm:$0xf]
    %v612 = vld [vmem:[#allocation6 + $0x4c] sm:$0xf]
    %v613 = vld [vmem:[#allocation6 + $0x50] sm:$0xf]
    %v630 = vunpack.c.l.b16 %v598
    %v631 = vunpack.c.l.b16 %v599
    %v632 = vunpack.c.l.b16 %v600
    %v633 = vunpack.c.l.b16 %v601
    %v634 = vunpack.c.l.b16 %v602
    %v635 = vunpack.c.l.b16 %v603
    %v636 = vunpack.c.l.b16 %v604
    %v637 = vunpack.c.l.b16 %v605
    %v638 = vunpack.c.l.b16 %v606
    %v639 = vunpack.c.l.b16 %v607
    %v640 = vunpack.c.l.b16 %v608
    %v641 = vunpack.c.l.b16 %v609
    %v642 = vunpack.c.l.b16 %v610
    %v643 = vunpack.c.l.b16 %v611
    %v644 = vunpack.c.l.b16 %v612
    %v645 = vunpack.c.l.b16 %v613
    %v646 = vpack.c.b16 %v631, %v630
    %v647 = vpack.c.b16 %v633, %v632
    %v648 = vpack.c.b16 %v635, %v634
    %v649 = vpack.c.b16 %v637, %v636
    %v650 = vpack.c.b16 %v639, %v638
    %v651 = vpack.c.b16 %v641, %v640
    %v652 = vpack.c.b16 %v643, %v642
    %v653 = vpack.c.b16 %v645, %v644
    %654 = vrot.lane.b32.xlu0 %v646, 40
    %v655 = vpop.permute.xlu0 %654
    %656 = vrot.lane.b32.xlu0 %v647, 40
    %v657 = vpop.permute.xlu0 %656
    %658 = vrot.lane.b32.xlu0 %v648, 40
    %v659 = vpop.permute.xlu0 %658
    %660 = vrot.lane.b32.xlu0 %v649, 40
    %v661 = vpop.permute.xlu0 %660
    %662 = vrot.lane.b32.xlu0 %v650, 40
    %v663 = vpop.permute.xlu0 %662
    %664 = vrot.lane.b32.xlu0 %v651, 40
    %v665 = vpop.permute.xlu0 %664
    %666 = vrot.lane.b32.xlu0 %v652, 40
    %v667 = vpop.permute.xlu0 %666
    %668 = vrot.lane.b32.xlu0 %v653, 40
    %v669 = vpop.permute.xlu0 %668
    %vm678 = vcmask 392512
    %679 = vst.msk [vmem:[#allocation3] sm:$0xff] %vm678, %v655
    %680 = vst.msk [vmem:[#allocation3 + $0x8] sm:$0xff] %vm678, %v657
    %681 = vst.msk [vmem:[#allocation3 + $0x10] sm:$0xff] %vm678, %v659
    %682 = vst.msk [vmem:[#allocation3 + $0x18] sm:$0xff] %vm678, %v661
    %683 = vst.msk [vmem:[#allocation3 + $0x20] sm:$0xff] %vm678, %v663
    %684 = vst.msk [vmem:[#allocation3 + $0x28] sm:$0xff] %vm678, %v665
    %685 = vst.msk [vmem:[#allocation3 + $0x30] sm:$0xff] %vm678, %v667
    %686 = vst.msk [vmem:[#allocation3 + $0x38] sm:$0xff] %vm678, %v669
    %v687 = vld [vmem:[#allocation6 + $0x18] sm:$0xf]
    %v688 = vld [vmem:[#allocation6 + $0x1c] sm:$0xf]
    %v689 = vld [vmem:[#allocation6 + $0x20] sm:$0xf]
    %v690 = vld [vmem:[#allocation6 + $0x24] sm:$0xf]
    %v691 = vld [vmem:[#allocation6 + $0x28] sm:$0xf]
    %v692 = vld [vmem:[#allocation6 + $0x2c] sm:$0xf]
    %v693 = vld [vmem:[#allocation6 + $0x30] sm:$0xf]
    %v694 = vld [vmem:[#allocation6 + $0x34] sm:$0xf]
    %v695 = vld [vmem:[#allocation6 + $0x38] sm:$0xf]
    %v696 = vld [vmem:[#allocation6 + $0x3c] sm:$0xf]
    %v697 = vld [vmem:[#allocation6 + $0x40] sm:$0xf]
    %v698 = vld [vmem:[#allocation6 + $0x44] sm:$0xf]
    %v699 = vld [vmem:[#allocation6 + $0x48] sm:$0xf]
    %v700 = vld [vmem:[#allocation6 + $0x4c] sm:$0xf]
    %v701 = vld [vmem:[#allocation6 + $0x50] sm:$0xf]
    %v702 = vld [vmem:[#allocation6 + $0x54] sm:$0xf]
    %v719 = vunpack.c.l.b16 %v687
    %v720 = vunpack.c.l.b16 %v688
    %v721 = vunpack.c.l.b16 %v689
    %v722 = vunpack.c.l.b16 %v690
    %v723 = vunpack.c.l.b16 %v691
    %v724 = vunpack.c.l.b16 %v692
    %v725 = vunpack.c.l.b16 %v693
    %v726 = vunpack.c.l.b16 %v694
    %v727 = vunpack.c.l.b16 %v695
    %v728 = vunpack.c.l.b16 %v696
    %v729 = vunpack.c.l.b16 %v697
    %v730 = vunpack.c.l.b16 %v698
    %v731 = vunpack.c.l.b16 %v699
    %v732 = vunpack.c.l.b16 %v700
    %v733 = vunpack.c.l.b16 %v701
    %v734 = vunpack.c.l.b16 %v702
    %v735 = vpack.c.b16 %v720, %v719
    %v736 = vpack.c.b16 %v722, %v721
    %v737 = vpack.c.b16 %v724, %v723
    %v738 = vpack.c.b16 %v726, %v725
    %v739 = vpack.c.b16 %v728, %v727
    %v740 = vpack.c.b16 %v730, %v729
    %v741 = vpack.c.b16 %v732, %v731
    %v742 = vpack.c.b16 %v734, %v733
    %743 = vrot.lane.b32.xlu0 %v735, 48
    %v744 = vpop.permute.xlu0 %743
    %745 = vrot.lane.b32.xlu0 %v736, 48
    %v746 = vpop.permute.xlu0 %745
    %747 = vrot.lane.b32.xlu0 %v737, 48
    %v748 = vpop.permute.xlu0 %747
    %749 = vrot.lane.b32.xlu0 %v738, 48
    %v750 = vpop.permute.xlu0 %749
    %751 = vrot.lane.b32.xlu0 %v739, 48
    %v752 = vpop.permute.xlu0 %751
    %753 = vrot.lane.b32.xlu0 %v740, 48
    %v754 = vpop.permute.xlu0 %753
    %755 = vrot.lane.b32.xlu0 %v741, 48
    %v756 = vpop.permute.xlu0 %755
    %757 = vrot.lane.b32.xlu0 %v742, 48
    %v758 = vpop.permute.xlu0 %757
    %vm767 = vcmask 458112
    %768 = vst.msk [vmem:[#allocation3] sm:$0xff] %vm767, %v744
    %769 = vst.msk [vmem:[#allocation3 + $0x8] sm:$0xff] %vm767, %v746
    %770 = vst.msk [vmem:[#allocation3 + $0x10] sm:$0xff] %vm767, %v748
    %771 = vst.msk [vmem:[#allocation3 + $0x18] sm:$0xff] %vm767, %v750
    %772 = vst.msk [vmem:[#allocation3 + $0x20] sm:$0xff] %vm767, %v752
    %773 = vst.msk [vmem:[#allocation3 + $0x28] sm:$0xff] %vm767, %v754
    %774 = vst.msk [vmem:[#allocation3 + $0x30] sm:$0xff] %vm767, %v756
    %775 = vst.msk [vmem:[#allocation3 + $0x38] sm:$0xff] %vm767, %v758
    %v776 = vld [vmem:[#allocation3] sm:$0xff]
    %v777 = vld [vmem:[#allocation3 + $0x8] sm:$0xff]
    %v778 = vld [vmem:[#allocation3 + $0x10] sm:$0xff]
    %v779 = vld [vmem:[#allocation3 + $0x18] sm:$0xff]
    %v780 = vld [vmem:[#allocation3 + $0x20] sm:$0xff]
    %v781 = vld [vmem:[#allocation3 + $0x28] sm:$0xff]
    %v782 = vld [vmem:[#allocation3 + $0x30] sm:$0xff]
    %v783 = vld [vmem:[#allocation3 + $0x38] sm:$0xff]
    %v784 = vld [vmem:[#allocation9] sm:$0xf]
    %v785 = vld [vmem:[#allocation9 + $0x4] sm:$0xf]
    %v786 = vld [vmem:[#allocation9 + $0x8] sm:$0xf]
    %v787 = vld [vmem:[#allocation9 + $0xc] sm:$0xf]
    %v788 = vld [vmem:[#allocation9 + $0x10] sm:$0xf]
    %v789 = vld [vmem:[#allocation9 + $0x14] sm:$0xf]
    %v790 = vld [vmem:[#allocation9 + $0x18] sm:$0xf]
    %v798 = vunpack.c.l.b16 %v784
    %v799 = vunpack.c.l.b16 %v785
    %v800 = vunpack.c.l.b16 %v786
    %v801 = vunpack.c.l.b16 %v787
    %v802 = vunpack.c.l.b16 %v788
    %v803 = vunpack.c.l.b16 %v789
    %v804 = vunpack.c.l.b16 %v790
    %v805 = vpack.c.b16 %v799, %v798
    %v806 = vpack.c.b16 %v801, %v800
    %v807 = vpack.c.b16 %v803, %v802
    %v808 = vpack.c.b16 %v804, %v804
    %vm812 = vcmask 457728
    %v814 = vsel %vm812, %v776, 0
    %v817 = vsel %vm812, %v777, 0
    %v820 = vsel %vm812, %v778, 0
    %v823 = vsel %vm812, %v779, 0
    %v826 = vsel %vm812, %v780, 0
    %v829 = vsel %vm812, %v781, 0
    %v832 = vsel %vm812, %v782, 0
    %v835 = vsel %vm812, %v783, 0
    %vm837 = vcmask 1043456
    %v839 = vsel %vm837, %v808, 0
    %841 = vmatprep.subr.bf16.mxu0 0
    %842 = vmatpush1.bf16.msra.mxu0 %v805
    %843 = vmatprep.subr.bf16.mxu0 0
    %844 = vmatpush1.bf16.msra.mxu0 %v806
    %845 = vmatprep.subr.bf16.mxu0 0
    %846 = vmatpush1.bf16.msra.mxu0 %v807
    %847 = vmatprep.subr.bf16.mxu0 0
    %848 = vmatpush1.bf16.msra.mxu0 %v839
    %849 = vmatprep.subr.bf16.mxu0 0
    %850 = vmatpush1.bf16.msra.mxu0 0
    %851 = vmatprep.subr.bf16.mxu0 0
    %852 = vmatpush1.bf16.msra.mxu0 0
    %853 = vmatprep.subr.bf16.mxu0 0
    %854 = vmatpush1.bf16.msra.mxu0 0
    %855 = vmatprep.subr.bf16.mxu0 0
    %856 = vmatpush1.bf16.msra.mxu0 0
    %857 = vmatprep.subr.bf16.mxu0 0
    %858 = vmatpush1.bf16.msra.mxu0 0
    %859 = vmatprep.subr.bf16.mxu0 0
    %860 = vmatpush1.bf16.msra.mxu0 0
    %861 = vmatprep.subr.bf16.mxu0 0
    %862 = vmatpush1.bf16.msra.mxu0 0
    %863 = vmatprep.subr.bf16.mxu0 0
    %864 = vmatpush1.bf16.msra.mxu0 0
    %865 = vmatprep.subr.bf16.mxu0 0
    %866 = vmatpush1.bf16.msra.mxu0 0
    %867 = vmatprep.subr.bf16.mxu0 0
    %868 = vmatpush1.bf16.msra.mxu0 0
    %869 = vmatprep.subr.bf16.mxu0 0
    %870 = vmatpush1.bf16.msra.mxu0 0
    %871 = vmatprep.subr.bf16.mxu0 0
    %872 = vmatpush1.bf16.msra.mxu0 0
    %873 = vmatprep.mubr.bf16.mxu0 0
    %874 = vmatmul.mubr.bf16.gmra.mrb[0].mxu0 %v814
    %v875 = vpop.f32.mrb[0].mxu0
    %v876 = vadd.f32 0.0, %v875
    %v877 = vpop.f32.mrb[0].mxu0
    %v878 = vpop.f32.mrb[0].mxu0
    %v879 = vadd.f32 0.0, %v878
    %v880 = vpop.f32.mrb[0].mxu0
    %881 = vmatprep.mubr.bf16.mxu0 0
    %882 = vmatmul.mubr.bf16.gmra.mrb[0].mxu0 %v817
    %v883 = vpop.f32.mrb[0].mxu0
    %v884 = vadd.f32 0.0, %v883
    %v885 = vpop.f32.mrb[0].mxu0
    %v886 = vpop.f32.mrb[0].mxu0
    %v887 = vadd.f32 0.0, %v886
    %v888 = vpop.f32.mrb[0].mxu0
    %889 = vmatprep.mubr.bf16.mxu0 0
    %890 = vmatmul.mubr.bf16.gmra.mrb[0].mxu0 %v820
    %v891 = vpop.f32.mrb[0].mxu0
    %v892 = vadd.f32 0.0, %v891
    %v893 = vpop.f32.mrb[0].mxu0
    %v894 = vpop.f32.mrb[0].mxu0
    %v895 = vadd.f32 0.0, %v894
    %v896 = vpop.f32.mrb[0].mxu0
    %897 = vmatprep.mubr.bf16.mxu0 0
    %898 = vmatmul.mubr.bf16.gmra.mrb[0].mxu0 %v823
    %v899 = vpop.f32.mrb[0].mxu0
    %v900 = vadd.f32 0.0, %v899
    %v901 = vpop.f32.mrb[0].mxu0
    %v902 = vpop.f32.mrb[0].mxu0
    %v903 = vadd.f32 0.0, %v902
    %v904 = vpop.f32.mrb[0].mxu0
    %905 = vmatprep.mubr.bf16.mxu0 0
    %906 = vmatmul.mubr.bf16.gmra.mrb[0].mxu0 %v826
    %v907 = vpop.f32.mrb[0].mxu0
    %v908 = vadd.f32 0.0, %v907
    %v909 = vpop.f32.mrb[0].mxu0
    %v910 = vpop.f32.mrb[0].mxu0
    %v911 = vadd.f32 0.0, %v910
    %v912 = vpop.f32.mrb[0].mxu0
    %913 = vmatprep.mubr.bf16.mxu0 0
    %914 = vmatmul.mubr.bf16.gmra.mrb[0].mxu0 %v829
    %v915 = vpop.f32.mrb[0].mxu0
    %v916 = vadd.f32 0.0, %v915
    %v917 = vpop.f32.mrb[0].mxu0
    %v918 = vpop.f32.mrb[0].mxu0
    %v919 = vadd.f32 0.0, %v918
    %v920 = vpop.f32.mrb[0].mxu0
    %921 = vmatprep.mubr.bf16.mxu0 0
    %922 = vmatmul.mubr.bf16.gmra.mrb[0].mxu0 %v832
    %v923 = vpop.f32.mrb[0].mxu0
    %v924 = vadd.f32 0.0, %v923
    %v925 = vpop.f32.mrb[0].mxu0
    %v926 = vpop.f32.mrb[0].mxu0
    %v927 = vadd.f32 0.0, %v926
    %v928 = vpop.f32.mrb[0].mxu0
    %929 = vmatprep.mubr.bf16.mxu0 0
    %930 = vmatmul.mubr.bf16.gmra.mrb[0].mxu0 %v835
    %v931 = vpop.f32.mrb[0].mxu0
    %v932 = vadd.f32 0.0, %v931
    %v933 = vpop.f32.mrb[0].mxu0
    %v934 = vpop.f32.mrb[0].mxu0
    %v935 = vadd.f32 0.0, %v934
    %v936 = vpop.f32.mrb[0].mxu0
    %937 = vdwg.mxu0
    %v938 = vld [vmem:[#allocation11] sm:$0x1]
    %v940 = vlaneseq
    %v941 = vshrl.u32 %v940, 7
    %v942 = vsub.s32 0, %v941
    %v943 = vrot.slane %v938, %v942
    %v945 = vmul.f32 %v876, %v943
    %v946 = vmul.f32 %v879, %v943
    %v947 = vmul.f32 %v884, %v943
    %v948 = vmul.f32 %v887, %v943
    %v949 = vmul.f32 %v892, %v943
    %v950 = vmul.f32 %v895, %v943
    %v951 = vmul.f32 %v900, %v943
    %v952 = vmul.f32 %v903, %v943
    %v953 = vmul.f32 %v908, %v943
    %v954 = vmul.f32 %v911, %v943
    %v955 = vmul.f32 %v916, %v943
    %v956 = vmul.f32 %v919, %v943
    %v957 = vmul.f32 %v924, %v943
    %v958 = vmul.f32 %v927, %v943
    %v959 = vmul.f32 %v932, %v943
    %v960 = vmul.f32 %v935, %v943
    %v961 = vld [vmem:[#allocation12] sm:$0x1]
    %v963 = vlaneseq
    %v964 = vshrl.u32 %v963, 7
    %v965 = vsub.s32 0, %v964
    %v966 = vrot.slane %v961, %v965
    %v968 = vadd.f32 %v945, %v966
    %v969 = vadd.f32 %v946, %v966
    %v970 = vadd.f32 %v947, %v966
    %v971 = vadd.f32 %v948, %v966
    %v972 = vadd.f32 %v949, %v966
    %v973 = vadd.f32 %v950, %v966
    %v974 = vadd.f32 %v951, %v966
    %v975 = vadd.f32 %v952, %v966
    %v976 = vadd.f32 %v953, %v966
    %v977 = vadd.f32 %v954, %v966
    %v978 = vadd.f32 %v955, %v966
    %v979 = vadd.f32 %v956, %v966
    %v980 = vadd.f32 %v957, %v966
    %v981 = vadd.f32 %v958, %v966
    %v982 = vadd.f32 %v959, %v966
    %v983 = vadd.f32 %v960, %v966
    %v984 = vmax.f32 %v968, 0.0
    %v985 = vmax.f32 %v969, 0.0
    %v986 = vmax.f32 %v970, 0.0
    %v987 = vmax.f32 %v971, 0.0
    %v988 = vmax.f32 %v972, 0.0
    %v989 = vmax.f32 %v973, 0.0
    %v990 = vmax.f32 %v974, 0.0
    %v991 = vmax.f32 %v975, 0.0
    %v992 = vmax.f32 %v976, 0.0
    %v993 = vmax.f32 %v977, 0.0
    %v994 = vmax.f32 %v978, 0.0
    %v995 = vmax.f32 %v979, 0.0
    %v996 = vmax.f32 %v980, 0.0
    %v997 = vmax.f32 %v981, 0.0
    %v998 = vmax.f32 %v982, 0.0
    %v999 = vmax.f32 %v983, 0.0
    %v1000 = vpack.c.bf16 %v985, %v984
    %v1001 = vpack.c.bf16 %v987, %v986
    %v1002 = vpack.c.bf16 %v989, %v988
    %v1003 = vpack.c.bf16 %v991, %v990
    %v1004 = vpack.c.bf16 %v993, %v992
    %v1005 = vpack.c.bf16 %v995, %v994
    %v1006 = vpack.c.bf16 %v997, %v996
    %v1007 = vpack.c.bf16 %v999, %v998
    %1008 = vst [vmem:[#allocation5] sm:$0xff] %v1000
    %1009 = vst [vmem:[#allocation5 + $0x8] sm:$0xff] %v1001
    %1010 = vst [vmem:[#allocation5 + $0x10] sm:$0xff] %v1002
    %1011 = vst [vmem:[#allocation5 + $0x18] sm:$0xff] %v1003
    %1012 = vst [vmem:[#allocation5 + $0x20] sm:$0xff] %v1004
    %1013 = vst [vmem:[#allocation5 + $0x28] sm:$0xff] %v1005
    %1014 = vst [vmem:[#allocation5 + $0x30] sm:$0xff] %v1006
    %1015 = vst [vmem:[#allocation5 + $0x38] sm:$0xff] %v1007
    %vm1016 = vcmask 261120
    %1017 = vst.msk [vmem:[#allocation2] sm:$0xff] %vm1016, 0
    %vm1018 = vcmask 257024
    %1019 = vst.msk [vmem:[#allocation2 + $0x8] sm:$0xf] %vm1018, 0
    %vm1020 = vcmask 261124
    %1021 = vst.msk [vmem:[#allocation2 + $0x48] sm:$0xf0] %vm1020, 0
    %1022 = vst.msk [vmem:[#allocation2 + $0x50] sm:$0xff] %vm1016, 0
    %v1023 = vld [vmem:[#allocation5] sm:$0xff]
    %v1024 = vld [vmem:[#allocation5 + $0x8] sm:$0xff]
    %v1025 = vld [vmem:[#allocation5 + $0x10] sm:$0xff]
    %v1026 = vld [vmem:[#allocation5 + $0x18] sm:$0xff]
    %v1027 = vld [vmem:[#allocation5 + $0x20] sm:$0xff]
    %v1028 = vld [vmem:[#allocation5 + $0x28] sm:$0xff]
    %v1029 = vld [vmem:[#allocation5 + $0x30] sm:$0xff]
    %v1030 = vld [vmem:[#allocation5 + $0x38] sm:$0xff]
    %vm1039 = vcmask 1043456
    %v1040 = vrot.slane %v1023, 4
    %v1041 = vrot.slane %v1024, 4
    %v1042 = vsel %vm1039, %v1040, %v1041
    %v1043 = vrot.slane %v1025, 4
    %v1044 = vsel %vm1039, %v1041, %v1043
    %v1045 = vrot.slane %v1026, 4
    %v1046 = vsel %vm1039, %v1043, %v1045
    %v1047 = vrot.slane %v1027, 4
    %v1048 = vsel %vm1039, %v1045, %v1047
    %v1049 = vrot.slane %v1028, 4
    %v1050 = vsel %vm1039, %v1047, %v1049
    %v1051 = vrot.slane %v1029, 4
    %v1052 = vsel %vm1039, %v1049, %v1051
    %v1053 = vrot.slane %v1030, 4
    %v1054 = vsel %vm1039, %v1051, %v1053
    %1064 = vst.msk [vmem:[#allocation2 + $0x8] sm:$0xf0] %vm1020, %v1040
    %1065 = vst.msk [vmem:[#allocation2 + $0x10] sm:$0xff] %vm1016, %v1042
    %1066 = vst.msk [vmem:[#allocation2 + $0x18] sm:$0xff] %vm1016, %v1044
    %1067 = vst.msk [vmem:[#allocation2 + $0x20] sm:$0xff] %vm1016, %v1046
    %1068 = vst.msk [vmem:[#allocation2 + $0x28] sm:$0xff] %vm1016, %v1048
    %1069 = vst.msk [vmem:[#allocation2 + $0x30] sm:$0xff] %vm1016, %v1050
    %1070 = vst.msk [vmem:[#allocation2 + $0x38] sm:$0xff] %vm1016, %v1052
    %1071 = vst.msk [vmem:[#allocation2 + $0x40] sm:$0xff] %vm1016, %v1054
    %1072 = vst.msk [vmem:[#allocation2 + $0x48] sm:$0xf] %vm1018, %v1053
    %v1073 = vld [vmem:[#allocation2] sm:$0xff]
    %v1074 = vld [vmem:[#allocation2 + $0x8] sm:$0xff]
    %v1075 = vld [vmem:[#allocation2 + $0x10] sm:$0xff]
    %v1076 = vld [vmem:[#allocation2 + $0x18] sm:$0xff]
    %v1077 = vld [vmem:[#allocation2 + $0x20] sm:$0xff]
    %v1078 = vld [vmem:[#allocation2 + $0x28] sm:$0xff]
    %v1079 = vld [vmem:[#allocation2 + $0x30] sm:$0xff]
    %v1080 = vld [vmem:[#allocation2 + $0x38] sm:$0xff]
    %1081 = vst.msk [vmem:[#allocation4] sm:$0xff] %vm1016, %v1073
    %1082 = vst.msk [vmem:[#allocation4 + $0x10] sm:$0xff] %vm1016, %v1074
    %1083 = vst.msk [vmem:[#allocation4 + $0x20] sm:$0xff] %vm1016, %v1075
    %1084 = vst.msk [vmem:[#allocation4 + $0x30] sm:$0xff] %vm1016, %v1076
    %1085 = vst.msk [vmem:[#allocation4 + $0x40] sm:$0xff] %vm1016, %v1077
    %1086 = vst.msk [vmem:[#allocation4 + $0x50] sm:$0xff] %vm1016, %v1078
    %1087 = vst.msk [vmem:[#allocation4 + $0x60] sm:$0xff] %vm1016, %v1079
    %1088 = vst.msk [vmem:[#allocation4 + $0x70] sm:$0xff] %vm1016, %v1080
    %v1089 = vld [vmem:[#allocation2] sm:$0xf0]
    %v1090 = vld [vmem:[#allocation2 + $0x8] sm:$0xff]
    %v1091 = vld [vmem:[#allocation2 + $0x10] sm:$0xff]
    %v1092 = vld [vmem:[#allocation2 + $0x18] sm:$0xff]
    %v1093 = vld [vmem:[#allocation2 + $0x20] sm:$0xff]
    %v1094 = vld [vmem:[#allocation2 + $0x28] sm:$0xff]
    %v1095 = vld [vmem:[#allocation2 + $0x30] sm:$0xff]
    %v1096 = vld [vmem:[#allocation2 + $0x38] sm:$0xff]
    %v1097 = vld [vmem:[#allocation2 + $0x40] sm:$0xf]
    %v1107 = vrot.slane %v1089, 4
    %v1108 = vrot.slane %v1090, 4
    %v1109 = vsel %vm1039, %v1107, %v1108
    %v1110 = vrot.slane %v1091, 4
    %v1111 = vsel %vm1039, %v1108, %v1110
    %v1112 = vrot.slane %v1092, 4
    %v1113 = vsel %vm1039, %v1110, %v1112
    %v1114 = vrot.slane %v1093, 4
    %v1115 = vsel %vm1039, %v1112, %v1114
    %v1116 = vrot.slane %v1094, 4
    %v1117 = vsel %vm1039, %v1114, %v1116
    %v1118 = vrot.slane %v1095, 4
    %v1119 = vsel %vm1039, %v1116, %v1118
    %v1120 = vrot.slane %v1096, 4
    %v1121 = vsel %vm1039, %v1118, %v1120
    %v1122 = vrot.slane %v1097, 4
    %v1123 = vsel %vm1039, %v1120, %v1122
    %1124 = vrot.lane.b32.xlu0 %v1109, 32
    %v1125 = vpop.permute.xlu0 %1124
    %1126 = vrot.lane.b32.xlu0 %v1111, 32
    %v1127 = vpop.permute.xlu0 %1126
    %1128 = vrot.lane.b32.xlu0 %v1113, 32
    %v1129 = vpop.permute.xlu0 %1128
    %1130 = vrot.lane.b32.xlu0 %v1115, 32
    %v1131 = vpop.permute.xlu0 %1130
    %1132 = vrot.lane.b32.xlu0 %v1117, 32
    %v1133 = vpop.permute.xlu0 %1132
    %1134 = vrot.lane.b32.xlu0 %v1119, 32
    %v1135 = vpop.permute.xlu0 %1134
    %1136 = vrot.lane.b32.xlu0 %v1121, 32
    %v1137 = vpop.permute.xlu0 %1136
    %1138 = vrot.lane.b32.xlu0 %v1123, 32
    %v1139 = vpop.permute.xlu0 %1138
    %vm1148 = vcmask 523520
    %1149 = vst.msk [vmem:[#allocation4] sm:$0xff] %vm1148, %v1125
    %1150 = vst.msk [vmem:[#allocation4 + $0x10] sm:$0xff] %vm1148, %v1127
    %1151 = vst.msk [vmem:[#allocation4 + $0x20] sm:$0xff] %vm1148, %v1129
    %1152 = vst.msk [vmem:[#allocation4 + $0x30] sm:$0xff] %vm1148, %v1131
    %1153 = vst.msk [vmem:[#allocation4 + $0x40] sm:$0xff] %vm1148, %v1133
    %1154 = vst.msk [vmem:[#allocation4 + $0x50] sm:$0xff] %vm1148, %v1135
    %1155 = vst.msk [vmem:[#allocation4 + $0x60] sm:$0xff] %vm1148, %v1137
    %1156 = vst.msk [vmem:[#allocation4 + $0x70] sm:$0xff] %vm1148, %v1139
    %v1157 = vld [vmem:[#allocation2 + $0x8] sm:$0xff]
    %v1158 = vld [vmem:[#allocation2 + $0x10] sm:$0xff]
    %v1159 = vld [vmem:[#allocation2 + $0x18] sm:$0xff]
    %v1160 = vld [vmem:[#allocation2 + $0x20] sm:$0xff]
    %v1161 = vld [vmem:[#allocation2 + $0x28] sm:$0xff]
    %v1162 = vld [vmem:[#allocation2 + $0x30] sm:$0xff]
    %v1163 = vld [vmem:[#allocation2 + $0x38] sm:$0xff]
    %v1164 = vld [vmem:[#allocation2 + $0x40] sm:$0xff]
    %1173 = vrot.lane.b32.xlu0 %v1157, 64
    %v1174 = vpop.permute.xlu0 %1173
    %1175 = vrot.lane.b32.xlu0 %v1158, 64
    %v1176 = vpop.permute.xlu0 %1175
    %1177 = vrot.lane.b32.xlu0 %v1159, 64
    %v1178 = vpop.permute.xlu0 %1177
    %1179 = vrot.lane.b32.xlu0 %v1160, 64
    %v1180 = vpop.permute.xlu0 %1179
    %1181 = vrot.lane.b32.xlu0 %v1161, 64
    %v1182 = vpop.permute.xlu0 %1181
    %1183 = vrot.lane.b32.xlu0 %v1162, 64
    %v1184 = vpop.permute.xlu0 %1183
    %1185 = vrot.lane.b32.xlu0 %v1163, 64
    %v1186 = vpop.permute.xlu0 %1185
    %1187 = vrot.lane.b32.xlu0 %v1164, 64
    %v1188 = vpop.permute.xlu0 %1187
    %vm1197 = vcmask 785920
    %1198 = vst.msk [vmem:[#allocation4] sm:$0xff] %vm1197, %v1174
    %1199 = vst.msk [vmem:[#allocation4 + $0x10] sm:$0xff] %vm1197, %v1176
    %1200 = vst.msk [vmem:[#allocation4 + $0x20] sm:$0xff] %vm1197, %v1178
    %1201 = vst.msk [vmem:[#allocation4 + $0x30] sm:$0xff] %vm1197, %v1180
    %1202 = vst.msk [vmem:[#allocation4 + $0x40] sm:$0xff] %vm1197, %v1182
    %1203 = vst.msk [vmem:[#allocation4 + $0x50] sm:$0xff] %vm1197, %v1184
    %1204 = vst.msk [vmem:[#allocation4 + $0x60] sm:$0xff] %vm1197, %v1186
    %1205 = vst.msk [vmem:[#allocation4 + $0x70] sm:$0xff] %vm1197, %v1188
    %v1206 = vld [vmem:[#allocation2 + $0x8] sm:$0xf0]
    %v1207 = vld [vmem:[#allocation2 + $0x10] sm:$0xff]
    %v1208 = vld [vmem:[#allocation2 + $0x18] sm:$0xff]
    %v1209 = vld [vmem:[#allocation2 + $0x20] sm:$0xff]
    %v1210 = vld [vmem:[#allocation2 + $0x28] sm:$0xff]
    %v1211 = vld [vmem:[#allocation2 + $0x30] sm:$0xff]
    %v1212 = vld [vmem:[#allocation2 + $0x38] sm:$0xff]
    %v1213 = vld [vmem:[#allocation2 + $0x40] sm:$0xff]
    %v1214 = vld [vmem:[#allocation2 + $0x48] sm:$0xf]
    %v1224 = vrot.slane %v1206, 4
    %v1225 = vrot.slane %v1207, 4
    %v1226 = vsel %vm1039, %v1224, %v1225
    %v1227 = vrot.slane %v1208, 4
    %v1228 = vsel %vm1039, %v1225, %v1227
    %v1229 = vrot.slane %v1209, 4
    %v1230 = vsel %vm1039, %v1227, %v1229
    %v1231 = vrot.slane %v1210, 4
    %v1232 = vsel %vm1039, %v1229, %v1231
    %v1233 = vrot.slane %v1211, 4
    %v1234 = vsel %vm1039, %v1231, %v1233
    %v1235 = vrot.slane %v1212, 4
    %v1236 = vsel %vm1039, %v1233, %v1235
    %v1237 = vrot.slane %v1213, 4
    %v1238 = vsel %vm1039, %v1235, %v1237
    %v1239 = vrot.slane %v1214, 4
    %v1240 = vsel %vm1039, %v1237, %v1239
    %1241 = vrot.lane.b32.xlu0 %v1226, 96
    %v1242 = vpop.permute.xlu0 %1241
    %1243 = vrot.lane.b32.xlu0 %v1228, 96
    %v1244 = vpop.permute.xlu0 %1243
    %1245 = vrot.lane.b32.xlu0 %v1230, 96
    %v1246 = vpop.permute.xlu0 %1245
    %1247 = vrot.lane.b32.xlu0 %v1232, 96
    %v1248 = vpop.permute.xlu0 %1247
    %1249 = vrot.lane.b32.xlu0 %v1234, 96
    %v1250 = vpop.permute.xlu0 %1249
    %1251 = vrot.lane.b32.xlu0 %v1236, 96
    %v1252 = vpop.permute.xlu0 %1251
    %1253 = vrot.lane.b32.xlu0 %v1238, 96
    %v1254 = vpop.permute.xlu0 %1253
    %1255 = vrot.lane.b32.xlu0 %v1240, 96
    %v1256 = vpop.permute.xlu0 %1255
    %vm1265 = vcmask 1048320
    %1266 = vst.msk [vmem:[#allocation4] sm:$0xff] %vm1265, %v1242
    %1267 = vst.msk [vmem:[#allocation4 + $0x10] sm:$0xff] %vm1265, %v1244
    %1268 = vst.msk [vmem:[#allocation4 + $0x20] sm:$0xff] %vm1265, %v1246
    %1269 = vst.msk [vmem:[#allocation4 + $0x30] sm:$0xff] %vm1265, %v1248
    %1270 = vst.msk [vmem:[#allocation4 + $0x40] sm:$0xff] %vm1265, %v1250
    %1271 = vst.msk [vmem:[#allocation4 + $0x50] sm:$0xff] %vm1265, %v1252
    %1272 = vst.msk [vmem:[#allocation4 + $0x60] sm:$0xff] %vm1265, %v1254
    %1273 = vst.msk [vmem:[#allocation4 + $0x70] sm:$0xff] %vm1265, %v1256
    %v1274 = vld [vmem:[#allocation2 + $0x10] sm:$0xff]
    %v1275 = vld [vmem:[#allocation2 + $0x18] sm:$0xff]
    %v1276 = vld [vmem:[#allocation2 + $0x20] sm:$0xff]
    %v1277 = vld [vmem:[#allocation2 + $0x28] sm:$0xff]
    %v1278 = vld [vmem:[#allocation2 + $0x30] sm:$0xff]
    %v1279 = vld [vmem:[#allocation2 + $0x38] sm:$0xff]
    %v1280 = vld [vmem:[#allocation2 + $0x40] sm:$0xff]
    %v1281 = vld [vmem:[#allocation2 + $0x48] sm:$0xff]
    %1282 = vst.msk [vmem:[#allocation4 + $0x8] sm:$0xff] %vm1016, %v1274
    %1283 = vst.msk [vmem:[#allocation4 + $0x18] sm:$0xff] %vm1016, %v1275
    %1284 = vst.msk [vmem:[#allocation4 + $0x28] sm:$0xff] %vm1016, %v1276
    %1285 = vst.msk [vmem:[#allocation4 + $0x38] sm:$0xff] %vm1016, %v1277
    %1286 = vst.msk [vmem:[#allocation4 + $0x48] sm:$0xff] %vm1016, %v1278
    %1287 = vst.msk [vmem:[#allocation4 + $0x58] sm:$0xff] %vm1016, %v1279
    %1288 = vst.msk [vmem:[#allocation4 + $0x68] sm:$0xff] %vm1016, %v1280
    %1289 = vst.msk [vmem:[#allocation4 + $0x78] sm:$0xff] %vm1016, %v1281
    %v1290 = vld [vmem:[#allocation2 + $0x10] sm:$0xf0]
    %v1291 = vld [vmem:[#allocation2 + $0x18] sm:$0xff]
    %v1292 = vld [vmem:[#allocation2 + $0x20] sm:$0xff]
    %v1293 = vld [vmem:[#allocation2 + $0x28] sm:$0xff]
    %v1294 = vld [vmem:[#allocation2 + $0x30] sm:$0xff]
    %v1295 = vld [vmem:[#allocation2 + $0x38] sm:$0xff]
    %v1296 = vld [vmem:[#allocation2 + $0x40] sm:$0xff]
    %v1297 = vld [vmem:[#allocation2 + $0x48] sm:$0xff]
    %v1298 = vld [vmem:[#allocation2 + $0x50] sm:$0xf]
    %v1308 = vrot.slane %v1290, 4
    %v1309 = vrot.slane %v1291, 4
    %v1310 = vsel %vm1039, %v1308, %v1309
    %v1311 = vrot.slane %v1292, 4
    %v1312 = vsel %vm1039, %v1309, %v1311
    %v1313 = vrot.slane %v1293, 4
    %v1314 = vsel %vm1039, %v1311, %v1313
    %v1315 = vrot.slane %v1294, 4
    %v1316 = vsel %vm1039, %v1313, %v1315
    %v1317 = vrot.slane %v1295, 4
    %v1318 = vsel %vm1039, %v1315, %v1317
    %v1319 = vrot.slane %v1296, 4
    %v1320 = vsel %vm1039, %v1317, %v1319
    %v1321 = vrot.slane %v1297, 4
    %v1322 = vsel %vm1039, %v1319, %v1321
    %v1323 = vrot.slane %v1298, 4
    %v1324 = vsel %vm1039, %v1321, %v1323
    %1325 = vrot.lane.b32.xlu0 %v1310, 32
    %v1326 = vpop.permute.xlu0 %1325
    %1327 = vrot.lane.b32.xlu0 %v1312, 32
    %v1328 = vpop.permute.xlu0 %1327
    %1329 = vrot.lane.b32.xlu0 %v1314, 32
    %v1330 = vpop.permute.xlu0 %1329
    %1331 = vrot.lane.b32.xlu0 %v1316, 32
    %v1332 = vpop.permute.xlu0 %1331
    %1333 = vrot.lane.b32.xlu0 %v1318, 32
    %v1334 = vpop.permute.xlu0 %1333
    %1335 = vrot.lane.b32.xlu0 %v1320, 32
    %v1336 = vpop.permute.xlu0 %1335
    %1337 = vrot.lane.b32.xlu0 %v1322, 32
    %v1338 = vpop.permute.xlu0 %1337
    %1339 = vrot.lane.b32.xlu0 %v1324, 32
    %v1340 = vpop.permute.xlu0 %1339
    %1349 = vst.msk [vmem:[#allocation4 + $0x8] sm:$0xff] %vm1148, %v1326
    %1350 = vst.msk [vmem:[#allocation4 + $0x18] sm:$0xff] %vm1148, %v1328
    %1351 = vst.msk [vmem:[#allocation4 + $0x28] sm:$0xff] %vm1148, %v1330
    %1352 = vst.msk [vmem:[#allocation4 + $0x38] sm:$0xff] %vm1148, %v1332
    %1353 = vst.msk [vmem:[#allocation4 + $0x48] sm:$0xff] %vm1148, %v1334
    %1354 = vst.msk [vmem:[#allocation4 + $0x58] sm:$0xff] %vm1148, %v1336
    %1355 = vst.msk [vmem:[#allocation4 + $0x68] sm:$0xff] %vm1148, %v1338
    %1356 = vst.msk [vmem:[#allocation4 + $0x78] sm:$0xff] %vm1148, %v1340
    %v1357 = vld [vmem:[#allocation2 + $0x18] sm:$0xff]
    %v1358 = vld [vmem:[#allocation2 + $0x20] sm:$0xff]
    %v1359 = vld [vmem:[#allocation2 + $0x28] sm:$0xff]
    %v1360 = vld [vmem:[#allocation2 + $0x30] sm:$0xff]
    %v1361 = vld [vmem:[#allocation2 + $0x38] sm:$0xff]
    %v1362 = vld [vmem:[#allocation2 + $0x40] sm:$0xff]
    %v1363 = vld [vmem:[#allocation2 + $0x48] sm:$0xff]
    %v1364 = vld [vmem:[#allocation2 + $0x50] sm:$0xff]
    %1373 = vrot.lane.b32.xlu0 %v1357, 64
    %v1374 = vpop.permute.xlu0 %1373
    %1375 = vrot.lane.b32.xlu0 %v1358, 64
    %v1376 = vpop.permute.xlu0 %1375
    %1377 = vrot.lane.b32.xlu0 %v1359, 64
    %v1378 = vpop.permute.xlu0 %1377
    %1379 = vrot.lane.b32.xlu0 %v1360, 64
    %v1380 = vpop.permute.xlu0 %1379
    %1381 = vrot.lane.b32.xlu0 %v1361, 64
    %v1382 = vpop.permute.xlu0 %1381
    %1383 = vrot.lane.b32.xlu0 %v1362, 64
    %v1384 = vpop.permute.xlu0 %1383
    %1385 = vrot.lane.b32.xlu0 %v1363, 64
    %v1386 = vpop.permute.xlu0 %1385
    %1387 = vrot.lane.b32.xlu0 %v1364, 64
    %v1388 = vpop.permute.xlu0 %1387
    %1397 = vst.msk [vmem:[#allocation4 + $0x8] sm:$0xff] %vm1197, %v1374
    %1398 = vst.msk [vmem:[#allocation4 + $0x18] sm:$0xff] %vm1197, %v1376
    %1399 = vst.msk [vmem:[#allocation4 + $0x28] sm:$0xff] %vm1197, %v1378
    %1400 = vst.msk [vmem:[#allocation4 + $0x38] sm:$0xff] %vm1197, %v1380
    %1401 = vst.msk [vmem:[#allocation4 + $0x48] sm:$0xff] %vm1197, %v1382
    %1402 = vst.msk [vmem:[#allocation4 + $0x58] sm:$0xff] %vm1197, %v1384
    %1403 = vst.msk [vmem:[#allocation4 + $0x68] sm:$0xff] %vm1197, %v1386
    %1404 = vst.msk [vmem:[#allocation4 + $0x78] sm:$0xff] %vm1197, %v1388
    %v1405 = vld [vmem:[#allocation4] sm:$0xff]
    %v1406 = vld [vmem:[#allocation4 + $0x8] sm:$0xff]
    %v1407 = vld [vmem:[#allocation4 + $0x10] sm:$0xff]
    %v1408 = vld [vmem:[#allocation4 + $0x18] sm:$0xff]
    %v1409 = vld [vmem:[#allocation4 + $0x20] sm:$0xff]
    %v1410 = vld [vmem:[#allocation4 + $0x28] sm:$0xff]
    %v1411 = vld [vmem:[#allocation4 + $0x30] sm:$0xff]
    %v1412 = vld [vmem:[#allocation4 + $0x38] sm:$0xff]
    %v1413 = vld [vmem:[#allocation4 + $0x40] sm:$0xff]
    %v1414 = vld [vmem:[#allocation4 + $0x48] sm:$0xff]
    %v1415 = vld [vmem:[#allocation4 + $0x50] sm:$0xff]
    %v1416 = vld [vmem:[#allocation4 + $0x58] sm:$0xff]
    %v1417 = vld [vmem:[#allocation4 + $0x60] sm:$0xff]
    %v1418 = vld [vmem:[#allocation4 + $0x68] sm:$0xff]
    %v1419 = vld [vmem:[#allocation4 + $0x70] sm:$0xff]
    %v1420 = vld [vmem:[#allocation4 + $0x78] sm:$0xff]
    %v1421 = vld [vmem:[#allocation14] sm:$0xf]
    %v1422 = vld [vmem:[#allocation14 + $0x4] sm:$0xf]
    %v1423 = vld [vmem:[#allocation14 + $0x8] sm:$0xf]
    %v1424 = vld [vmem:[#allocation14 + $0xc] sm:$0xf]
    %v1425 = vld [vmem:[#allocation14 + $0x10] sm:$0xf]
    %v1426 = vld [vmem:[#allocation14 + $0x14] sm:$0xf]
    %v1427 = vld [vmem:[#allocation14 + $0x18] sm:$0xf]
    %v1428 = vld [vmem:[#allocation14 + $0x1c] sm:$0xf]
    %v1429 = vld [vmem:[#allocation14 + $0x20] sm:$0xf]
    %v1430 = vld [vmem:[#allocation14 + $0x24] sm:$0xf]
    %v1431 = vld [vmem:[#allocation14 + $0x28] sm:$0xf]
    %v1432 = vld [vmem:[#allocation14 + $0x2c] sm:$0xf]
    %v1433 = vld [vmem:[#allocation14 + $0x30] sm:$0xf]
    %v1434 = vld [vmem:[#allocation14 + $0x34] sm:$0xf]
    %v1435 = vld [vmem:[#allocation14 + $0x38] sm:$0xf]
    %v1436 = vld [vmem:[#allocation14 + $0x3c] sm:$0xf]
    %v1437 = vld [vmem:[#allocation14 + $0x40] sm:$0xf]
    %v1438 = vld [vmem:[#allocation14 + $0x44] sm:$0xf]
    %v1439 = vld [vmem:[#allocation14 + $0x48] sm:$0xf]
    %v1440 = vld [vmem:[#allocation14 + $0x4c] sm:$0xf]
    %v1441 = vld [vmem:[#allocation14 + $0x50] sm:$0xf]
    %v1442 = vld [vmem:[#allocation14 + $0x54] sm:$0xf]
    %v1443 = vld [vmem:[#allocation14 + $0x58] sm:$0xf]
    %v1444 = vld [vmem:[#allocation14 + $0x5c] sm:$0xf]
    %v1445 = vld [vmem:[#allocation14 + $0x60] sm:$0xf]
    %v1446 = vld [vmem:[#allocation14 + $0x64] sm:$0xf]
    %v1447 = vld [vmem:[#allocation14 + $0x68] sm:$0xf]
    %v1448 = vld [vmem:[#allocation14 + $0x6c] sm:$0xf]
    %v1477 = vunpack.c.l.b16 %v1421
    %v1478 = vunpack.c.l.b16 %v1422
    %v1479 = vunpack.c.l.b16 %v1423
    %v1480 = vunpack.c.l.b16 %v1424
    %v1481 = vunpack.c.l.b16 %v1425
    %v1482 = vunpack.c.l.b16 %v1426
    %v1483 = vunpack.c.l.b16 %v1427
    %v1484 = vunpack.c.l.b16 %v1428
    %v1485 = vunpack.c.l.b16 %v1429
    %v1486 = vunpack.c.l.b16 %v1430
    %v1487 = vunpack.c.l.b16 %v1431
    %v1488 = vunpack.c.l.b16 %v1432
    %v1489 = vunpack.c.l.b16 %v1433
    %v1490 = vunpack.c.l.b16 %v1434
    %v1491 = vunpack.c.l.b16 %v1435
    %v1492 = vunpack.c.l.b16 %v1436
    %v1493 = vunpack.c.l.b16 %v1437
    %v1494 = vunpack.c.l.b16 %v1438
    %v1495 = vunpack.c.l.b16 %v1439
    %v1496 = vunpack.c.l.b16 %v1440
    %v1497 = vunpack.c.l.b16 %v1441
    %v1498 = vunpack.c.l.b16 %v1442
    %v1499 = vunpack.c.l.b16 %v1443
    %v1500 = vunpack.c.l.b16 %v1444
    %v1501 = vunpack.c.l.b16 %v1445
    %v1502 = vunpack.c.l.b16 %v1446
    %v1503 = vunpack.c.l.b16 %v1447
    %v1504 = vunpack.c.l.b16 %v1448
    %v1505 = vpack.c.b16 %v1478, %v1477
    %v1506 = vpack.c.b16 %v1480, %v1479
    %v1507 = vpack.c.b16 %v1482, %v1481
    %v1508 = vpack.c.b16 %v1484, %v1483
    %v1509 = vpack.c.b16 %v1486, %v1485
    %v1510 = vpack.c.b16 %v1488, %v1487
    %v1511 = vpack.c.b16 %v1490, %v1489
    %v1512 = vpack.c.b16 %v1492, %v1491
    %v1513 = vpack.c.b16 %v1494, %v1493
    %v1514 = vpack.c.b16 %v1496, %v1495
    %v1515 = vpack.c.b16 %v1498, %v1497
    %v1516 = vpack.c.b16 %v1500, %v1499
    %v1517 = vpack.c.b16 %v1502, %v1501
    %v1518 = vpack.c.b16 %v1504, %v1503
    %vm1533 = vcmask 785408
    %v1535 = vsel %vm1533, %v1406, 0
    %v1538 = vsel %vm1533, %v1408, 0
    %v1541 = vsel %vm1533, %v1410, 0
    %v1544 = vsel %vm1533, %v1412, 0
    %v1547 = vsel %vm1533, %v1414, 0
    %v1550 = vsel %vm1533, %v1416, 0
    %v1553 = vsel %vm1533, %v1418, 0
    %v1556 = vsel %vm1533, %v1420, 0
    %1558 = vmatprep.subr.bf16.mxu0 0
    %1559 = vmatpush1.bf16.msra.mxu0 %v1505
    %1560 = vmatprep.subr.bf16.mxu0 0
    %1561 = vmatpush1.bf16.msra.mxu0 %v1506
    %1562 = vmatprep.subr.bf16.mxu0 0
    %1563 = vmatpush1.bf16.msra.mxu0 %v1507
    %1564 = vmatprep.subr.bf16.mxu0 0
    %1565 = vmatpush1.bf16.msra.mxu0 %v1508
    %1566 = vmatprep.subr.bf16.mxu0 0
    %1567 = vmatpush1.bf16.msra.mxu0 %v1509
    %1568 = vmatprep.subr.bf16.mxu0 0
    %1569 = vmatpush1.bf16.msra.mxu0 %v1510
    %1570 = vmatprep.subr.bf16.mxu0 0
    %1571 = vmatpush1.bf16.msra.mxu0 %v1511
    %1572 = vmatprep.subr.bf16.mxu0 0
    %1573 = vmatpush1.bf16.msra.mxu0 %v1512
    %1574 = vmatprep.subr.bf16.mxu0 0
    %1575 = vmatpush1.bf16.msra.mxu0 %v1513
    %1576 = vmatprep.subr.bf16.mxu0 0
    %1577 = vmatpush1.bf16.msra.mxu0 %v1514
    %1578 = vmatprep.subr.bf16.mxu0 0
    %1579 = vmatpush1.bf16.msra.mxu0 %v1515
    %1580 = vmatprep.subr.bf16.mxu0 0
    %1581 = vmatpush1.bf16.msra.mxu0 %v1516
    %1582 = vmatprep.subr.bf16.mxu0 0
    %1583 = vmatpush1.bf16.msra.mxu0 %v1517
    %1584 = vmatprep.subr.bf16.mxu0 0
    %1585 = vmatpush1.bf16.msra.mxu0 %v1518
    %1586 = vmatprep.subr.bf16.mxu0 0
    %1587 = vmatpush1.bf16.msra.mxu0 0
    %1588 = vmatprep.subr.bf16.mxu0 0
    %1589 = vmatpush1.bf16.msra.mxu0 0
    %1590 = vmatprep.mubr.bf16.mxu0 %v1535
    %1591 = vmatmul.mubr.bf16.gmra.mrb[0].mxu0 %v1405
    %v1592 = vpop.f32.mrb[0].mxu0
    %v1593 = vadd.f32 0.0, %v1592
    %v1594 = vpop.f32.mrb[0].mxu0
    %v1595 = vpop.f32.mrb[0].mxu0
    %v1596 = vadd.f32 0.0, %v1595
    %v1597 = vpop.f32.mrb[0].mxu0
    %1598 = vmatprep.mubr.bf16.mxu0 %v1538
    %1599 = vmatmul.mubr.bf16.gmra.mrb[0].mxu0 %v1407
    %v1600 = vpop.f32.mrb[0].mxu0
    %v1601 = vadd.f32 0.0, %v1600
    %v1602 = vpop.f32.mrb[0].mxu0
    %v1603 = vpop.f32.mrb[0].mxu0
    %v1604 = vadd.f32 0.0, %v1603
    %v1605 = vpop.f32.mrb[0].mxu0
    %1606 = vmatprep.mubr.bf16.mxu0 %v1541
    %1607 = vmatmul.mubr.bf16.gmra.mrb[0].mxu0 %v1409
    %v1608 = vpop.f32.mrb[0].mxu0
    %v1609 = vadd.f32 0.0, %v1608
    %v1610 = vpop.f32.mrb[0].mxu0
    %v1611 = vpop.f32.mrb[0].mxu0
    %v1612 = vadd.f32 0.0, %v1611
    %v1613 = vpop.f32.mrb[0].mxu0
    %1614 = vmatprep.mubr.bf16.mxu0 %v1544
    %1615 = vmatmul.mubr.bf16.gmra.mrb[0].mxu0 %v1411
    %v1616 = vpop.f32.mrb[0].mxu0
    %v1617 = vadd.f32 0.0, %v1616
    %v1618 = vpop.f32.mrb[0].mxu0
    %v1619 = vpop.f32.mrb[0].mxu0
    %v1620 = vadd.f32 0.0, %v1619
    %v1621 = vpop.f32.mrb[0].mxu0
    %1622 = vmatprep.mubr.bf16.mxu0 %v1547
    %1623 = vmatmul.mubr.bf16.gmra.mrb[0].mxu0 %v1413
    %v1624 = vpop.f32.mrb[0].mxu0
    %v1625 = vadd.f32 0.0, %v1624
    %v1626 = vpop.f32.mrb[0].mxu0
    %v1627 = vpop.f32.mrb[0].mxu0
    %v1628 = vadd.f32 0.0, %v1627
    %v1629 = vpop.f32.mrb[0].mxu0
    %1630 = vmatprep.mubr.bf16.mxu0 %v1550
    %1631 = vmatmul.mubr.bf16.gmra.mrb[0].mxu0 %v1415
    %v1632 = vpop.f32.mrb[0].mxu0
    %v1633 = vadd.f32 0.0, %v1632
    %v1634 = vpop.f32.mrb[0].mxu0
    %v1635 = vpop.f32.mrb[0].mxu0
    %v1636 = vadd.f32 0.0, %v1635
    %v1637 = vpop.f32.mrb[0].mxu0
    %1638 = vmatprep.mubr.bf16.mxu0 %v1553
    %1639 = vmatmul.mubr.bf16.gmra.mrb[0].mxu0 %v1417
    %v1640 = vpop.f32.mrb[0].mxu0
    %v1641 = vadd.f32 0.0, %v1640
    %v1642 = vpop.f32.mrb[0].mxu0
    %v1643 = vpop.f32.mrb[0].mxu0
    %v1644 = vadd.f32 0.0, %v1643
    %v1645 = vpop.f32.mrb[0].mxu0
    %1646 = vmatprep.mubr.bf16.mxu0 %v1556
    %1647 = vmatmul.mubr.bf16.gmra.mrb[0].mxu0 %v1419
    %v1648 = vpop.f32.mrb[0].mxu0
    %v1649 = vadd.f32 0.0, %v1648
    %v1650 = vpop.f32.mrb[0].mxu0
    %v1651 = vpop.f32.mrb[0].mxu0
    %v1652 = vadd.f32 0.0, %v1651
    %v1653 = vpop.f32.mrb[0].mxu0
    %1654 = vdwg.mxu0
    %v1655 = vld [vmem:[#allocation15] sm:$0x1]
    %v1657 = vlaneseq
    %v1658 = vshrl.u32 %v1657, 7
    %v1659 = vsub.s32 0, %v1658
    %v1660 = vrot.slane %v1655, %v1659
    %v1662 = vmul.f32 %v1593, %v1660
    %v1663 = vmul.f32 %v1596, %v1660
    %v1664 = vmul.f32 %v1601, %v1660
    %v1665 = vmul.f32 %v1604, %v1660
    %v1666 = vmul.f32 %v1609, %v1660
    %v1667 = vmul.f32 %v1612, %v1660
    %v1668 = vmul.f32 %v1617, %v1660
    %v1669 = vmul.f32 %v1620, %v1660
    %v1670 = vmul.f32 %v1625, %v1660
    %v1671 = vmul.f32 %v1628, %v1660
    %v1672 = vmul.f32 %v1633, %v1660
    %v1673 = vmul.f32 %v1636, %v1660
    %v1674 = vmul.f32 %v1641, %v1660
    %v1675 = vmul.f32 %v1644, %v1660
    %v1676 = vmul.f32 %v1649, %v1660
    %v1677 = vmul.f32 %v1652, %v1660
    %v1678 = vld [vmem:[#allocation17] sm:$0x1]
    %v1680 = vlaneseq
    %v1681 = vshrl.u32 %v1680, 7
    %v1682 = vsub.s32 0, %v1681
    %v1683 = vrot.slane %v1678, %v1682
    %v1685 = vadd.f32 %v1662, %v1683
    %v1686 = vadd.f32 %v1663, %v1683
    %v1687 = vadd.f32 %v1664, %v1683
    %v1688 = vadd.f32 %v1665, %v1683
    %v1689 = vadd.f32 %v1666, %v1683
    %v1690 = vadd.f32 %v1667, %v1683
    %v1691 = vadd.f32 %v1668, %v1683
    %v1692 = vadd.f32 %v1669, %v1683
    %v1693 = vadd.f32 %v1670, %v1683
    %v1694 = vadd.f32 %v1671, %v1683
    %v1695 = vadd.f32 %v1672, %v1683
    %v1696 = vadd.f32 %v1673, %v1683
    %v1697 = vadd.f32 %v1674, %v1683
    %v1698 = vadd.f32 %v1675, %v1683
    %v1699 = vadd.f32 %v1676, %v1683
    %v1700 = vadd.f32 %v1677, %v1683
    %v1701 = vmax.f32 %v1685, 0.0
    %v1702 = vmax.f32 %v1686, 0.0
    %v1703 = vmax.f32 %v1687, 0.0
    %v1704 = vmax.f32 %v1688, 0.0
    %v1705 = vmax.f32 %v1689, 0.0
    %v1706 = vmax.f32 %v1690, 0.0
    %v1707 = vmax.f32 %v1691, 0.0
    %v1708 = vmax.f32 %v1692, 0.0
    %v1709 = vmax.f32 %v1693, 0.0
    %v1710 = vmax.f32 %v1694, 0.0
    %v1711 = vmax.f32 %v1695, 0.0
    %v1712 = vmax.f32 %v1696, 0.0
    %v1713 = vmax.f32 %v1697, 0.0
    %v1714 = vmax.f32 %v1698, 0.0
    %v1715 = vmax.f32 %v1699, 0.0
    %v1716 = vmax.f32 %v1700, 0.0
    %v1717 = vpack.c.bf16 %v1702, %v1701
    %v1718 = vpack.c.bf16 %v1704, %v1703
    %v1719 = vpack.c.bf16 %v1706, %v1705
    %v1720 = vpack.c.bf16 %v1708, %v1707
    %v1721 = vpack.c.bf16 %v1710, %v1709
    %v1722 = vpack.c.bf16 %v1712, %v1711
    %v1723 = vpack.c.bf16 %v1714, %v1713
    %v1724 = vpack.c.bf16 %v1716, %v1715
    %v1733 = vrot.slane %v1717, 4
    %v1734 = vrot.slane %v1718, 4
    %v1735 = vsel %vm1039, %v1733, %v1734
    %v1736 = vrot.slane %v1719, 4
    %v1737 = vsel %vm1039, %v1734, %v1736
    %v1738 = vrot.slane %v1720, 4
    %v1739 = vsel %vm1039, %v1736, %v1738
    %v1740 = vrot.slane %v1721, 4
    %v1741 = vsel %vm1039, %v1738, %v1740
    %v1742 = vrot.slane %v1722, 4
    %v1743 = vsel %vm1039, %v1740, %v1742
    %v1744 = vrot.slane %v1723, 4
    %v1745 = vsel %vm1039, %v1742, %v1744
    %v1746 = vrot.slane %v1724, 4
    %v1747 = vsel %vm1039, %v1744, %v1746
    %1757 = vst.msk [vmem:[#allocation2 + $0x8] sm:$0xf0] %vm1020, %v1733
    %1758 = vst.msk [vmem:[#allocation2 + $0x10] sm:$0xff] %vm1016, %v1735
    %1759 = vst.msk [vmem:[#allocation2 + $0x18] sm:$0xff] %vm1016, %v1737
    %1760 = vst.msk [vmem:[#allocation2 + $0x20] sm:$0xff] %vm1016, %v1739
    %1761 = vst.msk [vmem:[#allocation2 + $0x28] sm:$0xff] %vm1016, %v1741
    %1762 = vst.msk [vmem:[#allocation2 + $0x30] sm:$0xff] %vm1016, %v1743
    %1763 = vst.msk [vmem:[#allocation2 + $0x38] sm:$0xff] %vm1016, %v1745
    %1764 = vst.msk [vmem:[#allocation2 + $0x40] sm:$0xff] %vm1016, %v1747
    %1765 = vst.msk [vmem:[#allocation2 + $0x48] sm:$0xf] %vm1018, %v1746
    %v1766 = vld [vmem:[#allocation2] sm:$0xff]
    %v1767 = vld [vmem:[#allocation2 + $0x8] sm:$0xff]
    %v1768 = vld [vmem:[#allocation2 + $0x10] sm:$0xff]
    %v1769 = vld [vmem:[#allocation2 + $0x18] sm:$0xff]
    %v1770 = vld [vmem:[#allocation2 + $0x20] sm:$0xff]
    %v1771 = vld [vmem:[#allocation2 + $0x28] sm:$0xff]
    %v1772 = vld [vmem:[#allocation2 + $0x30] sm:$0xff]
    %v1773 = vld [vmem:[#allocation2 + $0x38] sm:$0xff]
    %1774 = vst.msk [vmem:[#allocation4] sm:$0xff] %vm1016, %v1766
    %1775 = vst.msk [vmem:[#allocation4 + $0x10] sm:$0xff] %vm1016, %v1767
    %1776 = vst.msk [vmem:[#allocation4 + $0x20] sm:$0xff] %vm1016, %v1768
    %1777 = vst.msk [vmem:[#allocation4 + $0x30] sm:$0xff] %vm1016, %v1769
    %1778 = vst.msk [vmem:[#allocation4 + $0x40] sm:$0xff] %vm1016, %v1770
    %1779 = vst.msk [vmem:[#allocation4 + $0x50] sm:$0xff] %vm1016, %v1771
    %1780 = vst.msk [vmem:[#allocation4 + $0x60] sm:$0xff] %vm1016, %v1772
    %1781 = vst.msk [vmem:[#allocation4 + $0x70] sm:$0xff] %vm1016, %v1773
    %v1782 = vld [vmem:[#allocation2] sm:$0xf0]
    %v1783 = vld [vmem:[#allocation2 + $0x8] sm:$0xff]
    %v1784 = vld [vmem:[#allocation2 + $0x10] sm:$0xff]
    %v1785 = vld [vmem:[#allocation2 + $0x18] sm:$0xff]
    %v1786 = vld [vmem:[#allocation2 + $0x20] sm:$0xff]
    %v1787 = vld [vmem:[#allocation2 + $0x28] sm:$0xff]
    %v1788 = vld [vmem:[#allocation2 + $0x30] sm:$0xff]
    %v1789 = vld [vmem:[#allocation2 + $0x38] sm:$0xff]
    %v1790 = vld [vmem:[#allocation2 + $0x40] sm:$0xf]
    %v1800 = vrot.slane %v1782, 4
    %v1801 = vrot.slane %v1783, 4
    %v1802 = vsel %vm1039, %v1800, %v1801
    %v1803 = vrot.slane %v1784, 4
    %v1804 = vsel %vm1039, %v1801, %v1803
    %v1805 = vrot.slane %v1785, 4
    %v1806 = vsel %vm1039, %v1803, %v1805
    %v1807 = vrot.slane %v1786, 4
    %v1808 = vsel %vm1039, %v1805, %v1807
    %v1809 = vrot.slane %v1787, 4
    %v1810 = vsel %vm1039, %v1807, %v1809
    %v1811 = vrot.slane %v1788, 4
    %v1812 = vsel %vm1039, %v1809, %v1811
    %v1813 = vrot.slane %v1789, 4
    %v1814 = vsel %vm1039, %v1811, %v1813
    %v1815 = vrot.slane %v1790, 4
    %v1816 = vsel %vm1039, %v1813, %v1815
    %1817 = vrot.lane.b32.xlu0 %v1802, 32
    %v1818 = vpop.permute.xlu0 %1817
    %1819 = vrot.lane.b32.xlu0 %v1804, 32
    %v1820 = vpop.permute.xlu0 %1819
    %1821 = vrot.lane.b32.xlu0 %v1806, 32
    %v1822 = vpop.permute.xlu0 %1821
    %1823 = vrot.lane.b32.xlu0 %v1808, 32
    %v1824 = vpop.permute.xlu0 %1823
    %1825 = vrot.lane.b32.xlu0 %v1810, 32
    %v1826 = vpop.permute.xlu0 %1825
    %1827 = vrot.lane.b32.xlu0 %v1812, 32
    %v1828 = vpop.permute.xlu0 %1827
    %1829 = vrot.lane.b32.xlu0 %v1814, 32
    %v1830 = vpop.permute.xlu0 %1829
    %1831 = vrot.lane.b32.xlu0 %v1816, 32
    %v1832 = vpop.permute.xlu0 %1831
    %1841 = vst.msk [vmem:[#allocation4] sm:$0xff] %vm1148, %v1818
    %1842 = vst.msk [vmem:[#allocation4 + $0x10] sm:$0xff] %vm1148, %v1820
    %1843 = vst.msk [vmem:[#allocation4 + $0x20] sm:$0xff] %vm1148, %v1822
    %1844 = vst.msk [vmem:[#allocation4 + $0x30] sm:$0xff] %vm1148, %v1824
    %1845 = vst.msk [vmem:[#allocation4 + $0x40] sm:$0xff] %vm1148, %v1826
    %1846 = vst.msk [vmem:[#allocation4 + $0x50] sm:$0xff] %vm1148, %v1828
    %1847 = vst.msk [vmem:[#allocation4 + $0x60] sm:$0xff] %vm1148, %v1830
    %1848 = vst.msk [vmem:[#allocation4 + $0x70] sm:$0xff] %vm1148, %v1832
    %v1849 = vld [vmem:[#allocation2 + $0x8] sm:$0xff]
    %v1850 = vld [vmem:[#allocation2 + $0x10] sm:$0xff]
    %v1851 = vld [vmem:[#allocation2 + $0x18] sm:$0xff]
    %v1852 = vld [vmem:[#allocation2 + $0x20] sm:$0xff]
    %v1853 = vld [vmem:[#allocation2 + $0x28] sm:$0xff]
    %v1854 = vld [vmem:[#allocation2 + $0x30] sm:$0xff]
    %v1855 = vld [vmem:[#allocation2 + $0x38] sm:$0xff]
    %v1856 = vld [vmem:[#allocation2 + $0x40] sm:$0xff]
    %1865 = vrot.lane.b32.xlu0 %v1849, 64
    %v1866 = vpop.permute.xlu0 %1865
    %1867 = vrot.lane.b32.xlu0 %v1850, 64
    %v1868 = vpop.permute.xlu0 %1867
    %1869 = vrot.lane.b32.xlu0 %v1851, 64
    %v1870 = vpop.permute.xlu0 %1869
    %1871 = vrot.lane.b32.xlu0 %v1852, 64
    %v1872 = vpop.permute.xlu0 %1871
    %1873 = vrot.lane.b32.xlu0 %v1853, 64
    %v1874 = vpop.permute.xlu0 %1873
    %1875 = vrot.lane.b32.xlu0 %v1854, 64
    %v1876 = vpop.permute.xlu0 %1875
    %1877 = vrot.lane.b32.xlu0 %v1855, 64
    %v1878 = vpop.permute.xlu0 %1877
    %1879 = vrot.lane.b32.xlu0 %v1856, 64
    %v1880 = vpop.permute.xlu0 %1879
    %1889 = vst.msk [vmem:[#allocation4] sm:$0xff] %vm1197, %v1866
    %1890 = vst.msk [vmem:[#allocation4 + $0x10] sm:$0xff] %vm1197, %v1868
    %1891 = vst.msk [vmem:[#allocation4 + $0x20] sm:$0xff] %vm1197, %v1870
    %1892 = vst.msk [vmem:[#allocation4 + $0x30] sm:$0xff] %vm1197, %v1872
    %1893 = vst.msk [vmem:[#allocation4 + $0x40] sm:$0xff] %vm1197, %v1874
    %1894 = vst.msk [vmem:[#allocation4 + $0x50] sm:$0xff] %vm1197, %v1876
    %1895 = vst.msk [vmem:[#allocation4 + $0x60] sm:$0xff] %vm1197, %v1878
    %1896 = vst.msk [vmem:[#allocation4 + $0x70] sm:$0xff] %vm1197, %v1880
    %v1897 = vld [vmem:[#allocation2 + $0x8] sm:$0xf0]
    %v1898 = vld [vmem:[#allocation2 + $0x10] sm:$0xff]
    %v1899 = vld [vmem:[#allocation2 + $0x18] sm:$0xff]
    %v1900 = vld [vmem:[#allocation2 + $0x20] sm:$0xff]
    %v1901 = vld [vmem:[#allocation2 + $0x28] sm:$0xff]
    %v1902 = vld [vmem:[#allocation2 + $0x30] sm:$0xff]
    %v1903 = vld [vmem:[#allocation2 + $0x38] sm:$0xff]
    %v1904 = vld [vmem:[#allocation2 + $0x40] sm:$0xff]
    %v1905 = vld [vmem:[#allocation2 + $0x48] sm:$0xf]
    %v1915 = vrot.slane %v1897, 4
    %v1916 = vrot.slane %v1898, 4
    %v1917 = vsel %vm1039, %v1915, %v1916
    %v1918 = vrot.slane %v1899, 4
    %v1919 = vsel %vm1039, %v1916, %v1918
    %v1920 = vrot.slane %v1900, 4
    %v1921 = vsel %vm1039, %v1918, %v1920
    %v1922 = vrot.slane %v1901, 4
    %v1923 = vsel %vm1039, %v1920, %v1922
    %v1924 = vrot.slane %v1902, 4
    %v1925 = vsel %vm1039, %v1922, %v1924
    %v1926 = vrot.slane %v1903, 4
    %v1927 = vsel %vm1039, %v1924, %v1926
    %v1928 = vrot.slane %v1904, 4
    %v1929 = vsel %vm1039, %v1926, %v1928
    %v1930 = vrot.slane %v1905, 4
    %v1931 = vsel %vm1039, %v1928, %v1930
    %1932 = vrot.lane.b32.xlu0 %v1917, 96
    %v1933 = vpop.permute.xlu0 %1932
    %1934 = vrot.lane.b32.xlu0 %v1919, 96
    %v1935 = vpop.permute.xlu0 %1934
    %1936 = vrot.lane.b32.xlu0 %v1921, 96
    %v1937 = vpop.permute.xlu0 %1936
    %1938 = vrot.lane.b32.xlu0 %v1923, 96
    %v1939 = vpop.permute.xlu0 %1938
    %1940 = vrot.lane.b32.xlu0 %v1925, 96
    %v1941 = vpop.permute.xlu0 %1940
    %1942 = vrot.lane.b32.xlu0 %v1927, 96
    %v1943 = vpop.permute.xlu0 %1942
    %1944 = vrot.lane.b32.xlu0 %v1929, 96
    %v1945 = vpop.permute.xlu0 %1944
    %1946 = vrot.lane.b32.xlu0 %v1931, 96
    %v1947 = vpop.permute.xlu0 %1946
    %1956 = vst.msk [vmem:[#allocation4] sm:$0xff] %vm1265, %v1933
    %1957 = vst.msk [vmem:[#allocation4 + $0x10] sm:$0xff] %vm1265, %v1935
    %1958 = vst.msk [vmem:[#allocation4 + $0x20] sm:$0xff] %vm1265, %v1937
    %1959 = vst.msk [vmem:[#allocation4 + $0x30] sm:$0xff] %vm1265, %v1939
    %1960 = vst.msk [vmem:[#allocation4 + $0x40] sm:$0xff] %vm1265, %v1941
    %1961 = vst.msk [vmem:[#allocation4 + $0x50] sm:$0xff] %vm1265, %v1943
    %1962 = vst.msk [vmem:[#allocation4 + $0x60] sm:$0xff] %vm1265, %v1945
    %1963 = vst.msk [vmem:[#allocation4 + $0x70] sm:$0xff] %vm1265, %v1947
    %v1964 = vld [vmem:[#allocation2 + $0x10] sm:$0xff]
    %v1965 = vld [vmem:[#allocation2 + $0x18] sm:$0xff]
    %v1966 = vld [vmem:[#allocation2 + $0x20] sm:$0xff]
    %v1967 = vld [vmem:[#allocation2 + $0x28] sm:$0xff]
    %v1968 = vld [vmem:[#allocation2 + $0x30] sm:$0xff]
    %v1969 = vld [vmem:[#allocation2 + $0x38] sm:$0xff]
    %v1970 = vld [vmem:[#allocation2 + $0x40] sm:$0xff]
    %v1971 = vld [vmem:[#allocation2 + $0x48] sm:$0xff]
    %1972 = vst.msk [vmem:[#allocation4 + $0x8] sm:$0xff] %vm1016, %v1964
    %1973 = vst.msk [vmem:[#allocation4 + $0x18] sm:$0xff] %vm1016, %v1965
    %1974 = vst.msk [vmem:[#allocation4 + $0x28] sm:$0xff] %vm1016, %v1966
    %1975 = vst.msk [vmem:[#allocation4 + $0x38] sm:$0xff] %vm1016, %v1967
    %1976 = vst.msk [vmem:[#allocation4 + $0x48] sm:$0xff] %vm1016, %v1968
    %1977 = vst.msk [vmem:[#allocation4 + $0x58] sm:$0xff] %vm1016, %v1969
    %1978 = vst.msk [vmem:[#allocation4 + $0x68] sm:$0xff] %vm1016, %v1970
    %1979 = vst.msk [vmem:[#allocation4 + $0x78] sm:$0xff] %vm1016, %v1971
    %v1980 = vld [vmem:[#allocation2 + $0x10] sm:$0xf0]
    %v1981 = vld [vmem:[#allocation2 + $0x18] sm:$0xff]
    %v1982 = vld [vmem:[#allocation2 + $0x20] sm:$0xff]
    %v1983 = vld [vmem:[#allocation2 + $0x28] sm:$0xff]
    %v1984 = vld [vmem:[#allocation2 + $0x30] sm:$0xff]
    %v1985 = vld [vmem:[#allocation2 + $0x38] sm:$0xff]
    %v1986 = vld [vmem:[#allocation2 + $0x40] sm:$0xff]
    %v1987 = vld [vmem:[#allocation2 + $0x48] sm:$0xff]
    %v1988 = vld [vmem:[#allocation2 + $0x50] sm:$0xf]
    %v1998 = vrot.slane %v1980, 4
    %v1999 = vrot.slane %v1981, 4
    %v2000 = vsel %vm1039, %v1998, %v1999
    %v2001 = vrot.slane %v1982, 4
    %v2002 = vsel %vm1039, %v1999, %v2001
    %v2003 = vrot.slane %v1983, 4
    %v2004 = vsel %vm1039, %v2001, %v2003
    %v2005 = vrot.slane %v1984, 4
    %v2006 = vsel %vm1039, %v2003, %v2005
    %v2007 = vrot.slane %v1985, 4
    %v2008 = vsel %vm1039, %v2005, %v2007
    %v2009 = vrot.slane %v1986, 4
    %v2010 = vsel %vm1039, %v2007, %v2009
    %v2011 = vrot.slane %v1987, 4
    %v2012 = vsel %vm1039, %v2009, %v2011
    %v2013 = vrot.slane %v1988, 4
    %v2014 = vsel %vm1039, %v2011, %v2013
    %2015 = vrot.lane.b32.xlu0 %v2000, 32
    %v2016 = vpop.permute.xlu0 %2015
    %2017 = vrot.lane.b32.xlu0 %v2002, 32
    %v2018 = vpop.permute.xlu0 %2017
    %2019 = vrot.lane.b32.xlu0 %v2004, 32
    %v2020 = vpop.permute.xlu0 %2019
    %2021 = vrot.lane.b32.xlu0 %v2006, 32
    %v2022 = vpop.permute.xlu0 %2021
    %2023 = vrot.lane.b32.xlu0 %v2008, 32
    %v2024 = vpop.permute.xlu0 %2023
    %2025 = vrot.lane.b32.xlu0 %v2010, 32
    %v2026 = vpop.permute.xlu0 %2025
    %2027 = vrot.lane.b32.xlu0 %v2012, 32
    %v2028 = vpop.permute.xlu0 %2027
    %2029 = vrot.lane.b32.xlu0 %v2014, 32
    %v2030 = vpop.permute.xlu0 %2029
    %2039 = vst.msk [vmem:[#allocation4 + $0x8] sm:$0xff] %vm1148, %v2016
    %2040 = vst.msk [vmem:[#allocation4 + $0x18] sm:$0xff] %vm1148, %v2018
    %2041 = vst.msk [vmem:[#allocation4 + $0x28] sm:$0xff] %vm1148, %v2020
    %2042 = vst.msk [vmem:[#allocation4 + $0x38] sm:$0xff] %vm1148, %v2022
    %2043 = vst.msk [vmem:[#allocation4 + $0x48] sm:$0xff] %vm1148, %v2024
    %2044 = vst.msk [vmem:[#allocation4 + $0x58] sm:$0xff] %vm1148, %v2026
    %2045 = vst.msk [vmem:[#allocation4 + $0x68] sm:$0xff] %vm1148, %v2028
    %2046 = vst.msk [vmem:[#allocation4 + $0x78] sm:$0xff] %vm1148, %v2030
    %v2047 = vld [vmem:[#allocation2 + $0x18] sm:$0xff]
    %v2048 = vld [vmem:[#allocation2 + $0x20] sm:$0xff]
    %v2049 = vld [vmem:[#allocation2 + $0x28] sm:$0xff]
    %v2050 = vld [vmem:[#allocation2 + $0x30] sm:$0xff]
    %v2051 = vld [vmem:[#allocation2 + $0x38] sm:$0xff]
    %v2052 = vld [vmem:[#allocation2 + $0x40] sm:$0xff]
    %v2053 = vld [vmem:[#allocation2 + $0x48] sm:$0xff]
    %v2054 = vld [vmem:[#allocation2 + $0x50] sm:$0xff]
    %2063 = vrot.lane.b32.xlu0 %v2047, 64
    %v2064 = vpop.permute.xlu0 %2063
    %2065 = vrot.lane.b32.xlu0 %v2048, 64
    %v2066 = vpop.permute.xlu0 %2065
    %2067 = vrot.lane.b32.xlu0 %v2049, 64
    %v2068 = vpop.permute.xlu0 %2067
    %2069 = vrot.lane.b32.xlu0 %v2050, 64
    %v2070 = vpop.permute.xlu0 %2069
    %2071 = vrot.lane.b32.xlu0 %v2051, 64
    %v2072 = vpop.permute.xlu0 %2071
    %2073 = vrot.lane.b32.xlu0 %v2052, 64
    %v2074 = vpop.permute.xlu0 %2073
    %2075 = vrot.lane.b32.xlu0 %v2053, 64
    %v2076 = vpop.permute.xlu0 %2075
    %2077 = vrot.lane.b32.xlu0 %v2054, 64
    %v2078 = vpop.permute.xlu0 %2077
    %2087 = vst.msk [vmem:[#allocation4 + $0x8] sm:$0xff] %vm1197, %v2064
    %2088 = vst.msk [vmem:[#allocation4 + $0x18] sm:$0xff] %vm1197, %v2066
    %2089 = vst.msk [vmem:[#allocation4 + $0x28] sm:$0xff] %vm1197, %v2068
    %2090 = vst.msk [vmem:[#allocation4 + $0x38] sm:$0xff] %vm1197, %v2070
    %2091 = vst.msk [vmem:[#allocation4 + $0x48] sm:$0xff] %vm1197, %v2072
    %2092 = vst.msk [vmem:[#allocation4 + $0x58] sm:$0xff] %vm1197, %v2074
    %2093 = vst.msk [vmem:[#allocation4 + $0x68] sm:$0xff] %vm1197, %v2076
    %2094 = vst.msk [vmem:[#allocation4 + $0x78] sm:$0xff] %vm1197, %v2078
    %v2095 = vld [vmem:[#allocation4] sm:$0xff]
    %v2096 = vld [vmem:[#allocation4 + $0x8] sm:$0xff]
    %v2097 = vld [vmem:[#allocation4 + $0x10] sm:$0xff]
    %v2098 = vld [vmem:[#allocation4 + $0x18] sm:$0xff]
    %v2099 = vld [vmem:[#allocation4 + $0x20] sm:$0xff]
    %v2100 = vld [vmem:[#allocation4 + $0x28] sm:$0xff]
    %v2101 = vld [vmem:[#allocation4 + $0x30] sm:$0xff]
    %v2102 = vld [vmem:[#allocation4 + $0x38] sm:$0xff]
    %v2103 = vld [vmem:[#allocation4 + $0x40] sm:$0xff]
    %v2104 = vld [vmem:[#allocation4 + $0x48] sm:$0xff]
    %v2105 = vld [vmem:[#allocation4 + $0x50] sm:$0xff]
    %v2106 = vld [vmem:[#allocation4 + $0x58] sm:$0xff]
    %v2107 = vld [vmem:[#allocation4 + $0x60] sm:$0xff]
    %v2108 = vld [vmem:[#allocation4 + $0x68] sm:$0xff]
    %v2109 = vld [vmem:[#allocation4 + $0x70] sm:$0xff]
    %v2110 = vld [vmem:[#allocation4 + $0x78] sm:$0xff]
    %v2111 = vld [vmem:[#allocation18] sm:$0xf]
    %v2112 = vld [vmem:[#allocation18 + $0x4] sm:$0xf]
    %v2113 = vld [vmem:[#allocation18 + $0x8] sm:$0xf]
    %v2114 = vld [vmem:[#allocation18 + $0xc] sm:$0xf]
    %v2115 = vld [vmem:[#allocation18 + $0x10] sm:$0xf]
    %v2116 = vld [vmem:[#allocation18 + $0x14] sm:$0xf]
    %v2117 = vld [vmem:[#allocation18 + $0x18] sm:$0xf]
    %v2118 = vld [vmem:[#allocation18 + $0x1c] sm:$0xf]
    %v2119 = vld [vmem:[#allocation18 + $0x20] sm:$0xf]
    %v2120 = vld [vmem:[#allocation18 + $0x24] sm:$0xf]
    %v2121 = vld [vmem:[#allocation18 + $0x28] sm:$0xf]
    %v2122 = vld [vmem:[#allocation18 + $0x2c] sm:$0xf]
    %v2123 = vld [vmem:[#allocation18 + $0x30] sm:$0xf]
    %v2124 = vld [vmem:[#allocation18 + $0x34] sm:$0xf]
    %v2125 = vld [vmem:[#allocation18 + $0x38] sm:$0xf]
    %v2126 = vld [vmem:[#allocation18 + $0x3c] sm:$0xf]
    %v2127 = vld [vmem:[#allocation18 + $0x40] sm:$0xf]
    %v2128 = vld [vmem:[#allocation18 + $0x44] sm:$0xf]
    %v2129 = vld [vmem:[#allocation18 + $0x48] sm:$0xf]
    %v2130 = vld [vmem:[#allocation18 + $0x4c] sm:$0xf]
    %v2131 = vld [vmem:[#allocation18 + $0x50] sm:$0xf]
    %v2132 = vld [vmem:[#allocation18 + $0x54] sm:$0xf]
    %v2133 = vld [vmem:[#allocation18 + $0x58] sm:$0xf]
    %v2134 = vld [vmem:[#allocation18 + $0x5c] sm:$0xf]
    %v2135 = vld [vmem:[#allocation18 + $0x60] sm:$0xf]
    %v2136 = vld [vmem:[#allocation18 + $0x64] sm:$0xf]
    %v2137 = vld [vmem:[#allocation18 + $0x68] sm:$0xf]
    %v2138 = vld [vmem:[#allocation18 + $0x6c] sm:$0xf]
    %v2167 = vunpack.c.l.b16 %v2111
    %v2168 = vunpack.c.l.b16 %v2112
    %v2169 = vunpack.c.l.b16 %v2113
    %v2170 = vunpack.c.l.b16 %v2114
    %v2171 = vunpack.c.l.b16 %v2115
    %v2172 = vunpack.c.l.b16 %v2116
    %v2173 = vunpack.c.l.b16 %v2117
    %v2174 = vunpack.c.l.b16 %v2118
    %v2175 = vunpack.c.l.b16 %v2119
    %v2176 = vunpack.c.l.b16 %v2120
    %v2177 = vunpack.c.l.b16 %v2121
    %v2178 = vunpack.c.l.b16 %v2122
    %v2179 = vunpack.c.l.b16 %v2123
    %v2180 = vunpack.c.l.b16 %v2124
    %v2181 = vunpack.c.l.b16 %v2125
    %v2182 = vunpack.c.l.b16 %v2126
    %v2183 = vunpack.c.l.b16 %v2127
    %v2184 = vunpack.c.l.b16 %v2128
    %v2185 = vunpack.c.l.b16 %v2129
    %v2186 = vunpack.c.l.b16 %v2130
    %v2187 = vunpack.c.l.b16 %v2131
    %v2188 = vunpack.c.l.b16 %v2132
    %v2189 = vunpack.c.l.b16 %v2133
    %v2190 = vunpack.c.l.b16 %v2134
    %v2191 = vunpack.c.l.b16 %v2135
    %v2192 = vunpack.c.l.b16 %v2136
    %v2193 = vunpack.c.l.b16 %v2137
    %v2194 = vunpack.c.l.b16 %v2138
    %v2195 = vpack.c.b16 %v2168, %v2167
    %v2196 = vpack.c.b16 %v2170, %v2169
    %v2197 = vpack.c.b16 %v2172, %v2171
    %v2198 = vpack.c.b16 %v2174, %v2173
    %v2199 = vpack.c.b16 %v2176, %v2175
    %v2200 = vpack.c.b16 %v2178, %v2177
    %v2201 = vpack.c.b16 %v2180, %v2179
    %v2202 = vpack.c.b16 %v2182, %v2181
    %v2203 = vpack.c.b16 %v2184, %v2183
    %v2204 = vpack.c.b16 %v2186, %v2185
    %v2205 = vpack.c.b16 %v2188, %v2187
    %v2206 = vpack.c.b16 %v2190, %v2189
    %v2207 = vpack.c.b16 %v2192, %v2191
    %v2208 = vpack.c.b16 %v2194, %v2193
    %v2224 = vsel %vm1533, %v2096, 0
    %v2227 = vsel %vm1533, %v2098, 0
    %v2230 = vsel %vm1533, %v2100, 0
    %v2233 = vsel %vm1533, %v2102, 0
    %v2236 = vsel %vm1533, %v2104, 0
    %v2239 = vsel %vm1533, %v2106, 0
    %v2242 = vsel %vm1533, %v2108, 0
    %v2245 = vsel %vm1533, %v2110, 0
    %2247 = vmatprep.subr.bf16.mxu0 0
    %2248 = vmatpush1.bf16.msra.mxu0 %v2195
    %2249 = vmatprep.subr.bf16.mxu0 0
    %2250 = vmatpush1.bf16.msra.mxu0 %v2196
    %2251 = vmatprep.subr.bf16.mxu0 0
    %2252 = vmatpush1.bf16.msra.mxu0 %v2197
    %2253 = vmatprep.subr.bf16.mxu0 0
    %2254 = vmatpush1.bf16.msra.mxu0 %v2198
    %2255 = vmatprep.subr.bf16.mxu0 0
    %2256 = vmatpush1.bf16.msra.mxu0 %v2199
    %2257 = vmatprep.subr.bf16.mxu0 0
    %2258 = vmatpush1.bf16.msra.mxu0 %v2200
    %2259 = vmatprep.subr.bf16.mxu0 0
    %2260 = vmatpush1.bf16.msra.mxu0 %v2201
    %2261 = vmatprep.subr.bf16.mxu0 0
    %2262 = vmatpush1.bf16.msra.mxu0 %v2202
    %2263 = vmatprep.subr.bf16.mxu0 0
    %2264 = vmatpush1.bf16.msra.mxu0 %v2203
    %2265 = vmatprep.subr.bf16.mxu0 0
    %2266 = vmatpush1.bf16.msra.mxu0 %v2204
    %2267 = vmatprep.subr.bf16.mxu0 0
    %2268 = vmatpush1.bf16.msra.mxu0 %v2205
    %2269 = vmatprep.subr.bf16.mxu0 0
    %2270 = vmatpush1.bf16.msra.mxu0 %v2206
    %2271 = vmatprep.subr.bf16.mxu0 0
    %2272 = vmatpush1.bf16.msra.mxu0 %v2207
    %2273 = vmatprep.subr.bf16.mxu0 0
    %2274 = vmatpush1.bf16.msra.mxu0 %v2208
    %2275 = vmatprep.subr.bf16.mxu0 0
    %2276 = vmatpush1.bf16.msra.mxu0 0
    %2277 = vmatprep.subr.bf16.mxu0 0
    %2278 = vmatpush1.bf16.msra.mxu0 0
    %2279 = vmatprep.mubr.bf16.mxu0 %v2224
    %2280 = vmatmul.mubr.bf16.gmra.mrb[0].mxu0 %v2095
    %v2281 = vpop.f32.mrb[0].mxu0
    %v2282 = vadd.f32 0.0, %v2281
    %v2283 = vpop.f32.mrb[0].mxu0
    %v2284 = vpop.f32.mrb[0].mxu0
    %v2285 = vadd.f32 0.0, %v2284
    %v2286 = vpop.f32.mrb[0].mxu0
    %2287 = vmatprep.mubr.bf16.mxu0 %v2227
    %2288 = vmatmul.mubr.bf16.gmra.mrb[0].mxu0 %v2097
    %v2289 = vpop.f32.mrb[0].mxu0
    %v2290 = vadd.f32 0.0, %v2289
    %v2291 = vpop.f32.mrb[0].mxu0
    %v2292 = vpop.f32.mrb[0].mxu0
    %v2293 = vadd.f32 0.0, %v2292
    %v2294 = vpop.f32.mrb[0].mxu0
    %2295 = vmatprep.mubr.bf16.mxu0 %v2230
    %2296 = vmatmul.mubr.bf16.gmra.mrb[0].mxu0 %v2099
    %v2297 = vpop.f32.mrb[0].mxu0
    %v2298 = vadd.f32 0.0, %v2297
    %v2299 = vpop.f32.mrb[0].mxu0
    %v2300 = vpop.f32.mrb[0].mxu0
    %v2301 = vadd.f32 0.0, %v2300
    %v2302 = vpop.f32.mrb[0].mxu0
    %2303 = vmatprep.mubr.bf16.mxu0 %v2233
    %2304 = vmatmul.mubr.bf16.gmra.mrb[0].mxu0 %v2101
    %v2305 = vpop.f32.mrb[0].mxu0
    %v2306 = vadd.f32 0.0, %v2305
    %v2307 = vpop.f32.mrb[0].mxu0
    %v2308 = vpop.f32.mrb[0].mxu0
    %v2309 = vadd.f32 0.0, %v2308
    %v2310 = vpop.f32.mrb[0].mxu0
    %2311 = vmatprep.mubr.bf16.mxu0 %v2236
    %2312 = vmatmul.mubr.bf16.gmra.mrb[0].mxu0 %v2103
    %v2313 = vpop.f32.mrb[0].mxu0
    %v2314 = vadd.f32 0.0, %v2313
    %v2315 = vpop.f32.mrb[0].mxu0
    %v2316 = vpop.f32.mrb[0].mxu0
    %v2317 = vadd.f32 0.0, %v2316
    %v2318 = vpop.f32.mrb[0].mxu0
    %2319 = vmatprep.mubr.bf16.mxu0 %v2239
    %2320 = vmatmul.mubr.bf16.gmra.mrb[0].mxu0 %v2105
    %v2321 = vpop.f32.mrb[0].mxu0
    %v2322 = vadd.f32 0.0, %v2321
    %v2323 = vpop.f32.mrb[0].mxu0
    %v2324 = vpop.f32.mrb[0].mxu0
    %v2325 = vadd.f32 0.0, %v2324
    %v2326 = vpop.f32.mrb[0].mxu0
    %2327 = vmatprep.mubr.bf16.mxu0 %v2242
    %2328 = vmatmul.mubr.bf16.gmra.mrb[0].mxu0 %v2107
    %v2329 = vpop.f32.mrb[0].mxu0
    %v2330 = vadd.f32 0.0, %v2329
    %v2331 = vpop.f32.mrb[0].mxu0
    %v2332 = vpop.f32.mrb[0].mxu0
    %v2333 = vadd.f32 0.0, %v2332
    %v2334 = vpop.f32.mrb[0].mxu0
    %2335 = vmatprep.mubr.bf16.mxu0 %v2245
    %2336 = vmatmul.mubr.bf16.gmra.mrb[0].mxu0 %v2109
    %v2337 = vpop.f32.mrb[0].mxu0
    %v2338 = vadd.f32 0.0, %v2337
    %v2339 = vpop.f32.mrb[0].mxu0
    %v2340 = vpop.f32.mrb[0].mxu0
    %v2341 = vadd.f32 0.0, %v2340
    %v2342 = vpop.f32.mrb[0].mxu0
    %2343 = vdwg.mxu0
    %v2344 = vld [vmem:[#allocation20] sm:$0x1]
    %v2346 = vlaneseq
    %v2347 = vshrl.u32 %v2346, 7
    %v2348 = vsub.s32 0, %v2347
    %v2349 = vrot.slane %v2344, %v2348
    %v2351 = vmul.f32 %v2282, %v2349
    %v2352 = vmul.f32 %v2285, %v2349
    %v2353 = vmul.f32 %v2290, %v2349
    %v2354 = vmul.f32 %v2293, %v2349
    %v2355 = vmul.f32 %v2298, %v2349
    %v2356 = vmul.f32 %v2301, %v2349
    %v2357 = vmul.f32 %v2306, %v2349
    %v2358 = vmul.f32 %v2309, %v2349
    %v2359 = vmul.f32 %v2314, %v2349
    %v2360 = vmul.f32 %v2317, %v2349
    %v2361 = vmul.f32 %v2322, %v2349
    %v2362 = vmul.f32 %v2325, %v2349
    %v2363 = vmul.f32 %v2330, %v2349
    %v2364 = vmul.f32 %v2333, %v2349
    %v2365 = vmul.f32 %v2338, %v2349
    %v2366 = vmul.f32 %v2341, %v2349
    %v2367 = vld [vmem:[#allocation21] sm:$0x1]
    %v2369 = vlaneseq
    %v2370 = vshrl.u32 %v2369, 7
    %v2371 = vsub.s32 0, %v2370
    %v2372 = vrot.slane %v2367, %v2371
    %v2374 = vadd.f32 %v2351, %v2372
    %v2375 = vadd.f32 %v2352, %v2372
    %v2376 = vadd.f32 %v2353, %v2372
    %v2377 = vadd.f32 %v2354, %v2372
    %v2378 = vadd.f32 %v2355, %v2372
    %v2379 = vadd.f32 %v2356, %v2372
    %v2380 = vadd.f32 %v2357, %v2372
    %v2381 = vadd.f32 %v2358, %v2372
    %v2382 = vadd.f32 %v2359, %v2372
    %v2383 = vadd.f32 %v2360, %v2372
    %v2384 = vadd.f32 %v2361, %v2372
    %v2385 = vadd.f32 %v2362, %v2372
    %v2386 = vadd.f32 %v2363, %v2372
    %v2387 = vadd.f32 %v2364, %v2372
    %v2388 = vadd.f32 %v2365, %v2372
    %v2389 = vadd.f32 %v2366, %v2372
    %v2390 = vmax.f32 %v2374, 0.0
    %v2391 = vmax.f32 %v2375, 0.0
    %v2392 = vmax.f32 %v2376, 0.0
    %v2393 = vmax.f32 %v2377, 0.0
    %v2394 = vmax.f32 %v2378, 0.0
    %v2395 = vmax.f32 %v2379, 0.0
    %v2396 = vmax.f32 %v2380, 0.0
    %v2397 = vmax.f32 %v2381, 0.0
    %v2398 = vmax.f32 %v2382, 0.0
    %v2399 = vmax.f32 %v2383, 0.0
    %v2400 = vmax.f32 %v2384, 0.0
    %v2401 = vmax.f32 %v2385, 0.0
    %v2402 = vmax.f32 %v2386, 0.0
    %v2403 = vmax.f32 %v2387, 0.0
    %v2404 = vmax.f32 %v2388, 0.0
    %v2405 = vmax.f32 %v2389, 0.0
    %v2406 = vpack.c.bf16 %v2391, %v2390
    %v2407 = vpack.c.bf16 %v2393, %v2392
    %v2408 = vpack.c.bf16 %v2395, %v2394
    %v2409 = vpack.c.bf16 %v2397, %v2396
    %v2410 = vpack.c.bf16 %v2399, %v2398
    %v2411 = vpack.c.bf16 %v2401, %v2400
    %v2412 = vpack.c.bf16 %v2403, %v2402
    %v2413 = vpack.c.bf16 %v2405, %v2404
    %v2422 = vunpack.c.l.b16 %v2406
    %v2423 = vunpack.c.h.b16 %v2406
    %v2424 = vunpack.c.l.b16 %v2407
    %v2425 = vunpack.c.h.b16 %v2407
    %v2426 = vunpack.c.l.b16 %v2408
    %v2427 = vunpack.c.h.b16 %v2408
    %v2428 = vunpack.c.l.b16 %v2409
    %v2429 = vunpack.c.h.b16 %v2409
    %v2430 = vunpack.c.l.b16 %v2410
    %v2431 = vunpack.c.h.b16 %v2410
    %v2432 = vunpack.c.l.b16 %v2411
    %v2433 = vunpack.c.h.b16 %v2411
    %v2434 = vunpack.c.l.b16 %v2412
    %v2435 = vunpack.c.h.b16 %v2412
    %v2436 = vunpack.c.l.b16 %v2413
    %v2437 = vunpack.c.h.b16 %v2413
    %v2438 = vpack.c.b16 %v2422, %v2422
    %v2439 = vpack.c.b16 %v2423, %v2423
    %v2440 = vpack.c.b16 %v2424, %v2424
    %v2441 = vpack.c.b16 %v2425, %v2425
    %v2442 = vpack.c.b16 %v2426, %v2426
    %v2443 = vpack.c.b16 %v2427, %v2427
    %v2444 = vpack.c.b16 %v2428, %v2428
    %v2445 = vpack.c.b16 %v2429, %v2429
    %v2446 = vpack.c.b16 %v2430, %v2430
    %v2447 = vpack.c.b16 %v2431, %v2431
    %v2448 = vpack.c.b16 %v2432, %v2432
    %v2449 = vpack.c.b16 %v2433, %v2433
    %v2450 = vpack.c.b16 %v2434, %v2434
    %v2451 = vpack.c.b16 %v2435, %v2435
    %v2452 = vpack.c.b16 %v2436, %v2436
    %v2453 = vpack.c.b16 %v2437, %v2437
    %2470 = vst.msk [vmem:[#allocation23] sm:$0xf] %vm1018, %v2438
    %2471 = vst.msk [vmem:[#allocation23 + $0x4] sm:$0xf] %vm1018, %v2439
    %2472 = vst.msk [vmem:[#allocation23 + $0x8] sm:$0xf] %vm1018, %v2440
    %2473 = vst.msk [vmem:[#allocation23 + $0xc] sm:$0xf] %vm1018, %v2441
    %2474 = vst.msk [vmem:[#allocation23 + $0x10] sm:$0xf] %vm1018, %v2442
    %2475 = vst.msk [vmem:[#allocation23 + $0x14] sm:$0xf] %vm1018, %v2443
    %2476 = vst.msk [vmem:[#allocation23 + $0x18] sm:$0xf] %vm1018, %v2444
    %2477 = vst.msk [vmem:[#allocation23 + $0x1c] sm:$0xf] %vm1018, %v2445
    %2478 = vst.msk [vmem:[#allocation23 + $0x20] sm:$0xf] %vm1018, %v2446
    %2479 = vst.msk [vmem:[#allocation23 + $0x24] sm:$0xf] %vm1018, %v2447
    %2480 = vst.msk [vmem:[#allocation23 + $0x28] sm:$0xf] %vm1018, %v2448
    %2481 = vst.msk [vmem:[#allocation23 + $0x2c] sm:$0xf] %vm1018, %v2449
    %2482 = vst.msk [vmem:[#allocation23 + $0x30] sm:$0xf] %vm1018, %v2450
    %2483 = vst.msk [vmem:[#allocation23 + $0x34] sm:$0xf] %vm1018, %v2451
    %2484 = vst.msk [vmem:[#allocation23 + $0x38] sm:$0xf] %vm1018, %v2452
    %2485 = vst.msk [vmem:[#allocation23 + $0x3c] sm:$0xf] %vm1018, %v2453
    %v2486 = vld [vmem:[#allocation5] sm:$0xff]
    %v2487 = vld [vmem:[#allocation5 + $0x8] sm:$0xff]
    %v2488 = vld [vmem:[#allocation5 + $0x10] sm:$0xff]
    %v2489 = vld [vmem:[#allocation5 + $0x18] sm:$0xff]
    %v2490 = vld [vmem:[#allocation5 + $0x20] sm:$0xff]
    %v2491 = vld [vmem:[#allocation5 + $0x28] sm:$0xff]
    %v2492 = vld [vmem:[#allocation5 + $0x30] sm:$0xff]
    %v2493 = vld [vmem:[#allocation5 + $0x38] sm:$0xff]
    %v2502 = vrot.slane %v2486, 4
    %v2503 = vrot.slane %v2487, 4
    %v2504 = vsel %vm1039, %v2502, %v2503
    %v2505 = vrot.slane %v2488, 4
    %v2506 = vsel %vm1039, %v2503, %v2505
    %v2507 = vrot.slane %v2489, 4
    %v2508 = vsel %vm1039, %v2505, %v2507
    %v2509 = vrot.slane %v2490, 4
    %v2510 = vsel %vm1039, %v2507, %v2509
    %v2511 = vrot.slane %v2491, 4
    %v2512 = vsel %vm1039, %v2509, %v2511
    %v2513 = vrot.slane %v2492, 4
    %v2514 = vsel %vm1039, %v2511, %v2513
    %v2515 = vrot.slane %v2493, 4
    %v2516 = vsel %vm1039, %v2513, %v2515
    %2517 = vrot.lane.b32.xlu0 %v2502, 96
    %v2518 = vpop.permute.xlu0 %2517
    %2519 = vrot.lane.b32.xlu0 %v2504, 96
    %v2520 = vpop.permute.xlu0 %2519
    %2521 = vrot.lane.b32.xlu0 %v2506, 96
    %v2522 = vpop.permute.xlu0 %2521
    %2523 = vrot.lane.b32.xlu0 %v2508, 96
    %v2524 = vpop.permute.xlu0 %2523
    %2525 = vrot.lane.b32.xlu0 %v2510, 96
    %v2526 = vpop.permute.xlu0 %2525
    %2527 = vrot.lane.b32.xlu0 %v2512, 96
    %v2528 = vpop.permute.xlu0 %2527
    %2529 = vrot.lane.b32.xlu0 %v2514, 96
    %v2530 = vpop.permute.xlu0 %2529
    %2531 = vrot.lane.b32.xlu0 %v2516, 96
    %v2532 = vpop.permute.xlu0 %2531
    %2533 = vrot.lane.b32.xlu0 %v2515, 96
    %v2534 = vpop.permute.xlu0 %2533
    %2544 = vst.msk [vmem:[#allocation2 + $0x8] sm:$0xf0] %vm1020, %v2518
    %2545 = vst.msk [vmem:[#allocation2 + $0x10] sm:$0xff] %vm1016, %v2520
    %2546 = vst.msk [vmem:[#allocation2 + $0x18] sm:$0xff] %vm1016, %v2522
    %2547 = vst.msk [vmem:[#allocation2 + $0x20] sm:$0xff] %vm1016, %v2524
    %2548 = vst.msk [vmem:[#allocation2 + $0x28] sm:$0xff] %vm1016, %v2526
    %2549 = vst.msk [vmem:[#allocation2 + $0x30] sm:$0xff] %vm1016, %v2528
    %2550 = vst.msk [vmem:[#allocation2 + $0x38] sm:$0xff] %vm1016, %v2530
    %2551 = vst.msk [vmem:[#allocation2 + $0x40] sm:$0xff] %vm1016, %v2532
    %2552 = vst.msk [vmem:[#allocation2 + $0x48] sm:$0xf] %vm1018, %v2534
    %v2553 = vld [vmem:[#allocation2] sm:$0xff]
    %v2554 = vld [vmem:[#allocation2 + $0x8] sm:$0xff]
    %v2555 = vld [vmem:[#allocation2 + $0x10] sm:$0xff]
    %v2556 = vld [vmem:[#allocation2 + $0x18] sm:$0xff]
    %v2557 = vld [vmem:[#allocation2 + $0x20] sm:$0xff]
    %v2558 = vld [vmem:[#allocation2 + $0x28] sm:$0xff]
    %v2559 = vld [vmem:[#allocation2 + $0x30] sm:$0xff]
    %v2560 = vld [vmem:[#allocation2 + $0x38] sm:$0xff]
    %2561 = vst.msk [vmem:[#allocation4] sm:$0xff] %vm1016, %v2553
    %2562 = vst.msk [vmem:[#allocation4 + $0x10] sm:$0xff] %vm1016, %v2554
    %2563 = vst.msk [vmem:[#allocation4 + $0x20] sm:$0xff] %vm1016, %v2555
    %2564 = vst.msk [vmem:[#allocation4 + $0x30] sm:$0xff] %vm1016, %v2556
    %2565 = vst.msk [vmem:[#allocation4 + $0x40] sm:$0xff] %vm1016, %v2557
    %2566 = vst.msk [vmem:[#allocation4 + $0x50] sm:$0xff] %vm1016, %v2558
    %2567 = vst.msk [vmem:[#allocation4 + $0x60] sm:$0xff] %vm1016, %v2559
    %2568 = vst.msk [vmem:[#allocation4 + $0x70] sm:$0xff] %vm1016, %v2560
    %v2569 = vld [vmem:[#allocation2] sm:$0xf0]
    %v2570 = vld [vmem:[#allocation2 + $0x8] sm:$0xff]
    %v2571 = vld [vmem:[#allocation2 + $0x10] sm:$0xff]
    %v2572 = vld [vmem:[#allocation2 + $0x18] sm:$0xff]
    %v2573 = vld [vmem:[#allocation2 + $0x20] sm:$0xff]
    %v2574 = vld [vmem:[#allocation2 + $0x28] sm:$0xff]
    %v2575 = vld [vmem:[#allocation2 + $0x30] sm:$0xff]
    %v2576 = vld [vmem:[#allocation2 + $0x38] sm:$0xff]
    %v2577 = vld [vmem:[#allocation2 + $0x40] sm:$0xf]
    %v2587 = vrot.slane %v2569, 4
    %v2588 = vrot.slane %v2570, 4
    %v2589 = vsel %vm1039, %v2587, %v2588
    %v2590 = vrot.slane %v2571, 4
    %v2591 = vsel %vm1039, %v2588, %v2590
    %v2592 = vrot.slane %v2572, 4
    %v2593 = vsel %vm1039, %v2590, %v2592
    %v2594 = vrot.slane %v2573, 4
    %v2595 = vsel %vm1039, %v2592, %v2594
    %v2596 = vrot.slane %v2574, 4
    %v2597 = vsel %vm1039, %v2594, %v2596
    %v2598 = vrot.slane %v2575, 4
    %v2599 = vsel %vm1039, %v2596, %v2598
    %v2600 = vrot.slane %v2576, 4
    %v2601 = vsel %vm1039, %v2598, %v2600
    %v2602 = vrot.slane %v2577, 4
    %v2603 = vsel %vm1039, %v2600, %v2602
    %2604 = vrot.lane.b32.xlu0 %v2589, 32
    %v2605 = vpop.permute.xlu0 %2604
    %2606 = vrot.lane.b32.xlu0 %v2591, 32
    %v2607 = vpop.permute.xlu0 %2606
    %2608 = vrot.lane.b32.xlu0 %v2593, 32
    %v2609 = vpop.permute.xlu0 %2608
    %2610 = vrot.lane.b32.xlu0 %v2595, 32
    %v2611 = vpop.permute.xlu0 %2610
    %2612 = vrot.lane.b32.xlu0 %v2597, 32
    %v2613 = vpop.permute.xlu0 %2612
    %2614 = vrot.lane.b32.xlu0 %v2599, 32
    %v2615 = vpop.permute.xlu0 %2614
    %2616 = vrot.lane.b32.xlu0 %v2601, 32
    %v2617 = vpop.permute.xlu0 %2616
    %2618 = vrot.lane.b32.xlu0 %v2603, 32
    %v2619 = vpop.permute.xlu0 %2618
    %2628 = vst.msk [vmem:[#allocation4] sm:$0xff] %vm1148, %v2605
    %2629 = vst.msk [vmem:[#allocation4 + $0x10] sm:$0xff] %vm1148, %v2607
    %2630 = vst.msk [vmem:[#allocation4 + $0x20] sm:$0xff] %vm1148, %v2609
    %2631 = vst.msk [vmem:[#allocation4 + $0x30] sm:$0xff] %vm1148, %v2611
    %2632 = vst.msk [vmem:[#allocation4 + $0x40] sm:$0xff] %vm1148, %v2613
    %2633 = vst.msk [vmem:[#allocation4 + $0x50] sm:$0xff] %vm1148, %v2615
    %2634 = vst.msk [vmem:[#allocation4 + $0x60] sm:$0xff] %vm1148, %v2617
    %2635 = vst.msk [vmem:[#allocation4 + $0x70] sm:$0xff] %vm1148, %v2619
    %v2636 = vld [vmem:[#allocation2 + $0x8] sm:$0xff]
    %v2637 = vld [vmem:[#allocation2 + $0x10] sm:$0xff]
    %v2638 = vld [vmem:[#allocation2 + $0x18] sm:$0xff]
    %v2639 = vld [vmem:[#allocation2 + $0x20] sm:$0xff]
    %v2640 = vld [vmem:[#allocation2 + $0x28] sm:$0xff]
    %v2641 = vld [vmem:[#allocation2 + $0x30] sm:$0xff]
    %v2642 = vld [vmem:[#allocation2 + $0x38] sm:$0xff]
    %v2643 = vld [vmem:[#allocation2 + $0x40] sm:$0xff]
    %2652 = vrot.lane.b32.xlu0 %v2636, 64
    %v2653 = vpop.permute.xlu0 %2652
    %2654 = vrot.lane.b32.xlu0 %v2637, 64
    %v2655 = vpop.permute.xlu0 %2654
    %2656 = vrot.lane.b32.xlu0 %v2638, 64
    %v2657 = vpop.permute.xlu0 %2656
    %2658 = vrot.lane.b32.xlu0 %v2639, 64
    %v2659 = vpop.permute.xlu0 %2658
    %2660 = vrot.lane.b32.xlu0 %v2640, 64
    %v2661 = vpop.permute.xlu0 %2660
    %2662 = vrot.lane.b32.xlu0 %v2641, 64
    %v2663 = vpop.permute.xlu0 %2662
    %2664 = vrot.lane.b32.xlu0 %v2642, 64
    %v2665 = vpop.permute.xlu0 %2664
    %2666 = vrot.lane.b32.xlu0 %v2643, 64
    %v2667 = vpop.permute.xlu0 %2666
    %2676 = vst.msk [vmem:[#allocation4] sm:$0xff] %vm1197, %v2653
    %2677 = vst.msk [vmem:[#allocation4 + $0x10] sm:$0xff] %vm1197, %v2655
    %2678 = vst.msk [vmem:[#allocation4 + $0x20] sm:$0xff] %vm1197, %v2657
    %2679 = vst.msk [vmem:[#allocation4 + $0x30] sm:$0xff] %vm1197, %v2659
    %2680 = vst.msk [vmem:[#allocation4 + $0x40] sm:$0xff] %vm1197, %v2661
    %2681 = vst.msk [vmem:[#allocation4 + $0x50] sm:$0xff] %vm1197, %v2663
    %2682 = vst.msk [vmem:[#allocation4 + $0x60] sm:$0xff] %vm1197, %v2665
    %2683 = vst.msk [vmem:[#allocation4 + $0x70] sm:$0xff] %vm1197, %v2667
    %v2684 = vld [vmem:[#allocation2 + $0x8] sm:$0xf0]
    %v2685 = vld [vmem:[#allocation2 + $0x10] sm:$0xff]
    %v2686 = vld [vmem:[#allocation2 + $0x18] sm:$0xff]
    %v2687 = vld [vmem:[#allocation2 + $0x20] sm:$0xff]
    %v2688 = vld [vmem:[#allocation2 + $0x28] sm:$0xff]
    %v2689 = vld [vmem:[#allocation2 + $0x30] sm:$0xff]
    %v2690 = vld [vmem:[#allocation2 + $0x38] sm:$0xff]
    %v2691 = vld [vmem:[#allocation2 + $0x40] sm:$0xff]
    %v2692 = vld [vmem:[#allocation2 + $0x48] sm:$0xf]
    %v2702 = vrot.slane %v2684, 4
    %v2703 = vrot.slane %v2685, 4
    %v2704 = vsel %vm1039, %v2702, %v2703
    %v2705 = vrot.slane %v2686, 4
    %v2706 = vsel %vm1039, %v2703, %v2705
    %v2707 = vrot.slane %v2687, 4
    %v2708 = vsel %vm1039, %v2705, %v2707
    %v2709 = vrot.slane %v2688, 4
    %v2710 = vsel %vm1039, %v2707, %v2709
    %v2711 = vrot.slane %v2689, 4
    %v2712 = vsel %vm1039, %v2709, %v2711
    %v2713 = vrot.slane %v2690, 4
    %v2714 = vsel %vm1039, %v2711, %v2713
    %v2715 = vrot.slane %v2691, 4
    %v2716 = vsel %vm1039, %v2713, %v2715
    %v2717 = vrot.slane %v2692, 4
    %v2718 = vsel %vm1039, %v2715, %v2717
    %2719 = vrot.lane.b32.xlu0 %v2704, 96
    %v2720 = vpop.permute.xlu0 %2719
    %2721 = vrot.lane.b32.xlu0 %v2706, 96
    %v2722 = vpop.permute.xlu0 %2721
    %2723 = vrot.lane.b32.xlu0 %v2708, 96
    %v2724 = vpop.permute.xlu0 %2723
    %2725 = vrot.lane.b32.xlu0 %v2710, 96
    %v2726 = vpop.permute.xlu0 %2725
    %2727 = vrot.lane.b32.xlu0 %v2712, 96
    %v2728 = vpop.permute.xlu0 %2727
    %2729 = vrot.lane.b32.xlu0 %v2714, 96
    %v2730 = vpop.permute.xlu0 %2729
    %2731 = vrot.lane.b32.xlu0 %v2716, 96
    %v2732 = vpop.permute.xlu0 %2731
    %2733 = vrot.lane.b32.xlu0 %v2718, 96
    %v2734 = vpop.permute.xlu0 %2733
    %2743 = vst.msk [vmem:[#allocation4] sm:$0xff] %vm1265, %v2720
    %2744 = vst.msk [vmem:[#allocation4 + $0x10] sm:$0xff] %vm1265, %v2722
    %2745 = vst.msk [vmem:[#allocation4 + $0x20] sm:$0xff] %vm1265, %v2724
    %2746 = vst.msk [vmem:[#allocation4 + $0x30] sm:$0xff] %vm1265, %v2726
    %2747 = vst.msk [vmem:[#allocation4 + $0x40] sm:$0xff] %vm1265, %v2728
    %2748 = vst.msk [vmem:[#allocation4 + $0x50] sm:$0xff] %vm1265, %v2730
    %2749 = vst.msk [vmem:[#allocation4 + $0x60] sm:$0xff] %vm1265, %v2732
    %2750 = vst.msk [vmem:[#allocation4 + $0x70] sm:$0xff] %vm1265, %v2734
    %v2751 = vld [vmem:[#allocation2 + $0x10] sm:$0xff]
    %v2752 = vld [vmem:[#allocation2 + $0x18] sm:$0xff]
    %v2753 = vld [vmem:[#allocation2 + $0x20] sm:$0xff]
    %v2754 = vld [vmem:[#allocation2 + $0x28] sm:$0xff]
    %v2755 = vld [vmem:[#allocation2 + $0x30] sm:$0xff]
    %v2756 = vld [vmem:[#allocation2 + $0x38] sm:$0xff]
    %v2757 = vld [vmem:[#allocation2 + $0x40] sm:$0xff]
    %v2758 = vld [vmem:[#allocation2 + $0x48] sm:$0xff]
    %2759 = vst.msk [vmem:[#allocation4 + $0x8] sm:$0xff] %vm1016, %v2751
    %2760 = vst.msk [vmem:[#allocation4 + $0x18] sm:$0xff] %vm1016, %v2752
    %2761 = vst.msk [vmem:[#allocation4 + $0x28] sm:$0xff] %vm1016, %v2753
    %2762 = vst.msk [vmem:[#allocation4 + $0x38] sm:$0xff] %vm1016, %v2754
    %2763 = vst.msk [vmem:[#allocation4 + $0x48] sm:$0xff] %vm1016, %v2755
    %2764 = vst.msk [vmem:[#allocation4 + $0x58] sm:$0xff] %vm1016, %v2756
    %2765 = vst.msk [vmem:[#allocation4 + $0x68] sm:$0xff] %vm1016, %v2757
    %2766 = vst.msk [vmem:[#allocation4 + $0x78] sm:$0xff] %vm1016, %v2758
    %v2767 = vld [vmem:[#allocation2 + $0x10] sm:$0xf0]
    %v2768 = vld [vmem:[#allocation2 + $0x18] sm:$0xff]
    %v2769 = vld [vmem:[#allocation2 + $0x20] sm:$0xff]
    %v2770 = vld [vmem:[#allocation2 + $0x28] sm:$0xff]
    %v2771 = vld [vmem:[#allocation2 + $0x30] sm:$0xff]
    %v2772 = vld [vmem:[#allocation2 + $0x38] sm:$0xff]
    %v2773 = vld [vmem:[#allocation2 + $0x40] sm:$0xff]
    %v2774 = vld [vmem:[#allocation2 + $0x48] sm:$0xff]
    %v2775 = vld [vmem:[#allocation2 + $0x50] sm:$0xf]
    %v2785 = vrot.slane %v2767, 4
    %v2786 = vrot.slane %v2768, 4
    %v2787 = vsel %vm1039, %v2785, %v2786
    %v2788 = vrot.slane %v2769, 4
    %v2789 = vsel %vm1039, %v2786, %v2788
    %v2790 = vrot.slane %v2770, 4
    %v2791 = vsel %vm1039, %v2788, %v2790
    %v2792 = vrot.slane %v2771, 4
    %v2793 = vsel %vm1039, %v2790, %v2792
    %v2794 = vrot.slane %v2772, 4
    %v2795 = vsel %vm1039, %v2792, %v2794
    %v2796 = vrot.slane %v2773, 4
    %v2797 = vsel %vm1039, %v2794, %v2796
    %v2798 = vrot.slane %v2774, 4
    %v2799 = vsel %vm1039, %v2796, %v2798
    %v2800 = vrot.slane %v2775, 4
    %v2801 = vsel %vm1039, %v2798, %v2800
    %2802 = vrot.lane.b32.xlu0 %v2787, 32
    %v2803 = vpop.permute.xlu0 %2802
    %2804 = vrot.lane.b32.xlu0 %v2789, 32
    %v2805 = vpop.permute.xlu0 %2804
    %2806 = vrot.lane.b32.xlu0 %v2791, 32
    %v2807 = vpop.permute.xlu0 %2806
    %2808 = vrot.lane.b32.xlu0 %v2793, 32
    %v2809 = vpop.permute.xlu0 %2808
    %2810 = vrot.lane.b32.xlu0 %v2795, 32
    %v2811 = vpop.permute.xlu0 %2810
    %2812 = vrot.lane.b32.xlu0 %v2797, 32
    %v2813 = vpop.permute.xlu0 %2812
    %2814 = vrot.lane.b32.xlu0 %v2799, 32
    %v2815 = vpop.permute.xlu0 %2814
    %2816 = vrot.lane.b32.xlu0 %v2801, 32
    %v2817 = vpop.permute.xlu0 %2816
    %2826 = vst.msk [vmem:[#allocation4 + $0x8] sm:$0xff] %vm1148, %v2803
    %2827 = vst.msk [vmem:[#allocation4 + $0x18] sm:$0xff] %vm1148, %v2805
    %2828 = vst.msk [vmem:[#allocation4 + $0x28] sm:$0xff] %vm1148, %v2807
    %2829 = vst.msk [vmem:[#allocation4 + $0x38] sm:$0xff] %vm1148, %v2809
    %2830 = vst.msk [vmem:[#allocation4 + $0x48] sm:$0xff] %vm1148, %v2811
    %2831 = vst.msk [vmem:[#allocation4 + $0x58] sm:$0xff] %vm1148, %v2813
    %2832 = vst.msk [vmem:[#allocation4 + $0x68] sm:$0xff] %vm1148, %v2815
    %2833 = vst.msk [vmem:[#allocation4 + $0x78] sm:$0xff] %vm1148, %v2817
    %v2834 = vld [vmem:[#allocation2 + $0x18] sm:$0xff]
    %v2835 = vld [vmem:[#allocation2 + $0x20] sm:$0xff]
    %v2836 = vld [vmem:[#allocation2 + $0x28] sm:$0xff]
    %v2837 = vld [vmem:[#allocation2 + $0x30] sm:$0xff]
    %v2838 = vld [vmem:[#allocation2 + $0x38] sm:$0xff]
    %v2839 = vld [vmem:[#allocation2 + $0x40] sm:$0xff]
    %v2840 = vld [vmem:[#allocation2 + $0x48] sm:$0xff]
    %v2841 = vld [vmem:[#allocation2 + $0x50] sm:$0xff]
    %2850 = vrot.lane.b32.xlu0 %v2834, 64
    %v2851 = vpop.permute.xlu0 %2850
    %2852 = vrot.lane.b32.xlu0 %v2835, 64
    %v2853 = vpop.permute.xlu0 %2852
    %2854 = vrot.lane.b32.xlu0 %v2836, 64
    %v2855 = vpop.permute.xlu0 %2854
    %2856 = vrot.lane.b32.xlu0 %v2837, 64
    %v2857 = vpop.permute.xlu0 %2856
    %2858 = vrot.lane.b32.xlu0 %v2838, 64
    %v2859 = vpop.permute.xlu0 %2858
    %2860 = vrot.lane.b32.xlu0 %v2839, 64
    %v2861 = vpop.permute.xlu0 %2860
    %2862 = vrot.lane.b32.xlu0 %v2840, 64
    %v2863 = vpop.permute.xlu0 %2862
    %2864 = vrot.lane.b32.xlu0 %v2841, 64
    %v2865 = vpop.permute.xlu0 %2864
    %2874 = vst.msk [vmem:[#allocation4 + $0x8] sm:$0xff] %vm1197, %v2851
    %2875 = vst.msk [vmem:[#allocation4 + $0x18] sm:$0xff] %vm1197, %v2853
    %2876 = vst.msk [vmem:[#allocation4 + $0x28] sm:$0xff] %vm1197, %v2855
    %2877 = vst.msk [vmem:[#allocation4 + $0x38] sm:$0xff] %vm1197, %v2857
    %2878 = vst.msk [vmem:[#allocation4 + $0x48] sm:$0xff] %vm1197, %v2859
    %2879 = vst.msk [vmem:[#allocation4 + $0x58] sm:$0xff] %vm1197, %v2861
    %2880 = vst.msk [vmem:[#allocation4 + $0x68] sm:$0xff] %vm1197, %v2863
    %2881 = vst.msk [vmem:[#allocation4 + $0x78] sm:$0xff] %vm1197, %v2865
    %v2882 = vld [vmem:[#allocation4] sm:$0xff]
    %v2883 = vld [vmem:[#allocation4 + $0x8] sm:$0xff]
    %v2884 = vld [vmem:[#allocation4 + $0x10] sm:$0xff]
    %v2885 = vld [vmem:[#allocation4 + $0x18] sm:$0xff]
    %v2886 = vld [vmem:[#allocation4 + $0x20] sm:$0xff]
    %v2887 = vld [vmem:[#allocation4 + $0x28] sm:$0xff]
    %v2888 = vld [vmem:[#allocation4 + $0x30] sm:$0xff]
    %v2889 = vld [vmem:[#allocation4 + $0x38] sm:$0xff]
    %v2890 = vld [vmem:[#allocation4 + $0x40] sm:$0xff]
    %v2891 = vld [vmem:[#allocation4 + $0x48] sm:$0xff]
    %v2892 = vld [vmem:[#allocation4 + $0x50] sm:$0xff]
    %v2893 = vld [vmem:[#allocation4 + $0x58] sm:$0xff]
    %v2894 = vld [vmem:[#allocation4 + $0x60] sm:$0xff]
    %v2895 = vld [vmem:[#allocation4 + $0x68] sm:$0xff]
    %v2896 = vld [vmem:[#allocation4 + $0x70] sm:$0xff]
    %v2897 = vld [vmem:[#allocation4 + $0x78] sm:$0xff]
    %s2898 = scalar_lea.vmem [#allocation14], 112
    %v2899 = vld [vmem:[%s2898] sm:$0xf]
    %v2900 = vld [vmem:[%s2898 + $0x4] sm:$0xf]
    %v2901 = vld [vmem:[%s2898 + $0x8] sm:$0xf]
    %v2902 = vld [vmem:[%s2898 + $0xc] sm:$0xf]
    %v2903 = vld [vmem:[%s2898 + $0x10] sm:$0xf]
    %v2904 = vld [vmem:[%s2898 + $0x14] sm:$0xf]
    %v2905 = vld [vmem:[%s2898 + $0x18] sm:$0xf]
    %v2906 = vld [vmem:[%s2898 + $0x1c] sm:$0xf]
    %v2907 = vld [vmem:[%s2898 + $0x20] sm:$0xf]
    %v2908 = vld [vmem:[%s2898 + $0x24] sm:$0xf]
    %v2909 = vld [vmem:[%s2898 + $0x28] sm:$0xf]
    %v2910 = vld [vmem:[%s2898 + $0x2c] sm:$0xf]
    %v2911 = vld [vmem:[%s2898 + $0x30] sm:$0xf]
    %v2912 = vld [vmem:[%s2898 + $0x34] sm:$0xf]
    %v2913 = vld [vmem:[%s2898 + $0x38] sm:$0xf]
    %v2914 = vld [vmem:[%s2898 + $0x3c] sm:$0xf]
    %v2915 = vld [vmem:[%s2898 + $0x40] sm:$0xf]
    %v2916 = vld [vmem:[%s2898 + $0x44] sm:$0xf]
    %v2917 = vld [vmem:[%s2898 + $0x48] sm:$0xf]
    %v2918 = vld [vmem:[%s2898 + $0x4c] sm:$0xf]
    %v2919 = vld [vmem:[%s2898 + $0x50] sm:$0xf]
    %v2920 = vld [vmem:[%s2898 + $0x54] sm:$0xf]
    %v2921 = vld [vmem:[%s2898 + $0x58] sm:$0xf]
    %v2922 = vld [vmem:[%s2898 + $0x5c] sm:$0xf]
    %v2923 = vld [vmem:[%s2898 + $0x60] sm:$0xf]
    %v2924 = vld [vmem:[%s2898 + $0x64] sm:$0xf]
    %v2925 = vld [vmem:[%s2898 + $0x68] sm:$0xf]
    %v2926 = vld [vmem:[%s2898 + $0x6c] sm:$0xf]
    %v2955 = vunpack.c.l.b16 %v2899
    %v2956 = vunpack.c.l.b16 %v2900
    %v2957 = vunpack.c.l.b16 %v2901
    %v2958 = vunpack.c.l.b16 %v2902
    %v2959 = vunpack.c.l.b16 %v2903
    %v2960 = vunpack.c.l.b16 %v2904
    %v2961 = vunpack.c.l.b16 %v2905
    %v2962 = vunpack.c.l.b16 %v2906
    %v2963 = vunpack.c.l.b16 %v2907
    %v2964 = vunpack.c.l.b16 %v2908
    %v2965 = vunpack.c.l.b16 %v2909
    %v2966 = vunpack.c.l.b16 %v2910
    %v2967 = vunpack.c.l.b16 %v2911
    %v2968 = vunpack.c.l.b16 %v2912
    %v2969 = vunpack.c.l.b16 %v2913
    %v2970 = vunpack.c.l.b16 %v2914
    %v2971 = vunpack.c.l.b16 %v2915
    %v2972 = vunpack.c.l.b16 %v2916
    %v2973 = vunpack.c.l.b16 %v2917
    %v2974 = vunpack.c.l.b16 %v2918
    %v2975 = vunpack.c.l.b16 %v2919
    %v2976 = vunpack.c.l.b16 %v2920
    %v2977 = vunpack.c.l.b16 %v2921
    %v2978 = vunpack.c.l.b16 %v2922
    %v2979 = vunpack.c.l.b16 %v2923
    %v2980 = vunpack.c.l.b16 %v2924
    %v2981 = vunpack.c.l.b16 %v2925
    %v2982 = vunpack.c.l.b16 %v2926
    %v2983 = vpack.c.b16 %v2956, %v2955
    %v2984 = vpack.c.b16 %v2958, %v2957
    %v2985 = vpack.c.b16 %v2960, %v2959
    %v2986 = vpack.c.b16 %v2962, %v2961
    %v2987 = vpack.c.b16 %v2964, %v2963
    %v2988 = vpack.c.b16 %v2966, %v2965
    %v2989 = vpack.c.b16 %v2968, %v2967
    %v2990 = vpack.c.b16 %v2970, %v2969
    %v2991 = vpack.c.b16 %v2972, %v2971
    %v2992 = vpack.c.b16 %v2974, %v2973
    %v2993 = vpack.c.b16 %v2976, %v2975
    %v2994 = vpack.c.b16 %v2978, %v2977
    %v2995 = vpack.c.b16 %v2980, %v2979
    %v2996 = vpack.c.b16 %v2982, %v2981
    %v3012 = vsel %vm1533, %v2883, 0
    %v3015 = vsel %vm1533, %v2885, 0
    %v3018 = vsel %vm1533, %v2887, 0
    %v3021 = vsel %vm1533, %v2889, 0
    %v3024 = vsel %vm1533, %v2891, 0
    %v3027 = vsel %vm1533, %v2893, 0
    %v3030 = vsel %vm1533, %v2895, 0
    %v3033 = vsel %vm1533, %v2897, 0
    %3035 = vmatprep.subr.bf16.mxu0 0
    %3036 = vmatpush1.bf16.msra.mxu0 %v2983
    %3037 = vmatprep.subr.bf16.mxu0 0
    %3038 = vmatpush1.bf16.msra.mxu0 %v2984
    %3039 = vmatprep.subr.bf16.mxu0 0
    %3040 = vmatpush1.bf16.msra.mxu0 %v2985
    %3041 = vmatprep.subr.bf16.mxu0 0
    %3042 = vmatpush1.bf16.msra.mxu0 %v2986
    %3043 = vmatprep.subr.bf16.mxu0 0
    %3044 = vmatpush1.bf16.msra.mxu0 %v2987
    %3045 = vmatprep.subr.bf16.mxu0 0
    %3046 = vmatpush1.bf16.msra.mxu0 %v2988
    %3047 = vmatprep.subr.bf16.mxu0 0
    %3048 = vmatpush1.bf16.msra.mxu0 %v2989
    %3049 = vmatprep.subr.bf16.mxu0 0
    %3050 = vmatpush1.bf16.msra.mxu0 %v2990
    %3051 = vmatprep.subr.bf16.mxu0 0
    %3052 = vmatpush1.bf16.msra.mxu0 %v2991
    %3053 = vmatprep.subr.bf16.mxu0 0
    %3054 = vmatpush1.bf16.msra.mxu0 %v2992
    %3055 = vmatprep.subr.bf16.mxu0 0
    %3056 = vmatpush1.bf16.msra.mxu0 %v2993
    %3057 = vmatprep.subr.bf16.mxu0 0
    %3058 = vmatpush1.bf16.msra.mxu0 %v2994
    %3059 = vmatprep.subr.bf16.mxu0 0
    %3060 = vmatpush1.bf16.msra.mxu0 %v2995
    %3061 = vmatprep.subr.bf16.mxu0 0
    %3062 = vmatpush1.bf16.msra.mxu0 %v2996
    %3063 = vmatprep.subr.bf16.mxu0 0
    %3064 = vmatpush1.bf16.msra.mxu0 0
    %3065 = vmatprep.subr.bf16.mxu0 0
    %3066 = vmatpush1.bf16.msra.mxu0 0
    %3067 = vmatprep.mubr.bf16.mxu0 %v3012
    %3068 = vmatmul.mubr.bf16.gmra.mrb[0].mxu0 %v2882
    %v3069 = vpop.f32.mrb[0].mxu0
    %v3070 = vadd.f32 0.0, %v3069
    %v3071 = vpop.f32.mrb[0].mxu0
    %v3072 = vpop.f32.mrb[0].mxu0
    %v3073 = vadd.f32 0.0, %v3072
    %v3074 = vpop.f32.mrb[0].mxu0
    %3075 = vmatprep.mubr.bf16.mxu0 %v3015
    %3076 = vmatmul.mubr.bf16.gmra.mrb[0].mxu0 %v2884
    %v3077 = vpop.f32.mrb[0].mxu0
    %v3078 = vadd.f32 0.0, %v3077
    %v3079 = vpop.f32.mrb[0].mxu0
    %v3080 = vpop.f32.mrb[0].mxu0
    %v3081 = vadd.f32 0.0, %v3080
    %v3082 = vpop.f32.mrb[0].mxu0
    %3083 = vmatprep.mubr.bf16.mxu0 %v3018
    %3084 = vmatmul.mubr.bf16.gmra.mrb[0].mxu0 %v2886
    %v3085 = vpop.f32.mrb[0].mxu0
    %v3086 = vadd.f32 0.0, %v3085
    %v3087 = vpop.f32.mrb[0].mxu0
    %v3088 = vpop.f32.mrb[0].mxu0
    %v3089 = vadd.f32 0.0, %v3088
    %v3090 = vpop.f32.mrb[0].mxu0
    %3091 = vmatprep.mubr.bf16.mxu0 %v3021
    %3092 = vmatmul.mubr.bf16.gmra.mrb[0].mxu0 %v2888
    %v3093 = vpop.f32.mrb[0].mxu0
    %v3094 = vadd.f32 0.0, %v3093
    %v3095 = vpop.f32.mrb[0].mxu0
    %v3096 = vpop.f32.mrb[0].mxu0
    %v3097 = vadd.f32 0.0, %v3096
    %v3098 = vpop.f32.mrb[0].mxu0
    %3099 = vmatprep.mubr.bf16.mxu0 %v3024
    %3100 = vmatmul.mubr.bf16.gmra.mrb[0].mxu0 %v2890
    %v3101 = vpop.f32.mrb[0].mxu0
    %v3102 = vadd.f32 0.0, %v3101
    %v3103 = vpop.f32.mrb[0].mxu0
    %v3104 = vpop.f32.mrb[0].mxu0
    %v3105 = vadd.f32 0.0, %v3104
    %v3106 = vpop.f32.mrb[0].mxu0
    %3107 = vmatprep.mubr.bf16.mxu0 %v3027
    %3108 = vmatmul.mubr.bf16.gmra.mrb[0].mxu0 %v2892
    %v3109 = vpop.f32.mrb[0].mxu0
    %v3110 = vadd.f32 0.0, %v3109
    %v3111 = vpop.f32.mrb[0].mxu0
    %v3112 = vpop.f32.mrb[0].mxu0
    %v3113 = vadd.f32 0.0, %v3112
    %v3114 = vpop.f32.mrb[0].mxu0
    %3115 = vmatprep.mubr.bf16.mxu0 %v3030
    %3116 = vmatmul.mubr.bf16.gmra.mrb[0].mxu0 %v2894
    %v3117 = vpop.f32.mrb[0].mxu0
    %v3118 = vadd.f32 0.0, %v3117
    %v3119 = vpop.f32.mrb[0].mxu0
    %v3120 = vpop.f32.mrb[0].mxu0
    %v3121 = vadd.f32 0.0, %v3120
    %v3122 = vpop.f32.mrb[0].mxu0
    %3123 = vmatprep.mubr.bf16.mxu0 %v3033
    %3124 = vmatmul.mubr.bf16.gmra.mrb[0].mxu0 %v2896
    %v3125 = vpop.f32.mrb[0].mxu0
    %v3126 = vadd.f32 0.0, %v3125
    %v3127 = vpop.f32.mrb[0].mxu0
    %v3128 = vpop.f32.mrb[0].mxu0
    %v3129 = vadd.f32 0.0, %v3128
    %v3130 = vpop.f32.mrb[0].mxu0
    %3131 = vdwg.mxu0
    %s3132 = scalar_lea.vmem [#allocation15], 1
    %v3133 = vld [vmem:[%s3132] sm:$0x1]
    %v3135 = vlaneseq
    %v3136 = vshrl.u32 %v3135, 7
    %v3137 = vsub.s32 0, %v3136
    %v3138 = vrot.slane %v3133, %v3137
    %v3140 = vmul.f32 %v3070, %v3138
    %v3141 = vmul.f32 %v3073, %v3138
    %v3142 = vmul.f32 %v3078, %v3138
    %v3143 = vmul.f32 %v3081, %v3138
    %v3144 = vmul.f32 %v3086, %v3138
    %v3145 = vmul.f32 %v3089, %v3138
    %v3146 = vmul.f32 %v3094, %v3138
    %v3147 = vmul.f32 %v3097, %v3138
    %v3148 = vmul.f32 %v3102, %v3138
    %v3149 = vmul.f32 %v3105, %v3138
    %v3150 = vmul.f32 %v3110, %v3138
    %v3151 = vmul.f32 %v3113, %v3138
    %v3152 = vmul.f32 %v3118, %v3138
    %v3153 = vmul.f32 %v3121, %v3138
    %v3154 = vmul.f32 %v3126, %v3138
    %v3155 = vmul.f32 %v3129, %v3138
    %s3156 = scalar_lea.vmem [#allocation17], 1
    %v3157 = vld [vmem:[%s3156] sm:$0x1]
    %v3159 = vlaneseq
    %v3160 = vshrl.u32 %v3159, 7
    %v3161 = vsub.s32 0, %v3160
    %v3162 = vrot.slane %v3157, %v3161
    %v3164 = vadd.f32 %v3140, %v3162
    %v3165 = vadd.f32 %v3141, %v3162
    %v3166 = vadd.f32 %v3142, %v3162
    %v3167 = vadd.f32 %v3143, %v3162
    %v3168 = vadd.f32 %v3144, %v3162
    %v3169 = vadd.f32 %v3145, %v3162
    %v3170 = vadd.f32 %v3146, %v3162
    %v3171 = vadd.f32 %v3147, %v3162
    %v3172 = vadd.f32 %v3148, %v3162
    %v3173 = vadd.f32 %v3149, %v3162
    %v3174 = vadd.f32 %v3150, %v3162
    %v3175 = vadd.f32 %v3151, %v3162
    %v3176 = vadd.f32 %v3152, %v3162
    %v3177 = vadd.f32 %v3153, %v3162
    %v3178 = vadd.f32 %v3154, %v3162
    %v3179 = vadd.f32 %v3155, %v3162
    %v3180 = vmax.f32 %v3164, 0.0
    %v3181 = vmax.f32 %v3165, 0.0
    %v3182 = vmax.f32 %v3166, 0.0
    %v3183 = vmax.f32 %v3167, 0.0
    %v3184 = vmax.f32 %v3168, 0.0
    %v3185 = vmax.f32 %v3169, 0.0
    %v3186 = vmax.f32 %v3170, 0.0
    %v3187 = vmax.f32 %v3171, 0.0
    %v3188 = vmax.f32 %v3172, 0.0
    %v3189 = vmax.f32 %v3173, 0.0
    %v3190 = vmax.f32 %v3174, 0.0
    %v3191 = vmax.f32 %v3175, 0.0
    %v3192 = vmax.f32 %v3176, 0.0
    %v3193 = vmax.f32 %v3177, 0.0
    %v3194 = vmax.f32 %v3178, 0.0
    %v3195 = vmax.f32 %v3179, 0.0
    %v3196 = vpack.c.bf16 %v3181, %v3180
    %v3197 = vpack.c.bf16 %v3183, %v3182
    %v3198 = vpack.c.bf16 %v3185, %v3184
    %v3199 = vpack.c.bf16 %v3187, %v3186
    %v3200 = vpack.c.bf16 %v3189, %v3188
    %v3201 = vpack.c.bf16 %v3191, %v3190
    %v3202 = vpack.c.bf16 %v3193, %v3192
    %v3203 = vpack.c.bf16 %v3195, %v3194
    %v3212 = vrot.slane %v3196, 4
    %v3213 = vrot.slane %v3197, 4
    %v3214 = vsel %vm1039, %v3212, %v3213
    %v3215 = vrot.slane %v3198, 4
    %v3216 = vsel %vm1039, %v3213, %v3215
    %v3217 = vrot.slane %v3199, 4
    %v3218 = vsel %vm1039, %v3215, %v3217
    %v3219 = vrot.slane %v3200, 4
    %v3220 = vsel %vm1039, %v3217, %v3219
    %v3221 = vrot.slane %v3201, 4
    %v3222 = vsel %vm1039, %v3219, %v3221
    %v3223 = vrot.slane %v3202, 4
    %v3224 = vsel %vm1039, %v3221, %v3223
    %v3225 = vrot.slane %v3203, 4
    %v3226 = vsel %vm1039, %v3223, %v3225
    %3236 = vst.msk [vmem:[#allocation2 + $0x8] sm:$0xf0] %vm1020, %v3212
    %3237 = vst.msk [vmem:[#allocation2 + $0x10] sm:$0xff] %vm1016, %v3214
    %3238 = vst.msk [vmem:[#allocation2 + $0x18] sm:$0xff] %vm1016, %v3216
    %3239 = vst.msk [vmem:[#allocation2 + $0x20] sm:$0xff] %vm1016, %v3218
    %3240 = vst.msk [vmem:[#allocation2 + $0x28] sm:$0xff] %vm1016, %v3220
    %3241 = vst.msk [vmem:[#allocation2 + $0x30] sm:$0xff] %vm1016, %v3222
    %3242 = vst.msk [vmem:[#allocation2 + $0x38] sm:$0xff] %vm1016, %v3224
    %3243 = vst.msk [vmem:[#allocation2 + $0x40] sm:$0xff] %vm1016, %v3226
    %3244 = vst.msk [vmem:[#allocation2 + $0x48] sm:$0xf] %vm1018, %v3225
    %v3245 = vld [vmem:[#allocation2] sm:$0xff]
    %v3246 = vld [vmem:[#allocation2 + $0x8] sm:$0xff]
    %v3247 = vld [vmem:[#allocation2 + $0x10] sm:$0xff]
    %v3248 = vld [vmem:[#allocation2 + $0x18] sm:$0xff]
    %v3249 = vld [vmem:[#allocation2 + $0x20] sm:$0xff]
    %v3250 = vld [vmem:[#allocation2 + $0x28] sm:$0xff]
    %v3251 = vld [vmem:[#allocation2 + $0x30] sm:$0xff]
    %v3252 = vld [vmem:[#allocation2 + $0x38] sm:$0xff]
    %3253 = vst.msk [vmem:[#allocation4] sm:$0xff] %vm1016, %v3245
    %3254 = vst.msk [vmem:[#allocation4 + $0x10] sm:$0xff] %vm1016, %v3246
    %3255 = vst.msk [vmem:[#allocation4 + $0x20] sm:$0xff] %vm1016, %v3247
    %3256 = vst.msk [vmem:[#allocation4 + $0x30] sm:$0xff] %vm1016, %v3248
    %3257 = vst.msk [vmem:[#allocation4 + $0x40] sm:$0xff] %vm1016, %v3249
    %3258 = vst.msk [vmem:[#allocation4 + $0x50] sm:$0xff] %vm1016, %v3250
    %3259 = vst.msk [vmem:[#allocation4 + $0x60] sm:$0xff] %vm1016, %v3251
    %3260 = vst.msk [vmem:[#allocation4 + $0x70] sm:$0xff] %vm1016, %v3252
    %v3261 = vld [vmem:[#allocation2] sm:$0xf0]
    %v3262 = vld [vmem:[#allocation2 + $0x8] sm:$0xff]
    %v3263 = vld [vmem:[#allocation2 + $0x10] sm:$0xff]
    %v3264 = vld [vmem:[#allocation2 + $0x18] sm:$0xff]
    %v3265 = vld [vmem:[#allocation2 + $0x20] sm:$0xff]
    %v3266 = vld [vmem:[#allocation2 + $0x28] sm:$0xff]
    %v3267 = vld [vmem:[#allocation2 + $0x30] sm:$0xff]
    %v3268 = vld [vmem:[#allocation2 + $0x38] sm:$0xff]
    %v3269 = vld [vmem:[#allocation2 + $0x40] sm:$0xf]
    %v3279 = vrot.slane %v3261, 4
    %v3280 = vrot.slane %v3262, 4
    %v3281 = vsel %vm1039, %v3279, %v3280
    %v3282 = vrot.slane %v3263, 4
    %v3283 = vsel %vm1039, %v3280, %v3282
    %v3284 = vrot.slane %v3264, 4
    %v3285 = vsel %vm1039, %v3282, %v3284
    %v3286 = vrot.slane %v3265, 4
    %v3287 = vsel %vm1039, %v3284, %v3286
    %v3288 = vrot.slane %v3266, 4
    %v3289 = vsel %vm1039, %v3286, %v3288
    %v3290 = vrot.slane %v3267, 4
    %v3291 = vsel %vm1039, %v3288, %v3290
    %v3292 = vrot.slane %v3268, 4
    %v3293 = vsel %vm1039, %v3290, %v3292
    %v3294 = vrot.slane %v3269, 4
    %v3295 = vsel %vm1039, %v3292, %v3294
    %3296 = vrot.lane.b32.xlu0 %v3281, 32
    %v3297 = vpop.permute.xlu0 %3296
    %3298 = vrot.lane.b32.xlu0 %v3283, 32
    %v3299 = vpop.permute.xlu0 %3298
    %3300 = vrot.lane.b32.xlu0 %v3285, 32
    %v3301 = vpop.permute.xlu0 %3300
    %3302 = vrot.lane.b32.xlu0 %v3287, 32
    %v3303 = vpop.permute.xlu0 %3302
    %3304 = vrot.lane.b32.xlu0 %v3289, 32
    %v3305 = vpop.permute.xlu0 %3304
    %3306 = vrot.lane.b32.xlu0 %v3291, 32
    %v3307 = vpop.permute.xlu0 %3306
    %3308 = vrot.lane.b32.xlu0 %v3293, 32
    %v3309 = vpop.permute.xlu0 %3308
    %3310 = vrot.lane.b32.xlu0 %v3295, 32
    %v3311 = vpop.permute.xlu0 %3310
    %3320 = vst.msk [vmem:[#allocation4] sm:$0xff] %vm1148, %v3297
    %3321 = vst.msk [vmem:[#allocation4 + $0x10] sm:$0xff] %vm1148, %v3299
    %3322 = vst.msk [vmem:[#allocation4 + $0x20] sm:$0xff] %vm1148, %v3301
    %3323 = vst.msk [vmem:[#allocation4 + $0x30] sm:$0xff] %vm1148, %v3303
    %3324 = vst.msk [vmem:[#allocation4 + $0x40] sm:$0xff] %vm1148, %v3305
    %3325 = vst.msk [vmem:[#allocation4 + $0x50] sm:$0xff] %vm1148, %v3307
    %3326 = vst.msk [vmem:[#allocation4 + $0x60] sm:$0xff] %vm1148, %v3309
    %3327 = vst.msk [vmem:[#allocation4 + $0x70] sm:$0xff] %vm1148, %v3311
    %v3328 = vld [vmem:[#allocation2 + $0x8] sm:$0xff]
    %v3329 = vld [vmem:[#allocation2 + $0x10] sm:$0xff]
    %v3330 = vld [vmem:[#allocation2 + $0x18] sm:$0xff]
    %v3331 = vld [vmem:[#allocation2 + $0x20] sm:$0xff]
    %v3332 = vld [vmem:[#allocation2 + $0x28] sm:$0xff]
    %v3333 = vld [vmem:[#allocation2 + $0x30] sm:$0xff]
    %v3334 = vld [vmem:[#allocation2 + $0x38] sm:$0xff]
    %v3335 = vld [vmem:[#allocation2 + $0x40] sm:$0xff]
    %3344 = vrot.lane.b32.xlu0 %v3328, 64
    %v3345 = vpop.permute.xlu0 %3344
    %3346 = vrot.lane.b32.xlu0 %v3329, 64
    %v3347 = vpop.permute.xlu0 %3346
    %3348 = vrot.lane.b32.xlu0 %v3330, 64
    %v3349 = vpop.permute.xlu0 %3348
    %3350 = vrot.lane.b32.xlu0 %v3331, 64
    %v3351 = vpop.permute.xlu0 %3350
    %3352 = vrot.lane.b32.xlu0 %v3332, 64
    %v3353 = vpop.permute.xlu0 %3352
    %3354 = vrot.lane.b32.xlu0 %v3333, 64
    %v3355 = vpop.permute.xlu0 %3354
    %3356 = vrot.lane.b32.xlu0 %v3334, 64
    %v3357 = vpop.permute.xlu0 %3356
    %3358 = vrot.lane.b32.xlu0 %v3335, 64
    %v3359 = vpop.permute.xlu0 %3358
    %3368 = vst.msk [vmem:[#allocation4] sm:$0xff] %vm1197, %v3345
    %3369 = vst.msk [vmem:[#allocation4 + $0x10] sm:$0xff] %vm1197, %v3347
    %3370 = vst.msk [vmem:[#allocation4 + $0x20] sm:$0xff] %vm1197, %v3349
    %3371 = vst.msk [vmem:[#allocation4 + $0x30] sm:$0xff] %vm1197, %v3351
    %3372 = vst.msk [vmem:[#allocation4 + $0x40] sm:$0xff] %vm1197, %v3353
    %3373 = vst.msk [vmem:[#allocation4 + $0x50] sm:$0xff] %vm1197, %v3355
    %3374 = vst.msk [vmem:[#allocation4 + $0x60] sm:$0xff] %vm1197, %v3357
    %3375 = vst.msk [vmem:[#allocation4 + $0x70] sm:$0xff] %vm1197, %v3359
    %v3376 = vld [vmem:[#allocation2 + $0x8] sm:$0xf0]
    %v3377 = vld [vmem:[#allocation2 + $0x10] sm:$0xff]
    %v3378 = vld [vmem:[#allocation2 + $0x18] sm:$0xff]
    %v3379 = vld [vmem:[#allocation2 + $0x20] sm:$0xff]
    %v3380 = vld [vmem:[#allocation2 + $0x28] sm:$0xff]
    %v3381 = vld [vmem:[#allocation2 + $0x30] sm:$0xff]
    %v3382 = vld [vmem:[#allocation2 + $0x38] sm:$0xff]
    %v3383 = vld [vmem:[#allocation2 + $0x40] sm:$0xff]
    %v3384 = vld [vmem:[#allocation2 + $0x48] sm:$0xf]
    %v3394 = vrot.slane %v3376, 4
    %v3395 = vrot.slane %v3377, 4
    %v3396 = vsel %vm1039, %v3394, %v3395
    %v3397 = vrot.slane %v3378, 4
    %v3398 = vsel %vm1039, %v3395, %v3397
    %v3399 = vrot.slane %v3379, 4
    %v3400 = vsel %vm1039, %v3397, %v3399
    %v3401 = vrot.slane %v3380, 4
    %v3402 = vsel %vm1039, %v3399, %v3401
    %v3403 = vrot.slane %v3381, 4
    %v3404 = vsel %vm1039, %v3401, %v3403
    %v3405 = vrot.slane %v3382, 4
    %v3406 = vsel %vm1039, %v3403, %v3405
    %v3407 = vrot.slane %v3383, 4
    %v3408 = vsel %vm1039, %v3405, %v3407
    %v3409 = vrot.slane %v3384, 4
    %v3410 = vsel %vm1039, %v3407, %v3409
    %3411 = vrot.lane.b32.xlu0 %v3396, 96
    %v3412 = vpop.permute.xlu0 %3411
    %3413 = vrot.lane.b32.xlu0 %v3398, 96
    %v3414 = vpop.permute.xlu0 %3413
    %3415 = vrot.lane.b32.xlu0 %v3400, 96
    %v3416 = vpop.permute.xlu0 %3415
    %3417 = vrot.lane.b32.xlu0 %v3402, 96
    %v3418 = vpop.permute.xlu0 %3417
    %3419 = vrot.lane.b32.xlu0 %v3404, 96
    %v3420 = vpop.permute.xlu0 %3419
    %3421 = vrot.lane.b32.xlu0 %v3406, 96
    %v3422 = vpop.permute.xlu0 %3421
    %3423 = vrot.lane.b32.xlu0 %v3408, 96
    %v3424 = vpop.permute.xlu0 %3423
    %3425 = vrot.lane.b32.xlu0 %v3410, 96
    %v3426 = vpop.permute.xlu0 %3425
    %3435 = vst.msk [vmem:[#allocation4] sm:$0xff] %vm1265, %v3412
    %3436 = vst.msk [vmem:[#allocation4 + $0x10] sm:$0xff] %vm1265, %v3414
    %3437 = vst.msk [vmem:[#allocation4 + $0x20] sm:$0xff] %vm1265, %v3416
    %3438 = vst.msk [vmem:[#allocation4 + $0x30] sm:$0xff] %vm1265, %v3418
    %3439 = vst.msk [vmem:[#allocation4 + $0x40] sm:$0xff] %vm1265, %v3420
    %3440 = vst.msk [vmem:[#allocation4 + $0x50] sm:$0xff] %vm1265, %v3422
    %3441 = vst.msk [vmem:[#allocation4 + $0x60] sm:$0xff] %vm1265, %v3424
    %3442 = vst.msk [vmem:[#allocation4 + $0x70] sm:$0xff] %vm1265, %v3426
    %v3443 = vld [vmem:[#allocation2 + $0x10] sm:$0xff]
    %v3444 = vld [vmem:[#allocation2 + $0x18] sm:$0xff]
    %v3445 = vld [vmem:[#allocation2 + $0x20] sm:$0xff]
    %v3446 = vld [vmem:[#allocation2 + $0x28] sm:$0xff]
    %v3447 = vld [vmem:[#allocation2 + $0x30] sm:$0xff]
    %v3448 = vld [vmem:[#allocation2 + $0x38] sm:$0xff]
    %v3449 = vld [vmem:[#allocation2 + $0x40] sm:$0xff]
    %v3450 = vld [vmem:[#allocation2 + $0x48] sm:$0xff]
    %3451 = vst.msk [vmem:[#allocation4 + $0x8] sm:$0xff] %vm1016, %v3443
    %3452 = vst.msk [vmem:[#allocation4 + $0x18] sm:$0xff] %vm1016, %v3444
    %3453 = vst.msk [vmem:[#allocation4 + $0x28] sm:$0xff] %vm1016, %v3445
    %3454 = vst.msk [vmem:[#allocation4 + $0x38] sm:$0xff] %vm1016, %v3446
    %3455 = vst.msk [vmem:[#allocation4 + $0x48] sm:$0xff] %vm1016, %v3447
    %3456 = vst.msk [vmem:[#allocation4 + $0x58] sm:$0xff] %vm1016, %v3448
    %3457 = vst.msk [vmem:[#allocation4 + $0x68] sm:$0xff] %vm1016, %v3449
    %3458 = vst.msk [vmem:[#allocation4 + $0x78] sm:$0xff] %vm1016, %v3450
    %v3459 = vld [vmem:[#allocation2 + $0x10] sm:$0xf0]
    %v3460 = vld [vmem:[#allocation2 + $0x18] sm:$0xff]
    %v3461 = vld [vmem:[#allocation2 + $0x20] sm:$0xff]
    %v3462 = vld [vmem:[#allocation2 + $0x28] sm:$0xff]
    %v3463 = vld [vmem:[#allocation2 + $0x30] sm:$0xff]
    %v3464 = vld [vmem:[#allocation2 + $0x38] sm:$0xff]
    %v3465 = vld [vmem:[#allocation2 + $0x40] sm:$0xff]
    %v3466 = vld [vmem:[#allocation2 + $0x48] sm:$0xff]
    %v3467 = vld [vmem:[#allocation2 + $0x50] sm:$0xf]
    %v3477 = vrot.slane %v3459, 4
    %v3478 = vrot.slane %v3460, 4
    %v3479 = vsel %vm1039, %v3477, %v3478
    %v3480 = vrot.slane %v3461, 4
    %v3481 = vsel %vm1039, %v3478, %v3480
    %v3482 = vrot.slane %v3462, 4
    %v3483 = vsel %vm1039, %v3480, %v3482
    %v3484 = vrot.slane %v3463, 4
    %v3485 = vsel %vm1039, %v3482, %v3484
    %v3486 = vrot.slane %v3464, 4
    %v3487 = vsel %vm1039, %v3484, %v3486
    %v3488 = vrot.slane %v3465, 4
    %v3489 = vsel %vm1039, %v3486, %v3488
    %v3490 = vrot.slane %v3466, 4
    %v3491 = vsel %vm1039, %v3488, %v3490
    %v3492 = vrot.slane %v3467, 4
    %v3493 = vsel %vm1039, %v3490, %v3492
    %3494 = vrot.lane.b32.xlu0 %v3479, 32
    %v3495 = vpop.permute.xlu0 %3494
    %3496 = vrot.lane.b32.xlu0 %v3481, 32
    %v3497 = vpop.permute.xlu0 %3496
    %3498 = vrot.lane.b32.xlu0 %v3483, 32
    %v3499 = vpop.permute.xlu0 %3498
    %3500 = vrot.lane.b32.xlu0 %v3485, 32
    %v3501 = vpop.permute.xlu0 %3500
    %3502 = vrot.lane.b32.xlu0 %v3487, 32
    %v3503 = vpop.permute.xlu0 %3502
    %3504 = vrot.lane.b32.xlu0 %v3489, 32
    %v3505 = vpop.permute.xlu0 %3504
    %3506 = vrot.lane.b32.xlu0 %v3491, 32
    %v3507 = vpop.permute.xlu0 %3506
    %3508 = vrot.lane.b32.xlu0 %v3493, 32
    %v3509 = vpop.permute.xlu0 %3508
    %3518 = vst.msk [vmem:[#allocation4 + $0x8] sm:$0xff] %vm1148, %v3495
    %3519 = vst.msk [vmem:[#allocation4 + $0x18] sm:$0xff] %vm1148, %v3497
    %3520 = vst.msk [vmem:[#allocation4 + $0x28] sm:$0xff] %vm1148, %v3499
    %3521 = vst.msk [vmem:[#allocation4 + $0x38] sm:$0xff] %vm1148, %v3501
    %3522 = vst.msk [vmem:[#allocation4 + $0x48] sm:$0xff] %vm1148, %v3503
    %3523 = vst.msk [vmem:[#allocation4 + $0x58] sm:$0xff] %vm1148, %v3505
    %3524 = vst.msk [vmem:[#allocation4 + $0x68] sm:$0xff] %vm1148, %v3507
    %3525 = vst.msk [vmem:[#allocation4 + $0x78] sm:$0xff] %vm1148, %v3509
    %v3526 = vld [vmem:[#allocation2 + $0x18] sm:$0xff]
    %v3527 = vld [vmem:[#allocation2 + $0x20] sm:$0xff]
    %v3528 = vld [vmem:[#allocation2 + $0x28] sm:$0xff]
    %v3529 = vld [vmem:[#allocation2 + $0x30] sm:$0xff]
    %v3530 = vld [vmem:[#allocation2 + $0x38] sm:$0xff]
    %v3531 = vld [vmem:[#allocation2 + $0x40] sm:$0xff]
    %v3532 = vld [vmem:[#allocation2 + $0x48] sm:$0xff]
    %v3533 = vld [vmem:[#allocation2 + $0x50] sm:$0xff]
    %3542 = vrot.lane.b32.xlu0 %v3526, 64
    %v3543 = vpop.permute.xlu0 %3542
    %3544 = vrot.lane.b32.xlu0 %v3527, 64
    %v3545 = vpop.permute.xlu0 %3544
    %3546 = vrot.lane.b32.xlu0 %v3528, 64
    %v3547 = vpop.permute.xlu0 %3546
    %3548 = vrot.lane.b32.xlu0 %v3529, 64
    %v3549 = vpop.permute.xlu0 %3548
    %3550 = vrot.lane.b32.xlu0 %v3530, 64
    %v3551 = vpop.permute.xlu0 %3550
    %3552 = vrot.lane.b32.xlu0 %v3531, 64
    %v3553 = vpop.permute.xlu0 %3552
    %3554 = vrot.lane.b32.xlu0 %v3532, 64
    %v3555 = vpop.permute.xlu0 %3554
    %3556 = vrot.lane.b32.xlu0 %v3533, 64
    %v3557 = vpop.permute.xlu0 %3556
    %3566 = vst.msk [vmem:[#allocation4 + $0x8] sm:$0xff] %vm1197, %v3543
    %3567 = vst.msk [vmem:[#allocation4 + $0x18] sm:$0xff] %vm1197, %v3545
    %3568 = vst.msk [vmem:[#allocation4 + $0x28] sm:$0xff] %vm1197, %v3547
    %3569 = vst.msk [vmem:[#allocation4 + $0x38] sm:$0xff] %vm1197, %v3549
    %3570 = vst.msk [vmem:[#allocation4 + $0x48] sm:$0xff] %vm1197, %v3551
    %3571 = vst.msk [vmem:[#allocation4 + $0x58] sm:$0xff] %vm1197, %v3553
    %3572 = vst.msk [vmem:[#allocation4 + $0x68] sm:$0xff] %vm1197, %v3555
    %3573 = vst.msk [vmem:[#allocation4 + $0x78] sm:$0xff] %vm1197, %v3557
    %v3574 = vld [vmem:[#allocation4] sm:$0xff]
    %v3575 = vld [vmem:[#allocation4 + $0x8] sm:$0xff]
    %v3576 = vld [vmem:[#allocation4 + $0x10] sm:$0xff]
    %v3577 = vld [vmem:[#allocation4 + $0x18] sm:$0xff]
    %v3578 = vld [vmem:[#allocation4 + $0x20] sm:$0xff]
    %v3579 = vld [vmem:[#allocation4 + $0x28] sm:$0xff]
    %v3580 = vld [vmem:[#allocation4 + $0x30] sm:$0xff]
    %v3581 = vld [vmem:[#allocation4 + $0x38] sm:$0xff]
    %v3582 = vld [vmem:[#allocation4 + $0x40] sm:$0xff]
    %v3583 = vld [vmem:[#allocation4 + $0x48] sm:$0xff]
    %v3584 = vld [vmem:[#allocation4 + $0x50] sm:$0xff]
    %v3585 = vld [vmem:[#allocation4 + $0x58] sm:$0xff]
    %v3586 = vld [vmem:[#allocation4 + $0x60] sm:$0xff]
    %v3587 = vld [vmem:[#allocation4 + $0x68] sm:$0xff]
    %v3588 = vld [vmem:[#allocation4 + $0x70] sm:$0xff]
    %v3589 = vld [vmem:[#allocation4 + $0x78] sm:$0xff]
    %s3590 = scalar_lea.vmem [#allocation18], 112
    %v3591 = vld [vmem:[%s3590] sm:$0xf]
    %v3592 = vld [vmem:[%s3590 + $0x4] sm:$0xf]
    %v3593 = vld [vmem:[%s3590 + $0x8] sm:$0xf]
    %v3594 = vld [vmem:[%s3590 + $0xc] sm:$0xf]
    %v3595 = vld [vmem:[%s3590 + $0x10] sm:$0xf]
    %v3596 = vld [vmem:[%s3590 + $0x14] sm:$0xf]
    %v3597 = vld [vmem:[%s3590 + $0x18] sm:$0xf]
    %v3598 = vld [vmem:[%s3590 + $0x1c] sm:$0xf]
    %v3599 = vld [vmem:[%s3590 + $0x20] sm:$0xf]
    %v3600 = vld [vmem:[%s3590 + $0x24] sm:$0xf]
    %v3601 = vld [vmem:[%s3590 + $0x28] sm:$0xf]
    %v3602 = vld [vmem:[%s3590 + $0x2c] sm:$0xf]
    %v3603 = vld [vmem:[%s3590 + $0x30] sm:$0xf]
    %v3604 = vld [vmem:[%s3590 + $0x34] sm:$0xf]
    %v3605 = vld [vmem:[%s3590 + $0x38] sm:$0xf]
    %v3606 = vld [vmem:[%s3590 + $0x3c] sm:$0xf]
    %v3607 = vld [vmem:[%s3590 + $0x40] sm:$0xf]
    %v3608 = vld [vmem:[%s3590 + $0x44] sm:$0xf]
    %v3609 = vld [vmem:[%s3590 + $0x48] sm:$0xf]
    %v3610 = vld [vmem:[%s3590 + $0x4c] sm:$0xf]
    %v3611 = vld [vmem:[%s3590 + $0x50] sm:$0xf]
    %v3612 = vld [vmem:[%s3590 + $0x54] sm:$0xf]
    %v3613 = vld [vmem:[%s3590 + $0x58] sm:$0xf]
    %v3614 = vld [vmem:[%s3590 + $0x5c] sm:$0xf]
    %v3615 = vld [vmem:[%s3590 + $0x60] sm:$0xf]
    %v3616 = vld [vmem:[%s3590 + $0x64] sm:$0xf]
    %v3617 = vld [vmem:[%s3590 + $0x68] sm:$0xf]
    %v3618 = vld [vmem:[%s3590 + $0x6c] sm:$0xf]
    %v3647 = vunpack.c.l.b16 %v3591
    %v3648 = vunpack.c.l.b16 %v3592
    %v3649 = vunpack.c.l.b16 %v3593
    %v3650 = vunpack.c.l.b16 %v3594
    %v3651 = vunpack.c.l.b16 %v3595
    %v3652 = vunpack.c.l.b16 %v3596
    %v3653 = vunpack.c.l.b16 %v3597
    %v3654 = vunpack.c.l.b16 %v3598
    %v3655 = vunpack.c.l.b16 %v3599
    %v3656 = vunpack.c.l.b16 %v3600
    %v3657 = vunpack.c.l.b16 %v3601
    %v3658 = vunpack.c.l.b16 %v3602
    %v3659 = vunpack.c.l.b16 %v3603
    %v3660 = vunpack.c.l.b16 %v3604
    %v3661 = vunpack.c.l.b16 %v3605
    %v3662 = vunpack.c.l.b16 %v3606
    %v3663 = vunpack.c.l.b16 %v3607
    %v3664 = vunpack.c.l.b16 %v3608
    %v3665 = vunpack.c.l.b16 %v3609
    %v3666 = vunpack.c.l.b16 %v3610
    %v3667 = vunpack.c.l.b16 %v3611
    %v3668 = vunpack.c.l.b16 %v3612
    %v3669 = vunpack.c.l.b16 %v3613
    %v3670 = vunpack.c.l.b16 %v3614
    %v3671 = vunpack.c.l.b16 %v3615
    %v3672 = vunpack.c.l.b16 %v3616
    %v3673 = vunpack.c.l.b16 %v3617
    %v3674 = vunpack.c.l.b16 %v3618
    %v3675 = vpack.c.b16 %v3648, %v3647
    %v3676 = vpack.c.b16 %v3650, %v3649
    %v3677 = vpack.c.b16 %v3652, %v3651
    %v3678 = vpack.c.b16 %v3654, %v3653
    %v3679 = vpack.c.b16 %v3656, %v3655
    %v3680 = vpack.c.b16 %v3658, %v3657
    %v3681 = vpack.c.b16 %v3660, %v3659
    %v3682 = vpack.c.b16 %v3662, %v3661
    %v3683 = vpack.c.b16 %v3664, %v3663
    %v3684 = vpack.c.b16 %v3666, %v3665
    %v3685 = vpack.c.b16 %v3668, %v3667
    %v3686 = vpack.c.b16 %v3670, %v3669
    %v3687 = vpack.c.b16 %v3672, %v3671
    %v3688 = vpack.c.b16 %v3674, %v3673
    %v3704 = vsel %vm1533, %v3575, 0
    %v3707 = vsel %vm1533, %v3577, 0
    %v3710 = vsel %vm1533, %v3579, 0
    %v3713 = vsel %vm1533, %v3581, 0
    %v3716 = vsel %vm1533, %v3583, 0
    %v3719 = vsel %vm1533, %v3585, 0
    %v3722 = vsel %vm1533, %v3587, 0
    %v3725 = vsel %vm1533, %v3589, 0
    %3727 = vmatprep.subr.bf16.mxu0 0
    %3728 = vmatpush1.bf16.msra.mxu0 %v3675
    %3729 = vmatprep.subr.bf16.mxu0 0
    %3730 = vmatpush1.bf16.msra.mxu0 %v3676
    %3731 = vmatprep.subr.bf16.mxu0 0
    %3732 = vmatpush1.bf16.msra.mxu0 %v3677
    %3733 = vmatprep.subr.bf16.mxu0 0
    %3734 = vmatpush1.bf16.msra.mxu0 %v3678
    %3735 = vmatprep.subr.bf16.mxu0 0
    %3736 = vmatpush1.bf16.msra.mxu0 %v3679
    %3737 = vmatprep.subr.bf16.mxu0 0
    %3738 = vmatpush1.bf16.msra.mxu0 %v3680
    %3739 = vmatprep.subr.bf16.mxu0 0
    %3740 = vmatpush1.bf16.msra.mxu0 %v3681
    %3741 = vmatprep.subr.bf16.mxu0 0
    %3742 = vmatpush1.bf16.msra.mxu0 %v3682
    %3743 = vmatprep.subr.bf16.mxu0 0
    %3744 = vmatpush1.bf16.msra.mxu0 %v3683
    %3745 = vmatprep.subr.bf16.mxu0 0
    %3746 = vmatpush1.bf16.msra.mxu0 %v3684
    %3747 = vmatprep.subr.bf16.mxu0 0
    %3748 = vmatpush1.bf16.msra.mxu0 %v3685
    %3749 = vmatprep.subr.bf16.mxu0 0
    %3750 = vmatpush1.bf16.msra.mxu0 %v3686
    %3751 = vmatprep.subr.bf16.mxu0 0
    %3752 = vmatpush1.bf16.msra.mxu0 %v3687
    %3753 = vmatprep.subr.bf16.mxu0 0
    %3754 = vmatpush1.bf16.msra.mxu0 %v3688
    %3755 = vmatprep.subr.bf16.mxu0 0
    %3756 = vmatpush1.bf16.msra.mxu0 0
    %3757 = vmatprep.subr.bf16.mxu0 0
    %3758 = vmatpush1.bf16.msra.mxu0 0
    %3759 = vmatprep.mubr.bf16.mxu0 %v3704
    %3760 = vmatmul.mubr.bf16.gmra.mrb[0].mxu0 %v3574
    %v3761 = vpop.f32.mrb[0].mxu0
    %v3762 = vadd.f32 0.0, %v3761
    %v3763 = vpop.f32.mrb[0].mxu0
    %v3764 = vpop.f32.mrb[0].mxu0
    %v3765 = vadd.f32 0.0, %v3764
    %v3766 = vpop.f32.mrb[0].mxu0
    %3767 = vmatprep.mubr.bf16.mxu0 %v3707
    %3768 = vmatmul.mubr.bf16.gmra.mrb[0].mxu0 %v3576
    %v3769 = vpop.f32.mrb[0].mxu0
    %v3770 = vadd.f32 0.0, %v3769
    %v3771 = vpop.f32.mrb[0].mxu0
    %v3772 = vpop.f32.mrb[0].mxu0
    %v3773 = vadd.f32 0.0, %v3772
    %v3774 = vpop.f32.mrb[0].mxu0
    %3775 = vmatprep.mubr.bf16.mxu0 %v3710
    %3776 = vmatmul.mubr.bf16.gmra.mrb[0].mxu0 %v3578
    %v3777 = vpop.f32.mrb[0].mxu0
    %v3778 = vadd.f32 0.0, %v3777
    %v3779 = vpop.f32.mrb[0].mxu0
    %v3780 = vpop.f32.mrb[0].mxu0
    %v3781 = vadd.f32 0.0, %v3780
    %v3782 = vpop.f32.mrb[0].mxu0
    %3783 = vmatprep.mubr.bf16.mxu0 %v3713
    %3784 = vmatmul.mubr.bf16.gmra.mrb[0].mxu0 %v3580
    %v3785 = vpop.f32.mrb[0].mxu0
    %v3786 = vadd.f32 0.0, %v3785
    %v3787 = vpop.f32.mrb[0].mxu0
    %v3788 = vpop.f32.mrb[0].mxu0
    %v3789 = vadd.f32 0.0, %v3788
    %v3790 = vpop.f32.mrb[0].mxu0
    %3791 = vmatprep.mubr.bf16.mxu0 %v3716
    %3792 = vmatmul.mubr.bf16.gmra.mrb[0].mxu0 %v3582
    %v3793 = vpop.f32.mrb[0].mxu0
    %v3794 = vadd.f32 0.0, %v3793
    %v3795 = vpop.f32.mrb[0].mxu0
    %v3796 = vpop.f32.mrb[0].mxu0
    %v3797 = vadd.f32 0.0, %v3796
    %v3798 = vpop.f32.mrb[0].mxu0
    %3799 = vmatprep.mubr.bf16.mxu0 %v3719
    %3800 = vmatmul.mubr.bf16.gmra.mrb[0].mxu0 %v3584
    %v3801 = vpop.f32.mrb[0].mxu0
    %v3802 = vadd.f32 0.0, %v3801
    %v3803 = vpop.f32.mrb[0].mxu0
    %v3804 = vpop.f32.mrb[0].mxu0
    %v3805 = vadd.f32 0.0, %v3804
    %v3806 = vpop.f32.mrb[0].mxu0
    %3807 = vmatprep.mubr.bf16.mxu0 %v3722
    %3808 = vmatmul.mubr.bf16.gmra.mrb[0].mxu0 %v3586
    %v3809 = vpop.f32.mrb[0].mxu0
    %v3810 = vadd.f32 0.0, %v3809
    %v3811 = vpop.f32.mrb[0].mxu0
    %v3812 = vpop.f32.mrb[0].mxu0
    %v3813 = vadd.f32 0.0, %v3812
    %v3814 = vpop.f32.mrb[0].mxu0
    %3815 = vmatprep.mubr.bf16.mxu0 %v3725
    %3816 = vmatmul.mubr.bf16.gmra.mrb[0].mxu0 %v3588
    %v3817 = vpop.f32.mrb[0].mxu0
    %v3818 = vadd.f32 0.0, %v3817
    %v3819 = vpop.f32.mrb[0].mxu0
    %v3820 = vpop.f32.mrb[0].mxu0
    %v3821 = vadd.f32 0.0, %v3820
    %v3822 = vpop.f32.mrb[0].mxu0
    %3823 = vdwg.mxu0
    %s3824 = scalar_lea.vmem [#allocation20], 1
    %v3825 = vld [vmem:[%s3824] sm:$0x1]
    %v3827 = vlaneseq
    %v3828 = vshrl.u32 %v3827, 7
    %v3829 = vsub.s32 0, %v3828
    %v3830 = vrot.slane %v3825, %v3829
    %v3832 = vmul.f32 %v3762, %v3830
    %v3833 = vmul.f32 %v3765, %v3830
    %v3834 = vmul.f32 %v3770, %v3830
    %v3835 = vmul.f32 %v3773, %v3830
    %v3836 = vmul.f32 %v3778, %v3830
    %v3837 = vmul.f32 %v3781, %v3830
    %v3838 = vmul.f32 %v3786, %v3830
    %v3839 = vmul.f32 %v3789, %v3830
    %v3840 = vmul.f32 %v3794, %v3830
    %v3841 = vmul.f32 %v3797, %v3830
    %v3842 = vmul.f32 %v3802, %v3830
    %v3843 = vmul.f32 %v3805, %v3830
    %v3844 = vmul.f32 %v3810, %v3830
    %v3845 = vmul.f32 %v3813, %v3830
    %v3846 = vmul.f32 %v3818, %v3830
    %v3847 = vmul.f32 %v3821, %v3830
    %s3848 = scalar_lea.vmem [#allocation21], 1
    %v3849 = vld [vmem:[%s3848] sm:$0x1]
    %v3851 = vlaneseq
    %v3852 = vshrl.u32 %v3851, 7
    %v3853 = vsub.s32 0, %v3852
    %v3854 = vrot.slane %v3849, %v3853
    %v3856 = vadd.f32 %v3832, %v3854
    %v3857 = vadd.f32 %v3833, %v3854
    %v3858 = vadd.f32 %v3834, %v3854
    %v3859 = vadd.f32 %v3835, %v3854
    %v3860 = vadd.f32 %v3836, %v3854
    %v3861 = vadd.f32 %v3837, %v3854
    %v3862 = vadd.f32 %v3838, %v3854
    %v3863 = vadd.f32 %v3839, %v3854
    %v3864 = vadd.f32 %v3840, %v3854
    %v3865 = vadd.f32 %v3841, %v3854
    %v3866 = vadd.f32 %v3842, %v3854
    %v3867 = vadd.f32 %v3843, %v3854
    %v3868 = vadd.f32 %v3844, %v3854
    %v3869 = vadd.f32 %v3845, %v3854
    %v3870 = vadd.f32 %v3846, %v3854
    %v3871 = vadd.f32 %v3847, %v3854
    %v3872 = vmax.f32 %v3856, 0.0
    %v3873 = vmax.f32 %v3857, 0.0
    %v3874 = vmax.f32 %v3858, 0.0
    %v3875 = vmax.f32 %v3859, 0.0
    %v3876 = vmax.f32 %v3860, 0.0
    %v3877 = vmax.f32 %v3861, 0.0
    %v3878 = vmax.f32 %v3862, 0.0
    %v3879 = vmax.f32 %v3863, 0.0
    %v3880 = vmax.f32 %v3864, 0.0
    %v3881 = vmax.f32 %v3865, 0.0
    %v3882 = vmax.f32 %v3866, 0.0
    %v3883 = vmax.f32 %v3867, 0.0
    %v3884 = vmax.f32 %v3868, 0.0
    %v3885 = vmax.f32 %v3869, 0.0
    %v3886 = vmax.f32 %v3870, 0.0
    %v3887 = vmax.f32 %v3871, 0.0
    %v3888 = vpack.c.bf16 %v3873, %v3872
    %v3889 = vpack.c.bf16 %v3875, %v3874
    %v3890 = vpack.c.bf16 %v3877, %v3876
    %v3891 = vpack.c.bf16 %v3879, %v3878
    %v3892 = vpack.c.bf16 %v3881, %v3880
    %v3893 = vpack.c.bf16 %v3883, %v3882
    %v3894 = vpack.c.bf16 %v3885, %v3884
    %v3895 = vpack.c.bf16 %v3887, %v3886
    %v3904 = vunpack.c.l.b16 %v3888
    %v3905 = vunpack.c.h.b16 %v3888
    %v3906 = vunpack.c.l.b16 %v3889
    %v3907 = vunpack.c.h.b16 %v3889
    %v3908 = vunpack.c.l.b16 %v3890
    %v3909 = vunpack.c.h.b16 %v3890
    %v3910 = vunpack.c.l.b16 %v3891
    %v3911 = vunpack.c.h.b16 %v3891
    %v3912 = vunpack.c.l.b16 %v3892
    %v3913 = vunpack.c.h.b16 %v3892
    %v3914 = vunpack.c.l.b16 %v3893
    %v3915 = vunpack.c.h.b16 %v3893
    %v3916 = vunpack.c.l.b16 %v3894
    %v3917 = vunpack.c.h.b16 %v3894
    %v3918 = vunpack.c.l.b16 %v3895
    %v3919 = vunpack.c.h.b16 %v3895
    %v3920 = vpack.c.b16 %v3904, %v3904
    %v3921 = vpack.c.b16 %v3905, %v3905
    %v3922 = vpack.c.b16 %v3906, %v3906
    %v3923 = vpack.c.b16 %v3907, %v3907
    %v3924 = vpack.c.b16 %v3908, %v3908
    %v3925 = vpack.c.b16 %v3909, %v3909
    %v3926 = vpack.c.b16 %v3910, %v3910
    %v3927 = vpack.c.b16 %v3911, %v3911
    %v3928 = vpack.c.b16 %v3912, %v3912
    %v3929 = vpack.c.b16 %v3913, %v3913
    %v3930 = vpack.c.b16 %v3914, %v3914
    %v3931 = vpack.c.b16 %v3915, %v3915
    %v3932 = vpack.c.b16 %v3916, %v3916
    %v3933 = vpack.c.b16 %v3917, %v3917
    %v3934 = vpack.c.b16 %v3918, %v3918
    %v3935 = vpack.c.b16 %v3919, %v3919
    %3936 = vrot.lane.b32.xlu0 %v3920, 32
    %v3937 = vpop.permute.xlu0 %3936
    %3938 = vrot.lane.b32.xlu0 %v3921, 32
    %v3939 = vpop.permute.xlu0 %3938
    %3940 = vrot.lane.b32.xlu0 %v3922, 32
    %v3941 = vpop.permute.xlu0 %3940
    %3942 = vrot.lane.b32.xlu0 %v3923, 32
    %v3943 = vpop.permute.xlu0 %3942
    %3944 = vrot.lane.b32.xlu0 %v3924, 32
    %v3945 = vpop.permute.xlu0 %3944
    %3946 = vrot.lane.b32.xlu0 %v3925, 32
    %v3947 = vpop.permute.xlu0 %3946
    %3948 = vrot.lane.b32.xlu0 %v3926, 32
    %v3949 = vpop.permute.xlu0 %3948
    %3950 = vrot.lane.b32.xlu0 %v3927, 32
    %v3951 = vpop.permute.xlu0 %3950
    %3952 = vrot.lane.b32.xlu0 %v3928, 32
    %v3953 = vpop.permute.xlu0 %3952
    %3954 = vrot.lane.b32.xlu0 %v3929, 32
    %v3955 = vpop.permute.xlu0 %3954
    %3956 = vrot.lane.b32.xlu0 %v3930, 32
    %v3957 = vpop.permute.xlu0 %3956
    %3958 = vrot.lane.b32.xlu0 %v3931, 32
    %v3959 = vpop.permute.xlu0 %3958
    %3960 = vrot.lane.b32.xlu0 %v3932, 32
    %v3961 = vpop.permute.xlu0 %3960
    %3962 = vrot.lane.b32.xlu0 %v3933, 32
    %v3963 = vpop.permute.xlu0 %3962
    %3964 = vrot.lane.b32.xlu0 %v3934, 32
    %v3965 = vpop.permute.xlu0 %3964
    %3966 = vrot.lane.b32.xlu0 %v3935, 32
    %v3967 = vpop.permute.xlu0 %3966
    %vm3984 = vcmask 519424
    %3985 = vst.msk [vmem:[#allocation23] sm:$0xf] %vm3984, %v3937
    %3986 = vst.msk [vmem:[#allocation23 + $0x4] sm:$0xf] %vm3984, %v3939
    %3987 = vst.msk [vmem:[#allocation23 + $0x8] sm:$0xf] %vm3984, %v3941
    %3988 = vst.msk [vmem:[#allocation23 + $0xc] sm:$0xf] %vm3984, %v3943
    %3989 = vst.msk [vmem:[#allocation23 + $0x10] sm:$0xf] %vm3984, %v3945
    %3990 = vst.msk [vmem:[#allocation23 + $0x14] sm:$0xf] %vm3984, %v3947
    %3991 = vst.msk [vmem:[#allocation23 + $0x18] sm:$0xf] %vm3984, %v3949
    %3992 = vst.msk [vmem:[#allocation23 + $0x1c] sm:$0xf] %vm3984, %v3951
    %3993 = vst.msk [vmem:[#allocation23 + $0x20] sm:$0xf] %vm3984, %v3953
    %3994 = vst.msk [vmem:[#allocation23 + $0x24] sm:$0xf] %vm3984, %v3955
    %3995 = vst.msk [vmem:[#allocation23 + $0x28] sm:$0xf] %vm3984, %v3957
    %3996 = vst.msk [vmem:[#allocation23 + $0x2c] sm:$0xf] %vm3984, %v3959
    %3997 = vst.msk [vmem:[#allocation23 + $0x30] sm:$0xf] %vm3984, %v3961
    %3998 = vst.msk [vmem:[#allocation23 + $0x34] sm:$0xf] %vm3984, %v3963
    %3999 = vst.msk [vmem:[#allocation23 + $0x38] sm:$0xf] %vm3984, %v3965
    %4000 = vst.msk [vmem:[#allocation23 + $0x3c] sm:$0xf] %vm3984, %v3967
    %v4001 = vld [vmem:[#allocation5] sm:$0xff]
    %v4002 = vld [vmem:[#allocation5 + $0x8] sm:$0xff]
    %v4003 = vld [vmem:[#allocation5 + $0x10] sm:$0xff]
    %v4004 = vld [vmem:[#allocation5 + $0x18] sm:$0xff]
    %v4005 = vld [vmem:[#allocation5 + $0x20] sm:$0xff]
    %v4006 = vld [vmem:[#allocation5 + $0x28] sm:$0xff]
    %v4007 = vld [vmem:[#allocation5 + $0x30] sm:$0xff]
    %v4008 = vld [vmem:[#allocation5 + $0x38] sm:$0xff]
    %v4017 = vrot.slane %v4001, 4
    %v4018 = vrot.slane %v4002, 4
    %v4019 = vsel %vm1039, %v4017, %v4018
    %v4020 = vrot.slane %v4003, 4
    %v4021 = vsel %vm1039, %v4018, %v4020
    %v4022 = vrot.slane %v4004, 4
    %v4023 = vsel %vm1039, %v4020, %v4022
    %v4024 = vrot.slane %v4005, 4
    %v4025 = vsel %vm1039, %v4022, %v4024
    %v4026 = vrot.slane %v4006, 4
    %v4027 = vsel %vm1039, %v4024, %v4026
    %v4028 = vrot.slane %v4007, 4
    %v4029 = vsel %vm1039, %v4026, %v4028
    %v4030 = vrot.slane %v4008, 4
    %v4031 = vsel %vm1039, %v4028, %v4030
    %4032 = vrot.lane.b32.xlu0 %v4017, 64
    %v4033 = vpop.permute.xlu0 %4032
    %4034 = vrot.lane.b32.xlu0 %v4019, 64
    %v4035 = vpop.permute.xlu0 %4034
    %4036 = vrot.lane.b32.xlu0 %v4021, 64
    %v4037 = vpop.permute.xlu0 %4036
    %4038 = vrot.lane.b32.xlu0 %v4023, 64
    %v4039 = vpop.permute.xlu0 %4038
    %4040 = vrot.lane.b32.xlu0 %v4025, 64
    %v4041 = vpop.permute.xlu0 %4040
    %4042 = vrot.lane.b32.xlu0 %v4027, 64
    %v4043 = vpop.permute.xlu0 %4042
    %4044 = vrot.lane.b32.xlu0 %v4029, 64
    %v4045 = vpop.permute.xlu0 %4044
    %4046 = vrot.lane.b32.xlu0 %v4031, 64
    %v4047 = vpop.permute.xlu0 %4046
    %4048 = vrot.lane.b32.xlu0 %v4030, 64
    %v4049 = vpop.permute.xlu0 %4048
    %4059 = vst.msk [vmem:[#allocation2 + $0x8] sm:$0xf0] %vm1020, %v4033
    %4060 = vst.msk [vmem:[#allocation2 + $0x10] sm:$0xff] %vm1016, %v4035
    %4061 = vst.msk [vmem:[#allocation2 + $0x18] sm:$0xff] %vm1016, %v4037
    %4062 = vst.msk [vmem:[#allocation2 + $0x20] sm:$0xff] %vm1016, %v4039
    %4063 = vst.msk [vmem:[#allocation2 + $0x28] sm:$0xff] %vm1016, %v4041
    %4064 = vst.msk [vmem:[#allocation2 + $0x30] sm:$0xff] %vm1016, %v4043
    %4065 = vst.msk [vmem:[#allocation2 + $0x38] sm:$0xff] %vm1016, %v4045
    %4066 = vst.msk [vmem:[#allocation2 + $0x40] sm:$0xff] %vm1016, %v4047
    %4067 = vst.msk [vmem:[#allocation2 + $0x48] sm:$0xf] %vm1018, %v4049
    %v4068 = vld [vmem:[#allocation2] sm:$0xff]
    %v4069 = vld [vmem:[#allocation2 + $0x8] sm:$0xff]
    %v4070 = vld [vmem:[#allocation2 + $0x10] sm:$0xff]
    %v4071 = vld [vmem:[#allocation2 + $0x18] sm:$0xff]
    %v4072 = vld [vmem:[#allocation2 + $0x20] sm:$0xff]
    %v4073 = vld [vmem:[#allocation2 + $0x28] sm:$0xff]
    %v4074 = vld [vmem:[#allocation2 + $0x30] sm:$0xff]
    %v4075 = vld [vmem:[#allocation2 + $0x38] sm:$0xff]
    %4076 = vst.msk [vmem:[#allocation4] sm:$0xff] %vm1016, %v4068
    %4077 = vst.msk [vmem:[#allocation4 + $0x10] sm:$0xff] %vm1016, %v4069
    %4078 = vst.msk [vmem:[#allocation4 + $0x20] sm:$0xff] %vm1016, %v4070
    %4079 = vst.msk [vmem:[#allocation4 + $0x30] sm:$0xff] %vm1016, %v4071
    %4080 = vst.msk [vmem:[#allocation4 + $0x40] sm:$0xff] %vm1016, %v4072
    %4081 = vst.msk [vmem:[#allocation4 + $0x50] sm:$0xff] %vm1016, %v4073
    %4082 = vst.msk [vmem:[#allocation4 + $0x60] sm:$0xff] %vm1016, %v4074
    %4083 = vst.msk [vmem:[#allocation4 + $0x70] sm:$0xff] %vm1016, %v4075
    %v4084 = vld [vmem:[#allocation2] sm:$0xf0]
    %v4085 = vld [vmem:[#allocation2 + $0x8] sm:$0xff]
    %v4086 = vld [vmem:[#allocation2 + $0x10] sm:$0xff]
    %v4087 = vld [vmem:[#allocation2 + $0x18] sm:$0xff]
    %v4088 = vld [vmem:[#allocation2 + $0x20] sm:$0xff]
    %v4089 = vld [vmem:[#allocation2 + $0x28] sm:$0xff]
    %v4090 = vld [vmem:[#allocation2 + $0x30] sm:$0xff]
    %v4091 = vld [vmem:[#allocation2 + $0x38] sm:$0xff]
    %v4092 = vld [vmem:[#allocation2 + $0x40] sm:$0xf]
    %v4102 = vrot.slane %v4084, 4
    %v4103 = vrot.slane %v4085, 4
    %v4104 = vsel %vm1039, %v4102, %v4103
    %v4105 = vrot.slane %v4086, 4
    %v4106 = vsel %vm1039, %v4103, %v4105
    %v4107 = vrot.slane %v4087, 4
    %v4108 = vsel %vm1039, %v4105, %v4107
    %v4109 = vrot.slane %v4088, 4
    %v4110 = vsel %vm1039, %v4107, %v4109
    %v4111 = vrot.slane %v4089, 4
    %v4112 = vsel %vm1039, %v4109, %v4111
    %v4113 = vrot.slane %v4090, 4
    %v4114 = vsel %vm1039, %v4111, %v4113
    %v4115 = vrot.slane %v4091, 4
    %v4116 = vsel %vm1039, %v4113, %v4115
    %v4117 = vrot.slane %v4092, 4
    %v4118 = vsel %vm1039, %v4115, %v4117
    %4119 = vrot.lane.b32.xlu0 %v4104, 32
    %v4120 = vpop.permute.xlu0 %4119
    %4121 = vrot.lane.b32.xlu0 %v4106, 32
    %v4122 = vpop.permute.xlu0 %4121
    %4123 = vrot.lane.b32.xlu0 %v4108, 32
    %v4124 = vpop.permute.xlu0 %4123
    %4125 = vrot.lane.b32.xlu0 %v4110, 32
    %v4126 = vpop.permute.xlu0 %4125
    %4127 = vrot.lane.b32.xlu0 %v4112, 32
    %v4128 = vpop.permute.xlu0 %4127
    %4129 = vrot.lane.b32.xlu0 %v4114, 32
    %v4130 = vpop.permute.xlu0 %4129
    %4131 = vrot.lane.b32.xlu0 %v4116, 32
    %v4132 = vpop.permute.xlu0 %4131
    %4133 = vrot.lane.b32.xlu0 %v4118, 32
    %v4134 = vpop.permute.xlu0 %4133
    %4143 = vst.msk [vmem:[#allocation4] sm:$0xff] %vm1148, %v4120
    %4144 = vst.msk [vmem:[#allocation4 + $0x10] sm:$0xff] %vm1148, %v4122
    %4145 = vst.msk [vmem:[#allocation4 + $0x20] sm:$0xff] %vm1148, %v4124
    %4146 = vst.msk [vmem:[#allocation4 + $0x30] sm:$0xff] %vm1148, %v4126
    %4147 = vst.msk [vmem:[#allocation4 + $0x40] sm:$0xff] %vm1148, %v4128
    %4148 = vst.msk [vmem:[#allocation4 + $0x50] sm:$0xff] %vm1148, %v4130
    %4149 = vst.msk [vmem:[#allocation4 + $0x60] sm:$0xff] %vm1148, %v4132
    %4150 = vst.msk [vmem:[#allocation4 + $0x70] sm:$0xff] %vm1148, %v4134
    %v4151 = vld [vmem:[#allocation2 + $0x8] sm:$0xff]
    %v4152 = vld [vmem:[#allocation2 + $0x10] sm:$0xff]
    %v4153 = vld [vmem:[#allocation2 + $0x18] sm:$0xff]
    %v4154 = vld [vmem:[#allocation2 + $0x20] sm:$0xff]
    %v4155 = vld [vmem:[#allocation2 + $0x28] sm:$0xff]
    %v4156 = vld [vmem:[#allocation2 + $0x30] sm:$0xff]
    %v4157 = vld [vmem:[#allocation2 + $0x38] sm:$0xff]
    %v4158 = vld [vmem:[#allocation2 + $0x40] sm:$0xff]
    %4167 = vrot.lane.b32.xlu0 %v4151, 64
    %v4168 = vpop.permute.xlu0 %4167
    %4169 = vrot.lane.b32.xlu0 %v4152, 64
    %v4170 = vpop.permute.xlu0 %4169
    %4171 = vrot.lane.b32.xlu0 %v4153, 64
    %v4172 = vpop.permute.xlu0 %4171
    %4173 = vrot.lane.b32.xlu0 %v4154, 64
    %v4174 = vpop.permute.xlu0 %4173
    %4175 = vrot.lane.b32.xlu0 %v4155, 64
    %v4176 = vpop.permute.xlu0 %4175
    %4177 = vrot.lane.b32.xlu0 %v4156, 64
    %v4178 = vpop.permute.xlu0 %4177
    %4179 = vrot.lane.b32.xlu0 %v4157, 64
    %v4180 = vpop.permute.xlu0 %4179
    %4181 = vrot.lane.b32.xlu0 %v4158, 64
    %v4182 = vpop.permute.xlu0 %4181
    %4191 = vst.msk [vmem:[#allocation4] sm:$0xff] %vm1197, %v4168
    %4192 = vst.msk [vmem:[#allocation4 + $0x10] sm:$0xff] %vm1197, %v4170
    %4193 = vst.msk [vmem:[#allocation4 + $0x20] sm:$0xff] %vm1197, %v4172
    %4194 = vst.msk [vmem:[#allocation4 + $0x30] sm:$0xff] %vm1197, %v4174
    %4195 = vst.msk [vmem:[#allocation4 + $0x40] sm:$0xff] %vm1197, %v4176
    %4196 = vst.msk [vmem:[#allocation4 + $0x50] sm:$0xff] %vm1197, %v4178
    %4197 = vst.msk [vmem:[#allocation4 + $0x60] sm:$0xff] %vm1197, %v4180
    %4198 = vst.msk [vmem:[#allocation4 + $0x70] sm:$0xff] %vm1197, %v4182
    %v4199 = vld [vmem:[#allocation2 + $0x8] sm:$0xf0]
    %v4200 = vld [vmem:[#allocation2 + $0x10] sm:$0xff]
    %v4201 = vld [vmem:[#allocation2 + $0x18] sm:$0xff]
    %v4202 = vld [vmem:[#allocation2 + $0x20] sm:$0xff]
    %v4203 = vld [vmem:[#allocation2 + $0x28] sm:$0xff]
    %v4204 = vld [vmem:[#allocation2 + $0x30] sm:$0xff]
    %v4205 = vld [vmem:[#allocation2 + $0x38] sm:$0xff]
    %v4206 = vld [vmem:[#allocation2 + $0x40] sm:$0xff]
    %v4207 = vld [vmem:[#allocation2 + $0x48] sm:$0xf]
    %v4217 = vrot.slane %v4199, 4
    %v4218 = vrot.slane %v4200, 4
    %v4219 = vsel %vm1039, %v4217, %v4218
    %v4220 = vrot.slane %v4201, 4
    %v4221 = vsel %vm1039, %v4218, %v4220
    %v4222 = vrot.slane %v4202, 4
    %v4223 = vsel %vm1039, %v4220, %v4222
    %v4224 = vrot.slane %v4203, 4
    %v4225 = vsel %vm1039, %v4222, %v4224
    %v4226 = vrot.slane %v4204, 4
    %v4227 = vsel %vm1039, %v4224, %v4226
    %v4228 = vrot.slane %v4205, 4
    %v4229 = vsel %vm1039, %v4226, %v4228
    %v4230 = vrot.slane %v4206, 4
    %v4231 = vsel %vm1039, %v4228, %v4230
    %v4232 = vrot.slane %v4207, 4
    %v4233 = vsel %vm1039, %v4230, %v4232
    %4234 = vrot.lane.b32.xlu0 %v4219, 96
    %v4235 = vpop.permute.xlu0 %4234
    %4236 = vrot.lane.b32.xlu0 %v4221, 96
    %v4237 = vpop.permute.xlu0 %4236
    %4238 = vrot.lane.b32.xlu0 %v4223, 96
    %v4239 = vpop.permute.xlu0 %4238
    %4240 = vrot.lane.b32.xlu0 %v4225, 96
    %v4241 = vpop.permute.xlu0 %4240
    %4242 = vrot.lane.b32.xlu0 %v4227, 96
    %v4243 = vpop.permute.xlu0 %4242
    %4244 = vrot.lane.b32.xlu0 %v4229, 96
    %v4245 = vpop.permute.xlu0 %4244
    %4246 = vrot.lane.b32.xlu0 %v4231, 96
    %v4247 = vpop.permute.xlu0 %4246
    %4248 = vrot.lane.b32.xlu0 %v4233, 96
    %v4249 = vpop.permute.xlu0 %4248
    %4258 = vst.msk [vmem:[#allocation4] sm:$0xff] %vm1265, %v4235
    %4259 = vst.msk [vmem:[#allocation4 + $0x10] sm:$0xff] %vm1265, %v4237
    %4260 = vst.msk [vmem:[#allocation4 + $0x20] sm:$0xff] %vm1265, %v4239
    %4261 = vst.msk [vmem:[#allocation4 + $0x30] sm:$0xff] %vm1265, %v4241
    %4262 = vst.msk [vmem:[#allocation4 + $0x40] sm:$0xff] %vm1265, %v4243
    %4263 = vst.msk [vmem:[#allocation4 + $0x50] sm:$0xff] %vm1265, %v4245
    %4264 = vst.msk [vmem:[#allocation4 + $0x60] sm:$0xff] %vm1265, %v4247
    %4265 = vst.msk [vmem:[#allocation4 + $0x70] sm:$0xff] %vm1265, %v4249
    %v4266 = vld [vmem:[#allocation2 + $0x10] sm:$0xff]
    %v4267 = vld [vmem:[#allocation2 + $0x18] sm:$0xff]
    %v4268 = vld [vmem:[#allocation2 + $0x20] sm:$0xff]
    %v4269 = vld [vmem:[#allocation2 + $0x28] sm:$0xff]
    %v4270 = vld [vmem:[#allocation2 + $0x30] sm:$0xff]
    %v4271 = vld [vmem:[#allocation2 + $0x38] sm:$0xff]
    %v4272 = vld [vmem:[#allocation2 + $0x40] sm:$0xff]
    %v4273 = vld [vmem:[#allocation2 + $0x48] sm:$0xff]
    %4274 = vst.msk [vmem:[#allocation4 + $0x8] sm:$0xff] %vm1016, %v4266
    %4275 = vst.msk [vmem:[#allocation4 + $0x18] sm:$0xff] %vm1016, %v4267
    %4276 = vst.msk [vmem:[#allocation4 + $0x28] sm:$0xff] %vm1016, %v4268
    %4277 = vst.msk [vmem:[#allocation4 + $0x38] sm:$0xff] %vm1016, %v4269
    %4278 = vst.msk [vmem:[#allocation4 + $0x48] sm:$0xff] %vm1016, %v4270
    %4279 = vst.msk [vmem:[#allocation4 + $0x58] sm:$0xff] %vm1016, %v4271
    %4280 = vst.msk [vmem:[#allocation4 + $0x68] sm:$0xff] %vm1016, %v4272
    %4281 = vst.msk [vmem:[#allocation4 + $0x78] sm:$0xff] %vm1016, %v4273
    %v4282 = vld [vmem:[#allocation2 + $0x10] sm:$0xf0]
    %v4283 = vld [vmem:[#allocation2 + $0x18] sm:$0xff]
    %v4284 = vld [vmem:[#allocation2 + $0x20] sm:$0xff]
    %v4285 = vld [vmem:[#allocation2 + $0x28] sm:$0xff]
    %v4286 = vld [vmem:[#allocation2 + $0x30] sm:$0xff]
    %v4287 = vld [vmem:[#allocation2 + $0x38] sm:$0xff]
    %v4288 = vld [vmem:[#allocation2 + $0x40] sm:$0xff]
    %v4289 = vld [vmem:[#allocation2 + $0x48] sm:$0xff]
    %v4290 = vld [vmem:[#allocation2 + $0x50] sm:$0xf]
    %v4300 = vrot.slane %v4282, 4
    %v4301 = vrot.slane %v4283, 4
    %v4302 = vsel %vm1039, %v4300, %v4301
    %v4303 = vrot.slane %v4284, 4
    %v4304 = vsel %vm1039, %v4301, %v4303
    %v4305 = vrot.slane %v4285, 4
    %v4306 = vsel %vm1039, %v4303, %v4305
    %v4307 = vrot.slane %v4286, 4
    %v4308 = vsel %vm1039, %v4305, %v4307
    %v4309 = vrot.slane %v4287, 4
    %v4310 = vsel %vm1039, %v4307, %v4309
    %v4311 = vrot.slane %v4288, 4
    %v4312 = vsel %vm1039, %v4309, %v4311
    %v4313 = vrot.slane %v4289, 4
    %v4314 = vsel %vm1039, %v4311, %v4313
    %v4315 = vrot.slane %v4290, 4
    %v4316 = vsel %vm1039, %v4313, %v4315
    %4317 = vrot.lane.b32.xlu0 %v4302, 32
    %v4318 = vpop.permute.xlu0 %4317
    %4319 = vrot.lane.b32.xlu0 %v4304, 32
    %v4320 = vpop.permute.xlu0 %4319
    %4321 = vrot.lane.b32.xlu0 %v4306, 32
    %v4322 = vpop.permute.xlu0 %4321
    %4323 = vrot.lane.b32.xlu0 %v4308, 32
    %v4324 = vpop.permute.xlu0 %4323
    %4325 = vrot.lane.b32.xlu0 %v4310, 32
    %v4326 = vpop.permute.xlu0 %4325
    %4327 = vrot.lane.b32.xlu0 %v4312, 32
    %v4328 = vpop.permute.xlu0 %4327
    %4329 = vrot.lane.b32.xlu0 %v4314, 32
    %v4330 = vpop.permute.xlu0 %4329
    %4331 = vrot.lane.b32.xlu0 %v4316, 32
    %v4332 = vpop.permute.xlu0 %4331
    %4341 = vst.msk [vmem:[#allocation4 + $0x8] sm:$0xff] %vm1148, %v4318
    %4342 = vst.msk [vmem:[#allocation4 + $0x18] sm:$0xff] %vm1148, %v4320
    %4343 = vst.msk [vmem:[#allocation4 + $0x28] sm:$0xff] %vm1148, %v4322
    %4344 = vst.msk [vmem:[#allocation4 + $0x38] sm:$0xff] %vm1148, %v4324
    %4345 = vst.msk [vmem:[#allocation4 + $0x48] sm:$0xff] %vm1148, %v4326
    %4346 = vst.msk [vmem:[#allocation4 + $0x58] sm:$0xff] %vm1148, %v4328
    %4347 = vst.msk [vmem:[#allocation4 + $0x68] sm:$0xff] %vm1148, %v4330
    %4348 = vst.msk [vmem:[#allocation4 + $0x78] sm:$0xff] %vm1148, %v4332
    %v4349 = vld [vmem:[#allocation2 + $0x18] sm:$0xff]
    %v4350 = vld [vmem:[#allocation2 + $0x20] sm:$0xff]
    %v4351 = vld [vmem:[#allocation2 + $0x28] sm:$0xff]
    %v4352 = vld [vmem:[#allocation2 + $0x30] sm:$0xff]
    %v4353 = vld [vmem:[#allocation2 + $0x38] sm:$0xff]
    %v4354 = vld [vmem:[#allocation2 + $0x40] sm:$0xff]
    %v4355 = vld [vmem:[#allocation2 + $0x48] sm:$0xff]
    %v4356 = vld [vmem:[#allocation2 + $0x50] sm:$0xff]
    %4365 = vrot.lane.b32.xlu0 %v4349, 64
    %v4366 = vpop.permute.xlu0 %4365
    %4367 = vrot.lane.b32.xlu0 %v4350, 64
    %v4368 = vpop.permute.xlu0 %4367
    %4369 = vrot.lane.b32.xlu0 %v4351, 64
    %v4370 = vpop.permute.xlu0 %4369
    %4371 = vrot.lane.b32.xlu0 %v4352, 64
    %v4372 = vpop.permute.xlu0 %4371
    %4373 = vrot.lane.b32.xlu0 %v4353, 64
    %v4374 = vpop.permute.xlu0 %4373
    %4375 = vrot.lane.b32.xlu0 %v4354, 64
    %v4376 = vpop.permute.xlu0 %4375
    %4377 = vrot.lane.b32.xlu0 %v4355, 64
    %v4378 = vpop.permute.xlu0 %4377
    %4379 = vrot.lane.b32.xlu0 %v4356, 64
    %v4380 = vpop.permute.xlu0 %4379
    %4389 = vst.msk [vmem:[#allocation4 + $0x8] sm:$0xff] %vm1197, %v4366
    %4390 = vst.msk [vmem:[#allocation4 + $0x18] sm:$0xff] %vm1197, %v4368
    %4391 = vst.msk [vmem:[#allocation4 + $0x28] sm:$0xff] %vm1197, %v4370
    %4392 = vst.msk [vmem:[#allocation4 + $0x38] sm:$0xff] %vm1197, %v4372
    %4393 = vst.msk [vmem:[#allocation4 + $0x48] sm:$0xff] %vm1197, %v4374
    %4394 = vst.msk [vmem:[#allocation4 + $0x58] sm:$0xff] %vm1197, %v4376
    %4395 = vst.msk [vmem:[#allocation4 + $0x68] sm:$0xff] %vm1197, %v4378
    %4396 = vst.msk [vmem:[#allocation4 + $0x78] sm:$0xff] %vm1197, %v4380
    %v4397 = vld [vmem:[#allocation4] sm:$0xff]
    %v4398 = vld [vmem:[#allocation4 + $0x8] sm:$0xff]
    %v4399 = vld [vmem:[#allocation4 + $0x10] sm:$0xff]
    %v4400 = vld [vmem:[#allocation4 + $0x18] sm:$0xff]
    %v4401 = vld [vmem:[#allocation4 + $0x20] sm:$0xff]
    %v4402 = vld [vmem:[#allocation4 + $0x28] sm:$0xff]
    %v4403 = vld [vmem:[#allocation4 + $0x30] sm:$0xff]
    %v4404 = vld [vmem:[#allocation4 + $0x38] sm:$0xff]
    %v4405 = vld [vmem:[#allocation4 + $0x40] sm:$0xff]
    %v4406 = vld [vmem:[#allocation4 + $0x48] sm:$0xff]
    %v4407 = vld [vmem:[#allocation4 + $0x50] sm:$0xff]
    %v4408 = vld [vmem:[#allocation4 + $0x58] sm:$0xff]
    %v4409 = vld [vmem:[#allocation4 + $0x60] sm:$0xff]
    %v4410 = vld [vmem:[#allocation4 + $0x68] sm:$0xff]
    %v4411 = vld [vmem:[#allocation4 + $0x70] sm:$0xff]
    %v4412 = vld [vmem:[#allocation4 + $0x78] sm:$0xff]
    %s4413 = scalar_lea.vmem [#allocation14], 224
    %v4414 = vld [vmem:[%s4413] sm:$0xf]
    %v4415 = vld [vmem:[%s4413 + $0x4] sm:$0xf]
    %v4416 = vld [vmem:[%s4413 + $0x8] sm:$0xf]
    %v4417 = vld [vmem:[%s4413 + $0xc] sm:$0xf]
    %v4418 = vld [vmem:[%s4413 + $0x10] sm:$0xf]
    %v4419 = vld [vmem:[%s4413 + $0x14] sm:$0xf]
    %v4420 = vld [vmem:[%s4413 + $0x18] sm:$0xf]
    %v4421 = vld [vmem:[%s4413 + $0x1c] sm:$0xf]
    %v4422 = vld [vmem:[%s4413 + $0x20] sm:$0xf]
    %v4423 = vld [vmem:[%s4413 + $0x24] sm:$0xf]
    %v4424 = vld [vmem:[%s4413 + $0x28] sm:$0xf]
    %v4425 = vld [vmem:[%s4413 + $0x2c] sm:$0xf]
    %v4426 = vld [vmem:[%s4413 + $0x30] sm:$0xf]
    %v4427 = vld [vmem:[%s4413 + $0x34] sm:$0xf]
    %v4428 = vld [vmem:[%s4413 + $0x38] sm:$0xf]
    %v4429 = vld [vmem:[%s4413 + $0x3c] sm:$0xf]
    %v4430 = vld [vmem:[%s4413 + $0x40] sm:$0xf]
    %v4431 = vld [vmem:[%s4413 + $0x44] sm:$0xf]
    %v4432 = vld [vmem:[%s4413 + $0x48] sm:$0xf]
    %v4433 = vld [vmem:[%s4413 + $0x4c] sm:$0xf]
    %v4434 = vld [vmem:[%s4413 + $0x50] sm:$0xf]
    %v4435 = vld [vmem:[%s4413 + $0x54] sm:$0xf]
    %v4436 = vld [vmem:[%s4413 + $0x58] sm:$0xf]
    %v4437 = vld [vmem:[%s4413 + $0x5c] sm:$0xf]
    %v4438 = vld [vmem:[%s4413 + $0x60] sm:$0xf]
    %v4439 = vld [vmem:[%s4413 + $0x64] sm:$0xf]
    %v4440 = vld [vmem:[%s4413 + $0x68] sm:$0xf]
    %v4441 = vld [vmem:[%s4413 + $0x6c] sm:$0xf]
    %v4470 = vunpack.c.l.b16 %v4414
    %v4471 = vunpack.c.l.b16 %v4415
    %v4472 = vunpack.c.l.b16 %v4416
    %v4473 = vunpack.c.l.b16 %v4417
    %v4474 = vunpack.c.l.b16 %v4418
    %v4475 = vunpack.c.l.b16 %v4419
    %v4476 = vunpack.c.l.b16 %v4420
    %v4477 = vunpack.c.l.b16 %v4421
    %v4478 = vunpack.c.l.b16 %v4422
    %v4479 = vunpack.c.l.b16 %v4423
    %v4480 = vunpack.c.l.b16 %v4424
    %v4481 = vunpack.c.l.b16 %v4425
    %v4482 = vunpack.c.l.b16 %v4426
    %v4483 = vunpack.c.l.b16 %v4427
    %v4484 = vunpack.c.l.b16 %v4428
    %v4485 = vunpack.c.l.b16 %v4429
    %v4486 = vunpack.c.l.b16 %v4430
    %v4487 = vunpack.c.l.b16 %v4431
    %v4488 = vunpack.c.l.b16 %v4432
    %v4489 = vunpack.c.l.b16 %v4433
    %v4490 = vunpack.c.l.b16 %v4434
    %v4491 = vunpack.c.l.b16 %v4435
    %v4492 = vunpack.c.l.b16 %v4436
    %v4493 = vunpack.c.l.b16 %v4437
    %v4494 = vunpack.c.l.b16 %v4438
    %v4495 = vunpack.c.l.b16 %v4439
    %v4496 = vunpack.c.l.b16 %v4440
    %v4497 = vunpack.c.l.b16 %v4441
    %v4498 = vpack.c.b16 %v4471, %v4470
    %v4499 = vpack.c.b16 %v4473, %v4472
    %v4500 = vpack.c.b16 %v4475, %v4474
    %v4501 = vpack.c.b16 %v4477, %v4476
    %v4502 = vpack.c.b16 %v4479, %v4478
    %v4503 = vpack.c.b16 %v4481, %v4480
    %v4504 = vpack.c.b16 %v4483, %v4482
    %v4505 = vpack.c.b16 %v4485, %v4484
    %v4506 = vpack.c.b16 %v4487, %v4486
    %v4507 = vpack.c.b16 %v4489, %v4488
    %v4508 = vpack.c.b16 %v4491, %v4490
    %v4509 = vpack.c.b16 %v4493, %v4492
    %v4510 = vpack.c.b16 %v4495, %v4494
    %v4511 = vpack.c.b16 %v4497, %v4496
    %v4527 = vsel %vm1533, %v4398, 0
    %v4530 = vsel %vm1533, %v4400, 0
    %v4533 = vsel %vm1533, %v4402, 0
    %v4536 = vsel %vm1533, %v4404, 0
    %v4539 = vsel %vm1533, %v4406, 0
    %v4542 = vsel %vm1533, %v4408, 0
    %v4545 = vsel %vm1533, %v4410, 0
    %v4548 = vsel %vm1533, %v4412, 0
    %4550 = vmatprep.subr.bf16.mxu0 0
    %4551 = vmatpush1.bf16.msra.mxu0 %v4498
    %4552 = vmatprep.subr.bf16.mxu0 0
    %4553 = vmatpush1.bf16.msra.mxu0 %v4499
    %4554 = vmatprep.subr.bf16.mxu0 0
    %4555 = vmatpush1.bf16.msra.mxu0 %v4500
    %4556 = vmatprep.subr.bf16.mxu0 0
    %4557 = vmatpush1.bf16.msra.mxu0 %v4501
    %4558 = vmatprep.subr.bf16.mxu0 0
    %4559 = vmatpush1.bf16.msra.mxu0 %v4502
    %4560 = vmatprep.subr.bf16.mxu0 0
    %4561 = vmatpush1.bf16.msra.mxu0 %v4503
    %4562 = vmatprep.subr.bf16.mxu0 0
    %4563 = vmatpush1.bf16.msra.mxu0 %v4504
    %4564 = vmatprep.subr.bf16.mxu0 0
    %4565 = vmatpush1.bf16.msra.mxu0 %v4505
    %4566 = vmatprep.subr.bf16.mxu0 0
    %4567 = vmatpush1.bf16.msra.mxu0 %v4506
    %4568 = vmatprep.subr.bf16.mxu0 0
    %4569 = vmatpush1.bf16.msra.mxu0 %v4507
    %4570 = vmatprep.subr.bf16.mxu0 0
    %4571 = vmatpush1.bf16.msra.mxu0 %v4508
    %4572 = vmatprep.subr.bf16.mxu0 0
    %4573 = vmatpush1.bf16.msra.mxu0 %v4509
    %4574 = vmatprep.subr.bf16.mxu0 0
    %4575 = vmatpush1.bf16.msra.mxu0 %v4510
    %4576 = vmatprep.subr.bf16.mxu0 0
    %4577 = vmatpush1.bf16.msra.mxu0 %v4511
    %4578 = vmatprep.subr.bf16.mxu0 0
    %4579 = vmatpush1.bf16.msra.mxu0 0
    %4580 = vmatprep.subr.bf16.mxu0 0
    %4581 = vmatpush1.bf16.msra.mxu0 0
    %4582 = vmatprep.mubr.bf16.mxu0 %v4527
    %4583 = vmatmul.mubr.bf16.gmra.mrb[0].mxu0 %v4397
    %v4584 = vpop.f32.mrb[0].mxu0
    %v4585 = vadd.f32 0.0, %v4584
    %v4586 = vpop.f32.mrb[0].mxu0
    %v4587 = vpop.f32.mrb[0].mxu0
    %v4588 = vadd.f32 0.0, %v4587
    %v4589 = vpop.f32.mrb[0].mxu0
    %4590 = vmatprep.mubr.bf16.mxu0 %v4530
    %4591 = vmatmul.mubr.bf16.gmra.mrb[0].mxu0 %v4399
    %v4592 = vpop.f32.mrb[0].mxu0
    %v4593 = vadd.f32 0.0, %v4592
    %v4594 = vpop.f32.mrb[0].mxu0
    %v4595 = vpop.f32.mrb[0].mxu0
    %v4596 = vadd.f32 0.0, %v4595
    %v4597 = vpop.f32.mrb[0].mxu0
    %4598 = vmatprep.mubr.bf16.mxu0 %v4533
    %4599 = vmatmul.mubr.bf16.gmra.mrb[0].mxu0 %v4401
    %v4600 = vpop.f32.mrb[0].mxu0
    %v4601 = vadd.f32 0.0, %v4600
    %v4602 = vpop.f32.mrb[0].mxu0
    %v4603 = vpop.f32.mrb[0].mxu0
    %v4604 = vadd.f32 0.0, %v4603
    %v4605 = vpop.f32.mrb[0].mxu0
    %4606 = vmatprep.mubr.bf16.mxu0 %v4536
    %4607 = vmatmul.mubr.bf16.gmra.mrb[0].mxu0 %v4403
    %v4608 = vpop.f32.mrb[0].mxu0
    %v4609 = vadd.f32 0.0, %v4608
    %v4610 = vpop.f32.mrb[0].mxu0
    %v4611 = vpop.f32.mrb[0].mxu0
    %v4612 = vadd.f32 0.0, %v4611
    %v4613 = vpop.f32.mrb[0].mxu0
    %4614 = vmatprep.mubr.bf16.mxu0 %v4539
    %4615 = vmatmul.mubr.bf16.gmra.mrb[0].mxu0 %v4405
    %v4616 = vpop.f32.mrb[0].mxu0
    %v4617 = vadd.f32 0.0, %v4616
    %v4618 = vpop.f32.mrb[0].mxu0
    %v4619 = vpop.f32.mrb[0].mxu0
    %v4620 = vadd.f32 0.0, %v4619
    %v4621 = vpop.f32.mrb[0].mxu0
    %4622 = vmatprep.mubr.bf16.mxu0 %v4542
    %4623 = vmatmul.mubr.bf16.gmra.mrb[0].mxu0 %v4407
    %v4624 = vpop.f32.mrb[0].mxu0
    %v4625 = vadd.f32 0.0, %v4624
    %v4626 = vpop.f32.mrb[0].mxu0
    %v4627 = vpop.f32.mrb[0].mxu0
    %v4628 = vadd.f32 0.0, %v4627
    %v4629 = vpop.f32.mrb[0].mxu0
    %4630 = vmatprep.mubr.bf16.mxu0 %v4545
    %4631 = vmatmul.mubr.bf16.gmra.mrb[0].mxu0 %v4409
    %v4632 = vpop.f32.mrb[0].mxu0
    %v4633 = vadd.f32 0.0, %v4632
    %v4634 = vpop.f32.mrb[0].mxu0
    %v4635 = vpop.f32.mrb[0].mxu0
    %v4636 = vadd.f32 0.0, %v4635
    %v4637 = vpop.f32.mrb[0].mxu0
    %4638 = vmatprep.mubr.bf16.mxu0 %v4548
    %4639 = vmatmul.mubr.bf16.gmra.mrb[0].mxu0 %v4411
    %v4640 = vpop.f32.mrb[0].mxu0
    %v4641 = vadd.f32 0.0, %v4640
    %v4642 = vpop.f32.mrb[0].mxu0
    %v4643 = vpop.f32.mrb[0].mxu0
    %v4644 = vadd.f32 0.0, %v4643
    %v4645 = vpop.f32.mrb[0].mxu0
    %4646 = vdwg.mxu0
    %s4647 = scalar_lea.vmem [#allocation15], 2
    %v4648 = vld [vmem:[%s4647] sm:$0x1]
    %v4650 = vlaneseq
    %v4651 = vshrl.u32 %v4650, 7
    %v4652 = vsub.s32 0, %v4651
    %v4653 = vrot.slane %v4648, %v4652
    %v4655 = vmul.f32 %v4585, %v4653
    %v4656 = vmul.f32 %v4588, %v4653
    %v4657 = vmul.f32 %v4593, %v4653
    %v4658 = vmul.f32 %v4596, %v4653
    %v4659 = vmul.f32 %v4601, %v4653
    %v4660 = vmul.f32 %v4604, %v4653
    %v4661 = vmul.f32 %v4609, %v4653
    %v4662 = vmul.f32 %v4612, %v4653
    %v4663 = vmul.f32 %v4617, %v4653
    %v4664 = vmul.f32 %v4620, %v4653
    %v4665 = vmul.f32 %v4625, %v4653
    %v4666 = vmul.f32 %v4628, %v4653
    %v4667 = vmul.f32 %v4633, %v4653
    %v4668 = vmul.f32 %v4636, %v4653
    %v4669 = vmul.f32 %v4641, %v4653
    %v4670 = vmul.f32 %v4644, %v4653
    %s4671 = scalar_lea.vmem [#allocation17], 2
    %v4672 = vld [vmem:[%s4671] sm:$0x1]
    %v4674 = vlaneseq
    %v4675 = vshrl.u32 %v4674, 7
    %v4676 = vsub.s32 0, %v4675
    %v4677 = vrot.slane %v4672, %v4676
    %v4679 = vadd.f32 %v4655, %v4677
    %v4680 = vadd.f32 %v4656, %v4677
    %v4681 = vadd.f32 %v4657, %v4677
    %v4682 = vadd.f32 %v4658, %v4677
    %v4683 = vadd.f32 %v4659, %v4677
    %v4684 = vadd.f32 %v4660, %v4677
    %v4685 = vadd.f32 %v4661, %v4677
    %v4686 = vadd.f32 %v4662, %v4677
    %v4687 = vadd.f32 %v4663, %v4677
    %v4688 = vadd.f32 %v4664, %v4677
    %v4689 = vadd.f32 %v4665, %v4677
    %v4690 = vadd.f32 %v4666, %v4677
    %v4691 = vadd.f32 %v4667, %v4677
    %v4692 = vadd.f32 %v4668, %v4677
    %v4693 = vadd.f32 %v4669, %v4677
    %v4694 = vadd.f32 %v4670, %v4677
    %v4695 = vmax.f32 %v4679, 0.0
    %v4696 = vmax.f32 %v4680, 0.0
    %v4697 = vmax.f32 %v4681, 0.0
    %v4698 = vmax.f32 %v4682, 0.0
    %v4699 = vmax.f32 %v4683, 0.0
    %v4700 = vmax.f32 %v4684, 0.0
    %v4701 = vmax.f32 %v4685, 0.0
    %v4702 = vmax.f32 %v4686, 0.0
    %v4703 = vmax.f32 %v4687, 0.0
    %v4704 = vmax.f32 %v4688, 0.0
    %v4705 = vmax.f32 %v4689, 0.0
    %v4706 = vmax.f32 %v4690, 0.0
    %v4707 = vmax.f32 %v4691, 0.0
    %v4708 = vmax.f32 %v4692, 0.0
    %v4709 = vmax.f32 %v4693, 0.0
    %v4710 = vmax.f32 %v4694, 0.0
    %v4711 = vpack.c.bf16 %v4696, %v4695
    %v4712 = vpack.c.bf16 %v4698, %v4697
    %v4713 = vpack.c.bf16 %v4700, %v4699
    %v4714 = vpack.c.bf16 %v4702, %v4701
    %v4715 = vpack.c.bf16 %v4704, %v4703
    %v4716 = vpack.c.bf16 %v4706, %v4705
    %v4717 = vpack.c.bf16 %v4708, %v4707
    %v4718 = vpack.c.bf16 %v4710, %v4709
    %v4727 = vrot.slane %v4711, 4
    %v4728 = vrot.slane %v4712, 4
    %v4729 = vsel %vm1039, %v4727, %v4728
    %v4730 = vrot.slane %v4713, 4
    %v4731 = vsel %vm1039, %v4728, %v4730
    %v4732 = vrot.slane %v4714, 4
    %v4733 = vsel %vm1039, %v4730, %v4732
    %v4734 = vrot.slane %v4715, 4
    %v4735 = vsel %vm1039, %v4732, %v4734
    %v4736 = vrot.slane %v4716, 4
    %v4737 = vsel %vm1039, %v4734, %v4736
    %v4738 = vrot.slane %v4717, 4
    %v4739 = vsel %vm1039, %v4736, %v4738
    %v4740 = vrot.slane %v4718, 4
    %v4741 = vsel %vm1039, %v4738, %v4740
    %4751 = vst.msk [vmem:[#allocation2 + $0x8] sm:$0xf0] %vm1020, %v4727
    %4752 = vst.msk [vmem:[#allocation2 + $0x10] sm:$0xff] %vm1016, %v4729
    %4753 = vst.msk [vmem:[#allocation2 + $0x18] sm:$0xff] %vm1016, %v4731
    %4754 = vst.msk [vmem:[#allocation2 + $0x20] sm:$0xff] %vm1016, %v4733
    %4755 = vst.msk [vmem:[#allocation2 + $0x28] sm:$0xff] %vm1016, %v4735
    %4756 = vst.msk [vmem:[#allocation2 + $0x30] sm:$0xff] %vm1016, %v4737
    %4757 = vst.msk [vmem:[#allocation2 + $0x38] sm:$0xff] %vm1016, %v4739
    %4758 = vst.msk [vmem:[#allocation2 + $0x40] sm:$0xff] %vm1016, %v4741
    %4759 = vst.msk [vmem:[#allocation2 + $0x48] sm:$0xf] %vm1018, %v4740
    %v4760 = vld [vmem:[#allocation2] sm:$0xff]
    %v4761 = vld [vmem:[#allocation2 + $0x8] sm:$0xff]
    %v4762 = vld [vmem:[#allocation2 + $0x10] sm:$0xff]
    %v4763 = vld [vmem:[#allocation2 + $0x18] sm:$0xff]
    %v4764 = vld [vmem:[#allocation2 + $0x20] sm:$0xff]
    %v4765 = vld [vmem:[#allocation2 + $0x28] sm:$0xff]
    %v4766 = vld [vmem:[#allocation2 + $0x30] sm:$0xff]
    %v4767 = vld [vmem:[#allocation2 + $0x38] sm:$0xff]
    %4768 = vst.msk [vmem:[#allocation4] sm:$0xff] %vm1016, %v4760
    %4769 = vst.msk [vmem:[#allocation4 + $0x10] sm:$0xff] %vm1016, %v4761
    %4770 = vst.msk [vmem:[#allocation4 + $0x20] sm:$0xff] %vm1016, %v4762
    %4771 = vst.msk [vmem:[#allocation4 + $0x30] sm:$0xff] %vm1016, %v4763
    %4772 = vst.msk [vmem:[#allocation4 + $0x40] sm:$0xff] %vm1016, %v4764
    %4773 = vst.msk [vmem:[#allocation4 + $0x50] sm:$0xff] %vm1016, %v4765
    %4774 = vst.msk [vmem:[#allocation4 + $0x60] sm:$0xff] %vm1016, %v4766
    %4775 = vst.msk [vmem:[#allocation4 + $0x70] sm:$0xff] %vm1016, %v4767
    %v4776 = vld [vmem:[#allocation2] sm:$0xf0]
    %v4777 = vld [vmem:[#allocation2 + $0x8] sm:$0xff]
    %v4778 = vld [vmem:[#allocation2 + $0x10] sm:$0xff]
    %v4779 = vld [vmem:[#allocation2 + $0x18] sm:$0xff]
    %v4780 = vld [vmem:[#allocation2 + $0x20] sm:$0xff]
    %v4781 = vld [vmem:[#allocation2 + $0x28] sm:$0xff]
    %v4782 = vld [vmem:[#allocation2 + $0x30] sm:$0xff]
    %v4783 = vld [vmem:[#allocation2 + $0x38] sm:$0xff]
    %v4784 = vld [vmem:[#allocation2 + $0x40] sm:$0xf]
    %v4794 = vrot.slane %v4776, 4
    %v4795 = vrot.slane %v4777, 4
    %v4796 = vsel %vm1039, %v4794, %v4795
    %v4797 = vrot.slane %v4778, 4
    %v4798 = vsel %vm1039, %v4795, %v4797
    %v4799 = vrot.slane %v4779, 4
    %v4800 = vsel %vm1039, %v4797, %v4799
    %v4801 = vrot.slane %v4780, 4
    %v4802 = vsel %vm1039, %v4799, %v4801
    %v4803 = vrot.slane %v4781, 4
    %v4804 = vsel %vm1039, %v4801, %v4803
    %v4805 = vrot.slane %v4782, 4
    %v4806 = vsel %vm1039, %v4803, %v4805
    %v4807 = vrot.slane %v4783, 4
    %v4808 = vsel %vm1039, %v4805, %v4807
    %v4809 = vrot.slane %v4784, 4
    %v4810 = vsel %vm1039, %v4807, %v4809
    %4811 = vrot.lane.b32.xlu0 %v4796, 32
    %v4812 = vpop.permute.xlu0 %4811
    %4813 = vrot.lane.b32.xlu0 %v4798, 32
    %v4814 = vpop.permute.xlu0 %4813
    %4815 = vrot.lane.b32.xlu0 %v4800, 32
    %v4816 = vpop.permute.xlu0 %4815
    %4817 = vrot.lane.b32.xlu0 %v4802, 32
    %v4818 = vpop.permute.xlu0 %4817
    %4819 = vrot.lane.b32.xlu0 %v4804, 32
    %v4820 = vpop.permute.xlu0 %4819
    %4821 = vrot.lane.b32.xlu0 %v4806, 32
    %v4822 = vpop.permute.xlu0 %4821
    %4823 = vrot.lane.b32.xlu0 %v4808, 32
    %v4824 = vpop.permute.xlu0 %4823
    %4825 = vrot.lane.b32.xlu0 %v4810, 32
    %v4826 = vpop.permute.xlu0 %4825
    %4835 = vst.msk [vmem:[#allocation4] sm:$0xff] %vm1148, %v4812
    %4836 = vst.msk [vmem:[#allocation4 + $0x10] sm:$0xff] %vm1148, %v4814
    %4837 = vst.msk [vmem:[#allocation4 + $0x20] sm:$0xff] %vm1148, %v4816
    %4838 = vst.msk [vmem:[#allocation4 + $0x30] sm:$0xff] %vm1148, %v4818
    %4839 = vst.msk [vmem:[#allocation4 + $0x40] sm:$0xff] %vm1148, %v4820
    %4840 = vst.msk [vmem:[#allocation4 + $0x50] sm:$0xff] %vm1148, %v4822
    %4841 = vst.msk [vmem:[#allocation4 + $0x60] sm:$0xff] %vm1148, %v4824
    %4842 = vst.msk [vmem:[#allocation4 + $0x70] sm:$0xff] %vm1148, %v4826
    %v4843 = vld [vmem:[#allocation2 + $0x8] sm:$0xff]
    %v4844 = vld [vmem:[#allocation2 + $0x10] sm:$0xff]
    %v4845 = vld [vmem:[#allocation2 + $0x18] sm:$0xff]
    %v4846 = vld [vmem:[#allocation2 + $0x20] sm:$0xff]
    %v4847 = vld [vmem:[#allocation2 + $0x28] sm:$0xff]
    %v4848 = vld [vmem:[#allocation2 + $0x30] sm:$0xff]
    %v4849 = vld [vmem:[#allocation2 + $0x38] sm:$0xff]
    %v4850 = vld [vmem:[#allocation2 + $0x40] sm:$0xff]
    %4859 = vrot.lane.b32.xlu0 %v4843, 64
    %v4860 = vpop.permute.xlu0 %4859
    %4861 = vrot.lane.b32.xlu0 %v4844, 64
    %v4862 = vpop.permute.xlu0 %4861
    %4863 = vrot.lane.b32.xlu0 %v4845, 64
    %v4864 = vpop.permute.xlu0 %4863
    %4865 = vrot.lane.b32.xlu0 %v4846, 64
    %v4866 = vpop.permute.xlu0 %4865
    %4867 = vrot.lane.b32.xlu0 %v4847, 64
    %v4868 = vpop.permute.xlu0 %4867
    %4869 = vrot.lane.b32.xlu0 %v4848, 64
    %v4870 = vpop.permute.xlu0 %4869
    %4871 = vrot.lane.b32.xlu0 %v4849, 64
    %v4872 = vpop.permute.xlu0 %4871
    %4873 = vrot.lane.b32.xlu0 %v4850, 64
    %v4874 = vpop.permute.xlu0 %4873
    %4883 = vst.msk [vmem:[#allocation4] sm:$0xff] %vm1197, %v4860
    %4884 = vst.msk [vmem:[#allocation4 + $0x10] sm:$0xff] %vm1197, %v4862
    %4885 = vst.msk [vmem:[#allocation4 + $0x20] sm:$0xff] %vm1197, %v4864
    %4886 = vst.msk [vmem:[#allocation4 + $0x30] sm:$0xff] %vm1197, %v4866
    %4887 = vst.msk [vmem:[#allocation4 + $0x40] sm:$0xff] %vm1197, %v4868
    %4888 = vst.msk [vmem:[#allocation4 + $0x50] sm:$0xff] %vm1197, %v4870
    %4889 = vst.msk [vmem:[#allocation4 + $0x60] sm:$0xff] %vm1197, %v4872
    %4890 = vst.msk [vmem:[#allocation4 + $0x70] sm:$0xff] %vm1197, %v4874
    %v4891 = vld [vmem:[#allocation2 + $0x8] sm:$0xf0]
    %v4892 = vld [vmem:[#allocation2 + $0x10] sm:$0xff]
    %v4893 = vld [vmem:[#allocation2 + $0x18] sm:$0xff]
    %v4894 = vld [vmem:[#allocation2 + $0x20] sm:$0xff]
    %v4895 = vld [vmem:[#allocation2 + $0x28] sm:$0xff]
    %v4896 = vld [vmem:[#allocation2 + $0x30] sm:$0xff]
    %v4897 = vld [vmem:[#allocation2 + $0x38] sm:$0xff]
    %v4898 = vld [vmem:[#allocation2 + $0x40] sm:$0xff]
    %v4899 = vld [vmem:[#allocation2 + $0x48] sm:$0xf]
    %v4909 = vrot.slane %v4891, 4
    %v4910 = vrot.slane %v4892, 4
    %v4911 = vsel %vm1039, %v4909, %v4910
    %v4912 = vrot.slane %v4893, 4
    %v4913 = vsel %vm1039, %v4910, %v4912
    %v4914 = vrot.slane %v4894, 4
    %v4915 = vsel %vm1039, %v4912, %v4914
    %v4916 = vrot.slane %v4895, 4
    %v4917 = vsel %vm1039, %v4914, %v4916
    %v4918 = vrot.slane %v4896, 4
    %v4919 = vsel %vm1039, %v4916, %v4918
    %v4920 = vrot.slane %v4897, 4
    %v4921 = vsel %vm1039, %v4918, %v4920
    %v4922 = vrot.slane %v4898, 4
    %v4923 = vsel %vm1039, %v4920, %v4922
    %v4924 = vrot.slane %v4899, 4
    %v4925 = vsel %vm1039, %v4922, %v4924
    %4926 = vrot.lane.b32.xlu0 %v4911, 96
    %v4927 = vpop.permute.xlu0 %4926
    %4928 = vrot.lane.b32.xlu0 %v4913, 96
    %v4929 = vpop.permute.xlu0 %4928
    %4930 = vrot.lane.b32.xlu0 %v4915, 96
    %v4931 = vpop.permute.xlu0 %4930
    %4932 = vrot.lane.b32.xlu0 %v4917, 96
    %v4933 = vpop.permute.xlu0 %4932
    %4934 = vrot.lane.b32.xlu0 %v4919, 96
    %v4935 = vpop.permute.xlu0 %4934
    %4936 = vrot.lane.b32.xlu0 %v4921, 96
    %v4937 = vpop.permute.xlu0 %4936
    %4938 = vrot.lane.b32.xlu0 %v4923, 96
    %v4939 = vpop.permute.xlu0 %4938
    %4940 = vrot.lane.b32.xlu0 %v4925, 96
    %v4941 = vpop.permute.xlu0 %4940
    %4950 = vst.msk [vmem:[#allocation4] sm:$0xff] %vm1265, %v4927
    %4951 = vst.msk [vmem:[#allocation4 + $0x10] sm:$0xff] %vm1265, %v4929
    %4952 = vst.msk [vmem:[#allocation4 + $0x20] sm:$0xff] %vm1265, %v4931
    %4953 = vst.msk [vmem:[#allocation4 + $0x30] sm:$0xff] %vm1265, %v4933
    %4954 = vst.msk [vmem:[#allocation4 + $0x40] sm:$0xff] %vm1265, %v4935
    %4955 = vst.msk [vmem:[#allocation4 + $0x50] sm:$0xff] %vm1265, %v4937
    %4956 = vst.msk [vmem:[#allocation4 + $0x60] sm:$0xff] %vm1265, %v4939
    %4957 = vst.msk [vmem:[#allocation4 + $0x70] sm:$0xff] %vm1265, %v4941
    %v4958 = vld [vmem:[#allocation2 + $0x10] sm:$0xff]
    %v4959 = vld [vmem:[#allocation2 + $0x18] sm:$0xff]
    %v4960 = vld [vmem:[#allocation2 + $0x20] sm:$0xff]
    %v4961 = vld [vmem:[#allocation2 + $0x28] sm:$0xff]
    %v4962 = vld [vmem:[#allocation2 + $0x30] sm:$0xff]
    %v4963 = vld [vmem:[#allocation2 + $0x38] sm:$0xff]
    %v4964 = vld [vmem:[#allocation2 + $0x40] sm:$0xff]
    %v4965 = vld [vmem:[#allocation2 + $0x48] sm:$0xff]
    %4966 = vst.msk [vmem:[#allocation4 + $0x8] sm:$0xff] %vm1016, %v4958
    %4967 = vst.msk [vmem:[#allocation4 + $0x18] sm:$0xff] %vm1016, %v4959
    %4968 = vst.msk [vmem:[#allocation4 + $0x28] sm:$0xff] %vm1016, %v4960
    %4969 = vst.msk [vmem:[#allocation4 + $0x38] sm:$0xff] %vm1016, %v4961
    %4970 = vst.msk [vmem:[#allocation4 + $0x48] sm:$0xff] %vm1016, %v4962
    %4971 = vst.msk [vmem:[#allocation4 + $0x58] sm:$0xff] %vm1016, %v4963
    %4972 = vst.msk [vmem:[#allocation4 + $0x68] sm:$0xff] %vm1016, %v4964
    %4973 = vst.msk [vmem:[#allocation4 + $0x78] sm:$0xff] %vm1016, %v4965
    %v4974 = vld [vmem:[#allocation2 + $0x10] sm:$0xf0]
    %v4975 = vld [vmem:[#allocation2 + $0x18] sm:$0xff]
    %v4976 = vld [vmem:[#allocation2 + $0x20] sm:$0xff]
    %v4977 = vld [vmem:[#allocation2 + $0x28] sm:$0xff]
    %v4978 = vld [vmem:[#allocation2 + $0x30] sm:$0xff]
    %v4979 = vld [vmem:[#allocation2 + $0x38] sm:$0xff]
    %v4980 = vld [vmem:[#allocation2 + $0x40] sm:$0xff]
    %v4981 = vld [vmem:[#allocation2 + $0x48] sm:$0xff]
    %v4982 = vld [vmem:[#allocation2 + $0x50] sm:$0xf]
    %v4992 = vrot.slane %v4974, 4
    %v4993 = vrot.slane %v4975, 4
    %v4994 = vsel %vm1039, %v4992, %v4993
    %v4995 = vrot.slane %v4976, 4
    %v4996 = vsel %vm1039, %v4993, %v4995
    %v4997 = vrot.slane %v4977, 4
    %v4998 = vsel %vm1039, %v4995, %v4997
    %v4999 = vrot.slane %v4978, 4
    %v5000 = vsel %vm1039, %v4997, %v4999
    %v5001 = vrot.slane %v4979, 4
    %v5002 = vsel %vm1039, %v4999, %v5001
    %v5003 = vrot.slane %v4980, 4
    %v5004 = vsel %vm1039, %v5001, %v5003
    %v5005 = vrot.slane %v4981, 4
    %v5006 = vsel %vm1039, %v5003, %v5005
    %v5007 = vrot.slane %v4982, 4
    %v5008 = vsel %vm1039, %v5005, %v5007
    %5009 = vrot.lane.b32.xlu0 %v4994, 32
    %v5010 = vpop.permute.xlu0 %5009
    %5011 = vrot.lane.b32.xlu0 %v4996, 32
    %v5012 = vpop.permute.xlu0 %5011
    %5013 = vrot.lane.b32.xlu0 %v4998, 32
    %v5014 = vpop.permute.xlu0 %5013
    %5015 = vrot.lane.b32.xlu0 %v5000, 32
    %v5016 = vpop.permute.xlu0 %5015
    %5017 = vrot.lane.b32.xlu0 %v5002, 32
    %v5018 = vpop.permute.xlu0 %5017
    %5019 = vrot.lane.b32.xlu0 %v5004, 32
    %v5020 = vpop.permute.xlu0 %5019
    %5021 = vrot.lane.b32.xlu0 %v5006, 32
    %v5022 = vpop.permute.xlu0 %5021
    %5023 = vrot.lane.b32.xlu0 %v5008, 32
    %v5024 = vpop.permute.xlu0 %5023
    %5033 = vst.msk [vmem:[#allocation4 + $0x8] sm:$0xff] %vm1148, %v5010
    %5034 = vst.msk [vmem:[#allocation4 + $0x18] sm:$0xff] %vm1148, %v5012
    %5035 = vst.msk [vmem:[#allocation4 + $0x28] sm:$0xff] %vm1148, %v5014
    %5036 = vst.msk [vmem:[#allocation4 + $0x38] sm:$0xff] %vm1148, %v5016
    %5037 = vst.msk [vmem:[#allocation4 + $0x48] sm:$0xff] %vm1148, %v5018
    %5038 = vst.msk [vmem:[#allocation4 + $0x58] sm:$0xff] %vm1148, %v5020
    %5039 = vst.msk [vmem:[#allocation4 + $0x68] sm:$0xff] %vm1148, %v5022
    %5040 = vst.msk [vmem:[#allocation4 + $0x78] sm:$0xff] %vm1148, %v5024
    %v5041 = vld [vmem:[#allocation2 + $0x18] sm:$0xff]
    %v5042 = vld [vmem:[#allocation2 + $0x20] sm:$0xff]
    %v5043 = vld [vmem:[#allocation2 + $0x28] sm:$0xff]
    %v5044 = vld [vmem:[#allocation2 + $0x30] sm:$0xff]
    %v5045 = vld [vmem:[#allocation2 + $0x38] sm:$0xff]
    %v5046 = vld [vmem:[#allocation2 + $0x40] sm:$0xff]
    %v5047 = vld [vmem:[#allocation2 + $0x48] sm:$0xff]
    %v5048 = vld [vmem:[#allocation2 + $0x50] sm:$0xff]
    %5057 = vrot.lane.b32.xlu0 %v5041, 64
    %v5058 = vpop.permute.xlu0 %5057
    %5059 = vrot.lane.b32.xlu0 %v5042, 64
    %v5060 = vpop.permute.xlu0 %5059
    %5061 = vrot.lane.b32.xlu0 %v5043, 64
    %v5062 = vpop.permute.xlu0 %5061
    %5063 = vrot.lane.b32.xlu0 %v5044, 64
    %v5064 = vpop.permute.xlu0 %5063
    %5065 = vrot.lane.b32.xlu0 %v5045, 64
    %v5066 = vpop.permute.xlu0 %5065
    %5067 = vrot.lane.b32.xlu0 %v5046, 64
    %v5068 = vpop.permute.xlu0 %5067
    %5069 = vrot.lane.b32.xlu0 %v5047, 64
    %v5070 = vpop.permute.xlu0 %5069
    %5071 = vrot.lane.b32.xlu0 %v5048, 64
    %v5072 = vpop.permute.xlu0 %5071
    %5081 = vst.msk [vmem:[#allocation4 + $0x8] sm:$0xff] %vm1197, %v5058
    %5082 = vst.msk [vmem:[#allocation4 + $0x18] sm:$0xff] %vm1197, %v5060
    %5083 = vst.msk [vmem:[#allocation4 + $0x28] sm:$0xff] %vm1197, %v5062
    %5084 = vst.msk [vmem:[#allocation4 + $0x38] sm:$0xff] %vm1197, %v5064
    %5085 = vst.msk [vmem:[#allocation4 + $0x48] sm:$0xff] %vm1197, %v5066
    %5086 = vst.msk [vmem:[#allocation4 + $0x58] sm:$0xff] %vm1197, %v5068
    %5087 = vst.msk [vmem:[#allocation4 + $0x68] sm:$0xff] %vm1197, %v5070
    %5088 = vst.msk [vmem:[#allocation4 + $0x78] sm:$0xff] %vm1197, %v5072
    %v5089 = vld [vmem:[#allocation4] sm:$0xff]
    %v5090 = vld [vmem:[#allocation4 + $0x8] sm:$0xff]
    %v5091 = vld [vmem:[#allocation4 + $0x10] sm:$0xff]
    %v5092 = vld [vmem:[#allocation4 + $0x18] sm:$0xff]
    %v5093 = vld [vmem:[#allocation4 + $0x20] sm:$0xff]
    %v5094 = vld [vmem:[#allocation4 + $0x28] sm:$0xff]
    %v5095 = vld [vmem:[#allocation4 + $0x30] sm:$0xff]
    %v5096 = vld [vmem:[#allocation4 + $0x38] sm:$0xff]
    %v5097 = vld [vmem:[#allocation4 + $0x40] sm:$0xff]
    %v5098 = vld [vmem:[#allocation4 + $0x48] sm:$0xff]
    %v5099 = vld [vmem:[#allocation4 + $0x50] sm:$0xff]
    %v5100 = vld [vmem:[#allocation4 + $0x58] sm:$0xff]
    %v5101 = vld [vmem:[#allocation4 + $0x60] sm:$0xff]
    %v5102 = vld [vmem:[#allocation4 + $0x68] sm:$0xff]
    %v5103 = vld [vmem:[#allocation4 + $0x70] sm:$0xff]
    %v5104 = vld [vmem:[#allocation4 + $0x78] sm:$0xff]
    %s5105 = scalar_lea.vmem [#allocation18], 224
    %v5106 = vld [vmem:[%s5105] sm:$0xf]
    %v5107 = vld [vmem:[%s5105 + $0x4] sm:$0xf]
    %v5108 = vld [vmem:[%s5105 + $0x8] sm:$0xf]
    %v5109 = vld [vmem:[%s5105 + $0xc] sm:$0xf]
    %v5110 = vld [vmem:[%s5105 + $0x10] sm:$0xf]
    %v5111 = vld [vmem:[%s5105 + $0x14] sm:$0xf]
    %v5112 = vld [vmem:[%s5105 + $0x18] sm:$0xf]
    %v5113 = vld [vmem:[%s5105 + $0x1c] sm:$0xf]
    %v5114 = vld [vmem:[%s5105 + $0x20] sm:$0xf]
    %v5115 = vld [vmem:[%s5105 + $0x24] sm:$0xf]
    %v5116 = vld [vmem:[%s5105 + $0x28] sm:$0xf]
    %v5117 = vld [vmem:[%s5105 + $0x2c] sm:$0xf]
    %v5118 = vld [vmem:[%s5105 + $0x30] sm:$0xf]
    %v5119 = vld [vmem:[%s5105 + $0x34] sm:$0xf]
    %v5120 = vld [vmem:[%s5105 + $0x38] sm:$0xf]
    %v5121 = vld [vmem:[%s5105 + $0x3c] sm:$0xf]
    %v5122 = vld [vmem:[%s5105 + $0x40] sm:$0xf]
    %v5123 = vld [vmem:[%s5105 + $0x44] sm:$0xf]
    %v5124 = vld [vmem:[%s5105 + $0x48] sm:$0xf]
    %v5125 = vld [vmem:[%s5105 + $0x4c] sm:$0xf]
    %v5126 = vld [vmem:[%s5105 + $0x50] sm:$0xf]
    %v5127 = vld [vmem:[%s5105 + $0x54] sm:$0xf]
    %v5128 = vld [vmem:[%s5105 + $0x58] sm:$0xf]
    %v5129 = vld [vmem:[%s5105 + $0x5c] sm:$0xf]
    %v5130 = vld [vmem:[%s5105 + $0x60] sm:$0xf]
    %v5131 = vld [vmem:[%s5105 + $0x64] sm:$0xf]
    %v5132 = vld [vmem:[%s5105 + $0x68] sm:$0xf]
    %v5133 = vld [vmem:[%s5105 + $0x6c] sm:$0xf]
    %v5162 = vunpack.c.l.b16 %v5106
    %v5163 = vunpack.c.l.b16 %v5107
    %v5164 = vunpack.c.l.b16 %v5108
    %v5165 = vunpack.c.l.b16 %v5109
    %v5166 = vunpack.c.l.b16 %v5110
    %v5167 = vunpack.c.l.b16 %v5111
    %v5168 = vunpack.c.l.b16 %v5112
    %v5169 = vunpack.c.l.b16 %v5113
    %v5170 = vunpack.c.l.b16 %v5114
    %v5171 = vunpack.c.l.b16 %v5115
    %v5172 = vunpack.c.l.b16 %v5116
    %v5173 = vunpack.c.l.b16 %v5117
    %v5174 = vunpack.c.l.b16 %v5118
    %v5175 = vunpack.c.l.b16 %v5119
    %v5176 = vunpack.c.l.b16 %v5120
    %v5177 = vunpack.c.l.b16 %v5121
    %v5178 = vunpack.c.l.b16 %v5122
    %v5179 = vunpack.c.l.b16 %v5123
    %v5180 = vunpack.c.l.b16 %v5124
    %v5181 = vunpack.c.l.b16 %v5125
    %v5182 = vunpack.c.l.b16 %v5126
    %v5183 = vunpack.c.l.b16 %v5127
    %v5184 = vunpack.c.l.b16 %v5128
    %v5185 = vunpack.c.l.b16 %v5129
    %v5186 = vunpack.c.l.b16 %v5130
    %v5187 = vunpack.c.l.b16 %v5131
    %v5188 = vunpack.c.l.b16 %v5132
    %v5189 = vunpack.c.l.b16 %v5133
    %v5190 = vpack.c.b16 %v5163, %v5162
    %v5191 = vpack.c.b16 %v5165, %v5164
    %v5192 = vpack.c.b16 %v5167, %v5166
    %v5193 = vpack.c.b16 %v5169, %v5168
    %v5194 = vpack.c.b16 %v5171, %v5170
    %v5195 = vpack.c.b16 %v5173, %v5172
    %v5196 = vpack.c.b16 %v5175, %v5174
    %v5197 = vpack.c.b16 %v5177, %v5176
    %v5198 = vpack.c.b16 %v5179, %v5178
    %v5199 = vpack.c.b16 %v5181, %v5180
    %v5200 = vpack.c.b16 %v5183, %v5182
    %v5201 = vpack.c.b16 %v5185, %v5184
    %v5202 = vpack.c.b16 %v5187, %v5186
    %v5203 = vpack.c.b16 %v5189, %v5188
    %v5219 = vsel %vm1533, %v5090, 0
    %v5222 = vsel %vm1533, %v5092, 0
    %v5225 = vsel %vm1533, %v5094, 0
    %v5228 = vsel %vm1533, %v5096, 0
    %v5231 = vsel %vm1533, %v5098, 0
    %v5234 = vsel %vm1533, %v5100, 0
    %v5237 = vsel %vm1533, %v5102, 0
    %v5240 = vsel %vm1533, %v5104, 0
    %5242 = vmatprep.subr.bf16.mxu0 0
    %5243 = vmatpush1.bf16.msra.mxu0 %v5190
    %5244 = vmatprep.subr.bf16.mxu0 0
    %5245 = vmatpush1.bf16.msra.mxu0 %v5191
    %5246 = vmatprep.subr.bf16.mxu0 0
    %5247 = vmatpush1.bf16.msra.mxu0 %v5192
    %5248 = vmatprep.subr.bf16.mxu0 0
    %5249 = vmatpush1.bf16.msra.mxu0 %v5193
    %5250 = vmatprep.subr.bf16.mxu0 0
    %5251 = vmatpush1.bf16.msra.mxu0 %v5194
    %5252 = vmatprep.subr.bf16.mxu0 0
    %5253 = vmatpush1.bf16.msra.mxu0 %v5195
    %5254 = vmatprep.subr.bf16.mxu0 0
    %5255 = vmatpush1.bf16.msra.mxu0 %v5196
    %5256 = vmatprep.subr.bf16.mxu0 0
    %5257 = vmatpush1.bf16.msra.mxu0 %v5197
    %5258 = vmatprep.subr.bf16.mxu0 0
    %5259 = vmatpush1.bf16.msra.mxu0 %v5198
    %5260 = vmatprep.subr.bf16.mxu0 0
    %5261 = vmatpush1.bf16.msra.mxu0 %v5199
    %5262 = vmatprep.subr.bf16.mxu0 0
    %5263 = vmatpush1.bf16.msra.mxu0 %v5200
    %5264 = vmatprep.subr.bf16.mxu0 0
    %5265 = vmatpush1.bf16.msra.mxu0 %v5201
    %5266 = vmatprep.subr.bf16.mxu0 0
    %5267 = vmatpush1.bf16.msra.mxu0 %v5202
    %5268 = vmatprep.subr.bf16.mxu0 0
    %5269 = vmatpush1.bf16.msra.mxu0 %v5203
    %5270 = vmatprep.subr.bf16.mxu0 0
    %5271 = vmatpush1.bf16.msra.mxu0 0
    %5272 = vmatprep.subr.bf16.mxu0 0
    %5273 = vmatpush1.bf16.msra.mxu0 0
    %5274 = vmatprep.mubr.bf16.mxu0 %v5219
    %5275 = vmatmul.mubr.bf16.gmra.mrb[0].mxu0 %v5089
    %v5276 = vpop.f32.mrb[0].mxu0
    %v5277 = vadd.f32 0.0, %v5276
    %v5278 = vpop.f32.mrb[0].mxu0
    %v5279 = vpop.f32.mrb[0].mxu0
    %v5280 = vadd.f32 0.0, %v5279
    %v5281 = vpop.f32.mrb[0].mxu0
    %5282 = vmatprep.mubr.bf16.mxu0 %v5222
    %5283 = vmatmul.mubr.bf16.gmra.mrb[0].mxu0 %v5091
    %v5284 = vpop.f32.mrb[0].mxu0
    %v5285 = vadd.f32 0.0, %v5284
    %v5286 = vpop.f32.mrb[0].mxu0
    %v5287 = vpop.f32.mrb[0].mxu0
    %v5288 = vadd.f32 0.0, %v5287
    %v5289 = vpop.f32.mrb[0].mxu0
    %5290 = vmatprep.mubr.bf16.mxu0 %v5225
    %5291 = vmatmul.mubr.bf16.gmra.mrb[0].mxu0 %v5093
    %v5292 = vpop.f32.mrb[0].mxu0
    %v5293 = vadd.f32 0.0, %v5292
    %v5294 = vpop.f32.mrb[0].mxu0
    %v5295 = vpop.f32.mrb[0].mxu0
    %v5296 = vadd.f32 0.0, %v5295
    %v5297 = vpop.f32.mrb[0].mxu0
    %5298 = vmatprep.mubr.bf16.mxu0 %v5228
    %5299 = vmatmul.mubr.bf16.gmra.mrb[0].mxu0 %v5095
    %v5300 = vpop.f32.mrb[0].mxu0
    %v5301 = vadd.f32 0.0, %v5300
    %v5302 = vpop.f32.mrb[0].mxu0
    %v5303 = vpop.f32.mrb[0].mxu0
    %v5304 = vadd.f32 0.0, %v5303
    %v5305 = vpop.f32.mrb[0].mxu0
    %5306 = vmatprep.mubr.bf16.mxu0 %v5231
    %5307 = vmatmul.mubr.bf16.gmra.mrb[0].mxu0 %v5097
    %v5308 = vpop.f32.mrb[0].mxu0
    %v5309 = vadd.f32 0.0, %v5308
    %v5310 = vpop.f32.mrb[0].mxu0
    %v5311 = vpop.f32.mrb[0].mxu0
    %v5312 = vadd.f32 0.0, %v5311
    %v5313 = vpop.f32.mrb[0].mxu0
    %5314 = vmatprep.mubr.bf16.mxu0 %v5234
    %5315 = vmatmul.mubr.bf16.gmra.mrb[0].mxu0 %v5099
    %v5316 = vpop.f32.mrb[0].mxu0
    %v5317 = vadd.f32 0.0, %v5316
    %v5318 = vpop.f32.mrb[0].mxu0
    %v5319 = vpop.f32.mrb[0].mxu0
    %v5320 = vadd.f32 0.0, %v5319
    %v5321 = vpop.f32.mrb[0].mxu0
    %5322 = vmatprep.mubr.bf16.mxu0 %v5237
    %5323 = vmatmul.mubr.bf16.gmra.mrb[0].mxu0 %v5101
    %v5324 = vpop.f32.mrb[0].mxu0
    %v5325 = vadd.f32 0.0, %v5324
    %v5326 = vpop.f32.mrb[0].mxu0
    %v5327 = vpop.f32.mrb[0].mxu0
    %v5328 = vadd.f32 0.0, %v5327
    %v5329 = vpop.f32.mrb[0].mxu0
    %5330 = vmatprep.mubr.bf16.mxu0 %v5240
    %5331 = vmatmul.mubr.bf16.gmra.mrb[0].mxu0 %v5103
    %v5332 = vpop.f32.mrb[0].mxu0
    %v5333 = vadd.f32 0.0, %v5332
    %v5334 = vpop.f32.mrb[0].mxu0
    %v5335 = vpop.f32.mrb[0].mxu0
    %v5336 = vadd.f32 0.0, %v5335
    %v5337 = vpop.f32.mrb[0].mxu0
    %5338 = vdwg.mxu0
    %s5339 = scalar_lea.vmem [#allocation20], 2
    %v5340 = vld [vmem:[%s5339] sm:$0x1]
    %v5342 = vlaneseq
    %v5343 = vshrl.u32 %v5342, 7
    %v5344 = vsub.s32 0, %v5343
    %v5345 = vrot.slane %v5340, %v5344
    %v5347 = vmul.f32 %v5277, %v5345
    %v5348 = vmul.f32 %v5280, %v5345
    %v5349 = vmul.f32 %v5285, %v5345
    %v5350 = vmul.f32 %v5288, %v5345
    %v5351 = vmul.f32 %v5293, %v5345
    %v5352 = vmul.f32 %v5296, %v5345
    %v5353 = vmul.f32 %v5301, %v5345
    %v5354 = vmul.f32 %v5304, %v5345
    %v5355 = vmul.f32 %v5309, %v5345
    %v5356 = vmul.f32 %v5312, %v5345
    %v5357 = vmul.f32 %v5317, %v5345
    %v5358 = vmul.f32 %v5320, %v5345
    %v5359 = vmul.f32 %v5325, %v5345
    %v5360 = vmul.f32 %v5328, %v5345
    %v5361 = vmul.f32 %v5333, %v5345
    %v5362 = vmul.f32 %v5336, %v5345
    %s5363 = scalar_lea.vmem [#allocation21], 2
    %v5364 = vld [vmem:[%s5363] sm:$0x1]
    %v5366 = vlaneseq
    %v5367 = vshrl.u32 %v5366, 7
    %v5368 = vsub.s32 0, %v5367
    %v5369 = vrot.slane %v5364, %v5368
    %v5371 = vadd.f32 %v5347, %v5369
    %v5372 = vadd.f32 %v5348, %v5369
    %v5373 = vadd.f32 %v5349, %v5369
    %v5374 = vadd.f32 %v5350, %v5369
    %v5375 = vadd.f32 %v5351, %v5369
    %v5376 = vadd.f32 %v5352, %v5369
    %v5377 = vadd.f32 %v5353, %v5369
    %v5378 = vadd.f32 %v5354, %v5369
    %v5379 = vadd.f32 %v5355, %v5369
    %v5380 = vadd.f32 %v5356, %v5369
    %v5381 = vadd.f32 %v5357, %v5369
    %v5382 = vadd.f32 %v5358, %v5369
    %v5383 = vadd.f32 %v5359, %v5369
    %v5384 = vadd.f32 %v5360, %v5369
    %v5385 = vadd.f32 %v5361, %v5369
    %v5386 = vadd.f32 %v5362, %v5369
    %v5387 = vmax.f32 %v5371, 0.0
    %v5388 = vmax.f32 %v5372, 0.0
    %v5389 = vmax.f32 %v5373, 0.0
    %v5390 = vmax.f32 %v5374, 0.0
    %v5391 = vmax.f32 %v5375, 0.0
    %v5392 = vmax.f32 %v5376, 0.0
    %v5393 = vmax.f32 %v5377, 0.0
    %v5394 = vmax.f32 %v5378, 0.0
    %v5395 = vmax.f32 %v5379, 0.0
    %v5396 = vmax.f32 %v5380, 0.0
    %v5397 = vmax.f32 %v5381, 0.0
    %v5398 = vmax.f32 %v5382, 0.0
    %v5399 = vmax.f32 %v5383, 0.0
    %v5400 = vmax.f32 %v5384, 0.0
    %v5401 = vmax.f32 %v5385, 0.0
    %v5402 = vmax.f32 %v5386, 0.0
    %v5403 = vpack.c.bf16 %v5388, %v5387
    %v5404 = vpack.c.bf16 %v5390, %v5389
    %v5405 = vpack.c.bf16 %v5392, %v5391
    %v5406 = vpack.c.bf16 %v5394, %v5393
    %v5407 = vpack.c.bf16 %v5396, %v5395
    %v5408 = vpack.c.bf16 %v5398, %v5397
    %v5409 = vpack.c.bf16 %v5400, %v5399
    %v5410 = vpack.c.bf16 %v5402, %v5401
    %v5419 = vunpack.c.l.b16 %v5403
    %v5420 = vunpack.c.h.b16 %v5403
    %v5421 = vunpack.c.l.b16 %v5404
    %v5422 = vunpack.c.h.b16 %v5404
    %v5423 = vunpack.c.l.b16 %v5405
    %v5424 = vunpack.c.h.b16 %v5405
    %v5425 = vunpack.c.l.b16 %v5406
    %v5426 = vunpack.c.h.b16 %v5406
    %v5427 = vunpack.c.l.b16 %v5407
    %v5428 = vunpack.c.h.b16 %v5407
    %v5429 = vunpack.c.l.b16 %v5408
    %v5430 = vunpack.c.h.b16 %v5408
    %v5431 = vunpack.c.l.b16 %v5409
    %v5432 = vunpack.c.h.b16 %v5409
    %v5433 = vunpack.c.l.b16 %v5410
    %v5434 = vunpack.c.h.b16 %v5410
    %v5435 = vpack.c.b16 %v5419, %v5419
    %v5436 = vpack.c.b16 %v5420, %v5420
    %v5437 = vpack.c.b16 %v5421, %v5421
    %v5438 = vpack.c.b16 %v5422, %v5422
    %v5439 = vpack.c.b16 %v5423, %v5423
    %v5440 = vpack.c.b16 %v5424, %v5424
    %v5441 = vpack.c.b16 %v5425, %v5425
    %v5442 = vpack.c.b16 %v5426, %v5426
    %v5443 = vpack.c.b16 %v5427, %v5427
    %v5444 = vpack.c.b16 %v5428, %v5428
    %v5445 = vpack.c.b16 %v5429, %v5429
    %v5446 = vpack.c.b16 %v5430, %v5430
    %v5447 = vpack.c.b16 %v5431, %v5431
    %v5448 = vpack.c.b16 %v5432, %v5432
    %v5449 = vpack.c.b16 %v5433, %v5433
    %v5450 = vpack.c.b16 %v5434, %v5434
    %5451 = vrot.lane.b32.xlu0 %v5435, 64
    %v5452 = vpop.permute.xlu0 %5451
    %5453 = vrot.lane.b32.xlu0 %v5436, 64
    %v5454 = vpop.permute.xlu0 %5453
    %5455 = vrot.lane.b32.xlu0 %v5437, 64
    %v5456 = vpop.permute.xlu0 %5455
    %5457 = vrot.lane.b32.xlu0 %v5438, 64
    %v5458 = vpop.permute.xlu0 %5457
    %5459 = vrot.lane.b32.xlu0 %v5439, 64
    %v5460 = vpop.permute.xlu0 %5459
    %5461 = vrot.lane.b32.xlu0 %v5440, 64
    %v5462 = vpop.permute.xlu0 %5461
    %5463 = vrot.lane.b32.xlu0 %v5441, 64
    %v5464 = vpop.permute.xlu0 %5463
    %5465 = vrot.lane.b32.xlu0 %v5442, 64
    %v5466 = vpop.permute.xlu0 %5465
    %5467 = vrot.lane.b32.xlu0 %v5443, 64
    %v5468 = vpop.permute.xlu0 %5467
    %5469 = vrot.lane.b32.xlu0 %v5444, 64
    %v5470 = vpop.permute.xlu0 %5469
    %5471 = vrot.lane.b32.xlu0 %v5445, 64
    %v5472 = vpop.permute.xlu0 %5471
    %5473 = vrot.lane.b32.xlu0 %v5446, 64
    %v5474 = vpop.permute.xlu0 %5473
    %5475 = vrot.lane.b32.xlu0 %v5447, 64
    %v5476 = vpop.permute.xlu0 %5475
    %5477 = vrot.lane.b32.xlu0 %v5448, 64
    %v5478 = vpop.permute.xlu0 %5477
    %5479 = vrot.lane.b32.xlu0 %v5449, 64
    %v5480 = vpop.permute.xlu0 %5479
    %5481 = vrot.lane.b32.xlu0 %v5450, 64
    %v5482 = vpop.permute.xlu0 %5481
    %vm5499 = vcmask 781824
    %5500 = vst.msk [vmem:[#allocation23] sm:$0xf] %vm5499, %v5452
    %5501 = vst.msk [vmem:[#allocation23 + $0x4] sm:$0xf] %vm5499, %v5454
    %5502 = vst.msk [vmem:[#allocation23 + $0x8] sm:$0xf] %vm5499, %v5456
    %5503 = vst.msk [vmem:[#allocation23 + $0xc] sm:$0xf] %vm5499, %v5458
    %5504 = vst.msk [vmem:[#allocation23 + $0x10] sm:$0xf] %vm5499, %v5460
    %5505 = vst.msk [vmem:[#allocation23 + $0x14] sm:$0xf] %vm5499, %v5462
    %5506 = vst.msk [vmem:[#allocation23 + $0x18] sm:$0xf] %vm5499, %v5464
    %5507 = vst.msk [vmem:[#allocation23 + $0x1c] sm:$0xf] %vm5499, %v5466
    %5508 = vst.msk [vmem:[#allocation23 + $0x20] sm:$0xf] %vm5499, %v5468
    %5509 = vst.msk [vmem:[#allocation23 + $0x24] sm:$0xf] %vm5499, %v5470
    %5510 = vst.msk [vmem:[#allocation23 + $0x28] sm:$0xf] %vm5499, %v5472
    %5511 = vst.msk [vmem:[#allocation23 + $0x2c] sm:$0xf] %vm5499, %v5474
    %5512 = vst.msk [vmem:[#allocation23 + $0x30] sm:$0xf] %vm5499, %v5476
    %5513 = vst.msk [vmem:[#allocation23 + $0x34] sm:$0xf] %vm5499, %v5478
    %5514 = vst.msk [vmem:[#allocation23 + $0x38] sm:$0xf] %vm5499, %v5480
    %5515 = vst.msk [vmem:[#allocation23 + $0x3c] sm:$0xf] %vm5499, %v5482
    %v5516 = vld [vmem:[#allocation5] sm:$0xff]
    %v5517 = vld [vmem:[#allocation5 + $0x8] sm:$0xff]
    %v5518 = vld [vmem:[#allocation5 + $0x10] sm:$0xff]
    %v5519 = vld [vmem:[#allocation5 + $0x18] sm:$0xff]
    %v5520 = vld [vmem:[#allocation5 + $0x20] sm:$0xff]
    %v5521 = vld [vmem:[#allocation5 + $0x28] sm:$0xff]
    %v5522 = vld [vmem:[#allocation5 + $0x30] sm:$0xff]
    %v5523 = vld [vmem:[#allocation5 + $0x38] sm:$0xff]
    %v5532 = vrot.slane %v5516, 4
    %v5533 = vrot.slane %v5517, 4
    %v5534 = vsel %vm1039, %v5532, %v5533
    %v5535 = vrot.slane %v5518, 4
    %v5536 = vsel %vm1039, %v5533, %v5535
    %v5537 = vrot.slane %v5519, 4
    %v5538 = vsel %vm1039, %v5535, %v5537
    %v5539 = vrot.slane %v5520, 4
    %v5540 = vsel %vm1039, %v5537, %v5539
    %v5541 = vrot.slane %v5521, 4
    %v5542 = vsel %vm1039, %v5539, %v5541
    %v5543 = vrot.slane %v5522, 4
    %v5544 = vsel %vm1039, %v5541, %v5543
    %v5545 = vrot.slane %v5523, 4
    %v5546 = vsel %vm1039, %v5543, %v5545
    %5547 = vrot.lane.b32.xlu0 %v5532, 32
    %v5548 = vpop.permute.xlu0 %5547
    %5549 = vrot.lane.b32.xlu0 %v5534, 32
    %v5550 = vpop.permute.xlu0 %5549
    %5551 = vrot.lane.b32.xlu0 %v5536, 32
    %v5552 = vpop.permute.xlu0 %5551
    %5553 = vrot.lane.b32.xlu0 %v5538, 32
    %v5554 = vpop.permute.xlu0 %5553
    %5555 = vrot.lane.b32.xlu0 %v5540, 32
    %v5556 = vpop.permute.xlu0 %5555
    %5557 = vrot.lane.b32.xlu0 %v5542, 32
    %v5558 = vpop.permute.xlu0 %5557
    %5559 = vrot.lane.b32.xlu0 %v5544, 32
    %v5560 = vpop.permute.xlu0 %5559
    %5561 = vrot.lane.b32.xlu0 %v5546, 32
    %v5562 = vpop.permute.xlu0 %5561
    %5563 = vrot.lane.b32.xlu0 %v5545, 32
    %v5564 = vpop.permute.xlu0 %5563
    %5574 = vst.msk [vmem:[#allocation2 + $0x8] sm:$0xf0] %vm1020, %v5548
    %5575 = vst.msk [vmem:[#allocation2 + $0x10] sm:$0xff] %vm1016, %v5550
    %5576 = vst.msk [vmem:[#allocation2 + $0x18] sm:$0xff] %vm1016, %v5552
    %5577 = vst.msk [vmem:[#allocation2 + $0x20] sm:$0xff] %vm1016, %v5554
    %5578 = vst.msk [vmem:[#allocation2 + $0x28] sm:$0xff] %vm1016, %v5556
    %5579 = vst.msk [vmem:[#allocation2 + $0x30] sm:$0xff] %vm1016, %v5558
    %5580 = vst.msk [vmem:[#allocation2 + $0x38] sm:$0xff] %vm1016, %v5560
    %5581 = vst.msk [vmem:[#allocation2 + $0x40] sm:$0xff] %vm1016, %v5562
    %5582 = vst.msk [vmem:[#allocation2 + $0x48] sm:$0xf] %vm1018, %v5564
    %v5583 = vld [vmem:[#allocation2] sm:$0xff]
    %v5584 = vld [vmem:[#allocation2 + $0x8] sm:$0xff]
    %v5585 = vld [vmem:[#allocation2 + $0x10] sm:$0xff]
    %v5586 = vld [vmem:[#allocation2 + $0x18] sm:$0xff]
    %v5587 = vld [vmem:[#allocation2 + $0x20] sm:$0xff]
    %v5588 = vld [vmem:[#allocation2 + $0x28] sm:$0xff]
    %v5589 = vld [vmem:[#allocation2 + $0x30] sm:$0xff]
    %v5590 = vld [vmem:[#allocation2 + $0x38] sm:$0xff]
    %5591 = vst.msk [vmem:[#allocation4] sm:$0xff] %vm1016, %v5583
    %5592 = vst.msk [vmem:[#allocation4 + $0x10] sm:$0xff] %vm1016, %v5584
    %5593 = vst.msk [vmem:[#allocation4 + $0x20] sm:$0xff] %vm1016, %v5585
    %5594 = vst.msk [vmem:[#allocation4 + $0x30] sm:$0xff] %vm1016, %v5586
    %5595 = vst.msk [vmem:[#allocation4 + $0x40] sm:$0xff] %vm1016, %v5587
    %5596 = vst.msk [vmem:[#allocation4 + $0x50] sm:$0xff] %vm1016, %v5588
    %5597 = vst.msk [vmem:[#allocation4 + $0x60] sm:$0xff] %vm1016, %v5589
    %5598 = vst.msk [vmem:[#allocation4 + $0x70] sm:$0xff] %vm1016, %v5590
    %v5599 = vld [vmem:[#allocation2] sm:$0xf0]
    %v5600 = vld [vmem:[#allocation2 + $0x8] sm:$0xff]
    %v5601 = vld [vmem:[#allocation2 + $0x10] sm:$0xff]
    %v5602 = vld [vmem:[#allocation2 + $0x18] sm:$0xff]
    %v5603 = vld [vmem:[#allocation2 + $0x20] sm:$0xff]
    %v5604 = vld [vmem:[#allocation2 + $0x28] sm:$0xff]
    %v5605 = vld [vmem:[#allocation2 + $0x30] sm:$0xff]
    %v5606 = vld [vmem:[#allocation2 + $0x38] sm:$0xff]
    %v5607 = vld [vmem:[#allocation2 + $0x40] sm:$0xf]
    %v5617 = vrot.slane %v5599, 4
    %v5618 = vrot.slane %v5600, 4
    %v5619 = vsel %vm1039, %v5617, %v5618
    %v5620 = vrot.slane %v5601, 4
    %v5621 = vsel %vm1039, %v5618, %v5620
    %v5622 = vrot.slane %v5602, 4
    %v5623 = vsel %vm1039, %v5620, %v5622
    %v5624 = vrot.slane %v5603, 4
    %v5625 = vsel %vm1039, %v5622, %v5624
    %v5626 = vrot.slane %v5604, 4
    %v5627 = vsel %vm1039, %v5624, %v5626
    %v5628 = vrot.slane %v5605, 4
    %v5629 = vsel %vm1039, %v5626, %v5628
    %v5630 = vrot.slane %v5606, 4
    %v5631 = vsel %vm1039, %v5628, %v5630
    %v5632 = vrot.slane %v5607, 4
    %v5633 = vsel %vm1039, %v5630, %v5632
    %5634 = vrot.lane.b32.xlu0 %v5619, 32
    %v5635 = vpop.permute.xlu0 %5634
    %5636 = vrot.lane.b32.xlu0 %v5621, 32
    %v5637 = vpop.permute.xlu0 %5636
    %5638 = vrot.lane.b32.xlu0 %v5623, 32
    %v5639 = vpop.permute.xlu0 %5638
    %5640 = vrot.lane.b32.xlu0 %v5625, 32
    %v5641 = vpop.permute.xlu0 %5640
    %5642 = vrot.lane.b32.xlu0 %v5627, 32
    %v5643 = vpop.permute.xlu0 %5642
    %5644 = vrot.lane.b32.xlu0 %v5629, 32
    %v5645 = vpop.permute.xlu0 %5644
    %5646 = vrot.lane.b32.xlu0 %v5631, 32
    %v5647 = vpop.permute.xlu0 %5646
    %5648 = vrot.lane.b32.xlu0 %v5633, 32
    %v5649 = vpop.permute.xlu0 %5648
    %5658 = vst.msk [vmem:[#allocation4] sm:$0xff] %vm1148, %v5635
    %5659 = vst.msk [vmem:[#allocation4 + $0x10] sm:$0xff] %vm1148, %v5637
    %5660 = vst.msk [vmem:[#allocation4 + $0x20] sm:$0xff] %vm1148, %v5639
    %5661 = vst.msk [vmem:[#allocation4 + $0x30] sm:$0xff] %vm1148, %v5641
    %5662 = vst.msk [vmem:[#allocation4 + $0x40] sm:$0xff] %vm1148, %v5643
    %5663 = vst.msk [vmem:[#allocation4 + $0x50] sm:$0xff] %vm1148, %v5645
    %5664 = vst.msk [vmem:[#allocation4 + $0x60] sm:$0xff] %vm1148, %v5647
    %5665 = vst.msk [vmem:[#allocation4 + $0x70] sm:$0xff] %vm1148, %v5649
    %v5666 = vld [vmem:[#allocation2 + $0x8] sm:$0xff]
    %v5667 = vld [vmem:[#allocation2 + $0x10] sm:$0xff]
    %v5668 = vld [vmem:[#allocation2 + $0x18] sm:$0xff]
    %v5669 = vld [vmem:[#allocation2 + $0x20] sm:$0xff]
    %v5670 = vld [vmem:[#allocation2 + $0x28] sm:$0xff]
    %v5671 = vld [vmem:[#allocation2 + $0x30] sm:$0xff]
    %v5672 = vld [vmem:[#allocation2 + $0x38] sm:$0xff]
    %v5673 = vld [vmem:[#allocation2 + $0x40] sm:$0xff]
    %5682 = vrot.lane.b32.xlu0 %v5666, 64
    %v5683 = vpop.permute.xlu0 %5682
    %5684 = vrot.lane.b32.xlu0 %v5667, 64
    %v5685 = vpop.permute.xlu0 %5684
    %5686 = vrot.lane.b32.xlu0 %v5668, 64
    %v5687 = vpop.permute.xlu0 %5686
    %5688 = vrot.lane.b32.xlu0 %v5669, 64
    %v5689 = vpop.permute.xlu0 %5688
    %5690 = vrot.lane.b32.xlu0 %v5670, 64
    %v5691 = vpop.permute.xlu0 %5690
    %5692 = vrot.lane.b32.xlu0 %v5671, 64
    %v5693 = vpop.permute.xlu0 %5692
    %5694 = vrot.lane.b32.xlu0 %v5672, 64
    %v5695 = vpop.permute.xlu0 %5694
    %5696 = vrot.lane.b32.xlu0 %v5673, 64
    %v5697 = vpop.permute.xlu0 %5696
    %5706 = vst.msk [vmem:[#allocation4] sm:$0xff] %vm1197, %v5683
    %5707 = vst.msk [vmem:[#allocation4 + $0x10] sm:$0xff] %vm1197, %v5685
    %5708 = vst.msk [vmem:[#allocation4 + $0x20] sm:$0xff] %vm1197, %v5687
    %5709 = vst.msk [vmem:[#allocation4 + $0x30] sm:$0xff] %vm1197, %v5689
    %5710 = vst.msk [vmem:[#allocation4 + $0x40] sm:$0xff] %vm1197, %v5691
    %5711 = vst.msk [vmem:[#allocation4 + $0x50] sm:$0xff] %vm1197, %v5693
    %5712 = vst.msk [vmem:[#allocation4 + $0x60] sm:$0xff] %vm1197, %v5695
    %5713 = vst.msk [vmem:[#allocation4 + $0x70] sm:$0xff] %vm1197, %v5697
    %v5714 = vld [vmem:[#allocation2 + $0x8] sm:$0xf0]
    %v5715 = vld [vmem:[#allocation2 + $0x10] sm:$0xff]
    %v5716 = vld [vmem:[#allocation2 + $0x18] sm:$0xff]
    %v5717 = vld [vmem:[#allocation2 + $0x20] sm:$0xff]
    %v5718 = vld [vmem:[#allocation2 + $0x28] sm:$0xff]
    %v5719 = vld [vmem:[#allocation2 + $0x30] sm:$0xff]
    %v5720 = vld [vmem:[#allocation2 + $0x38] sm:$0xff]
    %v5721 = vld [vmem:[#allocation2 + $0x40] sm:$0xff]
    %v5722 = vld [vmem:[#allocation2 + $0x48] sm:$0xf]
    %v5732 = vrot.slane %v5714, 4
    %v5733 = vrot.slane %v5715, 4
    %v5734 = vsel %vm1039, %v5732, %v5733
    %v5735 = vrot.slane %v5716, 4
    %v5736 = vsel %vm1039, %v5733, %v5735
    %v5737 = vrot.slane %v5717, 4
    %v5738 = vsel %vm1039, %v5735, %v5737
    %v5739 = vrot.slane %v5718, 4
    %v5740 = vsel %vm1039, %v5737, %v5739
    %v5741 = vrot.slane %v5719, 4
    %v5742 = vsel %vm1039, %v5739, %v5741
    %v5743 = vrot.slane %v5720, 4
    %v5744 = vsel %vm1039, %v5741, %v5743
    %v5745 = vrot.slane %v5721, 4
    %v5746 = vsel %vm1039, %v5743, %v5745
    %v5747 = vrot.slane %v5722, 4
    %v5748 = vsel %vm1039, %v5745, %v5747
    %5749 = vrot.lane.b32.xlu0 %v5734, 96
    %v5750 = vpop.permute.xlu0 %5749
    %5751 = vrot.lane.b32.xlu0 %v5736, 96
    %v5752 = vpop.permute.xlu0 %5751
    %5753 = vrot.lane.b32.xlu0 %v5738, 96
    %v5754 = vpop.permute.xlu0 %5753
    %5755 = vrot.lane.b32.xlu0 %v5740, 96
    %v5756 = vpop.permute.xlu0 %5755
    %5757 = vrot.lane.b32.xlu0 %v5742, 96
    %v5758 = vpop.permute.xlu0 %5757
    %5759 = vrot.lane.b32.xlu0 %v5744, 96
    %v5760 = vpop.permute.xlu0 %5759
    %5761 = vrot.lane.b32.xlu0 %v5746, 96
    %v5762 = vpop.permute.xlu0 %5761
    %5763 = vrot.lane.b32.xlu0 %v5748, 96
    %v5764 = vpop.permute.xlu0 %5763
    %5773 = vst.msk [vmem:[#allocation4] sm:$0xff] %vm1265, %v5750
    %5774 = vst.msk [vmem:[#allocation4 + $0x10] sm:$0xff] %vm1265, %v5752
    %5775 = vst.msk [vmem:[#allocation4 + $0x20] sm:$0xff] %vm1265, %v5754
    %5776 = vst.msk [vmem:[#allocation4 + $0x30] sm:$0xff] %vm1265, %v5756
    %5777 = vst.msk [vmem:[#allocation4 + $0x40] sm:$0xff] %vm1265, %v5758
    %5778 = vst.msk [vmem:[#allocation4 + $0x50] sm:$0xff] %vm1265, %v5760
    %5779 = vst.msk [vmem:[#allocation4 + $0x60] sm:$0xff] %vm1265, %v5762
    %5780 = vst.msk [vmem:[#allocation4 + $0x70] sm:$0xff] %vm1265, %v5764
    %v5781 = vld [vmem:[#allocation2 + $0x10] sm:$0xff]
    %v5782 = vld [vmem:[#allocation2 + $0x18] sm:$0xff]
    %v5783 = vld [vmem:[#allocation2 + $0x20] sm:$0xff]
    %v5784 = vld [vmem:[#allocation2 + $0x28] sm:$0xff]
    %v5785 = vld [vmem:[#allocation2 + $0x30] sm:$0xff]
    %v5786 = vld [vmem:[#allocation2 + $0x38] sm:$0xff]
    %v5787 = vld [vmem:[#allocation2 + $0x40] sm:$0xff]
    %v5788 = vld [vmem:[#allocation2 + $0x48] sm:$0xff]
    %5789 = vst.msk [vmem:[#allocation4 + $0x8] sm:$0xff] %vm1016, %v5781
    %5790 = vst.msk [vmem:[#allocation4 + $0x18] sm:$0xff] %vm1016, %v5782
    %5791 = vst.msk [vmem:[#allocation4 + $0x28] sm:$0xff] %vm1016, %v5783
    %5792 = vst.msk [vmem:[#allocation4 + $0x38] sm:$0xff] %vm1016, %v5784
    %5793 = vst.msk [vmem:[#allocation4 + $0x48] sm:$0xff] %vm1016, %v5785
    %5794 = vst.msk [vmem:[#allocation4 + $0x58] sm:$0xff] %vm1016, %v5786
    %5795 = vst.msk [vmem:[#allocation4 + $0x68] sm:$0xff] %vm1016, %v5787
    %5796 = vst.msk [vmem:[#allocation4 + $0x78] sm:$0xff] %vm1016, %v5788
    %v5797 = vld [vmem:[#allocation2 + $0x10] sm:$0xf0]
    %v5798 = vld [vmem:[#allocation2 + $0x18] sm:$0xff]
    %v5799 = vld [vmem:[#allocation2 + $0x20] sm:$0xff]
    %v5800 = vld [vmem:[#allocation2 + $0x28] sm:$0xff]
    %v5801 = vld [vmem:[#allocation2 + $0x30] sm:$0xff]
    %v5802 = vld [vmem:[#allocation2 + $0x38] sm:$0xff]
    %v5803 = vld [vmem:[#allocation2 + $0x40] sm:$0xff]
    %v5804 = vld [vmem:[#allocation2 + $0x48] sm:$0xff]
    %v5805 = vld [vmem:[#allocation2 + $0x50] sm:$0xf]
    %v5815 = vrot.slane %v5797, 4
    %v5816 = vrot.slane %v5798, 4
    %v5817 = vsel %vm1039, %v5815, %v5816
    %v5818 = vrot.slane %v5799, 4
    %v5819 = vsel %vm1039, %v5816, %v5818
    %v5820 = vrot.slane %v5800, 4
    %v5821 = vsel %vm1039, %v5818, %v5820
    %v5822 = vrot.slane %v5801, 4
    %v5823 = vsel %vm1039, %v5820, %v5822
    %v5824 = vrot.slane %v5802, 4
    %v5825 = vsel %vm1039, %v5822, %v5824
    %v5826 = vrot.slane %v5803, 4
    %v5827 = vsel %vm1039, %v5824, %v5826
    %v5828 = vrot.slane %v5804, 4
    %v5829 = vsel %vm1039, %v5826, %v5828
    %v5830 = vrot.slane %v5805, 4
    %v5831 = vsel %vm1039, %v5828, %v5830
    %5832 = vrot.lane.b32.xlu0 %v5817, 32
    %v5833 = vpop.permute.xlu0 %5832
    %5834 = vrot.lane.b32.xlu0 %v5819, 32
    %v5835 = vpop.permute.xlu0 %5834
    %5836 = vrot.lane.b32.xlu0 %v5821, 32
    %v5837 = vpop.permute.xlu0 %5836
    %5838 = vrot.lane.b32.xlu0 %v5823, 32
    %v5839 = vpop.permute.xlu0 %5838
    %5840 = vrot.lane.b32.xlu0 %v5825, 32
    %v5841 = vpop.permute.xlu0 %5840
    %5842 = vrot.lane.b32.xlu0 %v5827, 32
    %v5843 = vpop.permute.xlu0 %5842
    %5844 = vrot.lane.b32.xlu0 %v5829, 32
    %v5845 = vpop.permute.xlu0 %5844
    %5846 = vrot.lane.b32.xlu0 %v5831, 32
    %v5847 = vpop.permute.xlu0 %5846
    %5856 = vst.msk [vmem:[#allocation4 + $0x8] sm:$0xff] %vm1148, %v5833
    %5857 = vst.msk [vmem:[#allocation4 + $0x18] sm:$0xff] %vm1148, %v5835
    %5858 = vst.msk [vmem:[#allocation4 + $0x28] sm:$0xff] %vm1148, %v5837
    %5859 = vst.msk [vmem:[#allocation4 + $0x38] sm:$0xff] %vm1148, %v5839
    %5860 = vst.msk [vmem:[#allocation4 + $0x48] sm:$0xff] %vm1148, %v5841
    %5861 = vst.msk [vmem:[#allocation4 + $0x58] sm:$0xff] %vm1148, %v5843
    %5862 = vst.msk [vmem:[#allocation4 + $0x68] sm:$0xff] %vm1148, %v5845
    %5863 = vst.msk [vmem:[#allocation4 + $0x78] sm:$0xff] %vm1148, %v5847
    %v5864 = vld [vmem:[#allocation2 + $0x18] sm:$0xff]
    %v5865 = vld [vmem:[#allocation2 + $0x20] sm:$0xff]
    %v5866 = vld [vmem:[#allocation2 + $0x28] sm:$0xff]
    %v5867 = vld [vmem:[#allocation2 + $0x30] sm:$0xff]
    %v5868 = vld [vmem:[#allocation2 + $0x38] sm:$0xff]
    %v5869 = vld [vmem:[#allocation2 + $0x40] sm:$0xff]
    %v5870 = vld [vmem:[#allocation2 + $0x48] sm:$0xff]
    %v5871 = vld [vmem:[#allocation2 + $0x50] sm:$0xff]
    %5880 = vrot.lane.b32.xlu0 %v5864, 64
    %v5881 = vpop.permute.xlu0 %5880
    %5882 = vrot.lane.b32.xlu0 %v5865, 64
    %v5883 = vpop.permute.xlu0 %5882
    %5884 = vrot.lane.b32.xlu0 %v5866, 64
    %v5885 = vpop.permute.xlu0 %5884
    %5886 = vrot.lane.b32.xlu0 %v5867, 64
    %v5887 = vpop.permute.xlu0 %5886
    %5888 = vrot.lane.b32.xlu0 %v5868, 64
    %v5889 = vpop.permute.xlu0 %5888
    %5890 = vrot.lane.b32.xlu0 %v5869, 64
    %v5891 = vpop.permute.xlu0 %5890
    %5892 = vrot.lane.b32.xlu0 %v5870, 64
    %v5893 = vpop.permute.xlu0 %5892
    %5894 = vrot.lane.b32.xlu0 %v5871, 64
    %v5895 = vpop.permute.xlu0 %5894
    %5904 = vst.msk [vmem:[#allocation4 + $0x8] sm:$0xff] %vm1197, %v5881
    %5905 = vst.msk [vmem:[#allocation4 + $0x18] sm:$0xff] %vm1197, %v5883
    %5906 = vst.msk [vmem:[#allocation4 + $0x28] sm:$0xff] %vm1197, %v5885
    %5907 = vst.msk [vmem:[#allocation4 + $0x38] sm:$0xff] %vm1197, %v5887
    %5908 = vst.msk [vmem:[#allocation4 + $0x48] sm:$0xff] %vm1197, %v5889
    %5909 = vst.msk [vmem:[#allocation4 + $0x58] sm:$0xff] %vm1197, %v5891
    %5910 = vst.msk [vmem:[#allocation4 + $0x68] sm:$0xff] %vm1197, %v5893
    %5911 = vst.msk [vmem:[#allocation4 + $0x78] sm:$0xff] %vm1197, %v5895
    %v5912 = vld [vmem:[#allocation4] sm:$0xff]
    %v5913 = vld [vmem:[#allocation4 + $0x8] sm:$0xff]
    %v5914 = vld [vmem:[#allocation4 + $0x10] sm:$0xff]
    %v5915 = vld [vmem:[#allocation4 + $0x18] sm:$0xff]
    %v5916 = vld [vmem:[#allocation4 + $0x20] sm:$0xff]
    %v5917 = vld [vmem:[#allocation4 + $0x28] sm:$0xff]
    %v5918 = vld [vmem:[#allocation4 + $0x30] sm:$0xff]
    %v5919 = vld [vmem:[#allocation4 + $0x38] sm:$0xff]
    %v5920 = vld [vmem:[#allocation4 + $0x40] sm:$0xff]
    %v5921 = vld [vmem:[#allocation4 + $0x48] sm:$0xff]
    %v5922 = vld [vmem:[#allocation4 + $0x50] sm:$0xff]
    %v5923 = vld [vmem:[#allocation4 + $0x58] sm:$0xff]
    %v5924 = vld [vmem:[#allocation4 + $0x60] sm:$0xff]
    %v5925 = vld [vmem:[#allocation4 + $0x68] sm:$0xff]
    %v5926 = vld [vmem:[#allocation4 + $0x70] sm:$0xff]
    %v5927 = vld [vmem:[#allocation4 + $0x78] sm:$0xff]
    %s5928 = scalar_lea.vmem [#allocation14], 336
    %v5929 = vld [vmem:[%s5928] sm:$0xf]
    %v5930 = vld [vmem:[%s5928 + $0x4] sm:$0xf]
    %v5931 = vld [vmem:[%s5928 + $0x8] sm:$0xf]
    %v5932 = vld [vmem:[%s5928 + $0xc] sm:$0xf]
    %v5933 = vld [vmem:[%s5928 + $0x10] sm:$0xf]
    %v5934 = vld [vmem:[%s5928 + $0x14] sm:$0xf]
    %v5935 = vld [vmem:[%s5928 + $0x18] sm:$0xf]
    %v5936 = vld [vmem:[%s5928 + $0x1c] sm:$0xf]
    %v5937 = vld [vmem:[%s5928 + $0x20] sm:$0xf]
    %v5938 = vld [vmem:[%s5928 + $0x24] sm:$0xf]
    %v5939 = vld [vmem:[%s5928 + $0x28] sm:$0xf]
    %v5940 = vld [vmem:[%s5928 + $0x2c] sm:$0xf]
    %v5941 = vld [vmem:[%s5928 + $0x30] sm:$0xf]
    %v5942 = vld [vmem:[%s5928 + $0x34] sm:$0xf]
    %v5943 = vld [vmem:[%s5928 + $0x38] sm:$0xf]
    %v5944 = vld [vmem:[%s5928 + $0x3c] sm:$0xf]
    %v5945 = vld [vmem:[%s5928 + $0x40] sm:$0xf]
    %v5946 = vld [vmem:[%s5928 + $0x44] sm:$0xf]
    %v5947 = vld [vmem:[%s5928 + $0x48] sm:$0xf]
    %v5948 = vld [vmem:[%s5928 + $0x4c] sm:$0xf]
    %v5949 = vld [vmem:[%s5928 + $0x50] sm:$0xf]
    %v5950 = vld [vmem:[%s5928 + $0x54] sm:$0xf]
    %v5951 = vld [vmem:[%s5928 + $0x58] sm:$0xf]
    %v5952 = vld [vmem:[%s5928 + $0x5c] sm:$0xf]
    %v5953 = vld [vmem:[%s5928 + $0x60] sm:$0xf]
    %v5954 = vld [vmem:[%s5928 + $0x64] sm:$0xf]
    %v5955 = vld [vmem:[%s5928 + $0x68] sm:$0xf]
    %v5956 = vld [vmem:[%s5928 + $0x6c] sm:$0xf]
    %v5985 = vunpack.c.l.b16 %v5929
    %v5986 = vunpack.c.l.b16 %v5930
    %v5987 = vunpack.c.l.b16 %v5931
    %v5988 = vunpack.c.l.b16 %v5932
    %v5989 = vunpack.c.l.b16 %v5933
    %v5990 = vunpack.c.l.b16 %v5934
    %v5991 = vunpack.c.l.b16 %v5935
    %v5992 = vunpack.c.l.b16 %v5936
    %v5993 = vunpack.c.l.b16 %v5937
    %v5994 = vunpack.c.l.b16 %v5938
    %v5995 = vunpack.c.l.b16 %v5939
    %v5996 = vunpack.c.l.b16 %v5940
    %v5997 = vunpack.c.l.b16 %v5941
    %v5998 = vunpack.c.l.b16 %v5942
    %v5999 = vunpack.c.l.b16 %v5943
    %v6000 = vunpack.c.l.b16 %v5944
    %v6001 = vunpack.c.l.b16 %v5945
    %v6002 = vunpack.c.l.b16 %v5946
    %v6003 = vunpack.c.l.b16 %v5947
    %v6004 = vunpack.c.l.b16 %v5948
    %v6005 = vunpack.c.l.b16 %v5949
    %v6006 = vunpack.c.l.b16 %v5950
    %v6007 = vunpack.c.l.b16 %v5951
    %v6008 = vunpack.c.l.b16 %v5952
    %v6009 = vunpack.c.l.b16 %v5953
    %v6010 = vunpack.c.l.b16 %v5954
    %v6011 = vunpack.c.l.b16 %v5955
    %v6012 = vunpack.c.l.b16 %v5956
    %v6013 = vpack.c.b16 %v5986, %v5985
    %v6014 = vpack.c.b16 %v5988, %v5987
    %v6015 = vpack.c.b16 %v5990, %v5989
    %v6016 = vpack.c.b16 %v5992, %v5991
    %v6017 = vpack.c.b16 %v5994, %v5993
    %v6018 = vpack.c.b16 %v5996, %v5995
    %v6019 = vpack.c.b16 %v5998, %v5997
    %v6020 = vpack.c.b16 %v6000, %v5999
    %v6021 = vpack.c.b16 %v6002, %v6001
    %v6022 = vpack.c.b16 %v6004, %v6003
    %v6023 = vpack.c.b16 %v6006, %v6005
    %v6024 = vpack.c.b16 %v6008, %v6007
    %v6025 = vpack.c.b16 %v6010, %v6009
    %v6026 = vpack.c.b16 %v6012, %v6011
    %v6042 = vsel %vm1533, %v5913, 0
    %v6045 = vsel %vm1533, %v5915, 0
    %v6048 = vsel %vm1533, %v5917, 0
    %v6051 = vsel %vm1533, %v5919, 0
    %v6054 = vsel %vm1533, %v5921, 0
    %v6057 = vsel %vm1533, %v5923, 0
    %v6060 = vsel %vm1533, %v5925, 0
    %v6063 = vsel %vm1533, %v5927, 0
    %6065 = vmatprep.subr.bf16.mxu0 0
    %6066 = vmatpush1.bf16.msra.mxu0 %v6013
    %6067 = vmatprep.subr.bf16.mxu0 0
    %6068 = vmatpush1.bf16.msra.mxu0 %v6014
    %6069 = vmatprep.subr.bf16.mxu0 0
    %6070 = vmatpush1.bf16.msra.mxu0 %v6015
    %6071 = vmatprep.subr.bf16.mxu0 0
    %6072 = vmatpush1.bf16.msra.mxu0 %v6016
    %6073 = vmatprep.subr.bf16.mxu0 0
    %6074 = vmatpush1.bf16.msra.mxu0 %v6017
    %6075 = vmatprep.subr.bf16.mxu0 0
    %6076 = vmatpush1.bf16.msra.mxu0 %v6018
    %6077 = vmatprep.subr.bf16.mxu0 0
    %6078 = vmatpush1.bf16.msra.mxu0 %v6019
    %6079 = vmatprep.subr.bf16.mxu0 0
    %6080 = vmatpush1.bf16.msra.mxu0 %v6020
    %6081 = vmatprep.subr.bf16.mxu0 0
    %6082 = vmatpush1.bf16.msra.mxu0 %v6021
    %6083 = vmatprep.subr.bf16.mxu0 0
    %6084 = vmatpush1.bf16.msra.mxu0 %v6022
    %6085 = vmatprep.subr.bf16.mxu0 0
    %6086 = vmatpush1.bf16.msra.mxu0 %v6023
    %6087 = vmatprep.subr.bf16.mxu0 0
    %6088 = vmatpush1.bf16.msra.mxu0 %v6024
    %6089 = vmatprep.subr.bf16.mxu0 0
    %6090 = vmatpush1.bf16.msra.mxu0 %v6025
    %6091 = vmatprep.subr.bf16.mxu0 0
    %6092 = vmatpush1.bf16.msra.mxu0 %v6026
    %6093 = vmatprep.subr.bf16.mxu0 0
    %6094 = vmatpush1.bf16.msra.mxu0 0
    %6095 = vmatprep.subr.bf16.mxu0 0
    %6096 = vmatpush1.bf16.msra.mxu0 0
    %6097 = vmatprep.mubr.bf16.mxu0 %v6042
    %6098 = vmatmul.mubr.bf16.gmra.mrb[0].mxu0 %v5912
    %v6099 = vpop.f32.mrb[0].mxu0
    %v6100 = vadd.f32 0.0, %v6099
    %v6101 = vpop.f32.mrb[0].mxu0
    %v6102 = vpop.f32.mrb[0].mxu0
    %v6103 = vadd.f32 0.0, %v6102
    %v6104 = vpop.f32.mrb[0].mxu0
    %6105 = vmatprep.mubr.bf16.mxu0 %v6045
    %6106 = vmatmul.mubr.bf16.gmra.mrb[0].mxu0 %v5914
    %v6107 = vpop.f32.mrb[0].mxu0
    %v6108 = vadd.f32 0.0, %v6107
    %v6109 = vpop.f32.mrb[0].mxu0
    %v6110 = vpop.f32.mrb[0].mxu0
    %v6111 = vadd.f32 0.0, %v6110
    %v6112 = vpop.f32.mrb[0].mxu0
    %6113 = vmatprep.mubr.bf16.mxu0 %v6048
    %6114 = vmatmul.mubr.bf16.gmra.mrb[0].mxu0 %v5916
    %v6115 = vpop.f32.mrb[0].mxu0
    %v6116 = vadd.f32 0.0, %v6115
    %v6117 = vpop.f32.mrb[0].mxu0
    %v6118 = vpop.f32.mrb[0].mxu0
    %v6119 = vadd.f32 0.0, %v6118
    %v6120 = vpop.f32.mrb[0].mxu0
    %6121 = vmatprep.mubr.bf16.mxu0 %v6051
    %6122 = vmatmul.mubr.bf16.gmra.mrb[0].mxu0 %v5918
    %v6123 = vpop.f32.mrb[0].mxu0
    %v6124 = vadd.f32 0.0, %v6123
    %v6125 = vpop.f32.mrb[0].mxu0
    %v6126 = vpop.f32.mrb[0].mxu0
    %v6127 = vadd.f32 0.0, %v6126
    %v6128 = vpop.f32.mrb[0].mxu0
    %6129 = vmatprep.mubr.bf16.mxu0 %v6054
    %6130 = vmatmul.mubr.bf16.gmra.mrb[0].mxu0 %v5920
    %v6131 = vpop.f32.mrb[0].mxu0
    %v6132 = vadd.f32 0.0, %v6131
    %v6133 = vpop.f32.mrb[0].mxu0
    %v6134 = vpop.f32.mrb[0].mxu0
    %v6135 = vadd.f32 0.0, %v6134
    %v6136 = vpop.f32.mrb[0].mxu0
    %6137 = vmatprep.mubr.bf16.mxu0 %v6057
    %6138 = vmatmul.mubr.bf16.gmra.mrb[0].mxu0 %v5922
    %v6139 = vpop.f32.mrb[0].mxu0
    %v6140 = vadd.f32 0.0, %v6139
    %v6141 = vpop.f32.mrb[0].mxu0
    %v6142 = vpop.f32.mrb[0].mxu0
    %v6143 = vadd.f32 0.0, %v6142
    %v6144 = vpop.f32.mrb[0].mxu0
    %6145 = vmatprep.mubr.bf16.mxu0 %v6060
    %6146 = vmatmul.mubr.bf16.gmra.mrb[0].mxu0 %v5924
    %v6147 = vpop.f32.mrb[0].mxu0
    %v6148 = vadd.f32 0.0, %v6147
    %v6149 = vpop.f32.mrb[0].mxu0
    %v6150 = vpop.f32.mrb[0].mxu0
    %v6151 = vadd.f32 0.0, %v6150
    %v6152 = vpop.f32.mrb[0].mxu0
    %6153 = vmatprep.mubr.bf16.mxu0 %v6063
    %6154 = vmatmul.mubr.bf16.gmra.mrb[0].mxu0 %v5926
    %v6155 = vpop.f32.mrb[0].mxu0
    %v6156 = vadd.f32 0.0, %v6155
    %v6157 = vpop.f32.mrb[0].mxu0
    %v6158 = vpop.f32.mrb[0].mxu0
    %v6159 = vadd.f32 0.0, %v6158
    %v6160 = vpop.f32.mrb[0].mxu0
    %6161 = vdwg.mxu0
    %s6162 = scalar_lea.vmem [#allocation15], 3
    %v6163 = vld [vmem:[%s6162] sm:$0x1]
    %v6165 = vlaneseq
    %v6166 = vshrl.u32 %v6165, 7
    %v6167 = vsub.s32 0, %v6166
    %v6168 = vrot.slane %v6163, %v6167
    %v6170 = vmul.f32 %v6100, %v6168
    %v6171 = vmul.f32 %v6103, %v6168
    %v6172 = vmul.f32 %v6108, %v6168
    %v6173 = vmul.f32 %v6111, %v6168
    %v6174 = vmul.f32 %v6116, %v6168
    %v6175 = vmul.f32 %v6119, %v6168
    %v6176 = vmul.f32 %v6124, %v6168
    %v6177 = vmul.f32 %v6127, %v6168
    %v6178 = vmul.f32 %v6132, %v6168
    %v6179 = vmul.f32 %v6135, %v6168
    %v6180 = vmul.f32 %v6140, %v6168
    %v6181 = vmul.f32 %v6143, %v6168
    %v6182 = vmul.f32 %v6148, %v6168
    %v6183 = vmul.f32 %v6151, %v6168
    %v6184 = vmul.f32 %v6156, %v6168
    %v6185 = vmul.f32 %v6159, %v6168
    %s6186 = scalar_lea.vmem [#allocation17], 3
    %v6187 = vld [vmem:[%s6186] sm:$0x1]
    %v6189 = vlaneseq
    %v6190 = vshrl.u32 %v6189, 7
    %v6191 = vsub.s32 0, %v6190
    %v6192 = vrot.slane %v6187, %v6191
    %v6194 = vadd.f32 %v6170, %v6192
    %v6195 = vadd.f32 %v6171, %v6192
    %v6196 = vadd.f32 %v6172, %v6192
    %v6197 = vadd.f32 %v6173, %v6192
    %v6198 = vadd.f32 %v6174, %v6192
    %v6199 = vadd.f32 %v6175, %v6192
    %v6200 = vadd.f32 %v6176, %v6192
    %v6201 = vadd.f32 %v6177, %v6192
    %v6202 = vadd.f32 %v6178, %v6192
    %v6203 = vadd.f32 %v6179, %v6192
    %v6204 = vadd.f32 %v6180, %v6192
    %v6205 = vadd.f32 %v6181, %v6192
    %v6206 = vadd.f32 %v6182, %v6192
    %v6207 = vadd.f32 %v6183, %v6192
    %v6208 = vadd.f32 %v6184, %v6192
    %v6209 = vadd.f32 %v6185, %v6192
    %v6210 = vmax.f32 %v6194, 0.0
    %v6211 = vmax.f32 %v6195, 0.0
    %v6212 = vmax.f32 %v6196, 0.0
    %v6213 = vmax.f32 %v6197, 0.0
    %v6214 = vmax.f32 %v6198, 0.0
    %v6215 = vmax.f32 %v6199, 0.0
    %v6216 = vmax.f32 %v6200, 0.0
    %v6217 = vmax.f32 %v6201, 0.0
    %v6218 = vmax.f32 %v6202, 0.0
    %v6219 = vmax.f32 %v6203, 0.0
    %v6220 = vmax.f32 %v6204, 0.0
    %v6221 = vmax.f32 %v6205, 0.0
    %v6222 = vmax.f32 %v6206, 0.0
    %v6223 = vmax.f32 %v6207, 0.0
    %v6224 = vmax.f32 %v6208, 0.0
    %v6225 = vmax.f32 %v6209, 0.0
    %v6226 = vpack.c.bf16 %v6211, %v6210
    %v6227 = vpack.c.bf16 %v6213, %v6212
    %v6228 = vpack.c.bf16 %v6215, %v6214
    %v6229 = vpack.c.bf16 %v6217, %v6216
    %v6230 = vpack.c.bf16 %v6219, %v6218
    %v6231 = vpack.c.bf16 %v6221, %v6220
    %v6232 = vpack.c.bf16 %v6223, %v6222
    %v6233 = vpack.c.bf16 %v6225, %v6224
    %v6242 = vrot.slane %v6226, 4
    %v6243 = vrot.slane %v6227, 4
    %v6244 = vsel %vm1039, %v6242, %v6243
    %v6245 = vrot.slane %v6228, 4
    %v6246 = vsel %vm1039, %v6243, %v6245
    %v6247 = vrot.slane %v6229, 4
    %v6248 = vsel %vm1039, %v6245, %v6247
    %v6249 = vrot.slane %v6230, 4
    %v6250 = vsel %vm1039, %v6247, %v6249
    %v6251 = vrot.slane %v6231, 4
    %v6252 = vsel %vm1039, %v6249, %v6251
    %v6253 = vrot.slane %v6232, 4
    %v6254 = vsel %vm1039, %v6251, %v6253
    %v6255 = vrot.slane %v6233, 4
    %v6256 = vsel %vm1039, %v6253, %v6255
    %6266 = vst.msk [vmem:[#allocation2 + $0x8] sm:$0xf0] %vm1020, %v6242
    %6267 = vst.msk [vmem:[#allocation2 + $0x10] sm:$0xff] %vm1016, %v6244
    %6268 = vst.msk [vmem:[#allocation2 + $0x18] sm:$0xff] %vm1016, %v6246
    %6269 = vst.msk [vmem:[#allocation2 + $0x20] sm:$0xff] %vm1016, %v6248
    %6270 = vst.msk [vmem:[#allocation2 + $0x28] sm:$0xff] %vm1016, %v6250
    %6271 = vst.msk [vmem:[#allocation2 + $0x30] sm:$0xff] %vm1016, %v6252
    %6272 = vst.msk [vmem:[#allocation2 + $0x38] sm:$0xff] %vm1016, %v6254
    %6273 = vst.msk [vmem:[#allocation2 + $0x40] sm:$0xff] %vm1016, %v6256
    %6274 = vst.msk [vmem:[#allocation2 + $0x48] sm:$0xf] %vm1018, %v6255
    %v6275 = vld [vmem:[#allocation2] sm:$0xff]
    %v6276 = vld [vmem:[#allocation2 + $0x8] sm:$0xff]
    %v6277 = vld [vmem:[#allocation2 + $0x10] sm:$0xff]
    %v6278 = vld [vmem:[#allocation2 + $0x18] sm:$0xff]
    %v6279 = vld [vmem:[#allocation2 + $0x20] sm:$0xff]
    %v6280 = vld [vmem:[#allocation2 + $0x28] sm:$0xff]
    %v6281 = vld [vmem:[#allocation2 + $0x30] sm:$0xff]
    %v6282 = vld [vmem:[#allocation2 + $0x38] sm:$0xff]
    %6283 = vst.msk [vmem:[#allocation4] sm:$0xff] %vm1016, %v6275
    %6284 = vst.msk [vmem:[#allocation4 + $0x10] sm:$0xff] %vm1016, %v6276
    %6285 = vst.msk [vmem:[#allocation4 + $0x20] sm:$0xff] %vm1016, %v6277
    %6286 = vst.msk [vmem:[#allocation4 + $0x30] sm:$0xff] %vm1016, %v6278
    %6287 = vst.msk [vmem:[#allocation4 + $0x40] sm:$0xff] %vm1016, %v6279
    %6288 = vst.msk [vmem:[#allocation4 + $0x50] sm:$0xff] %vm1016, %v6280
    %6289 = vst.msk [vmem:[#allocation4 + $0x60] sm:$0xff] %vm1016, %v6281
    %6290 = vst.msk [vmem:[#allocation4 + $0x70] sm:$0xff] %vm1016, %v6282
    %v6291 = vld [vmem:[#allocation2] sm:$0xf0]
    %v6292 = vld [vmem:[#allocation2 + $0x8] sm:$0xff]
    %v6293 = vld [vmem:[#allocation2 + $0x10] sm:$0xff]
    %v6294 = vld [vmem:[#allocation2 + $0x18] sm:$0xff]
    %v6295 = vld [vmem:[#allocation2 + $0x20] sm:$0xff]
    %v6296 = vld [vmem:[#allocation2 + $0x28] sm:$0xff]
    %v6297 = vld [vmem:[#allocation2 + $0x30] sm:$0xff]
    %v6298 = vld [vmem:[#allocation2 + $0x38] sm:$0xff]
    %v6299 = vld [vmem:[#allocation2 + $0x40] sm:$0xf]
    %v6309 = vrot.slane %v6291, 4
    %v6310 = vrot.slane %v6292, 4
    %v6311 = vsel %vm1039, %v6309, %v6310
    %v6312 = vrot.slane %v6293, 4
    %v6313 = vsel %vm1039, %v6310, %v6312
    %v6314 = vrot.slane %v6294, 4
    %v6315 = vsel %vm1039, %v6312, %v6314
    %v6316 = vrot.slane %v6295, 4
    %v6317 = vsel %vm1039, %v6314, %v6316
    %v6318 = vrot.slane %v6296, 4
    %v6319 = vsel %vm1039, %v6316, %v6318
    %v6320 = vrot.slane %v6297, 4
    %v6321 = vsel %vm1039, %v6318, %v6320
    %v6322 = vrot.slane %v6298, 4
    %v6323 = vsel %vm1039, %v6320, %v6322
    %v6324 = vrot.slane %v6299, 4
    %v6325 = vsel %vm1039, %v6322, %v6324
    %6326 = vrot.lane.b32.xlu0 %v6311, 32
    %v6327 = vpop.permute.xlu0 %6326
    %6328 = vrot.lane.b32.xlu0 %v6313, 32
    %v6329 = vpop.permute.xlu0 %6328
    %6330 = vrot.lane.b32.xlu0 %v6315, 32
    %v6331 = vpop.permute.xlu0 %6330
    %6332 = vrot.lane.b32.xlu0 %v6317, 32
    %v6333 = vpop.permute.xlu0 %6332
    %6334 = vrot.lane.b32.xlu0 %v6319, 32
    %v6335 = vpop.permute.xlu0 %6334
    %6336 = vrot.lane.b32.xlu0 %v6321, 32
    %v6337 = vpop.permute.xlu0 %6336
    %6338 = vrot.lane.b32.xlu0 %v6323, 32
    %v6339 = vpop.permute.xlu0 %6338
    %6340 = vrot.lane.b32.xlu0 %v6325, 32
    %v6341 = vpop.permute.xlu0 %6340
    %6350 = vst.msk [vmem:[#allocation4] sm:$0xff] %vm1148, %v6327
    %6351 = vst.msk [vmem:[#allocation4 + $0x10] sm:$0xff] %vm1148, %v6329
    %6352 = vst.msk [vmem:[#allocation4 + $0x20] sm:$0xff] %vm1148, %v6331
    %6353 = vst.msk [vmem:[#allocation4 + $0x30] sm:$0xff] %vm1148, %v6333
    %6354 = vst.msk [vmem:[#allocation4 + $0x40] sm:$0xff] %vm1148, %v6335
    %6355 = vst.msk [vmem:[#allocation4 + $0x50] sm:$0xff] %vm1148, %v6337
    %6356 = vst.msk [vmem:[#allocation4 + $0x60] sm:$0xff] %vm1148, %v6339
    %6357 = vst.msk [vmem:[#allocation4 + $0x70] sm:$0xff] %vm1148, %v6341
    %v6358 = vld [vmem:[#allocation2 + $0x8] sm:$0xff]
    %v6359 = vld [vmem:[#allocation2 + $0x10] sm:$0xff]
    %v6360 = vld [vmem:[#allocation2 + $0x18] sm:$0xff]
    %v6361 = vld [vmem:[#allocation2 + $0x20] sm:$0xff]
    %v6362 = vld [vmem:[#allocation2 + $0x28] sm:$0xff]
    %v6363 = vld [vmem:[#allocation2 + $0x30] sm:$0xff]
    %v6364 = vld [vmem:[#allocation2 + $0x38] sm:$0xff]
    %v6365 = vld [vmem:[#allocation2 + $0x40] sm:$0xff]
    %6374 = vrot.lane.b32.xlu0 %v6358, 64
    %v6375 = vpop.permute.xlu0 %6374
    %6376 = vrot.lane.b32.xlu0 %v6359, 64
    %v6377 = vpop.permute.xlu0 %6376
    %6378 = vrot.lane.b32.xlu0 %v6360, 64
    %v6379 = vpop.permute.xlu0 %6378
    %6380 = vrot.lane.b32.xlu0 %v6361, 64
    %v6381 = vpop.permute.xlu0 %6380
    %6382 = vrot.lane.b32.xlu0 %v6362, 64
    %v6383 = vpop.permute.xlu0 %6382
    %6384 = vrot.lane.b32.xlu0 %v6363, 64
    %v6385 = vpop.permute.xlu0 %6384
    %6386 = vrot.lane.b32.xlu0 %v6364, 64
    %v6387 = vpop.permute.xlu0 %6386
    %6388 = vrot.lane.b32.xlu0 %v6365, 64
    %v6389 = vpop.permute.xlu0 %6388
    %6398 = vst.msk [vmem:[#allocation4] sm:$0xff] %vm1197, %v6375
    %6399 = vst.msk [vmem:[#allocation4 + $0x10] sm:$0xff] %vm1197, %v6377
    %6400 = vst.msk [vmem:[#allocation4 + $0x20] sm:$0xff] %vm1197, %v6379
    %6401 = vst.msk [vmem:[#allocation4 + $0x30] sm:$0xff] %vm1197, %v6381
    %6402 = vst.msk [vmem:[#allocation4 + $0x40] sm:$0xff] %vm1197, %v6383
    %6403 = vst.msk [vmem:[#allocation4 + $0x50] sm:$0xff] %vm1197, %v6385
    %6404 = vst.msk [vmem:[#allocation4 + $0x60] sm:$0xff] %vm1197, %v6387
    %6405 = vst.msk [vmem:[#allocation4 + $0x70] sm:$0xff] %vm1197, %v6389
    %v6406 = vld [vmem:[#allocation2 + $0x8] sm:$0xf0]
    %v6407 = vld [vmem:[#allocation2 + $0x10] sm:$0xff]
    %v6408 = vld [vmem:[#allocation2 + $0x18] sm:$0xff]
    %v6409 = vld [vmem:[#allocation2 + $0x20] sm:$0xff]
    %v6410 = vld [vmem:[#allocation2 + $0x28] sm:$0xff]
    %v6411 = vld [vmem:[#allocation2 + $0x30] sm:$0xff]
    %v6412 = vld [vmem:[#allocation2 + $0x38] sm:$0xff]
    %v6413 = vld [vmem:[#allocation2 + $0x40] sm:$0xff]
    %v6414 = vld [vmem:[#allocation2 + $0x48] sm:$0xf]
    %v6424 = vrot.slane %v6406, 4
    %v6425 = vrot.slane %v6407, 4
    %v6426 = vsel %vm1039, %v6424, %v6425
    %v6427 = vrot.slane %v6408, 4
    %v6428 = vsel %vm1039, %v6425, %v6427
    %v6429 = vrot.slane %v6409, 4
    %v6430 = vsel %vm1039, %v6427, %v6429
    %v6431 = vrot.slane %v6410, 4
    %v6432 = vsel %vm1039, %v6429, %v6431
    %v6433 = vrot.slane %v6411, 4
    %v6434 = vsel %vm1039, %v6431, %v6433
    %v6435 = vrot.slane %v6412, 4
    %v6436 = vsel %vm1039, %v6433, %v6435
    %v6437 = vrot.slane %v6413, 4
    %v6438 = vsel %vm1039, %v6435, %v6437
    %v6439 = vrot.slane %v6414, 4
    %v6440 = vsel %vm1039, %v6437, %v6439
    %6441 = vrot.lane.b32.xlu0 %v6426, 96
    %v6442 = vpop.permute.xlu0 %6441
    %6443 = vrot.lane.b32.xlu0 %v6428, 96
    %v6444 = vpop.permute.xlu0 %6443
    %6445 = vrot.lane.b32.xlu0 %v6430, 96
    %v6446 = vpop.permute.xlu0 %6445
    %6447 = vrot.lane.b32.xlu0 %v6432, 96
    %v6448 = vpop.permute.xlu0 %6447
    %6449 = vrot.lane.b32.xlu0 %v6434, 96
    %v6450 = vpop.permute.xlu0 %6449
    %6451 = vrot.lane.b32.xlu0 %v6436, 96
    %v6452 = vpop.permute.xlu0 %6451
    %6453 = vrot.lane.b32.xlu0 %v6438, 96
    %v6454 = vpop.permute.xlu0 %6453
    %6455 = vrot.lane.b32.xlu0 %v6440, 96
    %v6456 = vpop.permute.xlu0 %6455
    %6465 = vst.msk [vmem:[#allocation4] sm:$0xff] %vm1265, %v6442
    %6466 = vst.msk [vmem:[#allocation4 + $0x10] sm:$0xff] %vm1265, %v6444
    %6467 = vst.msk [vmem:[#allocation4 + $0x20] sm:$0xff] %vm1265, %v6446
    %6468 = vst.msk [vmem:[#allocation4 + $0x30] sm:$0xff] %vm1265, %v6448
    %6469 = vst.msk [vmem:[#allocation4 + $0x40] sm:$0xff] %vm1265, %v6450
    %6470 = vst.msk [vmem:[#allocation4 + $0x50] sm:$0xff] %vm1265, %v6452
    %6471 = vst.msk [vmem:[#allocation4 + $0x60] sm:$0xff] %vm1265, %v6454
    %6472 = vst.msk [vmem:[#allocation4 + $0x70] sm:$0xff] %vm1265, %v6456
    %v6473 = vld [vmem:[#allocation2 + $0x10] sm:$0xff]
    %v6474 = vld [vmem:[#allocation2 + $0x18] sm:$0xff]
    %v6475 = vld [vmem:[#allocation2 + $0x20] sm:$0xff]
    %v6476 = vld [vmem:[#allocation2 + $0x28] sm:$0xff]
    %v6477 = vld [vmem:[#allocation2 + $0x30] sm:$0xff]
    %v6478 = vld [vmem:[#allocation2 + $0x38] sm:$0xff]
    %v6479 = vld [vmem:[#allocation2 + $0x40] sm:$0xff]
    %v6480 = vld [vmem:[#allocation2 + $0x48] sm:$0xff]
    %6481 = vst.msk [vmem:[#allocation4 + $0x8] sm:$0xff] %vm1016, %v6473
    %6482 = vst.msk [vmem:[#allocation4 + $0x18] sm:$0xff] %vm1016, %v6474
    %6483 = vst.msk [vmem:[#allocation4 + $0x28] sm:$0xff] %vm1016, %v6475
    %6484 = vst.msk [vmem:[#allocation4 + $0x38] sm:$0xff] %vm1016, %v6476
    %6485 = vst.msk [vmem:[#allocation4 + $0x48] sm:$0xff] %vm1016, %v6477
    %6486 = vst.msk [vmem:[#allocation4 + $0x58] sm:$0xff] %vm1016, %v6478
    %6487 = vst.msk [vmem:[#allocation4 + $0x68] sm:$0xff] %vm1016, %v6479
    %6488 = vst.msk [vmem:[#allocation4 + $0x78] sm:$0xff] %vm1016, %v6480
    %v6489 = vld [vmem:[#allocation2 + $0x10] sm:$0xf0]
    %v6490 = vld [vmem:[#allocation2 + $0x18] sm:$0xff]
    %v6491 = vld [vmem:[#allocation2 + $0x20] sm:$0xff]
    %v6492 = vld [vmem:[#allocation2 + $0x28] sm:$0xff]
    %v6493 = vld [vmem:[#allocation2 + $0x30] sm:$0xff]
    %v6494 = vld [vmem:[#allocation2 + $0x38] sm:$0xff]
    %v6495 = vld [vmem:[#allocation2 + $0x40] sm:$0xff]
    %v6496 = vld [vmem:[#allocation2 + $0x48] sm:$0xff]
    %v6497 = vld [vmem:[#allocation2 + $0x50] sm:$0xf]
    %v6507 = vrot.slane %v6489, 4
    %v6508 = vrot.slane %v6490, 4
    %v6509 = vsel %vm1039, %v6507, %v6508
    %v6510 = vrot.slane %v6491, 4
    %v6511 = vsel %vm1039, %v6508, %v6510
    %v6512 = vrot.slane %v6492, 4
    %v6513 = vsel %vm1039, %v6510, %v6512
    %v6514 = vrot.slane %v6493, 4
    %v6515 = vsel %vm1039, %v6512, %v6514
    %v6516 = vrot.slane %v6494, 4
    %v6517 = vsel %vm1039, %v6514, %v6516
    %v6518 = vrot.slane %v6495, 4
    %v6519 = vsel %vm1039, %v6516, %v6518
    %v6520 = vrot.slane %v6496, 4
    %v6521 = vsel %vm1039, %v6518, %v6520
    %v6522 = vrot.slane %v6497, 4
    %v6523 = vsel %vm1039, %v6520, %v6522
    %6524 = vrot.lane.b32.xlu0 %v6509, 32
    %v6525 = vpop.permute.xlu0 %6524
    %6526 = vrot.lane.b32.xlu0 %v6511, 32
    %v6527 = vpop.permute.xlu0 %6526
    %6528 = vrot.lane.b32.xlu0 %v6513, 32
    %v6529 = vpop.permute.xlu0 %6528
    %6530 = vrot.lane.b32.xlu0 %v6515, 32
    %v6531 = vpop.permute.xlu0 %6530
    %6532 = vrot.lane.b32.xlu0 %v6517, 32
    %v6533 = vpop.permute.xlu0 %6532
    %6534 = vrot.lane.b32.xlu0 %v6519, 32
    %v6535 = vpop.permute.xlu0 %6534
    %6536 = vrot.lane.b32.xlu0 %v6521, 32
    %v6537 = vpop.permute.xlu0 %6536
    %6538 = vrot.lane.b32.xlu0 %v6523, 32
    %v6539 = vpop.permute.xlu0 %6538
    %6548 = vst.msk [vmem:[#allocation4 + $0x8] sm:$0xff] %vm1148, %v6525
    %6549 = vst.msk [vmem:[#allocation4 + $0x18] sm:$0xff] %vm1148, %v6527
    %6550 = vst.msk [vmem:[#allocation4 + $0x28] sm:$0xff] %vm1148, %v6529
    %6551 = vst.msk [vmem:[#allocation4 + $0x38] sm:$0xff] %vm1148, %v6531
    %6552 = vst.msk [vmem:[#allocation4 + $0x48] sm:$0xff] %vm1148, %v6533
    %6553 = vst.msk [vmem:[#allocation4 + $0x58] sm:$0xff] %vm1148, %v6535
    %6554 = vst.msk [vmem:[#allocation4 + $0x68] sm:$0xff] %vm1148, %v6537
    %6555 = vst.msk [vmem:[#allocation4 + $0x78] sm:$0xff] %vm1148, %v6539
    %v6556 = vld [vmem:[#allocation2 + $0x18] sm:$0xff]
    %v6557 = vld [vmem:[#allocation2 + $0x20] sm:$0xff]
    %v6558 = vld [vmem:[#allocation2 + $0x28] sm:$0xff]
    %v6559 = vld [vmem:[#allocation2 + $0x30] sm:$0xff]
    %v6560 = vld [vmem:[#allocation2 + $0x38] sm:$0xff]
    %v6561 = vld [vmem:[#allocation2 + $0x40] sm:$0xff]
    %v6562 = vld [vmem:[#allocation2 + $0x48] sm:$0xff]
    %v6563 = vld [vmem:[#allocation2 + $0x50] sm:$0xff]
    %6572 = vrot.lane.b32.xlu0 %v6556, 64
    %v6573 = vpop.permute.xlu0 %6572
    %6574 = vrot.lane.b32.xlu0 %v6557, 64
    %v6575 = vpop.permute.xlu0 %6574
    %6576 = vrot.lane.b32.xlu0 %v6558, 64
    %v6577 = vpop.permute.xlu0 %6576
    %6578 = vrot.lane.b32.xlu0 %v6559, 64
    %v6579 = vpop.permute.xlu0 %6578
    %6580 = vrot.lane.b32.xlu0 %v6560, 64
    %v6581 = vpop.permute.xlu0 %6580
    %6582 = vrot.lane.b32.xlu0 %v6561, 64
    %v6583 = vpop.permute.xlu0 %6582
    %6584 = vrot.lane.b32.xlu0 %v6562, 64
    %v6585 = vpop.permute.xlu0 %6584
    %6586 = vrot.lane.b32.xlu0 %v6563, 64
    %v6587 = vpop.permute.xlu0 %6586
    %6596 = vst.msk [vmem:[#allocation4 + $0x8] sm:$0xff] %vm1197, %v6573
    %6597 = vst.msk [vmem:[#allocation4 + $0x18] sm:$0xff] %vm1197, %v6575
    %6598 = vst.msk [vmem:[#allocation4 + $0x28] sm:$0xff] %vm1197, %v6577
    %6599 = vst.msk [vmem:[#allocation4 + $0x38] sm:$0xff] %vm1197, %v6579
    %6600 = vst.msk [vmem:[#allocation4 + $0x48] sm:$0xff] %vm1197, %v6581
    %6601 = vst.msk [vmem:[#allocation4 + $0x58] sm:$0xff] %vm1197, %v6583
    %6602 = vst.msk [vmem:[#allocation4 + $0x68] sm:$0xff] %vm1197, %v6585
    %6603 = vst.msk [vmem:[#allocation4 + $0x78] sm:$0xff] %vm1197, %v6587
    %v6604 = vld [vmem:[#allocation4] sm:$0xff]
    %v6605 = vld [vmem:[#allocation4 + $0x8] sm:$0xff]
    %v6606 = vld [vmem:[#allocation4 + $0x10] sm:$0xff]
    %v6607 = vld [vmem:[#allocation4 + $0x18] sm:$0xff]
    %v6608 = vld [vmem:[#allocation4 + $0x20] sm:$0xff]
    %v6609 = vld [vmem:[#allocation4 + $0x28] sm:$0xff]
    %v6610 = vld [vmem:[#allocation4 + $0x30] sm:$0xff]
    %v6611 = vld [vmem:[#allocation4 + $0x38] sm:$0xff]
    %v6612 = vld [vmem:[#allocation4 + $0x40] sm:$0xff]
    %v6613 = vld [vmem:[#allocation4 + $0x48] sm:$0xff]
    %v6614 = vld [vmem:[#allocation4 + $0x50] sm:$0xff]
    %v6615 = vld [vmem:[#allocation4 + $0x58] sm:$0xff]
    %v6616 = vld [vmem:[#allocation4 + $0x60] sm:$0xff]
    %v6617 = vld [vmem:[#allocation4 + $0x68] sm:$0xff]
    %v6618 = vld [vmem:[#allocation4 + $0x70] sm:$0xff]
    %v6619 = vld [vmem:[#allocation4 + $0x78] sm:$0xff]
    %s6620 = scalar_lea.vmem [#allocation18], 336
    %v6621 = vld [vmem:[%s6620] sm:$0xf]
    %v6622 = vld [vmem:[%s6620 + $0x4] sm:$0xf]
    %v6623 = vld [vmem:[%s6620 + $0x8] sm:$0xf]
    %v6624 = vld [vmem:[%s6620 + $0xc] sm:$0xf]
    %v6625 = vld [vmem:[%s6620 + $0x10] sm:$0xf]
    %v6626 = vld [vmem:[%s6620 + $0x14] sm:$0xf]
    %v6627 = vld [vmem:[%s6620 + $0x18] sm:$0xf]
    %v6628 = vld [vmem:[%s6620 + $0x1c] sm:$0xf]
    %v6629 = vld [vmem:[%s6620 + $0x20] sm:$0xf]
    %v6630 = vld [vmem:[%s6620 + $0x24] sm:$0xf]
    %v6631 = vld [vmem:[%s6620 + $0x28] sm:$0xf]
    %v6632 = vld [vmem:[%s6620 + $0x2c] sm:$0xf]
    %v6633 = vld [vmem:[%s6620 + $0x30] sm:$0xf]
    %v6634 = vld [vmem:[%s6620 + $0x34] sm:$0xf]
    %v6635 = vld [vmem:[%s6620 + $0x38] sm:$0xf]
    %v6636 = vld [vmem:[%s6620 + $0x3c] sm:$0xf]
    %v6637 = vld [vmem:[%s6620 + $0x40] sm:$0xf]
    %v6638 = vld [vmem:[%s6620 + $0x44] sm:$0xf]
    %v6639 = vld [vmem:[%s6620 + $0x48] sm:$0xf]
    %v6640 = vld [vmem:[%s6620 + $0x4c] sm:$0xf]
    %v6641 = vld [vmem:[%s6620 + $0x50] sm:$0xf]
    %v6642 = vld [vmem:[%s6620 + $0x54] sm:$0xf]
    %v6643 = vld [vmem:[%s6620 + $0x58] sm:$0xf]
    %v6644 = vld [vmem:[%s6620 + $0x5c] sm:$0xf]
    %v6645 = vld [vmem:[%s6620 + $0x60] sm:$0xf]
    %v6646 = vld [vmem:[%s6620 + $0x64] sm:$0xf]
    %v6647 = vld [vmem:[%s6620 + $0x68] sm:$0xf]
    %v6648 = vld [vmem:[%s6620 + $0x6c] sm:$0xf]
    %v6677 = vunpack.c.l.b16 %v6621
    %v6678 = vunpack.c.l.b16 %v6622
    %v6679 = vunpack.c.l.b16 %v6623
    %v6680 = vunpack.c.l.b16 %v6624
    %v6681 = vunpack.c.l.b16 %v6625
    %v6682 = vunpack.c.l.b16 %v6626
    %v6683 = vunpack.c.l.b16 %v6627
    %v6684 = vunpack.c.l.b16 %v6628
    %v6685 = vunpack.c.l.b16 %v6629
    %v6686 = vunpack.c.l.b16 %v6630
    %v6687 = vunpack.c.l.b16 %v6631
    %v6688 = vunpack.c.l.b16 %v6632
    %v6689 = vunpack.c.l.b16 %v6633
    %v6690 = vunpack.c.l.b16 %v6634
    %v6691 = vunpack.c.l.b16 %v6635
    %v6692 = vunpack.c.l.b16 %v6636
    %v6693 = vunpack.c.l.b16 %v6637
    %v6694 = vunpack.c.l.b16 %v6638
    %v6695 = vunpack.c.l.b16 %v6639
    %v6696 = vunpack.c.l.b16 %v6640
    %v6697 = vunpack.c.l.b16 %v6641
    %v6698 = vunpack.c.l.b16 %v6642
    %v6699 = vunpack.c.l.b16 %v6643
    %v6700 = vunpack.c.l.b16 %v6644
    %v6701 = vunpack.c.l.b16 %v6645
    %v6702 = vunpack.c.l.b16 %v6646
    %v6703 = vunpack.c.l.b16 %v6647
    %v6704 = vunpack.c.l.b16 %v6648
    %v6705 = vpack.c.b16 %v6678, %v6677
    %v6706 = vpack.c.b16 %v6680, %v6679
    %v6707 = vpack.c.b16 %v6682, %v6681
    %v6708 = vpack.c.b16 %v6684, %v6683
    %v6709 = vpack.c.b16 %v6686, %v6685
    %v6710 = vpack.c.b16 %v6688, %v6687
    %v6711 = vpack.c.b16 %v6690, %v6689
    %v6712 = vpack.c.b16 %v6692, %v6691
    %v6713 = vpack.c.b16 %v6694, %v6693
    %v6714 = vpack.c.b16 %v6696, %v6695
    %v6715 = vpack.c.b16 %v6698, %v6697
    %v6716 = vpack.c.b16 %v6700, %v6699
    %v6717 = vpack.c.b16 %v6702, %v6701
    %v6718 = vpack.c.b16 %v6704, %v6703
    %v6734 = vsel %vm1533, %v6605, 0
    %v6737 = vsel %vm1533, %v6607, 0
    %v6740 = vsel %vm1533, %v6609, 0
    %v6743 = vsel %vm1533, %v6611, 0
    %v6746 = vsel %vm1533, %v6613, 0
    %v6749 = vsel %vm1533, %v6615, 0
    %v6752 = vsel %vm1533, %v6617, 0
    %v6755 = vsel %vm1533, %v6619, 0
    %6757 = vmatprep.subr.bf16.mxu0 0
    %6758 = vmatpush1.bf16.msra.mxu0 %v6705
    %6759 = vmatprep.subr.bf16.mxu0 0
    %6760 = vmatpush1.bf16.msra.mxu0 %v6706
    %6761 = vmatprep.subr.bf16.mxu0 0
    %6762 = vmatpush1.bf16.msra.mxu0 %v6707
    %6763 = vmatprep.subr.bf16.mxu0 0
    %6764 = vmatpush1.bf16.msra.mxu0 %v6708
    %6765 = vmatprep.subr.bf16.mxu0 0
    %6766 = vmatpush1.bf16.msra.mxu0 %v6709
    %6767 = vmatprep.subr.bf16.mxu0 0
    %6768 = vmatpush1.bf16.msra.mxu0 %v6710
    %6769 = vmatprep.subr.bf16.mxu0 0
    %6770 = vmatpush1.bf16.msra.mxu0 %v6711
    %6771 = vmatprep.subr.bf16.mxu0 0
    %6772 = vmatpush1.bf16.msra.mxu0 %v6712
    %6773 = vmatprep.subr.bf16.mxu0 0
    %6774 = vmatpush1.bf16.msra.mxu0 %v6713
    %6775 = vmatprep.subr.bf16.mxu0 0
    %6776 = vmatpush1.bf16.msra.mxu0 %v6714
    %6777 = vmatprep.subr.bf16.mxu0 0
    %6778 = vmatpush1.bf16.msra.mxu0 %v6715
    %6779 = vmatprep.subr.bf16.mxu0 0
    %6780 = vmatpush1.bf16.msra.mxu0 %v6716
    %6781 = vmatprep.subr.bf16.mxu0 0
    %6782 = vmatpush1.bf16.msra.mxu0 %v6717
    %6783 = vmatprep.subr.bf16.mxu0 0
    %6784 = vmatpush1.bf16.msra.mxu0 %v6718
    %6785 = vmatprep.subr.bf16.mxu0 0
    %6786 = vmatpush1.bf16.msra.mxu0 0
    %6787 = vmatprep.subr.bf16.mxu0 0
    %6788 = vmatpush1.bf16.msra.mxu0 0
    %6789 = vmatprep.mubr.bf16.mxu0 %v6734
    %6790 = vmatmul.mubr.bf16.gmra.mrb[0].mxu0 %v6604
    %v6791 = vpop.f32.mrb[0].mxu0
    %v6792 = vadd.f32 0.0, %v6791
    %v6793 = vpop.f32.mrb[0].mxu0
    %v6794 = vpop.f32.mrb[0].mxu0
    %v6795 = vadd.f32 0.0, %v6794
    %v6796 = vpop.f32.mrb[0].mxu0
    %6797 = vmatprep.mubr.bf16.mxu0 %v6737
    %6798 = vmatmul.mubr.bf16.gmra.mrb[0].mxu0 %v6606
    %v6799 = vpop.f32.mrb[0].mxu0
    %v6800 = vadd.f32 0.0, %v6799
    %v6801 = vpop.f32.mrb[0].mxu0
    %v6802 = vpop.f32.mrb[0].mxu0
    %v6803 = vadd.f32 0.0, %v6802
    %v6804 = vpop.f32.mrb[0].mxu0
    %6805 = vmatprep.mubr.bf16.mxu0 %v6740
    %6806 = vmatmul.mubr.bf16.gmra.mrb[0].mxu0 %v6608
    %v6807 = vpop.f32.mrb[0].mxu0
    %v6808 = vadd.f32 0.0, %v6807
    %v6809 = vpop.f32.mrb[0].mxu0
    %v6810 = vpop.f32.mrb[0].mxu0
    %v6811 = vadd.f32 0.0, %v6810
    %v6812 = vpop.f32.mrb[0].mxu0
    %6813 = vmatprep.mubr.bf16.mxu0 %v6743
    %6814 = vmatmul.mubr.bf16.gmra.mrb[0].mxu0 %v6610
    %v6815 = vpop.f32.mrb[0].mxu0
    %v6816 = vadd.f32 0.0, %v6815
    %v6817 = vpop.f32.mrb[0].mxu0
    %v6818 = vpop.f32.mrb[0].mxu0
    %v6819 = vadd.f32 0.0, %v6818
    %v6820 = vpop.f32.mrb[0].mxu0
    %6821 = vmatprep.mubr.bf16.mxu0 %v6746
    %6822 = vmatmul.mubr.bf16.gmra.mrb[0].mxu0 %v6612
    %v6823 = vpop.f32.mrb[0].mxu0
    %v6824 = vadd.f32 0.0, %v6823
    %v6825 = vpop.f32.mrb[0].mxu0
    %v6826 = vpop.f32.mrb[0].mxu0
    %v6827 = vadd.f32 0.0, %v6826
    %v6828 = vpop.f32.mrb[0].mxu0
    %6829 = vmatprep.mubr.bf16.mxu0 %v6749
    %6830 = vmatmul.mubr.bf16.gmra.mrb[0].mxu0 %v6614
    %v6831 = vpop.f32.mrb[0].mxu0
    %v6832 = vadd.f32 0.0, %v6831
    %v6833 = vpop.f32.mrb[0].mxu0
    %v6834 = vpop.f32.mrb[0].mxu0
    %v6835 = vadd.f32 0.0, %v6834
    %v6836 = vpop.f32.mrb[0].mxu0
    %6837 = vmatprep.mubr.bf16.mxu0 %v6752
    %6838 = vmatmul.mubr.bf16.gmra.mrb[0].mxu0 %v6616
    %v6839 = vpop.f32.mrb[0].mxu0
    %v6840 = vadd.f32 0.0, %v6839
    %v6841 = vpop.f32.mrb[0].mxu0
    %v6842 = vpop.f32.mrb[0].mxu0
    %v6843 = vadd.f32 0.0, %v6842
    %v6844 = vpop.f32.mrb[0].mxu0
    %6845 = vmatprep.mubr.bf16.mxu0 %v6755
    %6846 = vmatmul.mubr.bf16.gmra.mrb[0].mxu0 %v6618
    %v6847 = vpop.f32.mrb[0].mxu0
    %v6848 = vadd.f32 0.0, %v6847
    %v6849 = vpop.f32.mrb[0].mxu0
    %v6850 = vpop.f32.mrb[0].mxu0
    %v6851 = vadd.f32 0.0, %v6850
    %v6852 = vpop.f32.mrb[0].mxu0
    %6853 = vdwg.mxu0
    %s6854 = scalar_lea.vmem [#allocation20], 3
    %v6855 = vld [vmem:[%s6854] sm:$0x1]
    %v6857 = vlaneseq
    %v6858 = vshrl.u32 %v6857, 7
    %v6859 = vsub.s32 0, %v6858
    %v6860 = vrot.slane %v6855, %v6859
    %v6862 = vmul.f32 %v6792, %v6860
    %v6863 = vmul.f32 %v6795, %v6860
    %v6864 = vmul.f32 %v6800, %v6860
    %v6865 = vmul.f32 %v6803, %v6860
    %v6866 = vmul.f32 %v6808, %v6860
    %v6867 = vmul.f32 %v6811, %v6860
    %v6868 = vmul.f32 %v6816, %v6860
    %v6869 = vmul.f32 %v6819, %v6860
    %v6870 = vmul.f32 %v6824, %v6860
    %v6871 = vmul.f32 %v6827, %v6860
    %v6872 = vmul.f32 %v6832, %v6860
    %v6873 = vmul.f32 %v6835, %v6860
    %v6874 = vmul.f32 %v6840, %v6860
    %v6875 = vmul.f32 %v6843, %v6860
    %v6876 = vmul.f32 %v6848, %v6860
    %v6877 = vmul.f32 %v6851, %v6860
    %s6878 = scalar_lea.vmem [#allocation21], 3
    %v6879 = vld [vmem:[%s6878] sm:$0x1]
    %v6881 = vlaneseq
    %v6882 = vshrl.u32 %v6881, 7
    %v6883 = vsub.s32 0, %v6882
    %v6884 = vrot.slane %v6879, %v6883
    %v6886 = vadd.f32 %v6862, %v6884
    %v6887 = vadd.f32 %v6863, %v6884
    %v6888 = vadd.f32 %v6864, %v6884
    %v6889 = vadd.f32 %v6865, %v6884
    %v6890 = vadd.f32 %v6866, %v6884
    %v6891 = vadd.f32 %v6867, %v6884
    %v6892 = vadd.f32 %v6868, %v6884
    %v6893 = vadd.f32 %v6869, %v6884
    %v6894 = vadd.f32 %v6870, %v6884
    %v6895 = vadd.f32 %v6871, %v6884
    %v6896 = vadd.f32 %v6872, %v6884
    %v6897 = vadd.f32 %v6873, %v6884
    %v6898 = vadd.f32 %v6874, %v6884
    %v6899 = vadd.f32 %v6875, %v6884
    %v6900 = vadd.f32 %v6876, %v6884
    %v6901 = vadd.f32 %v6877, %v6884
    %v6902 = vmax.f32 %v6886, 0.0
    %v6903 = vmax.f32 %v6887, 0.0
    %v6904 = vmax.f32 %v6888, 0.0
    %v6905 = vmax.f32 %v6889, 0.0
    %v6906 = vmax.f32 %v6890, 0.0
    %v6907 = vmax.f32 %v6891, 0.0
    %v6908 = vmax.f32 %v6892, 0.0
    %v6909 = vmax.f32 %v6893, 0.0
    %v6910 = vmax.f32 %v6894, 0.0
    %v6911 = vmax.f32 %v6895, 0.0
    %v6912 = vmax.f32 %v6896, 0.0
    %v6913 = vmax.f32 %v6897, 0.0
    %v6914 = vmax.f32 %v6898, 0.0
    %v6915 = vmax.f32 %v6899, 0.0
    %v6916 = vmax.f32 %v6900, 0.0
    %v6917 = vmax.f32 %v6901, 0.0
    %v6918 = vpack.c.bf16 %v6903, %v6902
    %v6919 = vpack.c.bf16 %v6905, %v6904
    %v6920 = vpack.c.bf16 %v6907, %v6906
    %v6921 = vpack.c.bf16 %v6909, %v6908
    %v6922 = vpack.c.bf16 %v6911, %v6910
    %v6923 = vpack.c.bf16 %v6913, %v6912
    %v6924 = vpack.c.bf16 %v6915, %v6914
    %v6925 = vpack.c.bf16 %v6917, %v6916
    %v6934 = vunpack.c.l.b16 %v6918
    %v6935 = vunpack.c.h.b16 %v6918
    %v6936 = vunpack.c.l.b16 %v6919
    %v6937 = vunpack.c.h.b16 %v6919
    %v6938 = vunpack.c.l.b16 %v6920
    %v6939 = vunpack.c.h.b16 %v6920
    %v6940 = vunpack.c.l.b16 %v6921
    %v6941 = vunpack.c.h.b16 %v6921
    %v6942 = vunpack.c.l.b16 %v6922
    %v6943 = vunpack.c.h.b16 %v6922
    %v6944 = vunpack.c.l.b16 %v6923
    %v6945 = vunpack.c.h.b16 %v6923
    %v6946 = vunpack.c.l.b16 %v6924
    %v6947 = vunpack.c.h.b16 %v6924
    %v6948 = vunpack.c.l.b16 %v6925
    %v6949 = vunpack.c.h.b16 %v6925
    %v6950 = vpack.c.b16 %v6934, %v6934
    %v6951 = vpack.c.b16 %v6935, %v6935
    %v6952 = vpack.c.b16 %v6936, %v6936
    %v6953 = vpack.c.b16 %v6937, %v6937
    %v6954 = vpack.c.b16 %v6938, %v6938
    %v6955 = vpack.c.b16 %v6939, %v6939
    %v6956 = vpack.c.b16 %v6940, %v6940
    %v6957 = vpack.c.b16 %v6941, %v6941
    %v6958 = vpack.c.b16 %v6942, %v6942
    %v6959 = vpack.c.b16 %v6943, %v6943
    %v6960 = vpack.c.b16 %v6944, %v6944
    %v6961 = vpack.c.b16 %v6945, %v6945
    %v6962 = vpack.c.b16 %v6946, %v6946
    %v6963 = vpack.c.b16 %v6947, %v6947
    %v6964 = vpack.c.b16 %v6948, %v6948
    %v6965 = vpack.c.b16 %v6949, %v6949
    %6966 = vrot.lane.b32.xlu0 %v6950, 96
    %v6967 = vpop.permute.xlu0 %6966
    %6968 = vrot.lane.b32.xlu0 %v6951, 96
    %v6969 = vpop.permute.xlu0 %6968
    %6970 = vrot.lane.b32.xlu0 %v6952, 96
    %v6971 = vpop.permute.xlu0 %6970
    %6972 = vrot.lane.b32.xlu0 %v6953, 96
    %v6973 = vpop.permute.xlu0 %6972
    %6974 = vrot.lane.b32.xlu0 %v6954, 96
    %v6975 = vpop.permute.xlu0 %6974
    %6976 = vrot.lane.b32.xlu0 %v6955, 96
    %v6977 = vpop.permute.xlu0 %6976
    %6978 = vrot.lane.b32.xlu0 %v6956, 96
    %v6979 = vpop.permute.xlu0 %6978
    %6980 = vrot.lane.b32.xlu0 %v6957, 96
    %v6981 = vpop.permute.xlu0 %6980
    %6982 = vrot.lane.b32.xlu0 %v6958, 96
    %v6983 = vpop.permute.xlu0 %6982
    %6984 = vrot.lane.b32.xlu0 %v6959, 96
    %v6985 = vpop.permute.xlu0 %6984
    %6986 = vrot.lane.b32.xlu0 %v6960, 96
    %v6987 = vpop.permute.xlu0 %6986
    %6988 = vrot.lane.b32.xlu0 %v6961, 96
    %v6989 = vpop.permute.xlu0 %6988
    %6990 = vrot.lane.b32.xlu0 %v6962, 96
    %v6991 = vpop.permute.xlu0 %6990
    %6992 = vrot.lane.b32.xlu0 %v6963, 96
    %v6993 = vpop.permute.xlu0 %6992
    %6994 = vrot.lane.b32.xlu0 %v6964, 96
    %v6995 = vpop.permute.xlu0 %6994
    %6996 = vrot.lane.b32.xlu0 %v6965, 96
    %v6997 = vpop.permute.xlu0 %6996
    %vm7014 = vcmask 1044224
    %7015 = vst.msk [vmem:[#allocation23] sm:$0xf] %vm7014, %v6967
    %7016 = vst.msk [vmem:[#allocation23 + $0x4] sm:$0xf] %vm7014, %v6969
    %7017 = vst.msk [vmem:[#allocation23 + $0x8] sm:$0xf] %vm7014, %v6971
    %7018 = vst.msk [vmem:[#allocation23 + $0xc] sm:$0xf] %vm7014, %v6973
    %7019 = vst.msk [vmem:[#allocation23 + $0x10] sm:$0xf] %vm7014, %v6975
    %7020 = vst.msk [vmem:[#allocation23 + $0x14] sm:$0xf] %vm7014, %v6977
    %7021 = vst.msk [vmem:[#allocation23 + $0x18] sm:$0xf] %vm7014, %v6979
    %7022 = vst.msk [vmem:[#allocation23 + $0x1c] sm:$0xf] %vm7014, %v6981
    %7023 = vst.msk [vmem:[#allocation23 + $0x20] sm:$0xf] %vm7014, %v6983
    %7024 = vst.msk [vmem:[#allocation23 + $0x24] sm:$0xf] %vm7014, %v6985
    %7025 = vst.msk [vmem:[#allocation23 + $0x28] sm:$0xf] %vm7014, %v6987
    %7026 = vst.msk [vmem:[#allocation23 + $0x2c] sm:$0xf] %vm7014, %v6989
    %7027 = vst.msk [vmem:[#allocation23 + $0x30] sm:$0xf] %vm7014, %v6991
    %7028 = vst.msk [vmem:[#allocation23 + $0x34] sm:$0xf] %vm7014, %v6993
    %7029 = vst.msk [vmem:[#allocation23 + $0x38] sm:$0xf] %vm7014, %v6995
    %7030 = vst.msk [vmem:[#allocation23 + $0x3c] sm:$0xf] %vm7014, %v6997
    // Predicated region
    $region82: #{tpu_custom_call.1} parent=1 // pred_check
      _
    $region83: #{tpu_custom_call.1} parent=1 // pred_check_branch
      %7032 = sbr.rel (0) target = $region85
    $region84: #{tpu_custom_call.1} parent=1 // pred_region
      %s7034 = ssub.s32 1024, 1024
      %7035 = vsyncadd [#allocation8], %s7034
      %s7036 = sshll.u32 [#allocation23], 4
      %s7037 = int_to_ptr.vmem [resolvable:$true] %s7036
      %7042 = dma.vmem_to_hbm [thread:$0]  %s7037, 1024, %s10, [#allocation8], 64, 64, 4
    $region85: #{tpu_custom_call.1} parent=1 // pred_fallthru
      _
    // Predicated region
    $region86: #{tpu_custom_call.1} parent=1 // pred_check
      _
    $region87: #{tpu_custom_call.1} parent=1 // pred_check_branch
      %7044 = sbr.rel (0) target = $region89
    $region88: #{tpu_custom_call.1} parent=1 // pred_region
      %7045 = dma.done [#allocation8], 1024
    $region89: #{tpu_custom_call.1} parent=1 // pred_fallthru
      _
    %7046 = vsyncpa [#allocation7], 1
    %7047 = vsyncpa [#allocation10], 1
    %7048 = vsyncpa [#allocation13], 1
    %7049 = vsyncpa [#allocation16], 1
    %7050 = vsyncpa [#allocation19], 1
    %7051 = vsyncpa [#allocation22], 1
    %7052 = vsyncpa [#allocation8], 1

</llo_original>
